<compile_context>
chip_gen: v6e
topology: v6e:2x2x1
jax: 0.10.0
libtpu: 0.0.40
codegen_flags: <defaults>
</compile_context>

<pallas_src>
import jax
import jax.numpy as jnp
from jax.experimental import pallas as pl
from jax.experimental.pallas import tpu as pltpu

_CHANNELS = [(3, 32), (32, 64), (64, 64), (64, 128), (128, 256), (256, 512)]
_NEG_SLOPE = 0.2


def _leaky(x):
    return jnp.where(x > 0, x, _NEG_SLOPE * x)


# ----------------------------------------------------------------------------
# Fused kernel: all six conv+LeakyReLU layers for B images per grid step.
# ----------------------------------------------------------------------------
def _disc_kernel(p_ref,
                 w1, w2, w3, w4, w5, w6,
                 b1, b2, b3, b4, b5, b6,
                 o_ref,
                 a2, a3, a4, a5, a6):
    B = p_ref.shape[0]

    # Zero only the border row 0 / column 0 of each padded scratch buffer
    # (with stride-2 / pad-1 / even sizes the bottom/right padding is never
    # read, and the interior is fully overwritten every grid step).
    for s in (a2, a3, a4, a5, a6):
        S, C = s.shape[1], s.shape[3]
        z = jnp.zeros((B, S, C), s.dtype)
        s[:, 0, :, :] = z            # top padding row
        s[:, :, 0, :] = z            # left padding column

    def conv(x_mk, w_ref, b_ref):
        # single K-concatenated GEMM (bf16 operands, f32 accumulate)
        y = jnp.dot(x_mk.astype(jnp.bfloat16), w_ref[...],
                    preferred_element_type=jnp.float32)
        return _leaky(y + b_ref[...])

    def gather_taps(act_ref, oh):
        # in-VMEM im2col: K = 9 * cin, tap-major / channel-minor ordering
        cin = act_ref.shape[3]
        if oh == 1:
            taps = [act_ref[:, di, dj, :]
                    for di in range(3) for dj in range(3)]
            return jnp.concatenate(taps, axis=-1)                 # (B, 9*cin)
        taps = [act_ref[:, pl.ds(di, oh, stride=2), pl.ds(dj, oh, stride=2), :]
                for di in range(3) for dj in range(3)]
        return jnp.concatenate(taps, axis=-1).reshape(B * oh * oh, 9 * cin)

    # ---- layer 1: wrapper-side im2col patches (B*1024, 27) -> (B,32,32,32)
    y = conv(p_ref[...].reshape(B * 1024, p_ref.shape[2]), w1, b1)
    a2[:, 1:33, 1:33, :] = y.astype(a2.dtype).reshape(B, 32, 32, 32)

    # ---- layer 2: (B,34,34,32) -> (B,16,16,64)
    y = conv(gather_taps(a2, 16), w2, b2)
    a3[:, 1:17, 1:17, :] = y.astype(a3.dtype).reshape(B, 16, 16, 64)

    # ---- layer 3: (B,18,18,64) -> (B,8,8,64)
    y = conv(gather_taps(a3, 8), w3, b3)
    a4[:, 1:9, 1:9, :] = y.astype(a4.dtype).reshape(B, 8, 8, 64)

    # ---- layer 4: (B,10,10,64) -> (B,4,4,128)
    y = conv(gather_taps(a4, 4), w4, b4)
    a5[:, 1:5, 1:5, :] = y.astype(a5.dtype).reshape(B, 4, 4, 128)

    # ---- layer 5: (B,6,6,128) -> (B,2,2,256)
    y = conv(gather_taps(a5, 2), w5, b5)
    a6[:, 1:3, 1:3, :] = y.astype(a6.dtype).reshape(B, 2, 2, 256)

    # ---- layer 6: (B,4,4,256) -> (B,512), written straight to the output
    y = conv(gather_taps(a6, 1), w6, b6)                          # (B, 512) f32
    o_ref[0] = y


# ----------------------------------------------------------------------------
# Wrapper
# ----------------------------------------------------------------------------
def _layer1_patches(x):
    """XLA-side im2col for layer 1: (N,64,64,3) -> (N,1024,27) bf16 patches."""
    n = x.shape[0]
    xp = jnp.pad(x, ((0, 0), (1, 1), (1, 1), (0, 0)))
    taps = [xp[:, di:di + 64:2, dj:dj + 64:2, :]
            for di in range(3) for dj in range(3)]
    p = jnp.concatenate(taps, axis=-1)                    # (N, 32, 32, 27)
    return p.reshape(n, 32 * 32, 27).astype(jnp.bfloat16)


@jax.jit
def discriminator_output(params, Ix, Iy, Iz):
    """A_DiscriminatorOutput forward pass (fused Pallas kernel)."""
    x = jnp.concatenate([Ix, Iy, Iz], axis=1)                 # (N, 3, 64, 64)
    x = jnp.transpose(x, (0, 2, 3, 1)).astype(jnp.float32)    # NHWC
    n, h, w, c = x.shape
    assert (h, w, c) == (64, 64, 3), "fused kernel is specialized to 64x64x3"

    patches = _layer1_patches(x)                              # (N, 1024, 27)

    # B images per grid step (fold into GEMM M); keep grid >= 2 for v7x cores.
    B = 1 if n <= 1 else min(8, n // 2)
    n_pad = -(-n // B) * B
    if n_pad != n:
        patches = jnp.pad(patches, ((0, n_pad - n), (0, 0), (0, 0)))
    g = n_pad // B

    ws, bs = [], []
    for (wgt, bias), (cin, cout) in zip(params, _CHANNELS):
        ws.append(wgt.reshape(9 * cin, cout).astype(jnp.bfloat16))  # HWIO -> K,C
        bs.append(bias.reshape(1, cout).astype(jnp.float32))

    flops, s = 0, 64
    for cin, cout in _CHANNELS:
        s //= 2
        flops += 2 * n_pad * s * s * 9 * cin * cout
    bytes_accessed = (patches.size * 2 + sum(wi.size * 2 for wi in ws)
                      + sum(bi.size * 4 for bi in bs) + n_pad * 512 * 4)

    out = pl.pallas_call(
        _disc_kernel,
        out_shape=jax.ShapeDtypeStruct((g, B, 512), jnp.float32),
        grid=(g,),
        in_specs=(
            [pl.BlockSpec((B, 1024, 27), lambda i: (i, 0, 0))]
            + [pl.BlockSpec(wi.shape, lambda i: (0, 0)) for wi in ws]
            + [pl.BlockSpec(bi.shape, lambda i: (0, 0)) for bi in bs]
        ),
        out_specs=pl.BlockSpec((1, B, 512), lambda i: (i, 0, 0)),
        scratch_shapes=[
            pltpu.VMEM((B, 34, 34, 32), jnp.float32),   # layer-2 input (padded)
            pltpu.VMEM((B, 18, 18, 64), jnp.float32),   # layer-3 input
            pltpu.VMEM((B, 10, 10, 64), jnp.float32),   # layer-4 input
            pltpu.VMEM((B, 6, 6, 128), jnp.float32),    # layer-5 input
            pltpu.VMEM((B, 4, 4, 256), jnp.float32),    # layer-6 input
        ],
        compiler_params=pltpu.CompilerParams(
            dimension_semantics=("parallel",),
            vmem_limit_bytes=32 * 1024 * 1024,
        ),
        cost_estimate=pl.CostEstimate(flops=flops, transcendentals=0,
                                      bytes_accessed=bytes_accessed),
    )(patches, *ws, *bs)

    out = out.reshape(n_pad, 512)[:n]
    # MaxPool2d((1, 1)) is the identity; mirror torch's .squeeze().
    return jnp.squeeze(out)


# ----------------------------------------------------------------------------
# Parameter init (deterministic, PyTorch-Conv2d-like uniform bounds, HWIO)
# ----------------------------------------------------------------------------
def init_params(key, k=3):
    params = []
    for (cin, cout) in _CHANNELS:
        key, kw_, kb_ = jax.random.split(key, 3)
        fan_in = cin * k * k
        bound = 1.0 / (fan_in ** 0.5)
        w = jax.random.uniform(kw_, (k, k, cin, cout), jnp.float32,
                               minval=-bound, maxval=bound)
        b = jax.random.uniform(kb_, (cout,), jnp.float32,
                               minval=-bound, maxval=bound)
        params.append((w, b))
    return params


if __name__ == "__main__":
    key = jax.random.PRNGKey(0)
    kp, kx, ky, kz = jax.random.split(key, 4)

    params = init_params(kp)

    N, H, W = 2, 64, 64
    Ix = jax.random.normal(kx, (N, 1, H, W), jnp.float32)
    Iy = jax.random.normal(ky, (N, 1, H, W), jnp.float32)
    Iz = jax.random.normal(kz, (N, 1, H, W), jnp.float32)

    g_adv = discriminator_output(params, Ix, Iy, Iz)
    g_adv = jax.block_until_ready(g_adv)

    assert g_adv.shape == (N, 512), g_adv.shape
    print("KERNEL_OK")
</pallas_src>

<mosaic_0001>
module attributes {stable_mosaic.version = 11 : i64} {
  func.func @_disc_kernel(%arg0: i32, %arg1: memref<1x1024x27xbf16, #tpu.memory_space<vmem>>, %arg2: memref<27x32xbf16, #tpu.memory_space<vmem>>, %arg3: memref<288x64xbf16, #tpu.memory_space<vmem>>, %arg4: memref<576x64xbf16, #tpu.memory_space<vmem>>, %arg5: memref<576x128xbf16, #tpu.memory_space<vmem>>, %arg6: memref<1152x256xbf16, #tpu.memory_space<vmem>>, %arg7: memref<2304x512xbf16, #tpu.memory_space<vmem>>, %arg8: memref<1x32xf32, #tpu.memory_space<vmem>>, %arg9: memref<1x64xf32, #tpu.memory_space<vmem>>, %arg10: memref<1x64xf32, #tpu.memory_space<vmem>>, %arg11: memref<1x128xf32, #tpu.memory_space<vmem>>, %arg12: memref<1x256xf32, #tpu.memory_space<vmem>>, %arg13: memref<1x512xf32, #tpu.memory_space<vmem>>, %arg14: memref<1x1x512xf32, #tpu.memory_space<vmem>>, %arg15: memref<1x34x34x32xf32, #tpu.memory_space<vmem>>, %arg16: memref<1x18x18x64xf32, #tpu.memory_space<vmem>>, %arg17: memref<1x10x10x64xf32, #tpu.memory_space<vmem>>, %arg18: memref<1x6x6x128xf32, #tpu.memory_space<vmem>>, %arg19: memref<1x4x4x256xf32, #tpu.memory_space<vmem>>) attributes {dimension_semantics = [#tpu.dimension_semantics<parallel>], iteration_bounds = array<i64: 2>, scalar_prefetch = 0 : i64, scratch_operands = 5 : i64, tpu.core_type = #tpu.core_type<tc>, window_params = [{transform_indices = @transform_0, window_bounds = array<i64: 1, 1024, 27>}, {pipeline_mode = #tpu.pipeline_mode<synchronous>, transform_indices = @transform_1, window_bounds = array<i64: 27, 32>}, {pipeline_mode = #tpu.pipeline_mode<synchronous>, transform_indices = @transform_2, window_bounds = array<i64: 288, 64>}, {pipeline_mode = #tpu.pipeline_mode<synchronous>, transform_indices = @transform_3, window_bounds = array<i64: 576, 64>}, {pipeline_mode = #tpu.pipeline_mode<synchronous>, transform_indices = @transform_4, window_bounds = array<i64: 576, 128>}, {pipeline_mode = #tpu.pipeline_mode<synchronous>, transform_indices = @transform_5, window_bounds = array<i64: 1152, 256>}, {pipeline_mode = #tpu.pipeline_mode<synchronous>, transform_indices = @transform_6, window_bounds = array<i64: 2304, 512>}, {pipeline_mode = #tpu.pipeline_mode<synchronous>, transform_indices = @transform_7, window_bounds = array<i64: 1, 32>}, {pipeline_mode = #tpu.pipeline_mode<synchronous>, transform_indices = @transform_8, window_bounds = array<i64: 1, 64>}, {pipeline_mode = #tpu.pipeline_mode<synchronous>, transform_indices = @transform_9, window_bounds = array<i64: 1, 64>}, {pipeline_mode = #tpu.pipeline_mode<synchronous>, transform_indices = @transform_10, window_bounds = array<i64: 1, 128>}, {pipeline_mode = #tpu.pipeline_mode<synchronous>, transform_indices = @transform_11, window_bounds = array<i64: 1, 256>}, {pipeline_mode = #tpu.pipeline_mode<synchronous>, transform_indices = @transform_12, window_bounds = array<i64: 1, 512>}, {transform_indices = @transform_13, window_bounds = array<i64: 1, 1, 512>}]} {
    %cst = arith.constant 0.000000e+00 : f32
    %0 = vector.broadcast %cst : f32 to vector<1x34x32xf32>
    %c0 = arith.constant 0 : index
    %c0_0 = arith.constant 0 : index
    %c0_1 = arith.constant 0 : index
    %c0_2 = arith.constant 0 : index
    %1 = vector.load %arg15[%c0, %c0_0, %c0_1, %c0_2] : memref<1x34x34x32xf32, #tpu.memory_space<vmem>>, vector<1x1x34x32xf32>
    %2 = vector.shape_cast %1 : vector<1x1x34x32xf32> to vector<1x34x32xf32>
    %3 = vector.shape_cast %0 : vector<1x34x32xf32> to vector<1x1x34x32xf32>
    tpu.vector_store %arg15[%c0, %c0_0, %c0_1, %c0_2], %3 {strides = array<i32>} : memref<1x34x34x32xf32, #tpu.memory_space<vmem>>, vector<1x1x34x32xf32>,
    %c0_3 = arith.constant 0 : index
    %c0_4 = arith.constant 0 : index
    %c0_5 = arith.constant 0 : index
    %c0_6 = arith.constant 0 : index
    %4 = vector.load %arg15[%c0_3, %c0_4, %c0_5, %c0_6] : memref<1x34x34x32xf32, #tpu.memory_space<vmem>>, vector<1x34x1x32xf32>
    %5 = vector.shape_cast %4 : vector<1x34x1x32xf32> to vector<1x34x32xf32>
    %6 = vector.shape_cast %0 : vector<1x34x32xf32> to vector<1x34x1x32xf32>
    tpu.vector_store %arg15[%c0_3, %c0_4, %c0_5, %c0_6], %6 {strides = array<i32>} : memref<1x34x34x32xf32, #tpu.memory_space<vmem>>, vector<1x34x1x32xf32>,
    %cst_7 = arith.constant 0.000000e+00 : f32
    %7 = vector.broadcast %cst_7 : f32 to vector<1x18x64xf32>
    %c0_8 = arith.constant 0 : index
    %c0_9 = arith.constant 0 : index
    %c0_10 = arith.constant 0 : index
    %c0_11 = arith.constant 0 : index
    %8 = vector.load %arg16[%c0_8, %c0_9, %c0_10, %c0_11] : memref<1x18x18x64xf32, #tpu.memory_space<vmem>>, vector<1x1x18x64xf32>
    %9 = vector.shape_cast %8 : vector<1x1x18x64xf32> to vector<1x18x64xf32>
    %10 = vector.shape_cast %7 : vector<1x18x64xf32> to vector<1x1x18x64xf32>
    tpu.vector_store %arg16[%c0_8, %c0_9, %c0_10, %c0_11], %10 {strides = array<i32>} : memref<1x18x18x64xf32, #tpu.memory_space<vmem>>, vector<1x1x18x64xf32>,
    %c0_12 = arith.constant 0 : index
    %c0_13 = arith.constant 0 : index
    %c0_14 = arith.constant 0 : index
    %c0_15 = arith.constant 0 : index
    %11 = vector.load %arg16[%c0_12, %c0_13, %c0_14, %c0_15] : memref<1x18x18x64xf32, #tpu.memory_space<vmem>>, vector<1x18x1x64xf32>
    %12 = vector.shape_cast %11 : vector<1x18x1x64xf32> to vector<1x18x64xf32>
    %13 = vector.shape_cast %7 : vector<1x18x64xf32> to vector<1x18x1x64xf32>
    tpu.vector_store %arg16[%c0_12, %c0_13, %c0_14, %c0_15], %13 {strides = array<i32>} : memref<1x18x18x64xf32, #tpu.memory_space<vmem>>, vector<1x18x1x64xf32>,
    %cst_16 = arith.constant 0.000000e+00 : f32
    %14 = vector.broadcast %cst_16 : f32 to vector<1x10x64xf32>
    %c0_17 = arith.constant 0 : index
    %c0_18 = arith.constant 0 : index
    %c0_19 = arith.constant 0 : index
    %c0_20 = arith.constant 0 : index
    %15 = vector.load %arg17[%c0_17, %c0_18, %c0_19, %c0_20] : memref<1x10x10x64xf32, #tpu.memory_space<vmem>>, vector<1x1x10x64xf32>
    %16 = vector.shape_cast %15 : vector<1x1x10x64xf32> to vector<1x10x64xf32>
    %17 = vector.shape_cast %14 : vector<1x10x64xf32> to vector<1x1x10x64xf32>
    tpu.vector_store %arg17[%c0_17, %c0_18, %c0_19, %c0_20], %17 {strides = array<i32>} : memref<1x10x10x64xf32, #tpu.memory_space<vmem>>, vector<1x1x10x64xf32>,
    %c0_21 = arith.constant 0 : index
    %c0_22 = arith.constant 0 : index
    %c0_23 = arith.constant 0 : index
    %c0_24 = arith.constant 0 : index
    %18 = vector.load %arg17[%c0_21, %c0_22, %c0_23, %c0_24] : memref<1x10x10x64xf32, #tpu.memory_space<vmem>>, vector<1x10x1x64xf32>
    %19 = vector.shape_cast %18 : vector<1x10x1x64xf32> to vector<1x10x64xf32>
    %20 = vector.shape_cast %14 : vector<1x10x64xf32> to vector<1x10x1x64xf32>
    tpu.vector_store %arg17[%c0_21, %c0_22, %c0_23, %c0_24], %20 {strides = array<i32>} : memref<1x10x10x64xf32, #tpu.memory_space<vmem>>, vector<1x10x1x64xf32>,
    %cst_25 = arith.constant 0.000000e+00 : f32
    %21 = vector.broadcast %cst_25 : f32 to vector<1x6x128xf32>
    %c0_26 = arith.constant 0 : index
    %c0_27 = arith.constant 0 : index
    %c0_28 = arith.constant 0 : index
    %c0_29 = arith.constant 0 : index
    %22 = vector.load %arg18[%c0_26, %c0_27, %c0_28, %c0_29] : memref<1x6x6x128xf32, #tpu.memory_space<vmem>>, vector<1x1x6x128xf32>
    %23 = vector.shape_cast %22 : vector<1x1x6x128xf32> to vector<1x6x128xf32>
    %24 = vector.shape_cast %21 : vector<1x6x128xf32> to vector<1x1x6x128xf32>
    tpu.vector_store %arg18[%c0_26, %c0_27, %c0_28, %c0_29], %24 {strides = array<i32>} : memref<1x6x6x128xf32, #tpu.memory_space<vmem>>, vector<1x1x6x128xf32>,
    %c0_30 = arith.constant 0 : index
    %c0_31 = arith.constant 0 : index
    %c0_32 = arith.constant 0 : index
    %c0_33 = arith.constant 0 : index
    %25 = vector.load %arg18[%c0_30, %c0_31, %c0_32, %c0_33] : memref<1x6x6x128xf32, #tpu.memory_space<vmem>>, vector<1x6x1x128xf32>
    %26 = vector.shape_cast %25 : vector<1x6x1x128xf32> to vector<1x6x128xf32>
    %27 = vector.shape_cast %21 : vector<1x6x128xf32> to vector<1x6x1x128xf32>
    tpu.vector_store %arg18[%c0_30, %c0_31, %c0_32, %c0_33], %27 {strides = array<i32>} : memref<1x6x6x128xf32, #tpu.memory_space<vmem>>, vector<1x6x1x128xf32>,
    %cst_34 = arith.constant 0.000000e+00 : f32
    %28 = vector.broadcast %cst_34 : f32 to vector<1x4x256xf32>
    %c0_35 = arith.constant 0 : index
    %c0_36 = arith.constant 0 : index
    %c0_37 = arith.constant 0 : index
    %c0_38 = arith.constant 0 : index
    %29 = vector.load %arg19[%c0_35, %c0_36, %c0_37, %c0_38] : memref<1x4x4x256xf32, #tpu.memory_space<vmem>>, vector<1x1x4x256xf32>
    %30 = vector.shape_cast %29 : vector<1x1x4x256xf32> to vector<1x4x256xf32>
    %31 = vector.shape_cast %28 : vector<1x4x256xf32> to vector<1x1x4x256xf32>
    tpu.vector_store %arg19[%c0_35, %c0_36, %c0_37, %c0_38], %31 {strides = array<i32>} : memref<1x4x4x256xf32, #tpu.memory_space<vmem>>, vector<1x1x4x256xf32>,
    %c0_39 = arith.constant 0 : index
    %c0_40 = arith.constant 0 : index
    %c0_41 = arith.constant 0 : index
    %c0_42 = arith.constant 0 : index
    %32 = vector.load %arg19[%c0_39, %c0_40, %c0_41, %c0_42] : memref<1x4x4x256xf32, #tpu.memory_space<vmem>>, vector<1x4x1x256xf32>
    %33 = vector.shape_cast %32 : vector<1x4x1x256xf32> to vector<1x4x256xf32>
    %34 = vector.shape_cast %28 : vector<1x4x256xf32> to vector<1x4x1x256xf32>
    tpu.vector_store %arg19[%c0_39, %c0_40, %c0_41, %c0_42], %34 {strides = array<i32>} : memref<1x4x4x256xf32, #tpu.memory_space<vmem>>, vector<1x4x1x256xf32>,
    %c0_43 = arith.constant 0 : index
    %c0_44 = arith.constant 0 : index
    %c0_45 = arith.constant 0 : index
    %35 = vector.load %arg1[%c0_43, %c0_44, %c0_45] : memref<1x1024x27xbf16, #tpu.memory_space<vmem>>, vector<1x1024x27xbf16>
    %36 = vector.shape_cast %35 : vector<1x1024x27xbf16> to vector<1024x27xbf16>
    %c0_46 = arith.constant 0 : index
    %c0_47 = arith.constant 0 : index
    %37 = vector.load %arg2[%c0_46, %c0_47] : memref<27x32xbf16, #tpu.memory_space<vmem>>, vector<27x32xbf16>
    %cst_48 = arith.constant dense<0.000000e+00> : vector<1024x32xf32>
    %38 = tpu.matmul %36, %37, %cst_48 {dimension_numbers = #tpu.dot_dimension_numbers<[1], [0], [0], [1], [0, 0, 1, 1], [], []>} : vector<1024x27xbf16>, vector<27x32xbf16>, vector<1024x32xf32> -> vector<1024x32xf32>
    %c0_49 = arith.constant 0 : index
    %c0_50 = arith.constant 0 : index
    %39 = vector.load %arg8[%c0_49, %c0_50] : memref<1x32xf32, #tpu.memory_space<vmem>>, vector<1x32xf32>
    %40 = vector.broadcast %39 : vector<1x32xf32> to vector<1024x32xf32>
    %41 = arith.addf %38, %40 : vector<1024x32xf32>
    %cst_51 = arith.constant 0.000000e+00 : f32
    %42 = vector.broadcast %cst_51 : f32 to vector<1024x32xf32>
    %43 = arith.cmpf ogt, %41, %42 : vector<1024x32xf32>
    %cst_52 = arith.constant 2.000000e-01 : f32
    %44 = vector.broadcast %cst_52 : f32 to vector<1024x32xf32>
    %45 = arith.mulf %44, %41 : vector<1024x32xf32>
    %46 = arith.select %43, %41, %45 : vector<1024x32xi1>, vector<1024x32xf32>
    %47 = vector.shape_cast %46 : vector<1024x32xf32> to vector<1x32x32x32xf32>
    %c0_53 = arith.constant 0 : index
    %c1 = arith.constant 1 : index
    %c1_54 = arith.constant 1 : index
    %c0_55 = arith.constant 0 : index
    %48 = vector.load %arg15[%c0_53, %c1, %c1_54, %c0_55] : memref<1x34x34x32xf32, #tpu.memory_space<vmem>>, vector<1x32x32x32xf32>
    tpu.vector_store %arg15[%c0_53, %c1, %c1_54, %c0_55], %47 {strides = array<i32>} : memref<1x34x34x32xf32, #tpu.memory_space<vmem>>, vector<1x32x32x32xf32>,
    %c0_56 = arith.constant 0 : index
    %c0_57 = arith.constant 0 : index
    %c0_58 = arith.constant 0 : index
    %c0_59 = arith.constant 0 : index
    %49 = tpu.strided_load %arg15[%c0_56, %c0_57, %c0_58, %c0_59] {strides = array<i32: 1, 2, 2, 1>} : memref<1x34x34x32xf32, #tpu.memory_space<vmem>>, vector<1x16x16x32xf32>
    %c0_60 = arith.constant 0 : index
    %c0_61 = arith.constant 0 : index
    %c1_62 = arith.constant 1 : index
    %c0_63 = arith.constant 0 : index
    %50 = tpu.strided_load %arg15[%c0_60, %c0_61, %c1_62, %c0_63] {strides = array<i32: 1, 2, 2, 1>} : memref<1x34x34x32xf32, #tpu.memory_space<vmem>>, vector<1x16x16x32xf32>
    %c0_64 = arith.constant 0 : index
    %c0_65 = arith.constant 0 : index
    %c2 = arith.constant 2 : index
    %c0_66 = arith.constant 0 : index
    %51 = tpu.strided_load %arg15[%c0_64, %c0_65, %c2, %c0_66] {strides = array<i32: 1, 2, 2, 1>} : memref<1x34x34x32xf32, #tpu.memory_space<vmem>>, vector<1x16x16x32xf32>
    %c0_67 = arith.constant 0 : index
    %c1_68 = arith.constant 1 : index
    %c0_69 = arith.constant 0 : index
    %c0_70 = arith.constant 0 : index
    %52 = tpu.strided_load %arg15[%c0_67, %c1_68, %c0_69, %c0_70] {strides = array<i32: 1, 2, 2, 1>} : memref<1x34x34x32xf32, #tpu.memory_space<vmem>>, vector<1x16x16x32xf32>
    %c0_71 = arith.constant 0 : index
    %c1_72 = arith.constant 1 : index
    %c1_73 = arith.constant 1 : index
    %c0_74 = arith.constant 0 : index
    %53 = tpu.strided_load %arg15[%c0_71, %c1_72, %c1_73, %c0_74] {strides = array<i32: 1, 2, 2, 1>} : memref<1x34x34x32xf32, #tpu.memory_space<vmem>>, vector<1x16x16x32xf32>
    %c0_75 = arith.constant 0 : index
    %c1_76 = arith.constant 1 : index
    %c2_77 = arith.constant 2 : index
    %c0_78 = arith.constant 0 : index
    %54 = tpu.strided_load %arg15[%c0_75, %c1_76, %c2_77, %c0_78] {strides = array<i32: 1, 2, 2, 1>} : memref<1x34x34x32xf32, #tpu.memory_space<vmem>>, vector<1x16x16x32xf32>
    %c0_79 = arith.constant 0 : index
    %c2_80 = arith.constant 2 : index
    %c0_81 = arith.constant 0 : index
    %c0_82 = arith.constant 0 : index
    %55 = tpu.strided_load %arg15[%c0_79, %c2_80, %c0_81, %c0_82] {strides = array<i32: 1, 2, 2, 1>} : memref<1x34x34x32xf32, #tpu.memory_space<vmem>>, vector<1x16x16x32xf32>
    %c0_83 = arith.constant 0 : index
    %c2_84 = arith.constant 2 : index
    %c1_85 = arith.constant 1 : index
    %c0_86 = arith.constant 0 : index
    %56 = tpu.strided_load %arg15[%c0_83, %c2_84, %c1_85, %c0_86] {strides = array<i32: 1, 2, 2, 1>} : memref<1x34x34x32xf32, #tpu.memory_space<vmem>>, vector<1x16x16x32xf32>
    %c0_87 = arith.constant 0 : index
    %c2_88 = arith.constant 2 : index
    %c2_89 = arith.constant 2 : index
    %c0_90 = arith.constant 0 : index
    %57 = tpu.strided_load %arg15[%c0_87, %c2_88, %c2_89, %c0_90] {strides = array<i32: 1, 2, 2, 1>} : memref<1x34x34x32xf32, #tpu.memory_space<vmem>>, vector<1x16x16x32xf32>
    %58 = tpu.concatenate %49, %50, %51, %52, %53, %54, %55, %56, %57 in 3 : vector<1x16x16x32xf32>, vector<1x16x16x32xf32>, vector<1x16x16x32xf32>, vector<1x16x16x32xf32>, vector<1x16x16x32xf32>, vector<1x16x16x32xf32>, vector<1x16x16x32xf32>, vector<1x16x16x32xf32>, vector<1x16x16x32xf32> -> vector<1x16x16x288xf32>
    %59 = vector.shape_cast %58 : vector<1x16x16x288xf32> to vector<256x288xf32>
    %60 = arith.truncf %59 : vector<256x288xf32> to vector<256x288xbf16>
    %c0_91 = arith.constant 0 : index
    %c0_92 = arith.constant 0 : index
    %61 = vector.load %arg3[%c0_91, %c0_92] : memref<288x64xbf16, #tpu.memory_space<vmem>>, vector<288x64xbf16>
    %cst_93 = arith.constant dense<0.000000e+00> : vector<256x64xf32>
    %62 = tpu.matmul %60, %61, %cst_93 {dimension_numbers = #tpu.dot_dimension_numbers<[1], [0], [0], [1], [0, 0, 1, 1], [], []>} : vector<256x288xbf16>, vector<288x64xbf16>, vector<256x64xf32> -> vector<256x64xf32>
    %c0_94 = arith.constant 0 : index
    %c0_95 = arith.constant 0 : index
    %63 = vector.load %arg9[%c0_94, %c0_95] : memref<1x64xf32, #tpu.memory_space<vmem>>, vector<1x64xf32>
    %64 = vector.broadcast %63 : vector<1x64xf32> to vector<256x64xf32>
    %65 = arith.addf %62, %64 : vector<256x64xf32>
    %cst_96 = arith.constant 0.000000e+00 : f32
    %66 = vector.broadcast %cst_96 : f32 to vector<256x64xf32>
    %67 = arith.cmpf ogt, %65, %66 : vector<256x64xf32>
    %cst_97 = arith.constant 2.000000e-01 : f32
    %68 = vector.broadcast %cst_97 : f32 to vector<256x64xf32>
    %69 = arith.mulf %68, %65 : vector<256x64xf32>
    %70 = arith.select %67, %65, %69 : vector<256x64xi1>, vector<256x64xf32>
    %71 = vector.shape_cast %70 : vector<256x64xf32> to vector<1x16x16x64xf32>
    %c0_98 = arith.constant 0 : index
    %c1_99 = arith.constant 1 : index
    %c1_100 = arith.constant 1 : index
    %c0_101 = arith.constant 0 : index
    %72 = vector.load %arg16[%c0_98, %c1_99, %c1_100, %c0_101] : memref<1x18x18x64xf32, #tpu.memory_space<vmem>>, vector<1x16x16x64xf32>
    tpu.vector_store %arg16[%c0_98, %c1_99, %c1_100, %c0_101], %71 {strides = array<i32>} : memref<1x18x18x64xf32, #tpu.memory_space<vmem>>, vector<1x16x16x64xf32>,
    %c0_102 = arith.constant 0 : index
    %c0_103 = arith.constant 0 : index
    %c0_104 = arith.constant 0 : index
    %c0_105 = arith.constant 0 : index
    %73 = tpu.strided_load %arg16[%c0_102, %c0_103, %c0_104, %c0_105] {strides = array<i32: 1, 2, 2, 1>} : memref<1x18x18x64xf32, #tpu.memory_space<vmem>>, vector<1x8x8x64xf32>
    %c0_106 = arith.constant 0 : index
    %c0_107 = arith.constant 0 : index
    %c1_108 = arith.constant 1 : index
    %c0_109 = arith.constant 0 : index
    %74 = tpu.strided_load %arg16[%c0_106, %c0_107, %c1_108, %c0_109] {strides = array<i32: 1, 2, 2, 1>} : memref<1x18x18x64xf32, #tpu.memory_space<vmem>>, vector<1x8x8x64xf32>
    %c0_110 = arith.constant 0 : index
    %c0_111 = arith.constant 0 : index
    %c2_112 = arith.constant 2 : index
    %c0_113 = arith.constant 0 : index
    %75 = tpu.strided_load %arg16[%c0_110, %c0_111, %c2_112, %c0_113] {strides = array<i32: 1, 2, 2, 1>} : memref<1x18x18x64xf32, #tpu.memory_space<vmem>>, vector<1x8x8x64xf32>
    %c0_114 = arith.constant 0 : index
    %c1_115 = arith.constant 1 : index
    %c0_116 = arith.constant 0 : index
    %c0_117 = arith.constant 0 : index
    %76 = tpu.strided_load %arg16[%c0_114, %c1_115, %c0_116, %c0_117] {strides = array<i32: 1, 2, 2, 1>} : memref<1x18x18x64xf32, #tpu.memory_space<vmem>>, vector<1x8x8x64xf32>
    %c0_118 = arith.constant 0 : index
    %c1_119 = arith.constant 1 : index
    %c1_120 = arith.constant 1 : index
    %c0_121 = arith.constant 0 : index
    %77 = tpu.strided_load %arg16[%c0_118, %c1_119, %c1_120, %c0_121] {strides = array<i32: 1, 2, 2, 1>} : memref<1x18x18x64xf32, #tpu.memory_space<vmem>>, vector<1x8x8x64xf32>
    %c0_122 = arith.constant 0 : index
    %c1_123 = arith.constant 1 : index
    %c2_124 = arith.constant 2 : index
    %c0_125 = arith.constant 0 : index
    %78 = tpu.strided_load %arg16[%c0_122, %c1_123, %c2_124, %c0_125] {strides = array<i32: 1, 2, 2, 1>} : memref<1x18x18x64xf32, #tpu.memory_space<vmem>>, vector<1x8x8x64xf32>
    %c0_126 = arith.constant 0 : index
    %c2_127 = arith.constant 2 : index
    %c0_128 = arith.constant 0 : index
    %c0_129 = arith.constant 0 : index
    %79 = tpu.strided_load %arg16[%c0_126, %c2_127, %c0_128, %c0_129] {strides = array<i32: 1, 2, 2, 1>} : memref<1x18x18x64xf32, #tpu.memory_space<vmem>>, vector<1x8x8x64xf32>
    %c0_130 = arith.constant 0 : index
    %c2_131 = arith.constant 2 : index
    %c1_132 = arith.constant 1 : index
    %c0_133 = arith.constant 0 : index
    %80 = tpu.strided_load %arg16[%c0_130, %c2_131, %c1_132, %c0_133] {strides = array<i32: 1, 2, 2, 1>} : memref<1x18x18x64xf32, #tpu.memory_space<vmem>>, vector<1x8x8x64xf32>
    %c0_134 = arith.constant 0 : index
    %c2_135 = arith.constant 2 : index
    %c2_136 = arith.constant 2 : index
    %c0_137 = arith.constant 0 : index
    %81 = tpu.strided_load %arg16[%c0_134, %c2_135, %c2_136, %c0_137] {strides = array<i32: 1, 2, 2, 1>} : memref<1x18x18x64xf32, #tpu.memory_space<vmem>>, vector<1x8x8x64xf32>
    %82 = tpu.concatenate %73, %74, %75, %76, %77, %78, %79, %80, %81 in 3 : vector<1x8x8x64xf32>, vector<1x8x8x64xf32>, vector<1x8x8x64xf32>, vector<1x8x8x64xf32>, vector<1x8x8x64xf32>, vector<1x8x8x64xf32>, vector<1x8x8x64xf32>, vector<1x8x8x64xf32>, vector<1x8x8x64xf32> -> vector<1x8x8x576xf32>
    %83 = vector.shape_cast %82 : vector<1x8x8x576xf32> to vector<64x576xf32>
    %84 = arith.truncf %83 : vector<64x576xf32> to vector<64x576xbf16>
    %c0_138 = arith.constant 0 : index
    %c0_139 = arith.constant 0 : index
    %85 = vector.load %arg4[%c0_138, %c0_139] : memref<576x64xbf16, #tpu.memory_space<vmem>>, vector<576x64xbf16>
    %cst_140 = arith.constant dense<0.000000e+00> : vector<64x64xf32>
    %86 = tpu.matmul %84, %85, %cst_140 {dimension_numbers = #tpu.dot_dimension_numbers<[1], [0], [0], [1], [0, 0, 1, 1], [], []>} : vector<64x576xbf16>, vector<576x64xbf16>, vector<64x64xf32> -> vector<64x64xf32>
    %c0_141 = arith.constant 0 : index
    %c0_142 = arith.constant 0 : index
    %87 = vector.load %arg10[%c0_141, %c0_142] : memref<1x64xf32, #tpu.memory_space<vmem>>, vector<1x64xf32>
    %88 = vector.broadcast %87 : vector<1x64xf32> to vector<64x64xf32>
    %89 = arith.addf %86, %88 : vector<64x64xf32>
    %cst_143 = arith.constant 0.000000e+00 : f32
    %90 = vector.broadcast %cst_143 : f32 to vector<64x64xf32>
    %91 = arith.cmpf ogt, %89, %90 : vector<64x64xf32>
    %cst_144 = arith.constant 2.000000e-01 : f32
    %92 = vector.broadcast %cst_144 : f32 to vector<64x64xf32>
    %93 = arith.mulf %92, %89 : vector<64x64xf32>
    %94 = arith.select %91, %89, %93 : vector<64x64xi1>, vector<64x64xf32>
    %95 = vector.shape_cast %94 : vector<64x64xf32> to vector<1x8x8x64xf32>
    %c0_145 = arith.constant 0 : index
    %c1_146 = arith.constant 1 : index
    %c1_147 = arith.constant 1 : index
    %c0_148 = arith.constant 0 : index
    %96 = vector.load %arg17[%c0_145, %c1_146, %c1_147, %c0_148] : memref<1x10x10x64xf32, #tpu.memory_space<vmem>>, vector<1x8x8x64xf32>
    tpu.vector_store %arg17[%c0_145, %c1_146, %c1_147, %c0_148], %95 {strides = array<i32>} : memref<1x10x10x64xf32, #tpu.memory_space<vmem>>, vector<1x8x8x64xf32>,
    %c0_149 = arith.constant 0 : index
    %c0_150 = arith.constant 0 : index
    %c0_151 = arith.constant 0 : index
    %c0_152 = arith.constant 0 : index
    %97 = tpu.strided_load %arg17[%c0_149, %c0_150, %c0_151, %c0_152] {strides = array<i32: 1, 2, 2, 1>} : memref<1x10x10x64xf32, #tpu.memory_space<vmem>>, vector<1x4x4x64xf32>
    %c0_153 = arith.constant 0 : index
    %c0_154 = arith.constant 0 : index
    %c1_155 = arith.constant 1 : index
    %c0_156 = arith.constant 0 : index
    %98 = tpu.strided_load %arg17[%c0_153, %c0_154, %c1_155, %c0_156] {strides = array<i32: 1, 2, 2, 1>} : memref<1x10x10x64xf32, #tpu.memory_space<vmem>>, vector<1x4x4x64xf32>
    %c0_157 = arith.constant 0 : index
    %c0_158 = arith.constant 0 : index
    %c2_159 = arith.constant 2 : index
    %c0_160 = arith.constant 0 : index
    %99 = tpu.strided_load %arg17[%c0_157, %c0_158, %c2_159, %c0_160] {strides = array<i32: 1, 2, 2, 1>} : memref<1x10x10x64xf32, #tpu.memory_space<vmem>>, vector<1x4x4x64xf32>
    %c0_161 = arith.constant 0 : index
    %c1_162 = arith.constant 1 : index
    %c0_163 = arith.constant 0 : index
    %c0_164 = arith.constant 0 : index
    %100 = tpu.strided_load %arg17[%c0_161, %c1_162, %c0_163, %c0_164] {strides = array<i32: 1, 2, 2, 1>} : memref<1x10x10x64xf32, #tpu.memory_space<vmem>>, vector<1x4x4x64xf32>
    %c0_165 = arith.constant 0 : index
    %c1_166 = arith.constant 1 : index
    %c1_167 = arith.constant 1 : index
    %c0_168 = arith.constant 0 : index
    %101 = tpu.strided_load %arg17[%c0_165, %c1_166, %c1_167, %c0_168] {strides = array<i32: 1, 2, 2, 1>} : memref<1x10x10x64xf32, #tpu.memory_space<vmem>>, vector<1x4x4x64xf32>
    %c0_169 = arith.constant 0 : index
    %c1_170 = arith.constant 1 : index
    %c2_171 = arith.constant 2 : index
    %c0_172 = arith.constant 0 : index
    %102 = tpu.strided_load %arg17[%c0_169, %c1_170, %c2_171, %c0_172] {strides = array<i32: 1, 2, 2, 1>} : memref<1x10x10x64xf32, #tpu.memory_space<vmem>>, vector<1x4x4x64xf32>
    %c0_173 = arith.constant 0 : index
    %c2_174 = arith.constant 2 : index
    %c0_175 = arith.constant 0 : index
    %c0_176 = arith.constant 0 : index
    %103 = tpu.strided_load %arg17[%c0_173, %c2_174, %c0_175, %c0_176] {strides = array<i32: 1, 2, 2, 1>} : memref<1x10x10x64xf32, #tpu.memory_space<vmem>>, vector<1x4x4x64xf32>
    %c0_177 = arith.constant 0 : index
    %c2_178 = arith.constant 2 : index
    %c1_179 = arith.constant 1 : index
    %c0_180 = arith.constant 0 : index
    %104 = tpu.strided_load %arg17[%c0_177, %c2_178, %c1_179, %c0_180] {strides = array<i32: 1, 2, 2, 1>} : memref<1x10x10x64xf32, #tpu.memory_space<vmem>>, vector<1x4x4x64xf32>
    %c0_181 = arith.constant 0 : index
    %c2_182 = arith.constant 2 : index
    %c2_183 = arith.constant 2 : index
    %c0_184 = arith.constant 0 : index
    %105 = tpu.strided_load %arg17[%c0_181, %c2_182, %c2_183, %c0_184] {strides = array<i32: 1, 2, 2, 1>} : memref<1x10x10x64xf32, #tpu.memory_space<vmem>>, vector<1x4x4x64xf32>
    %106 = tpu.concatenate %97, %98, %99, %100, %101, %102, %103, %104, %105 in 3 : vector<1x4x4x64xf32>, vector<1x4x4x64xf32>, vector<1x4x4x64xf32>, vector<1x4x4x64xf32>, vector<1x4x4x64xf32>, vector<1x4x4x64xf32>, vector<1x4x4x64xf32>, vector<1x4x4x64xf32>, vector<1x4x4x64xf32> -> vector<1x4x4x576xf32>
    %107 = vector.shape_cast %106 : vector<1x4x4x576xf32> to vector<16x576xf32>
    %108 = arith.truncf %107 : vector<16x576xf32> to vector<16x576xbf16>
    %c0_185 = arith.constant 0 : index
    %c0_186 = arith.constant 0 : index
    %109 = vector.load %arg5[%c0_185, %c0_186] : memref<576x128xbf16, #tpu.memory_space<vmem>>, vector<576x128xbf16>
    %cst_187 = arith.constant dense<0.000000e+00> : vector<16x128xf32>
    %110 = tpu.matmul %108, %109, %cst_187 {dimension_numbers = #tpu.dot_dimension_numbers<[1], [0], [0], [1], [0, 0, 1, 1], [], []>} : vector<16x576xbf16>, vector<576x128xbf16>, vector<16x128xf32> -> vector<16x128xf32>
    %c0_188 = arith.constant 0 : index
    %c0_189 = arith.constant 0 : index
    %111 = vector.load %arg11[%c0_188, %c0_189] : memref<1x128xf32, #tpu.memory_space<vmem>>, vector<1x128xf32>
    %112 = vector.broadcast %111 : vector<1x128xf32> to vector<16x128xf32>
    %113 = arith.addf %110, %112 : vector<16x128xf32>
    %cst_190 = arith.constant 0.000000e+00 : f32
    %114 = vector.broadcast %cst_190 : f32 to vector<16x128xf32>
    %115 = arith.cmpf ogt, %113, %114 : vector<16x128xf32>
    %cst_191 = arith.constant 2.000000e-01 : f32
    %116 = vector.broadcast %cst_191 : f32 to vector<16x128xf32>
    %117 = arith.mulf %116, %113 : vector<16x128xf32>
    %118 = arith.select %115, %113, %117 : vector<16x128xi1>, vector<16x128xf32>
    %119 = vector.shape_cast %118 : vector<16x128xf32> to vector<1x4x4x128xf32>
    %c0_192 = arith.constant 0 : index
    %c1_193 = arith.constant 1 : index
    %c1_194 = arith.constant 1 : index
    %c0_195 = arith.constant 0 : index
    %120 = vector.load %arg18[%c0_192, %c1_193, %c1_194, %c0_195] : memref<1x6x6x128xf32, #tpu.memory_space<vmem>>, vector<1x4x4x128xf32>
    tpu.vector_store %arg18[%c0_192, %c1_193, %c1_194, %c0_195], %119 {strides = array<i32>} : memref<1x6x6x128xf32, #tpu.memory_space<vmem>>, vector<1x4x4x128xf32>,
    %c0_196 = arith.constant 0 : index
    %c0_197 = arith.constant 0 : index
    %c0_198 = arith.constant 0 : index
    %c0_199 = arith.constant 0 : index
    %121 = tpu.strided_load %arg18[%c0_196, %c0_197, %c0_198, %c0_199] {strides = array<i32: 1, 2, 2, 1>} : memref<1x6x6x128xf32, #tpu.memory_space<vmem>>, vector<1x2x2x128xf32>
    %c0_200 = arith.constant 0 : index
    %c0_201 = arith.constant 0 : index
    %c1_202 = arith.constant 1 : index
    %c0_203 = arith.constant 0 : index
    %122 = tpu.strided_load %arg18[%c0_200, %c0_201, %c1_202, %c0_203] {strides = array<i32: 1, 2, 2, 1>} : memref<1x6x6x128xf32, #tpu.memory_space<vmem>>, vector<1x2x2x128xf32>
    %c0_204 = arith.constant 0 : index
    %c0_205 = arith.constant 0 : index
    %c2_206 = arith.constant 2 : index
    %c0_207 = arith.constant 0 : index
    %123 = tpu.strided_load %arg18[%c0_204, %c0_205, %c2_206, %c0_207] {strides = array<i32: 1, 2, 2, 1>} : memref<1x6x6x128xf32, #tpu.memory_space<vmem>>, vector<1x2x2x128xf32>
    %c0_208 = arith.constant 0 : index
    %c1_209 = arith.constant 1 : index
    %c0_210 = arith.constant 0 : index
    %c0_211 = arith.constant 0 : index
    %124 = tpu.strided_load %arg18[%c0_208, %c1_209, %c0_210, %c0_211] {strides = array<i32: 1, 2, 2, 1>} : memref<1x6x6x128xf32, #tpu.memory_space<vmem>>, vector<1x2x2x128xf32>
    %c0_212 = arith.constant 0 : index
    %c1_213 = arith.constant 1 : index
    %c1_214 = arith.constant 1 : index
    %c0_215 = arith.constant 0 : index
    %125 = tpu.strided_load %arg18[%c0_212, %c1_213, %c1_214, %c0_215] {strides = array<i32: 1, 2, 2, 1>} : memref<1x6x6x128xf32, #tpu.memory_space<vmem>>, vector<1x2x2x128xf32>
    %c0_216 = arith.constant 0 : index
    %c1_217 = arith.constant 1 : index
    %c2_218 = arith.constant 2 : index
    %c0_219 = arith.constant 0 : index
    %126 = tpu.strided_load %arg18[%c0_216, %c1_217, %c2_218, %c0_219] {strides = array<i32: 1, 2, 2, 1>} : memref<1x6x6x128xf32, #tpu.memory_space<vmem>>, vector<1x2x2x128xf32>
    %c0_220 = arith.constant 0 : index
    %c2_221 = arith.constant 2 : index
    %c0_222 = arith.constant 0 : index
    %c0_223 = arith.constant 0 : index
    %127 = tpu.strided_load %arg18[%c0_220, %c2_221, %c0_222, %c0_223] {strides = array<i32: 1, 2, 2, 1>} : memref<1x6x6x128xf32, #tpu.memory_space<vmem>>, vector<1x2x2x128xf32>
    %c0_224 = arith.constant 0 : index
    %c2_225 = arith.constant 2 : index
    %c1_226 = arith.constant 1 : index
    %c0_227 = arith.constant 0 : index
    %128 = tpu.strided_load %arg18[%c0_224, %c2_225, %c1_226, %c0_227] {strides = array<i32: 1, 2, 2, 1>} : memref<1x6x6x128xf32, #tpu.memory_space<vmem>>, vector<1x2x2x128xf32>
    %c0_228 = arith.constant 0 : index
    %c2_229 = arith.constant 2 : index
    %c2_230 = arith.constant 2 : index
    %c0_231 = arith.constant 0 : index
    %129 = tpu.strided_load %arg18[%c0_228, %c2_229, %c2_230, %c0_231] {strides = array<i32: 1, 2, 2, 1>} : memref<1x6x6x128xf32, #tpu.memory_space<vmem>>, vector<1x2x2x128xf32>
    %130 = tpu.concatenate %121, %122, %123, %124, %125, %126, %127, %128, %129 in 3 : vector<1x2x2x128xf32>, vector<1x2x2x128xf32>, vector<1x2x2x128xf32>, vector<1x2x2x128xf32>, vector<1x2x2x128xf32>, vector<1x2x2x128xf32>, vector<1x2x2x128xf32>, vector<1x2x2x128xf32>, vector<1x2x2x128xf32> -> vector<1x2x2x1152xf32>
    %131 = vector.shape_cast %130 : vector<1x2x2x1152xf32> to vector<4x1152xf32>
    %132 = arith.truncf %131 : vector<4x1152xf32> to vector<4x1152xbf16>
    %c0_232 = arith.constant 0 : index
    %c0_233 = arith.constant 0 : index
    %133 = vector.load %arg6[%c0_232, %c0_233] : memref<1152x256xbf16, #tpu.memory_space<vmem>>, vector<1152x256xbf16>
    %cst_234 = arith.constant dense<0.000000e+00> : vector<4x256xf32>
    %134 = tpu.matmul %132, %133, %cst_234 {dimension_numbers = #tpu.dot_dimension_numbers<[1], [0], [0], [1], [0, 0, 1, 1], [], []>} : vector<4x1152xbf16>, vector<1152x256xbf16>, vector<4x256xf32> -> vector<4x256xf32>
    %c0_235 = arith.constant 0 : index
    %c0_236 = arith.constant 0 : index
    %135 = vector.load %arg12[%c0_235, %c0_236] : memref<1x256xf32, #tpu.memory_space<vmem>>, vector<1x256xf32>
    %136 = vector.broadcast %135 : vector<1x256xf32> to vector<4x256xf32>
    %137 = arith.addf %134, %136 : vector<4x256xf32>
    %cst_237 = arith.constant 0.000000e+00 : f32
    %138 = vector.broadcast %cst_237 : f32 to vector<4x256xf32>
    %139 = arith.cmpf ogt, %137, %138 : vector<4x256xf32>
    %cst_238 = arith.constant 2.000000e-01 : f32
    %140 = vector.broadcast %cst_238 : f32 to vector<4x256xf32>
    %141 = arith.mulf %140, %137 : vector<4x256xf32>
    %142 = arith.select %139, %137, %141 : vector<4x256xi1>, vector<4x256xf32>
    %143 = vector.shape_cast %142 : vector<4x256xf32> to vector<1x2x2x256xf32>
    %c0_239 = arith.constant 0 : index
    %c1_240 = arith.constant 1 : index
    %c1_241 = arith.constant 1 : index
    %c0_242 = arith.constant 0 : index
    %144 = vector.load %arg19[%c0_239, %c1_240, %c1_241, %c0_242] : memref<1x4x4x256xf32, #tpu.memory_space<vmem>>, vector<1x2x2x256xf32>
    tpu.vector_store %arg19[%c0_239, %c1_240, %c1_241, %c0_242], %143 {strides = array<i32>} : memref<1x4x4x256xf32, #tpu.memory_space<vmem>>, vector<1x2x2x256xf32>,
    %c0_243 = arith.constant 0 : index
    %c0_244 = arith.constant 0 : index
    %c0_245 = arith.constant 0 : index
    %c0_246 = arith.constant 0 : index
    %145 = vector.load %arg19[%c0_243, %c0_244, %c0_245, %c0_246] : memref<1x4x4x256xf32, #tpu.memory_space<vmem>>, vector<1x1x1x256xf32>
    %146 = vector.shape_cast %145 : vector<1x1x1x256xf32> to vector<1x256xf32>
    %c0_247 = arith.constant 0 : index
    %c0_248 = arith.constant 0 : index
    %c1_249 = arith.constant 1 : index
    %c0_250 = arith.constant 0 : index
    %147 = vector.load %arg19[%c0_247, %c0_248, %c1_249, %c0_250] : memref<1x4x4x256xf32, #tpu.memory_space<vmem>>, vector<1x1x1x256xf32>
    %148 = vector.shape_cast %147 : vector<1x1x1x256xf32> to vector<1x256xf32>
    %c0_251 = arith.constant 0 : index
    %c0_252 = arith.constant 0 : index
    %c2_253 = arith.constant 2 : index
    %c0_254 = arith.constant 0 : index
    %149 = vector.load %arg19[%c0_251, %c0_252, %c2_253, %c0_254] : memref<1x4x4x256xf32, #tpu.memory_space<vmem>>, vector<1x1x1x256xf32>
    %150 = vector.shape_cast %149 : vector<1x1x1x256xf32> to vector<1x256xf32>
    %c0_255 = arith.constant 0 : index
    %c1_256 = arith.constant 1 : index
    %c0_257 = arith.constant 0 : index
    %c0_258 = arith.constant 0 : index
    %151 = vector.load %arg19[%c0_255, %c1_256, %c0_257, %c0_258] : memref<1x4x4x256xf32, #tpu.memory_space<vmem>>, vector<1x1x1x256xf32>
    %152 = vector.shape_cast %151 : vector<1x1x1x256xf32> to vector<1x256xf32>
    %c0_259 = arith.constant 0 : index
    %c1_260 = arith.constant 1 : index
    %c1_261 = arith.constant 1 : index
    %c0_262 = arith.constant 0 : index
    %153 = vector.load %arg19[%c0_259, %c1_260, %c1_261, %c0_262] : memref<1x4x4x256xf32, #tpu.memory_space<vmem>>, vector<1x1x1x256xf32>
    %154 = vector.shape_cast %153 : vector<1x1x1x256xf32> to vector<1x256xf32>
    %c0_263 = arith.constant 0 : index
    %c1_264 = arith.constant 1 : index
    %c2_265 = arith.constant 2 : index
    %c0_266 = arith.constant 0 : index
    %155 = vector.load %arg19[%c0_263, %c1_264, %c2_265, %c0_266] : memref<1x4x4x256xf32, #tpu.memory_space<vmem>>, vector<1x1x1x256xf32>
    %156 = vector.shape_cast %155 : vector<1x1x1x256xf32> to vector<1x256xf32>
    %c0_267 = arith.constant 0 : index
    %c2_268 = arith.constant 2 : index
    %c0_269 = arith.constant 0 : index
    %c0_270 = arith.constant 0 : index
    %157 = vector.load %arg19[%c0_267, %c2_268, %c0_269, %c0_270] : memref<1x4x4x256xf32, #tpu.memory_space<vmem>>, vector<1x1x1x256xf32>
    %158 = vector.shape_cast %157 : vector<1x1x1x256xf32> to vector<1x256xf32>
    %c0_271 = arith.constant 0 : index
    %c2_272 = arith.constant 2 : index
    %c1_273 = arith.constant 1 : index
    %c0_274 = arith.constant 0 : index
    %159 = vector.load %arg19[%c0_271, %c2_272, %c1_273, %c0_274] : memref<1x4x4x256xf32, #tpu.memory_space<vmem>>, vector<1x1x1x256xf32>
    %160 = vector.shape_cast %159 : vector<1x1x1x256xf32> to vector<1x256xf32>
    %c0_275 = arith.constant 0 : index
    %c2_276 = arith.constant 2 : index
    %c2_277 = arith.constant 2 : index
    %c0_278 = arith.constant 0 : index
    %161 = vector.load %arg19[%c0_275, %c2_276, %c2_277, %c0_278] : memref<1x4x4x256xf32, #tpu.memory_space<vmem>>, vector<1x1x1x256xf32>
    %162 = vector.shape_cast %161 : vector<1x1x1x256xf32> to vector<1x256xf32>
    %163 = tpu.concatenate %146, %148, %150, %152, %154, %156, %158, %160, %162 in 1 : vector<1x256xf32>, vector<1x256xf32>, vector<1x256xf32>, vector<1x256xf32>, vector<1x256xf32>, vector<1x256xf32>, vector<1x256xf32>, vector<1x256xf32>, vector<1x256xf32> -> vector<1x2304xf32>
    %164 = arith.truncf %163 : vector<1x2304xf32> to vector<1x2304xbf16>
    %c0_279 = arith.constant 0 : index
    %c0_280 = arith.constant 0 : index
    %165 = vector.load %arg7[%c0_279, %c0_280] : memref<2304x512xbf16, #tpu.memory_space<vmem>>, vector<2304x512xbf16>
    %cst_281 = arith.constant dense<0.000000e+00> : vector<1x512xf32>
    %166 = tpu.matmul %164, %165, %cst_281 {dimension_numbers = #tpu.dot_dimension_numbers<[1], [0], [0], [1], [0, 0, 1, 1], [], []>} : vector<1x2304xbf16>, vector<2304x512xbf16>, vector<1x512xf32> -> vector<1x512xf32>
    %c0_282 = arith.constant 0 : index
    %c0_283 = arith.constant 0 : index
    %167 = vector.load %arg13[%c0_282, %c0_283] : memref<1x512xf32, #tpu.memory_space<vmem>>, vector<1x512xf32>
    %168 = arith.addf %166, %167 : vector<1x512xf32>
    %cst_284 = arith.constant 0.000000e+00 : f32
    %169 = vector.broadcast %cst_284 : f32 to vector<1x512xf32>
    %170 = arith.cmpf ogt, %168, %169 : vector<1x512xf32>
    %cst_285 = arith.constant 2.000000e-01 : f32
    %171 = vector.broadcast %cst_285 : f32 to vector<1x512xf32>
    %172 = arith.mulf %171, %168 : vector<1x512xf32>
    %173 = arith.select %170, %168, %172 : vector<1x512xi1>, vector<1x512xf32>
    %c0_286 = arith.constant 0 : index
    %c0_287 = arith.constant 0 : index
    %c0_288 = arith.constant 0 : index
    %174 = vector.load %arg14[%c0_286, %c0_287, %c0_288] : memref<1x1x512xf32, #tpu.memory_space<vmem>>, vector<1x1x512xf32>
    %175 = vector.shape_cast %174 : vector<1x1x512xf32> to vector<1x512xf32>
    %176 = vector.shape_cast %173 : vector<1x512xf32> to vector<1x1x512xf32>
    tpu.vector_store %arg14[%c0_286, %c0_287, %c0_288], %176 {strides = array<i32>} : memref<1x1x512xf32, #tpu.memory_space<vmem>>, vector<1x1x512xf32>,
    return
  }
  func.func @transform_0(%arg0: i32) -> (i32, i32, i32) {
    %c0_i32 = arith.constant 0 : i32
    %c0_i32_0 = arith.constant 0 : i32
    %c0_i32_1 = arith.constant 0 : i32
    return %arg0, %c0_i32, %c0_i32_0 : i32, i32, i32
  }
  func.func @transform_1(%arg0: i32) -> (i32, i32) {
    %c0_i32 = arith.constant 0 : i32
    %c0_i32_0 = arith.constant 0 : i32
    %c0_i32_1 = arith.constant 0 : i32
    return %c0_i32, %c0_i32_0 : i32, i32
  }
  func.func @transform_2(%arg0: i32) -> (i32, i32) {
    %c0_i32 = arith.constant 0 : i32
    %c0_i32_0 = arith.constant 0 : i32
    %c0_i32_1 = arith.constant 0 : i32
    return %c0_i32, %c0_i32_0 : i32, i32
  }
  func.func @transform_3(%arg0: i32) -> (i32, i32) {
    %c0_i32 = arith.constant 0 : i32
    %c0_i32_0 = arith.constant 0 : i32
    %c0_i32_1 = arith.constant 0 : i32
    return %c0_i32, %c0_i32_0 : i32, i32
  }
  func.func @transform_4(%arg0: i32) -> (i32, i32) {
    %c0_i32 = arith.constant 0 : i32
    %c0_i32_0 = arith.constant 0 : i32
    %c0_i32_1 = arith.constant 0 : i32
    return %c0_i32, %c0_i32_0 : i32, i32
  }
  func.func @transform_5(%arg0: i32) -> (i32, i32) {
    %c0_i32 = arith.constant 0 : i32
    %c0_i32_0 = arith.constant 0 : i32
    %c0_i32_1 = arith.constant 0 : i32
    return %c0_i32, %c0_i32_0 : i32, i32
  }
  func.func @transform_6(%arg0: i32) -> (i32, i32) {
    %c0_i32 = arith.constant 0 : i32
    %c0_i32_0 = arith.constant 0 : i32
    %c0_i32_1 = arith.constant 0 : i32
    return %c0_i32, %c0_i32_0 : i32, i32
  }
  func.func @transform_7(%arg0: i32) -> (i32, i32) {
    %c0_i32 = arith.constant 0 : i32
    %c0_i32_0 = arith.constant 0 : i32
    %c0_i32_1 = arith.constant 0 : i32
    return %c0_i32, %c0_i32_0 : i32, i32
  }
  func.func @transform_8(%arg0: i32) -> (i32, i32) {
    %c0_i32 = arith.constant 0 : i32
    %c0_i32_0 = arith.constant 0 : i32
    %c0_i32_1 = arith.constant 0 : i32
    return %c0_i32, %c0_i32_0 : i32, i32
  }
  func.func @transform_9(%arg0: i32) -> (i32, i32) {
    %c0_i32 = arith.constant 0 : i32
    %c0_i32_0 = arith.constant 0 : i32
    %c0_i32_1 = arith.constant 0 : i32
    return %c0_i32, %c0_i32_0 : i32, i32
  }
  func.func @transform_10(%arg0: i32) -> (i32, i32) {
    %c0_i32 = arith.constant 0 : i32
    %c0_i32_0 = arith.constant 0 : i32
    %c0_i32_1 = arith.constant 0 : i32
    return %c0_i32, %c0_i32_0 : i32, i32
  }
  func.func @transform_11(%arg0: i32) -> (i32, i32) {
    %c0_i32 = arith.constant 0 : i32
    %c0_i32_0 = arith.constant 0 : i32
    %c0_i32_1 = arith.constant 0 : i32
    return %c0_i32, %c0_i32_0 : i32, i32
  }
  func.func @transform_12(%arg0: i32) -> (i32, i32) {
    %c0_i32 = arith.constant 0 : i32
    %c0_i32_0 = arith.constant 0 : i32
    %c0_i32_1 = arith.constant 0 : i32
    return %c0_i32, %c0_i32_0 : i32, i32
  }
  func.func @transform_13(%arg0: i32) -> (i32, i32, i32) {
    %c0_i32 = arith.constant 0 : i32
    %c0_i32_0 = arith.constant 0 : i32
    %c0_i32_1 = arith.constant 0 : i32
    return %arg0, %c0_i32, %c0_i32_0 : i32, i32, i32
  }
}

</mosaic_0001>

<llo_original>
// kernel: discriminator_output.1
$region0: #{discriminator_output.1}
  #allocation0 [shape = 'u32[]', space=smem, size = 0x4, offset = 0x4, fixed_abs, tag = 'smem constant byte address 0x4 - core index']
  #allocation1 [shape = 'u32[144,128]{1,0:T(1,128)}', space=vmem, size = 0x12000, scoped, tag = 'internal scratch']
  #allocation2 [shape = 'f32[1,34,34,32]{3,2,1,0:T(8,128)}', space=vmem, size = 0xaa000, scoped, tag = 'scratch operand']
  #allocation3 [shape = 'f32[1,18,18,64]{3,2,1,0:T(8,128)}', space=vmem, size = 0x36000, scoped, tag = 'scratch operand']
  #allocation4 [shape = 'f32[1,10,10,64]{3,2,1,0:T(8,128)}', space=vmem, size = 0x14000, scoped, tag = 'scratch operand']
  #allocation5 [shape = 'f32[1,6,6,128]{3,2,1,0:T(8,128)}', space=vmem, size = 0x6000, scoped, tag = 'scratch operand']
  #allocation6 [shape = 'f32[1,4,4,256]{3,2,1,0:T(4,128)}', space=vmem, size = 0x4000, scoped, tag = 'scratch operand']
  %s0 = inlined_call_operand.vmem [shape: bf16[2,1024,27], index: 0, kind: input, shape index: {}]
  %s1 = inlined_call_operand.vmem [shape: bf16[27,32], index: 1, kind: input, shape index: {}]
  %s2 = inlined_call_operand.vmem [shape: bf16[288,64], index: 2, kind: input, shape index: {}]
  %s3 = inlined_call_operand.vmem [shape: bf16[576,64], index: 3, kind: input, shape index: {}]
  %s4 = inlined_call_operand.vmem [shape: bf16[576,128], index: 4, kind: input, shape index: {}]
  %s5 = inlined_call_operand.vmem [shape: bf16[1152,256], index: 5, kind: input, shape index: {}]
  %s6 = inlined_call_operand.vmem [shape: bf16[2304,512], index: 6, kind: input, shape index: {}]
  %s7 = inlined_call_operand.vmem [shape: f32[1,32], index: 7, kind: input, shape index: {}]
  %s8 = inlined_call_operand.vmem [shape: f32[1,64], index: 8, kind: input, shape index: {}]
  %s9 = inlined_call_operand.vmem [shape: f32[1,64], index: 9, kind: input, shape index: {}]
  %s10 = inlined_call_operand.vmem [shape: f32[1,128], index: 10, kind: input, shape index: {}]
  %s11 = inlined_call_operand.vmem [shape: f32[1,256], index: 11, kind: input, shape index: {}]
  %s12 = inlined_call_operand.vmem [shape: f32[1,512], index: 12, kind: input, shape index: {}]
  %s13 = inlined_call_operand.vmem [shape: f32[2,1,512], index: 13, kind: output, shape index: {}]
  %s14 = sld [smem:[#allocation0]]
  $region85: #{discriminator_output.1} parent=0
    _
  %s16 = ssub.s32 1, %s14
  %s17 = scalar_select 0, %s16, %s14
  loop: start=0, step=1, limit=4
  $region2: #{discriminator_output.1} parent=0 // loop_pre_header
    _
  $region3: #{discriminator_output.1} parent=0 // loop_header
    %s19 = sphi 0, %s23
    %p20 = scmp.ge.s32.totalorder %s19, 4
    %s29 = sphi 0, %s31
    %s32 = sphi 0, %s29
    %s33 = sphi 0, %s32
    %s49 = sphi 0, %s33
    %s53 = sphi 0, %s53
    %s55 = sphi 0, %s53
    %s56 = sphi 0, %s55
    %s70 = sphi 0, %s56
    %s74 = sphi 0, %s74
    %s76 = sphi 0, %s74
    %s77 = sphi 0, %s76
    %s91 = sphi 0, %s77
    %s95 = sphi 0, %s95
    %s97 = sphi 0, %s95
    %s98 = sphi 0, %s97
    %s112 = sphi 0, %s98
    %s116 = sphi 0, %s116
    %s118 = sphi 0, %s116
    %s119 = sphi 0, %s118
    %s133 = sphi 0, %s119
    %s137 = sphi 0, %s137
    %s139 = sphi 0, %s137
    %s140 = sphi 0, %s139
    %s154 = sphi 0, %s140
    %s158 = sphi 0, %s158
    %s160 = sphi 0, %s158
    %s161 = sphi 0, %s160
    %s175 = sphi 0, %s161
    %s179 = sphi 0, %s179
    %s181 = sphi 0, %s179
    %s182 = sphi 0, %s181
    %s196 = sphi 0, %s182
    %s200 = sphi 0, %s200
    %s202 = sphi 0, %s200
    %s203 = sphi 0, %s202
    %s217 = sphi 0, %s203
    %s221 = sphi 0, %s221
    %s223 = sphi 0, %s221
    %s224 = sphi 0, %s223
    %s238 = sphi 0, %s224
    %s242 = sphi 0, %s242
    %s244 = sphi 0, %s242
    %s245 = sphi 0, %s244
    %s259 = sphi 0, %s245
    %s263 = sphi 0, %s263
    %s265 = sphi 0, %s263
    %s266 = sphi 0, %s265
    %s280 = sphi 0, %s266
    %s284 = sphi 0, %s284
    %s286 = sphi 0, %s284
    %s287 = sphi 0, %s286
    %s301 = sphi 0, %s287
    %s307 = sphi 0, %s309
    %s310 = sphi 0, %s307
    %s311 = sphi 0, %s310
    %s327 = sphi 0, %s311
  $region4: #{discriminator_output.1} parent=0 // loop_header_branch
    %22 = sbr.rel (%p20) target = $region8
  $region5: #{discriminator_output.1} parent=0 // loop_body
    %s24 = ssub.s32 %s19, 1
    %s25 = ssub.s32 %s19, 2
    %s26 = sadd.s32 %s19, 1
    %s27 = ssub.s32 %s19, %s26
    %p28 = scmp.eq.s32.totalorder %s27, 0
    %s30 = sadd.s32 %s29, 1
    %s31 = scalar_select %p28, %s29, %s30
    %p34 = pneg %p28
    %p35 = scmp.eq.s32.totalorder %s19, 1
    %p36 = por %p34, %p35
    %p37 = scmp.ne.s32.totalorder %s29, %s32
    %p38 = scmp.eq.s32.totalorder %s19, 0
    %p39 = por %p37, %p38
    %p40 = scmp.ne.s32.totalorder %s29, %s32
    %p41 = scmp.eq.s32.totalorder %s24, 1
    %p42 = por %p40, %p41
    %p43 = scmp.ne.s32.totalorder %s32, %s33
    %p44 = scmp.eq.s32.totalorder %s24, 0
    %p45 = por %p43, %p44
    %p46 = scmp.ne.s32.totalorder %s32, %s33
    %p47 = scmp.eq.s32.totalorder %s25, 1
    %p48 = por %p46, %p47
    %p50 = scmp.ne.s32.totalorder %s33, %s49
    %p51 = scmp.eq.s32.totalorder %s25, 0
    %p52 = por %p50, %p51
    %s54 = sadd.s32 %s53, 1
    %p57 = scmp.eq.s32.totalorder %s19, 1
    %p58 = scmp.ne.s32.totalorder %s53, %s55
    %p59 = scmp.eq.s32.totalorder %s19, 0
    %p60 = por %p58, %p59
    %p61 = scmp.ne.s32.totalorder %s53, %s55
    %p62 = scmp.eq.s32.totalorder %s24, 1
    %p63 = por %p61, %p62
    %p64 = scmp.ne.s32.totalorder %s55, %s56
    %p65 = scmp.eq.s32.totalorder %s24, 0
    %p66 = por %p64, %p65
    %p67 = scmp.ne.s32.totalorder %s55, %s56
    %p68 = scmp.eq.s32.totalorder %s25, 1
    %p69 = por %p67, %p68
    %p71 = scmp.ne.s32.totalorder %s56, %s70
    %p72 = scmp.eq.s32.totalorder %s25, 0
    %p73 = por %p71, %p72
    %s75 = sadd.s32 %s74, 1
    %p78 = scmp.eq.s32.totalorder %s19, 1
    %p79 = scmp.ne.s32.totalorder %s74, %s76
    %p80 = scmp.eq.s32.totalorder %s19, 0
    %p81 = por %p79, %p80
    %p82 = scmp.ne.s32.totalorder %s74, %s76
    %p83 = scmp.eq.s32.totalorder %s24, 1
    %p84 = por %p82, %p83
    %p85 = scmp.ne.s32.totalorder %s76, %s77
    %p86 = scmp.eq.s32.totalorder %s24, 0
    %p87 = por %p85, %p86
    %p88 = scmp.ne.s32.totalorder %s76, %s77
    %p89 = scmp.eq.s32.totalorder %s25, 1
    %p90 = por %p88, %p89
    %p92 = scmp.ne.s32.totalorder %s77, %s91
    %p93 = scmp.eq.s32.totalorder %s25, 0
    %p94 = por %p92, %p93
    %s96 = sadd.s32 %s95, 1
    %p99 = scmp.eq.s32.totalorder %s19, 1
    %p100 = scmp.ne.s32.totalorder %s95, %s97
    %p101 = scmp.eq.s32.totalorder %s19, 0
    %p102 = por %p100, %p101
    %p103 = scmp.ne.s32.totalorder %s95, %s97
    %p104 = scmp.eq.s32.totalorder %s24, 1
    %p105 = por %p103, %p104
    %p106 = scmp.ne.s32.totalorder %s97, %s98
    %p107 = scmp.eq.s32.totalorder %s24, 0
    %p108 = por %p106, %p107
    %p109 = scmp.ne.s32.totalorder %s97, %s98
    %p110 = scmp.eq.s32.totalorder %s25, 1
    %p111 = por %p109, %p110
    %p113 = scmp.ne.s32.totalorder %s98, %s112
    %p114 = scmp.eq.s32.totalorder %s25, 0
    %p115 = por %p113, %p114
    %s117 = sadd.s32 %s116, 1
    %p120 = scmp.eq.s32.totalorder %s19, 1
    %p121 = scmp.ne.s32.totalorder %s116, %s118
    %p122 = scmp.eq.s32.totalorder %s19, 0
    %p123 = por %p121, %p122
    %p124 = scmp.ne.s32.totalorder %s116, %s118
    %p125 = scmp.eq.s32.totalorder %s24, 1
    %p126 = por %p124, %p125
    %p127 = scmp.ne.s32.totalorder %s118, %s119
    %p128 = scmp.eq.s32.totalorder %s24, 0
    %p129 = por %p127, %p128
    %p130 = scmp.ne.s32.totalorder %s118, %s119
    %p131 = scmp.eq.s32.totalorder %s25, 1
    %p132 = por %p130, %p131
    %p134 = scmp.ne.s32.totalorder %s119, %s133
    %p135 = scmp.eq.s32.totalorder %s25, 0
    %p136 = por %p134, %p135
    %s138 = sadd.s32 %s137, 1
    %p141 = scmp.eq.s32.totalorder %s19, 1
    %p142 = scmp.ne.s32.totalorder %s137, %s139
    %p143 = scmp.eq.s32.totalorder %s19, 0
    %p144 = por %p142, %p143
    %p145 = scmp.ne.s32.totalorder %s137, %s139
    %p146 = scmp.eq.s32.totalorder %s24, 1
    %p147 = por %p145, %p146
    %p148 = scmp.ne.s32.totalorder %s139, %s140
    %p149 = scmp.eq.s32.totalorder %s24, 0
    %p150 = por %p148, %p149
    %p151 = scmp.ne.s32.totalorder %s139, %s140
    %p152 = scmp.eq.s32.totalorder %s25, 1
    %p153 = por %p151, %p152
    %p155 = scmp.ne.s32.totalorder %s140, %s154
    %p156 = scmp.eq.s32.totalorder %s25, 0
    %p157 = por %p155, %p156
    %s159 = sadd.s32 %s158, 1
    %p162 = scmp.eq.s32.totalorder %s19, 1
    %p163 = scmp.ne.s32.totalorder %s158, %s160
    %p164 = scmp.eq.s32.totalorder %s19, 0
    %p165 = por %p163, %p164
    %p166 = scmp.ne.s32.totalorder %s158, %s160
    %p167 = scmp.eq.s32.totalorder %s24, 1
    %p168 = por %p166, %p167
    %p169 = scmp.ne.s32.totalorder %s160, %s161
    %p170 = scmp.eq.s32.totalorder %s24, 0
    %p171 = por %p169, %p170
    %p172 = scmp.ne.s32.totalorder %s160, %s161
    %p173 = scmp.eq.s32.totalorder %s25, 1
    %p174 = por %p172, %p173
    %p176 = scmp.ne.s32.totalorder %s161, %s175
    %p177 = scmp.eq.s32.totalorder %s25, 0
    %p178 = por %p176, %p177
    %s180 = sadd.s32 %s179, 1
    %p183 = scmp.eq.s32.totalorder %s19, 1
    %p184 = scmp.ne.s32.totalorder %s179, %s181
    %p185 = scmp.eq.s32.totalorder %s19, 0
    %p186 = por %p184, %p185
    %p187 = scmp.ne.s32.totalorder %s179, %s181
    %p188 = scmp.eq.s32.totalorder %s24, 1
    %p189 = por %p187, %p188
    %p190 = scmp.ne.s32.totalorder %s181, %s182
    %p191 = scmp.eq.s32.totalorder %s24, 0
    %p192 = por %p190, %p191
    %p193 = scmp.ne.s32.totalorder %s181, %s182
    %p194 = scmp.eq.s32.totalorder %s25, 1
    %p195 = por %p193, %p194
    %p197 = scmp.ne.s32.totalorder %s182, %s196
    %p198 = scmp.eq.s32.totalorder %s25, 0
    %p199 = por %p197, %p198
    %s201 = sadd.s32 %s200, 1
    %p204 = scmp.eq.s32.totalorder %s19, 1
    %p205 = scmp.ne.s32.totalorder %s200, %s202
    %p206 = scmp.eq.s32.totalorder %s19, 0
    %p207 = por %p205, %p206
    %p208 = scmp.ne.s32.totalorder %s200, %s202
    %p209 = scmp.eq.s32.totalorder %s24, 1
    %p210 = por %p208, %p209
    %p211 = scmp.ne.s32.totalorder %s202, %s203
    %p212 = scmp.eq.s32.totalorder %s24, 0
    %p213 = por %p211, %p212
    %p214 = scmp.ne.s32.totalorder %s202, %s203
    %p215 = scmp.eq.s32.totalorder %s25, 1
    %p216 = por %p214, %p215
    %p218 = scmp.ne.s32.totalorder %s203, %s217
    %p219 = scmp.eq.s32.totalorder %s25, 0
    %p220 = por %p218, %p219
    %s222 = sadd.s32 %s221, 1
    %p225 = scmp.eq.s32.totalorder %s19, 1
    %p226 = scmp.ne.s32.totalorder %s221, %s223
    %p227 = scmp.eq.s32.totalorder %s19, 0
    %p228 = por %p226, %p227
    %p229 = scmp.ne.s32.totalorder %s221, %s223
    %p230 = scmp.eq.s32.totalorder %s24, 1
    %p231 = por %p229, %p230
    %p232 = scmp.ne.s32.totalorder %s223, %s224
    %p233 = scmp.eq.s32.totalorder %s24, 0
    %p234 = por %p232, %p233
    %p235 = scmp.ne.s32.totalorder %s223, %s224
    %p236 = scmp.eq.s32.totalorder %s25, 1
    %p237 = por %p235, %p236
    %p239 = scmp.ne.s32.totalorder %s224, %s238
    %p240 = scmp.eq.s32.totalorder %s25, 0
    %p241 = por %p239, %p240
    %s243 = sadd.s32 %s242, 1
    %p246 = scmp.eq.s32.totalorder %s19, 1
    %p247 = scmp.ne.s32.totalorder %s242, %s244
    %p248 = scmp.eq.s32.totalorder %s19, 0
    %p249 = por %p247, %p248
    %p250 = scmp.ne.s32.totalorder %s242, %s244
    %p251 = scmp.eq.s32.totalorder %s24, 1
    %p252 = por %p250, %p251
    %p253 = scmp.ne.s32.totalorder %s244, %s245
    %p254 = scmp.eq.s32.totalorder %s24, 0
    %p255 = por %p253, %p254
    %p256 = scmp.ne.s32.totalorder %s244, %s245
    %p257 = scmp.eq.s32.totalorder %s25, 1
    %p258 = por %p256, %p257
    %p260 = scmp.ne.s32.totalorder %s245, %s259
    %p261 = scmp.eq.s32.totalorder %s25, 0
    %p262 = por %p260, %p261
    %s264 = sadd.s32 %s263, 1
    %p267 = scmp.eq.s32.totalorder %s19, 1
    %p268 = scmp.ne.s32.totalorder %s263, %s265
    %p269 = scmp.eq.s32.totalorder %s19, 0
    %p270 = por %p268, %p269
    %p271 = scmp.ne.s32.totalorder %s263, %s265
    %p272 = scmp.eq.s32.totalorder %s24, 1
    %p273 = por %p271, %p272
    %p274 = scmp.ne.s32.totalorder %s265, %s266
    %p275 = scmp.eq.s32.totalorder %s24, 0
    %p276 = por %p274, %p275
    %p277 = scmp.ne.s32.totalorder %s265, %s266
    %p278 = scmp.eq.s32.totalorder %s25, 1
    %p279 = por %p277, %p278
    %p281 = scmp.ne.s32.totalorder %s266, %s280
    %p282 = scmp.eq.s32.totalorder %s25, 0
    %p283 = por %p281, %p282
    %s285 = sadd.s32 %s284, 1
    %p288 = scmp.eq.s32.totalorder %s19, 1
    %p289 = scmp.ne.s32.totalorder %s284, %s286
    %p290 = scmp.eq.s32.totalorder %s19, 0
    %p291 = por %p289, %p290
    %p292 = scmp.ne.s32.totalorder %s284, %s286
    %p293 = scmp.eq.s32.totalorder %s24, 1
    %p294 = por %p292, %p293
    %p295 = scmp.ne.s32.totalorder %s286, %s287
    %p296 = scmp.eq.s32.totalorder %s24, 0
    %p297 = por %p295, %p296
    %p298 = scmp.ne.s32.totalorder %s286, %s287
    %p299 = scmp.eq.s32.totalorder %s25, 1
    %p300 = por %p298, %p299
    %p302 = scmp.ne.s32.totalorder %s287, %s301
    %p303 = scmp.eq.s32.totalorder %s25, 0
    %p304 = por %p302, %p303
    %s305 = ssub.s32 %s19, %s26
    %p306 = scmp.eq.s32.totalorder %s305, 0
    %s308 = sadd.s32 %s307, 1
    %s309 = scalar_select %p306, %s307, %s308
    %p312 = pneg %p306
    %p313 = scmp.eq.s32.totalorder %s19, 1
    %p314 = por %p312, %p313
    %p315 = scmp.ne.s32.totalorder %s307, %s310
    %p316 = scmp.eq.s32.totalorder %s19, 0
    %p317 = por %p315, %p316
    %p318 = scmp.ne.s32.totalorder %s307, %s310
    %p319 = scmp.eq.s32.totalorder %s24, 1
    %p320 = por %p318, %p319
    %p321 = scmp.ne.s32.totalorder %s310, %s311
    %p322 = scmp.eq.s32.totalorder %s24, 0
    %p323 = por %p321, %p322
    %p324 = scmp.ne.s32.totalorder %s310, %s311
    %p325 = scmp.eq.s32.totalorder %s25, 1
    %p326 = por %p324, %p325
    %p328 = scmp.ne.s32.totalorder %s311, %s327
    %p329 = scmp.eq.s32.totalorder %s25, 0
    %p330 = por %p328, %p329
    %p331 = scmp.le.s32.totalorder 1, %s19
    %p332 = scmp.lt.s32.totalorder %s19, 3
    %p333 = pnand %p331, %p332
    %p334 = pneg %p333
    // Predicated region
    $region9: #{discriminator_output.1} parent=5 // pred_check
      _
    $region10: #{discriminator_output.1} parent=5 // pred_check_branch
      %336 = sbr.rel (%p333) target = $region12
    $region11: #{discriminator_output.1} parent=5 // pred_region
      %s337 = ssub.s32 %s19, 1
      // Predicated region
      $region13: #{discriminator_output.1} parent=11 // pred_check
        %p338 = pneg %p66
      $region14: #{discriminator_output.1} parent=11 // pred_check_branch
        %340 = sbr.rel (%p338) target = $region16
      $region15: #{discriminator_output.1} parent=11 // pred_region
        _
      $region16: #{discriminator_output.1} parent=11 // pred_fallthru
        _
      // Predicated region
      $region17: #{discriminator_output.1} parent=11 // pred_check
        %p341 = pneg %p87
      $region18: #{discriminator_output.1} parent=11 // pred_check_branch
        %343 = sbr.rel (%p341) target = $region20
      $region19: #{discriminator_output.1} parent=11 // pred_region
        _
      $region20: #{discriminator_output.1} parent=11 // pred_fallthru
        _
      // Predicated region
      $region21: #{discriminator_output.1} parent=11 // pred_check
        %p344 = pneg %p108
      $region22: #{discriminator_output.1} parent=11 // pred_check_branch
        %346 = sbr.rel (%p344) target = $region24
      $region23: #{discriminator_output.1} parent=11 // pred_region
        _
      $region24: #{discriminator_output.1} parent=11 // pred_fallthru
        _
      // Predicated region
      $region25: #{discriminator_output.1} parent=11 // pred_check
        %p347 = pneg %p129
      $region26: #{discriminator_output.1} parent=11 // pred_check_branch
        %349 = sbr.rel (%p347) target = $region28
      $region27: #{discriminator_output.1} parent=11 // pred_region
        _
      $region28: #{discriminator_output.1} parent=11 // pred_fallthru
        _
      // Predicated region
      $region29: #{discriminator_output.1} parent=11 // pred_check
        %p350 = pneg %p150
      $region30: #{discriminator_output.1} parent=11 // pred_check_branch
        %352 = sbr.rel (%p350) target = $region32
      $region31: #{discriminator_output.1} parent=11 // pred_region
        _
      $region32: #{discriminator_output.1} parent=11 // pred_fallthru
        _
      // Predicated region
      $region33: #{discriminator_output.1} parent=11 // pred_check
        %p353 = pneg %p171
      $region34: #{discriminator_output.1} parent=11 // pred_check_branch
        %355 = sbr.rel (%p353) target = $region36
      $region35: #{discriminator_output.1} parent=11 // pred_region
        _
      $region36: #{discriminator_output.1} parent=11 // pred_fallthru
        _
      // Predicated region
      $region37: #{discriminator_output.1} parent=11 // pred_check
        %p356 = pneg %p192
      $region38: #{discriminator_output.1} parent=11 // pred_check_branch
        %358 = sbr.rel (%p356) target = $region40
      $region39: #{discriminator_output.1} parent=11 // pred_region
        _
      $region40: #{discriminator_output.1} parent=11 // pred_fallthru
        _
      // Predicated region
      $region41: #{discriminator_output.1} parent=11 // pred_check
        %p359 = pneg %p213
      $region42: #{discriminator_output.1} parent=11 // pred_check_branch
        %361 = sbr.rel (%p359) target = $region44
      $region43: #{discriminator_output.1} parent=11 // pred_region
        _
      $region44: #{discriminator_output.1} parent=11 // pred_fallthru
        _
      // Predicated region
      $region45: #{discriminator_output.1} parent=11 // pred_check
        %p362 = pneg %p234
      $region46: #{discriminator_output.1} parent=11 // pred_check_branch
        %364 = sbr.rel (%p362) target = $region48
      $region47: #{discriminator_output.1} parent=11 // pred_region
        _
      $region48: #{discriminator_output.1} parent=11 // pred_fallthru
        _
      // Predicated region
      $region49: #{discriminator_output.1} parent=11 // pred_check
        %p365 = pneg %p255
      $region50: #{discriminator_output.1} parent=11 // pred_check_branch
        %367 = sbr.rel (%p365) target = $region52
      $region51: #{discriminator_output.1} parent=11 // pred_region
        _
      $region52: #{discriminator_output.1} parent=11 // pred_fallthru
        _
      // Predicated region
      $region53: #{discriminator_output.1} parent=11 // pred_check
        %p368 = pneg %p276
      $region54: #{discriminator_output.1} parent=11 // pred_check_branch
        %370 = sbr.rel (%p368) target = $region56
      $region55: #{discriminator_output.1} parent=11 // pred_region
        _
      $region56: #{discriminator_output.1} parent=11 // pred_fallthru
        _
      // Predicated region
      $region57: #{discriminator_output.1} parent=11 // pred_check
        %p371 = pneg %p297
      $region58: #{discriminator_output.1} parent=11 // pred_check_branch
        %373 = sbr.rel (%p371) target = $region60
      $region59: #{discriminator_output.1} parent=11 // pred_region
        _
      $region60: #{discriminator_output.1} parent=11 // pred_fallthru
        _
    $region12: #{discriminator_output.1} parent=5 // pred_fallthru
      _
    %p374 = scmp.lt.s32.totalorder %s19, 2
    // Predicated region
    $region61: #{discriminator_output.1} parent=5 // pred_check
      %p375 = pneg %p374
    $region62: #{discriminator_output.1} parent=5 // pred_check_branch
      %377 = sbr.rel (%p375) target = $region64
    $region63: #{discriminator_output.1} parent=5 // pred_region
      // Predicated region
      $region65: #{discriminator_output.1} parent=63 // pred_check
        %p378 = pneg %p39
      $region66: #{discriminator_output.1} parent=63 // pred_check_branch
        %380 = sbr.rel (%p378) target = $region68
      $region67: #{discriminator_output.1} parent=63 // pred_region
        %p381 = scmp.lt.s32.totalorder %s19, 1
        %s382 = scalar_select %p381, %s19, 1
        %s383 = smul.addr %s382, 128
        %s384 = smul.addr %s383, 4
        %s385 = scalar_lea.vmem %s0, %s384
      $region68: #{discriminator_output.1} parent=63 // pred_fallthru
        _
    $region64: #{discriminator_output.1} parent=5 // pred_fallthru
      _
    %p386 = scmp.le.s32.totalorder 1, %s19
    %p387 = scmp.lt.s32.totalorder %s19, 3
    %p388 = pnand %p386, %p387
    %p389 = pneg %p388
    // Predicated region
    $region69: #{discriminator_output.1} parent=5 // pred_check
      _
    $region70: #{discriminator_output.1} parent=5 // pred_check_branch
      %391 = sbr.rel (%p388) target = $region72
    $region71: #{discriminator_output.1} parent=5 // pred_region
      %s392 = ssub.s32 %s19, 1
      %p393 = scmp.lt.s32.totalorder %s24, 1
      %s394 = scalar_select %p393, %s24, 1
      %s395 = smul.addr %s394, 128
      %s396 = smul.addr %s395, 4
      %s397 = scalar_lea.vmem %s0, %s396
      %p398 = pneg %p45
      %p399 = pneg %p42
      %p400 = pneg %p66
      %p401 = pneg %p63
      %p402 = pneg %p87
      %p403 = pneg %p84
      %p404 = pneg %p108
      %p405 = pneg %p105
      %p406 = pneg %p129
      %p407 = pneg %p126
      %p408 = pneg %p150
      %p409 = pneg %p147
      %p410 = pneg %p171
      %p411 = pneg %p168
      %p412 = pneg %p192
      %p413 = pneg %p189
      %p414 = pneg %p213
      %p415 = pneg %p210
      %p416 = pneg %p234
      %p417 = pneg %p231
      %p418 = pneg %p255
      %p419 = pneg %p252
      %p420 = pneg %p276
      %p421 = pneg %p273
      %p422 = pneg %p297
      %p423 = pneg %p294
      %p424 = pneg %p323
      %p425 = pneg %p320
      %p426 = scmp.lt.s32.totalorder %s24, 1
      %s427 = scalar_select %p426, %s24, 1
      %s428 = smul.addr %s427, 4
      %s429 = scalar_lea.vmem %s13, %s428
      %p430 = scmp.lt.s32.totalorder %s24, 1
      %s431 = scalar_select %p430, %s24, 1
      %s432 = smul.addr %s431, 128
      %s433 = smul.addr %s432, 4
      %s434 = scalar_lea.vmem %s0, %s433
      %p435 = scmp.lt.s32.totalorder %s24, 1
      %s436 = scalar_select %p435, %s24, 1
      %s437 = smul.addr %s436, 4
      %s438 = scalar_lea.vmem %s13, %s437
      %vm440 = vcmask 261120
      %441 = vst.msk [vmem:[#allocation2] sm:$0xff] %vm440, 0.0
      %442 = vst.msk [vmem:[#allocation2 + $0x8] sm:$0xff] %vm440, 0.0
      %443 = vst.msk [vmem:[#allocation2 + $0x10] sm:$0xff] %vm440, 0.0
      %444 = vst.msk [vmem:[#allocation2 + $0x18] sm:$0xff] %vm440, 0.0
      %vm445 = vcmask 254976
      %446 = vst.msk [vmem:[#allocation2 + $0x20] sm:$0x3] %vm445, 0.0
      %vm447 = vcmask 253952
      %448 = vst.msk [vmem:[#allocation2] sm:$0x1] %vm447, 0.0
      %449 = vst.msk [vmem:[#allocation2 + $0x28] sm:$0x1] %vm447, 0.0
      %450 = vst.msk [vmem:[#allocation2 + $0x50] sm:$0x1] %vm447, 0.0
      %451 = vst.msk [vmem:[#allocation2 + $0x78] sm:$0x1] %vm447, 0.0
      %452 = vst.msk [vmem:[#allocation2 + $0xa0] sm:$0x1] %vm447, 0.0
      %453 = vst.msk [vmem:[#allocation2 + $0xc8] sm:$0x1] %vm447, 0.0
      %454 = vst.msk [vmem:[#allocation2 + $0xf0] sm:$0x1] %vm447, 0.0
      %455 = vst.msk [vmem:[#allocation2 + $0x118] sm:$0x1] %vm447, 0.0
      %456 = vst.msk [vmem:[#allocation2 + $0x140] sm:$0x1] %vm447, 0.0
      %457 = vst.msk [vmem:[#allocation2 + $0x168] sm:$0x1] %vm447, 0.0
      %458 = vst.msk [vmem:[#allocation2 + $0x190] sm:$0x1] %vm447, 0.0
      %459 = vst.msk [vmem:[#allocation2 + $0x1b8] sm:$0x1] %vm447, 0.0
      %460 = vst.msk [vmem:[#allocation2 + $0x1e0] sm:$0x1] %vm447, 0.0
      %461 = vst.msk [vmem:[#allocation2 + $0x208] sm:$0x1] %vm447, 0.0
      %462 = vst.msk [vmem:[#allocation2 + $0x230] sm:$0x1] %vm447, 0.0
      %463 = vst.msk [vmem:[#allocation2 + $0x258] sm:$0x1] %vm447, 0.0
      %464 = vst.msk [vmem:[#allocation2 + $0x280] sm:$0x1] %vm447, 0.0
      %465 = vst.msk [vmem:[#allocation2 + $0x2a8] sm:$0x1] %vm447, 0.0
      %466 = vst.msk [vmem:[#allocation2 + $0x2d0] sm:$0x1] %vm447, 0.0
      %467 = vst.msk [vmem:[#allocation2 + $0x2f8] sm:$0x1] %vm447, 0.0
      %468 = vst.msk [vmem:[#allocation2 + $0x320] sm:$0x1] %vm447, 0.0
      %469 = vst.msk [vmem:[#allocation2 + $0x348] sm:$0x1] %vm447, 0.0
      %470 = vst.msk [vmem:[#allocation2 + $0x370] sm:$0x1] %vm447, 0.0
      %471 = vst.msk [vmem:[#allocation2 + $0x398] sm:$0x1] %vm447, 0.0
      %472 = vst.msk [vmem:[#allocation2 + $0x3c0] sm:$0x1] %vm447, 0.0
      %473 = vst.msk [vmem:[#allocation2 + $0x3e8] sm:$0x1] %vm447, 0.0
      %474 = vst.msk [vmem:[#allocation2 + $0x410] sm:$0x1] %vm447, 0.0
      %475 = vst.msk [vmem:[#allocation2 + $0x438] sm:$0x1] %vm447, 0.0
      %476 = vst.msk [vmem:[#allocation2 + $0x460] sm:$0x1] %vm447, 0.0
      %477 = vst.msk [vmem:[#allocation2 + $0x488] sm:$0x1] %vm447, 0.0
      %478 = vst.msk [vmem:[#allocation2 + $0x4b0] sm:$0x1] %vm447, 0.0
      %479 = vst.msk [vmem:[#allocation2 + $0x4d8] sm:$0x1] %vm447, 0.0
      %480 = vst.msk [vmem:[#allocation2 + $0x500] sm:$0x1] %vm447, 0.0
      %481 = vst.msk [vmem:[#allocation2 + $0x528] sm:$0x1] %vm447, 0.0
      %vm482 = vcmask 523264
      %483 = vst.msk [vmem:[#allocation3] sm:$0xff] %vm482, 0.0
      %484 = vst.msk [vmem:[#allocation3 + $0x8] sm:$0xff] %vm482, 0.0
      %vm485 = vcmask 517120
      %486 = vst.msk [vmem:[#allocation3 + $0x10] sm:$0x3] %vm485, 0.0
      %vm487 = vcmask 516096
      %488 = vst.msk [vmem:[#allocation3] sm:$0x1] %vm487, 0.0
      %489 = vst.msk [vmem:[#allocation3 + $0x18] sm:$0x1] %vm487, 0.0
      %490 = vst.msk [vmem:[#allocation3 + $0x30] sm:$0x1] %vm487, 0.0
      %491 = vst.msk [vmem:[#allocation3 + $0x48] sm:$0x1] %vm487, 0.0
      %492 = vst.msk [vmem:[#allocation3 + $0x60] sm:$0x1] %vm487, 0.0
      %493 = vst.msk [vmem:[#allocation3 + $0x78] sm:$0x1] %vm487, 0.0
      %494 = vst.msk [vmem:[#allocation3 + $0x90] sm:$0x1] %vm487, 0.0
      %495 = vst.msk [vmem:[#allocation3 + $0xa8] sm:$0x1] %vm487, 0.0
      %496 = vst.msk [vmem:[#allocation3 + $0xc0] sm:$0x1] %vm487, 0.0
      %497 = vst.msk [vmem:[#allocation3 + $0xd8] sm:$0x1] %vm487, 0.0
      %498 = vst.msk [vmem:[#allocation3 + $0xf0] sm:$0x1] %vm487, 0.0
      %499 = vst.msk [vmem:[#allocation3 + $0x108] sm:$0x1] %vm487, 0.0
      %500 = vst.msk [vmem:[#allocation3 + $0x120] sm:$0x1] %vm487, 0.0
      %501 = vst.msk [vmem:[#allocation3 + $0x138] sm:$0x1] %vm487, 0.0
      %502 = vst.msk [vmem:[#allocation3 + $0x150] sm:$0x1] %vm487, 0.0
      %503 = vst.msk [vmem:[#allocation3 + $0x168] sm:$0x1] %vm487, 0.0
      %504 = vst.msk [vmem:[#allocation3 + $0x180] sm:$0x1] %vm487, 0.0
      %505 = vst.msk [vmem:[#allocation3 + $0x198] sm:$0x1] %vm487, 0.0
      %506 = vst.msk [vmem:[#allocation4] sm:$0xff] %vm482, 0.0
      %507 = vst.msk [vmem:[#allocation4 + $0x8] sm:$0x3] %vm485, 0.0
      %508 = vst.msk [vmem:[#allocation4] sm:$0x1] %vm487, 0.0
      %509 = vst.msk [vmem:[#allocation4 + $0x10] sm:$0x1] %vm487, 0.0
      %510 = vst.msk [vmem:[#allocation4 + $0x20] sm:$0x1] %vm487, 0.0
      %511 = vst.msk [vmem:[#allocation4 + $0x30] sm:$0x1] %vm487, 0.0
      %512 = vst.msk [vmem:[#allocation4 + $0x40] sm:$0x1] %vm487, 0.0
      %513 = vst.msk [vmem:[#allocation4 + $0x50] sm:$0x1] %vm487, 0.0
      %514 = vst.msk [vmem:[#allocation4 + $0x60] sm:$0x1] %vm487, 0.0
      %515 = vst.msk [vmem:[#allocation4 + $0x70] sm:$0x1] %vm487, 0.0
      %516 = vst.msk [vmem:[#allocation4 + $0x80] sm:$0x1] %vm487, 0.0
      %517 = vst.msk [vmem:[#allocation4 + $0x90] sm:$0x1] %vm487, 0.0
      %518 = vst [vmem:[#allocation5] sm:$0x3f] 0.0
      %519 = vst [vmem:[#allocation5] sm:$0x1] 0.0
      %520 = vst [vmem:[#allocation5 + $0x8] sm:$0x1] 0.0
      %521 = vst [vmem:[#allocation5 + $0x10] sm:$0x1] 0.0
      %522 = vst [vmem:[#allocation5 + $0x18] sm:$0x1] 0.0
      %523 = vst [vmem:[#allocation5 + $0x20] sm:$0x1] 0.0
      %524 = vst [vmem:[#allocation5 + $0x28] sm:$0x1] 0.0
      %525 = vst [vmem:[#allocation6] sm:$0xff] 0.0
      %v526 = vlaneseq
      %vm527 = vcmp.ge.s32.totalorder %v526, 0
      %vm528 = vcmp.lt.s32.totalorder %v526, 256
      %vm529 = vmand %vm527, %vm528
      %530 = vst.msk [vmem:[#allocation6] ss:$4 sm:$0x3] %vm529, 0.0
      %s531 = scalar_lea.vmem [#allocation6], 8
      %532 = vst.msk [vmem:[%s531] ss:$4 sm:$0x3] %vm529, 0.0
      %s533 = scalar_lea.vmem [#allocation6], 16
      %534 = vst.msk [vmem:[%s533] ss:$4 sm:$0x3] %vm529, 0.0
      %s535 = scalar_lea.vmem [#allocation6], 24
      %536 = vst.msk [vmem:[%s535] ss:$4 sm:$0x3] %vm529, 0.0
      %v537 = vld [vmem:[%s434] sm:$0xf]
      %v538 = vld [vmem:[%s434 + $0x4] sm:$0xf]
      %v539 = vld [vmem:[%s434 + $0x8] sm:$0xf]
      %v540 = vld [vmem:[%s434 + $0xc] sm:$0xf]
      %v541 = vld [vmem:[%s434 + $0x10] sm:$0xf]
      %v542 = vld [vmem:[%s434 + $0x14] sm:$0xf]
      %v543 = vld [vmem:[%s434 + $0x18] sm:$0xf]
      %v544 = vld [vmem:[%s434 + $0x1c] sm:$0xf]
      %v545 = vld [vmem:[%s434 + $0x20] sm:$0xf]
      %v546 = vld [vmem:[%s434 + $0x24] sm:$0xf]
      %v547 = vld [vmem:[%s434 + $0x28] sm:$0xf]
      %v548 = vld [vmem:[%s434 + $0x2c] sm:$0xf]
      %v549 = vld [vmem:[%s434 + $0x30] sm:$0xf]
      %v550 = vld [vmem:[%s434 + $0x34] sm:$0xf]
      %v551 = vld [vmem:[%s434 + $0x38] sm:$0xf]
      %v552 = vld [vmem:[%s434 + $0x3c] sm:$0xf]
      %v553 = vld [vmem:[%s434 + $0x40] sm:$0xf]
      %v554 = vld [vmem:[%s434 + $0x44] sm:$0xf]
      %v555 = vld [vmem:[%s434 + $0x48] sm:$0xf]
      %v556 = vld [vmem:[%s434 + $0x4c] sm:$0xf]
      %v557 = vld [vmem:[%s434 + $0x50] sm:$0xf]
      %v558 = vld [vmem:[%s434 + $0x54] sm:$0xf]
      %v559 = vld [vmem:[%s434 + $0x58] sm:$0xf]
      %v560 = vld [vmem:[%s434 + $0x5c] sm:$0xf]
      %v561 = vld [vmem:[%s434 + $0x60] sm:$0xf]
      %v562 = vld [vmem:[%s434 + $0x64] sm:$0xf]
      %v563 = vld [vmem:[%s434 + $0x68] sm:$0xf]
      %v564 = vld [vmem:[%s434 + $0x6c] sm:$0xf]
      %v565 = vld [vmem:[%s434 + $0x70] sm:$0xf]
      %v566 = vld [vmem:[%s434 + $0x74] sm:$0xf]
      %v567 = vld [vmem:[%s434 + $0x78] sm:$0xf]
      %v568 = vld [vmem:[%s434 + $0x7c] sm:$0xf]
      %v569 = vld [vmem:[%s434 + $0x80] sm:$0xf]
      %v570 = vld [vmem:[%s434 + $0x84] sm:$0xf]
      %v571 = vld [vmem:[%s434 + $0x88] sm:$0xf]
      %v572 = vld [vmem:[%s434 + $0x8c] sm:$0xf]
      %v573 = vld [vmem:[%s434 + $0x90] sm:$0xf]
      %v574 = vld [vmem:[%s434 + $0x94] sm:$0xf]
      %v575 = vld [vmem:[%s434 + $0x98] sm:$0xf]
      %v576 = vld [vmem:[%s434 + $0x9c] sm:$0xf]
      %v577 = vld [vmem:[%s434 + $0xa0] sm:$0xf]
      %v578 = vld [vmem:[%s434 + $0xa4] sm:$0xf]
      %v579 = vld [vmem:[%s434 + $0xa8] sm:$0xf]
      %v580 = vld [vmem:[%s434 + $0xac] sm:$0xf]
      %v581 = vld [vmem:[%s434 + $0xb0] sm:$0xf]
      %v582 = vld [vmem:[%s434 + $0xb4] sm:$0xf]
      %v583 = vld [vmem:[%s434 + $0xb8] sm:$0xf]
      %v584 = vld [vmem:[%s434 + $0xbc] sm:$0xf]
      %v585 = vld [vmem:[%s434 + $0xc0] sm:$0xf]
      %v586 = vld [vmem:[%s434 + $0xc4] sm:$0xf]
      %v587 = vld [vmem:[%s434 + $0xc8] sm:$0xf]
      %v588 = vld [vmem:[%s434 + $0xcc] sm:$0xf]
      %v589 = vld [vmem:[%s434 + $0xd0] sm:$0xf]
      %v590 = vld [vmem:[%s434 + $0xd4] sm:$0xf]
      %v591 = vld [vmem:[%s434 + $0xd8] sm:$0xf]
      %v592 = vld [vmem:[%s434 + $0xdc] sm:$0xf]
      %v593 = vld [vmem:[%s434 + $0xe0] sm:$0xf]
      %v594 = vld [vmem:[%s434 + $0xe4] sm:$0xf]
      %v595 = vld [vmem:[%s434 + $0xe8] sm:$0xf]
      %v596 = vld [vmem:[%s434 + $0xec] sm:$0xf]
      %v597 = vld [vmem:[%s434 + $0xf0] sm:$0xf]
      %v598 = vld [vmem:[%s434 + $0xf4] sm:$0xf]
      %v599 = vld [vmem:[%s434 + $0xf8] sm:$0xf]
      %v600 = vld [vmem:[%s434 + $0xfc] sm:$0xf]
      %v601 = vld [vmem:[%s434 + $0x100] sm:$0xf]
      %v602 = vld [vmem:[%s434 + $0x104] sm:$0xf]
      %v603 = vld [vmem:[%s434 + $0x108] sm:$0xf]
      %v604 = vld [vmem:[%s434 + $0x10c] sm:$0xf]
      %v605 = vld [vmem:[%s434 + $0x110] sm:$0xf]
      %v606 = vld [vmem:[%s434 + $0x114] sm:$0xf]
      %v607 = vld [vmem:[%s434 + $0x118] sm:$0xf]
      %v608 = vld [vmem:[%s434 + $0x11c] sm:$0xf]
      %v609 = vld [vmem:[%s434 + $0x120] sm:$0xf]
      %v610 = vld [vmem:[%s434 + $0x124] sm:$0xf]
      %v611 = vld [vmem:[%s434 + $0x128] sm:$0xf]
      %v612 = vld [vmem:[%s434 + $0x12c] sm:$0xf]
      %v613 = vld [vmem:[%s434 + $0x130] sm:$0xf]
      %v614 = vld [vmem:[%s434 + $0x134] sm:$0xf]
      %v615 = vld [vmem:[%s434 + $0x138] sm:$0xf]
      %v616 = vld [vmem:[%s434 + $0x13c] sm:$0xf]
      %v617 = vld [vmem:[%s434 + $0x140] sm:$0xf]
      %v618 = vld [vmem:[%s434 + $0x144] sm:$0xf]
      %v619 = vld [vmem:[%s434 + $0x148] sm:$0xf]
      %v620 = vld [vmem:[%s434 + $0x14c] sm:$0xf]
      %v621 = vld [vmem:[%s434 + $0x150] sm:$0xf]
      %v622 = vld [vmem:[%s434 + $0x154] sm:$0xf]
      %v623 = vld [vmem:[%s434 + $0x158] sm:$0xf]
      %v624 = vld [vmem:[%s434 + $0x15c] sm:$0xf]
      %v625 = vld [vmem:[%s434 + $0x160] sm:$0xf]
      %v626 = vld [vmem:[%s434 + $0x164] sm:$0xf]
      %v627 = vld [vmem:[%s434 + $0x168] sm:$0xf]
      %v628 = vld [vmem:[%s434 + $0x16c] sm:$0xf]
      %v629 = vld [vmem:[%s434 + $0x170] sm:$0xf]
      %v630 = vld [vmem:[%s434 + $0x174] sm:$0xf]
      %v631 = vld [vmem:[%s434 + $0x178] sm:$0xf]
      %v632 = vld [vmem:[%s434 + $0x17c] sm:$0xf]
      %v633 = vld [vmem:[%s434 + $0x180] sm:$0xf]
      %v634 = vld [vmem:[%s434 + $0x184] sm:$0xf]
      %v635 = vld [vmem:[%s434 + $0x188] sm:$0xf]
      %v636 = vld [vmem:[%s434 + $0x18c] sm:$0xf]
      %v637 = vld [vmem:[%s434 + $0x190] sm:$0xf]
      %v638 = vld [vmem:[%s434 + $0x194] sm:$0xf]
      %v639 = vld [vmem:[%s434 + $0x198] sm:$0xf]
      %v640 = vld [vmem:[%s434 + $0x19c] sm:$0xf]
      %v641 = vld [vmem:[%s434 + $0x1a0] sm:$0xf]
      %v642 = vld [vmem:[%s434 + $0x1a4] sm:$0xf]
      %v643 = vld [vmem:[%s434 + $0x1a8] sm:$0xf]
      %v644 = vld [vmem:[%s434 + $0x1ac] sm:$0xf]
      %v645 = vld [vmem:[%s434 + $0x1b0] sm:$0xf]
      %v646 = vld [vmem:[%s434 + $0x1b4] sm:$0xf]
      %v647 = vld [vmem:[%s434 + $0x1b8] sm:$0xf]
      %v648 = vld [vmem:[%s434 + $0x1bc] sm:$0xf]
      %v649 = vld [vmem:[%s434 + $0x1c0] sm:$0xf]
      %v650 = vld [vmem:[%s434 + $0x1c4] sm:$0xf]
      %v651 = vld [vmem:[%s434 + $0x1c8] sm:$0xf]
      %v652 = vld [vmem:[%s434 + $0x1cc] sm:$0xf]
      %v653 = vld [vmem:[%s434 + $0x1d0] sm:$0xf]
      %v654 = vld [vmem:[%s434 + $0x1d4] sm:$0xf]
      %v655 = vld [vmem:[%s434 + $0x1d8] sm:$0xf]
      %v656 = vld [vmem:[%s434 + $0x1dc] sm:$0xf]
      %v657 = vld [vmem:[%s434 + $0x1e0] sm:$0xf]
      %v658 = vld [vmem:[%s434 + $0x1e4] sm:$0xf]
      %v659 = vld [vmem:[%s434 + $0x1e8] sm:$0xf]
      %v660 = vld [vmem:[%s434 + $0x1ec] sm:$0xf]
      %v661 = vld [vmem:[%s434 + $0x1f0] sm:$0xf]
      %v662 = vld [vmem:[%s434 + $0x1f4] sm:$0xf]
      %v663 = vld [vmem:[%s434 + $0x1f8] sm:$0xf]
      %v664 = vld [vmem:[%s434 + $0x1fc] sm:$0xf]
      %v665 = vld [vmem:[%s1] sm:$0xf]
      %v666 = vld [vmem:[%s1 + $0x4] sm:$0xf]
      %v667 = vld [vmem:[%s1 + $0x8] sm:$0xf]
      %v668 = vld [vmem:[%s1 + $0xc] sm:$0x3]
      %v669 = vld [vmem:[%s7] sm:$0x1]
      %v671 = vlaneseq
      %v672 = vshrl.u32 %v671, 7
      %v673 = vsub.s32 0, %v672
      %v674 = vrot.slane %v669, %v673
      %v804 = vunpack.c.l.b16 %v537
      %v805 = vunpack.c.l.b16 %v538
      %v806 = vunpack.c.l.b16 %v539
      %v807 = vunpack.c.l.b16 %v540
      %v808 = vunpack.c.l.b16 %v541
      %v809 = vunpack.c.l.b16 %v542
      %v810 = vunpack.c.l.b16 %v543
      %v811 = vunpack.c.l.b16 %v544
      %v812 = vunpack.c.l.b16 %v545
      %v813 = vunpack.c.l.b16 %v546
      %v814 = vunpack.c.l.b16 %v547
      %v815 = vunpack.c.l.b16 %v548
      %v816 = vunpack.c.l.b16 %v549
      %v817 = vunpack.c.l.b16 %v550
      %v818 = vunpack.c.l.b16 %v551
      %v819 = vunpack.c.l.b16 %v552
      %v820 = vunpack.c.l.b16 %v553
      %v821 = vunpack.c.l.b16 %v554
      %v822 = vunpack.c.l.b16 %v555
      %v823 = vunpack.c.l.b16 %v556
      %v824 = vunpack.c.l.b16 %v557
      %v825 = vunpack.c.l.b16 %v558
      %v826 = vunpack.c.l.b16 %v559
      %v827 = vunpack.c.l.b16 %v560
      %v828 = vunpack.c.l.b16 %v561
      %v829 = vunpack.c.l.b16 %v562
      %v830 = vunpack.c.l.b16 %v563
      %v831 = vunpack.c.l.b16 %v564
      %v832 = vunpack.c.l.b16 %v565
      %v833 = vunpack.c.l.b16 %v566
      %v834 = vunpack.c.l.b16 %v567
      %v835 = vunpack.c.l.b16 %v568
      %v836 = vunpack.c.l.b16 %v569
      %v837 = vunpack.c.l.b16 %v570
      %v838 = vunpack.c.l.b16 %v571
      %v839 = vunpack.c.l.b16 %v572
      %v840 = vunpack.c.l.b16 %v573
      %v841 = vunpack.c.l.b16 %v574
      %v842 = vunpack.c.l.b16 %v575
      %v843 = vunpack.c.l.b16 %v576
      %v844 = vunpack.c.l.b16 %v577
      %v845 = vunpack.c.l.b16 %v578
      %v846 = vunpack.c.l.b16 %v579
      %v847 = vunpack.c.l.b16 %v580
      %v848 = vunpack.c.l.b16 %v581
      %v849 = vunpack.c.l.b16 %v582
      %v850 = vunpack.c.l.b16 %v583
      %v851 = vunpack.c.l.b16 %v584
      %v852 = vunpack.c.l.b16 %v585
      %v853 = vunpack.c.l.b16 %v586
      %v854 = vunpack.c.l.b16 %v587
      %v855 = vunpack.c.l.b16 %v588
      %v856 = vunpack.c.l.b16 %v589
      %v857 = vunpack.c.l.b16 %v590
      %v858 = vunpack.c.l.b16 %v591
      %v859 = vunpack.c.l.b16 %v592
      %v860 = vunpack.c.l.b16 %v593
      %v861 = vunpack.c.l.b16 %v594
      %v862 = vunpack.c.l.b16 %v595
      %v863 = vunpack.c.l.b16 %v596
      %v864 = vunpack.c.l.b16 %v597
      %v865 = vunpack.c.l.b16 %v598
      %v866 = vunpack.c.l.b16 %v599
      %v867 = vunpack.c.l.b16 %v600
      %v868 = vunpack.c.l.b16 %v601
      %v869 = vunpack.c.l.b16 %v602
      %v870 = vunpack.c.l.b16 %v603
      %v871 = vunpack.c.l.b16 %v604
      %v872 = vunpack.c.l.b16 %v605
      %v873 = vunpack.c.l.b16 %v606
      %v874 = vunpack.c.l.b16 %v607
      %v875 = vunpack.c.l.b16 %v608
      %v876 = vunpack.c.l.b16 %v609
      %v877 = vunpack.c.l.b16 %v610
      %v878 = vunpack.c.l.b16 %v611
      %v879 = vunpack.c.l.b16 %v612
      %v880 = vunpack.c.l.b16 %v613
      %v881 = vunpack.c.l.b16 %v614
      %v882 = vunpack.c.l.b16 %v615
      %v883 = vunpack.c.l.b16 %v616
      %v884 = vunpack.c.l.b16 %v617
      %v885 = vunpack.c.l.b16 %v618
      %v886 = vunpack.c.l.b16 %v619
      %v887 = vunpack.c.l.b16 %v620
      %v888 = vunpack.c.l.b16 %v621
      %v889 = vunpack.c.l.b16 %v622
      %v890 = vunpack.c.l.b16 %v623
      %v891 = vunpack.c.l.b16 %v624
      %v892 = vunpack.c.l.b16 %v625
      %v893 = vunpack.c.l.b16 %v626
      %v894 = vunpack.c.l.b16 %v627
      %v895 = vunpack.c.l.b16 %v628
      %v896 = vunpack.c.l.b16 %v629
      %v897 = vunpack.c.l.b16 %v630
      %v898 = vunpack.c.l.b16 %v631
      %v899 = vunpack.c.l.b16 %v632
      %v900 = vunpack.c.l.b16 %v633
      %v901 = vunpack.c.l.b16 %v634
      %v902 = vunpack.c.l.b16 %v635
      %v903 = vunpack.c.l.b16 %v636
      %v904 = vunpack.c.l.b16 %v637
      %v905 = vunpack.c.l.b16 %v638
      %v906 = vunpack.c.l.b16 %v639
      %v907 = vunpack.c.l.b16 %v640
      %v908 = vunpack.c.l.b16 %v641
      %v909 = vunpack.c.l.b16 %v642
      %v910 = vunpack.c.l.b16 %v643
      %v911 = vunpack.c.l.b16 %v644
      %v912 = vunpack.c.l.b16 %v645
      %v913 = vunpack.c.l.b16 %v646
      %v914 = vunpack.c.l.b16 %v647
      %v915 = vunpack.c.l.b16 %v648
      %v916 = vunpack.c.l.b16 %v649
      %v917 = vunpack.c.l.b16 %v650
      %v918 = vunpack.c.l.b16 %v651
      %v919 = vunpack.c.l.b16 %v652
      %v920 = vunpack.c.l.b16 %v653
      %v921 = vunpack.c.l.b16 %v654
      %v922 = vunpack.c.l.b16 %v655
      %v923 = vunpack.c.l.b16 %v656
      %v924 = vunpack.c.l.b16 %v657
      %v925 = vunpack.c.l.b16 %v658
      %v926 = vunpack.c.l.b16 %v659
      %v927 = vunpack.c.l.b16 %v660
      %v928 = vunpack.c.l.b16 %v661
      %v929 = vunpack.c.l.b16 %v662
      %v930 = vunpack.c.l.b16 %v663
      %v931 = vunpack.c.l.b16 %v664
      %v932 = vpack.c.b16 %v805, %v804
      %v933 = vpack.c.b16 %v807, %v806
      %v934 = vpack.c.b16 %v809, %v808
      %v935 = vpack.c.b16 %v811, %v810
      %v936 = vpack.c.b16 %v813, %v812
      %v937 = vpack.c.b16 %v815, %v814
      %v938 = vpack.c.b16 %v817, %v816
      %v939 = vpack.c.b16 %v819, %v818
      %v940 = vpack.c.b16 %v821, %v820
      %v941 = vpack.c.b16 %v823, %v822
      %v942 = vpack.c.b16 %v825, %v824
      %v943 = vpack.c.b16 %v827, %v826
      %v944 = vpack.c.b16 %v829, %v828
      %v945 = vpack.c.b16 %v831, %v830
      %v946 = vpack.c.b16 %v833, %v832
      %v947 = vpack.c.b16 %v835, %v834
      %v948 = vpack.c.b16 %v837, %v836
      %v949 = vpack.c.b16 %v839, %v838
      %v950 = vpack.c.b16 %v841, %v840
      %v951 = vpack.c.b16 %v843, %v842
      %v952 = vpack.c.b16 %v845, %v844
      %v953 = vpack.c.b16 %v847, %v846
      %v954 = vpack.c.b16 %v849, %v848
      %v955 = vpack.c.b16 %v851, %v850
      %v956 = vpack.c.b16 %v853, %v852
      %v957 = vpack.c.b16 %v855, %v854
      %v958 = vpack.c.b16 %v857, %v856
      %v959 = vpack.c.b16 %v859, %v858
      %v960 = vpack.c.b16 %v861, %v860
      %v961 = vpack.c.b16 %v863, %v862
      %v962 = vpack.c.b16 %v865, %v864
      %v963 = vpack.c.b16 %v867, %v866
      %v964 = vpack.c.b16 %v869, %v868
      %v965 = vpack.c.b16 %v871, %v870
      %v966 = vpack.c.b16 %v873, %v872
      %v967 = vpack.c.b16 %v875, %v874
      %v968 = vpack.c.b16 %v877, %v876
      %v969 = vpack.c.b16 %v879, %v878
      %v970 = vpack.c.b16 %v881, %v880
      %v971 = vpack.c.b16 %v883, %v882
      %v972 = vpack.c.b16 %v885, %v884
      %v973 = vpack.c.b16 %v887, %v886
      %v974 = vpack.c.b16 %v889, %v888
      %v975 = vpack.c.b16 %v891, %v890
      %v976 = vpack.c.b16 %v893, %v892
      %v977 = vpack.c.b16 %v895, %v894
      %v978 = vpack.c.b16 %v897, %v896
      %v979 = vpack.c.b16 %v899, %v898
      %v980 = vpack.c.b16 %v901, %v900
      %v981 = vpack.c.b16 %v903, %v902
      %v982 = vpack.c.b16 %v905, %v904
      %v983 = vpack.c.b16 %v907, %v906
      %v984 = vpack.c.b16 %v909, %v908
      %v985 = vpack.c.b16 %v911, %v910
      %v986 = vpack.c.b16 %v913, %v912
      %v987 = vpack.c.b16 %v915, %v914
      %v988 = vpack.c.b16 %v917, %v916
      %v989 = vpack.c.b16 %v919, %v918
      %v990 = vpack.c.b16 %v921, %v920
      %v991 = vpack.c.b16 %v923, %v922
      %v992 = vpack.c.b16 %v925, %v924
      %v993 = vpack.c.b16 %v927, %v926
      %v994 = vpack.c.b16 %v929, %v928
      %v995 = vpack.c.b16 %v931, %v930
      %v1000 = vunpack.c.l.b16 %v665
      %v1001 = vunpack.c.l.b16 %v666
      %v1002 = vunpack.c.l.b16 %v667
      %v1003 = vunpack.c.l.b16 %v668
      %v1004 = vpack.c.b16 %v1001, %v1000
      %v1005 = vpack.c.b16 %v1003, %v1002
      %vm1007 = vcmask 220160
      %v1009 = vsel %vm1007, %v932, 0
      %v1012 = vsel %vm1007, %v933, 0
      %v1015 = vsel %vm1007, %v934, 0
      %v1018 = vsel %vm1007, %v935, 0
      %v1021 = vsel %vm1007, %v936, 0
      %v1024 = vsel %vm1007, %v937, 0
      %v1027 = vsel %vm1007, %v938, 0
      %v1030 = vsel %vm1007, %v939, 0
      %v1033 = vsel %vm1007, %v940, 0
      %v1036 = vsel %vm1007, %v941, 0
      %v1039 = vsel %vm1007, %v942, 0
      %v1042 = vsel %vm1007, %v943, 0
      %v1045 = vsel %vm1007, %v944, 0
      %v1048 = vsel %vm1007, %v945, 0
      %v1051 = vsel %vm1007, %v946, 0
      %v1054 = vsel %vm1007, %v947, 0
      %v1057 = vsel %vm1007, %v948, 0
      %v1060 = vsel %vm1007, %v949, 0
      %v1063 = vsel %vm1007, %v950, 0
      %v1066 = vsel %vm1007, %v951, 0
      %v1069 = vsel %vm1007, %v952, 0
      %v1072 = vsel %vm1007, %v953, 0
      %v1075 = vsel %vm1007, %v954, 0
      %v1078 = vsel %vm1007, %v955, 0
      %v1081 = vsel %vm1007, %v956, 0
      %v1084 = vsel %vm1007, %v957, 0
      %v1087 = vsel %vm1007, %v958, 0
      %v1090 = vsel %vm1007, %v959, 0
      %v1093 = vsel %vm1007, %v960, 0
      %v1096 = vsel %vm1007, %v961, 0
      %v1099 = vsel %vm1007, %v962, 0
      %v1102 = vsel %vm1007, %v963, 0
      %v1105 = vsel %vm1007, %v964, 0
      %v1108 = vsel %vm1007, %v965, 0
      %v1111 = vsel %vm1007, %v966, 0
      %v1114 = vsel %vm1007, %v967, 0
      %v1117 = vsel %vm1007, %v968, 0
      %v1120 = vsel %vm1007, %v969, 0
      %v1123 = vsel %vm1007, %v970, 0
      %v1126 = vsel %vm1007, %v971, 0
      %v1129 = vsel %vm1007, %v972, 0
      %v1132 = vsel %vm1007, %v973, 0
      %v1135 = vsel %vm1007, %v974, 0
      %v1138 = vsel %vm1007, %v975, 0
      %v1141 = vsel %vm1007, %v976, 0
      %v1144 = vsel %vm1007, %v977, 0
      %v1147 = vsel %vm1007, %v978, 0
      %v1150 = vsel %vm1007, %v979, 0
      %v1153 = vsel %vm1007, %v980, 0
      %v1156 = vsel %vm1007, %v981, 0
      %v1159 = vsel %vm1007, %v982, 0
      %v1162 = vsel %vm1007, %v983, 0
      %v1165 = vsel %vm1007, %v984, 0
      %v1168 = vsel %vm1007, %v985, 0
      %v1171 = vsel %vm1007, %v986, 0
      %v1174 = vsel %vm1007, %v987, 0
      %v1177 = vsel %vm1007, %v988, 0
      %v1180 = vsel %vm1007, %v989, 0
      %v1183 = vsel %vm1007, %v990, 0
      %v1186 = vsel %vm1007, %v991, 0
      %v1189 = vsel %vm1007, %v992, 0
      %v1192 = vsel %vm1007, %v993, 0
      %v1195 = vsel %vm1007, %v994, 0
      %v1198 = vsel %vm1007, %v995, 0
      %vm1200 = vcmask 1044480
      %vm1201 = vcmask 1045504
      %v1202 = vsel %vm1200, 4294967295, 65535
      %v1203 = vsel %vm1201, %v1202, 0
      %v1205 = vand.u32 %v1005, %v1203
      %1207 = vmatprep.subr.bf16.mxu0 0
      %1208 = vmatpush1.bf16.msra.mxu0 0
      %1209 = vmatprep.subr.bf16.mxu0 0
      %1210 = vmatpush1.bf16.msra.mxu0 0
      %1211 = vmatprep.subr.bf16.mxu0 0
      %1212 = vmatpush1.bf16.msra.mxu0 0
      %1213 = vmatprep.subr.bf16.mxu0 0
      %1214 = vmatpush1.bf16.msra.mxu0 0
      %1215 = vmatprep.subr.bf16.mxu0 0
      %1216 = vmatpush1.bf16.msra.mxu0 0
      %1217 = vmatprep.subr.bf16.mxu0 0
      %1218 = vmatpush1.bf16.msra.mxu0 0
      %1219 = vmatprep.subr.bf16.mxu0 0
      %1220 = vmatpush1.bf16.msra.mxu0 %v1205
      %1221 = vmatprep.subr.bf16.mxu0 0
      %1222 = vmatpush1.bf16.msra.mxu0 %v1004
      %1223 = vmatprep.subr.bf16.mxu0 0
      %1224 = vmatpush2.bf16.msra.mxu0 0
      %1225 = vmatprep.subr.bf16.mxu0 0
      %1226 = vmatpush2.bf16.msra.mxu0 0
      %1227 = vmatprep.subr.bf16.mxu0 0
      %1228 = vmatpush2.bf16.msra.mxu0 0
      %1229 = vmatprep.subr.bf16.mxu0 0
      %1230 = vmatpush2.bf16.msra.mxu0 0
      %1231 = vmatprep.subr.bf16.mxu0 0
      %1232 = vmatpush2.bf16.msra.mxu0 0
      %1233 = vmatprep.subr.bf16.mxu0 0
      %1234 = vmatpush2.bf16.msra.mxu0 0
      %1235 = vmatprep.subr.bf16.mxu0 0
      %1236 = vmatpush2.bf16.msra.mxu0 0
      %1237 = vmatprep.subr.bf16.mxu0 0
      %1238 = vmatpush2.bf16.msra.mxu0 0
      %1239 = vmatprep.mubr.bf16.mxu0 0
      %1240 = vmatmul.mubr.bf16.gmra.mxu0 %v1009
      %v1241 = vpop.f32.mrf.mxu0
      %v1242 = vadd.f32 %v674, %v1241
      %v1243 = vpop.f32.mrf.mxu0
      %v1244 = vpop.f32.mrf.mxu0
      %v1245 = vadd.f32 %v674, %v1244
      %v1246 = vpop.f32.mrf.mxu0
      %1247 = vmatprep.mubr.bf16.mxu0 0
      %1248 = vmatmul.mubr.bf16.gmra.mxu0 %v1012
      %v1249 = vpop.f32.mrf.mxu0
      %v1250 = vadd.f32 %v674, %v1249
      %v1251 = vpop.f32.mrf.mxu0
      %v1252 = vpop.f32.mrf.mxu0
      %v1253 = vadd.f32 %v674, %v1252
      %v1254 = vpop.f32.mrf.mxu0
      %1255 = vmatprep.mubr.bf16.mxu0 0
      %1256 = vmatmul.mubr.bf16.gmra.mxu0 %v1015
      %v1257 = vpop.f32.mrf.mxu0
      %v1258 = vadd.f32 %v674, %v1257
      %v1259 = vpop.f32.mrf.mxu0
      %v1260 = vpop.f32.mrf.mxu0
      %v1261 = vadd.f32 %v674, %v1260
      %v1262 = vpop.f32.mrf.mxu0
      %1263 = vmatprep.mubr.bf16.mxu0 0
      %1264 = vmatmul.mubr.bf16.gmra.mxu0 %v1018
      %v1265 = vpop.f32.mrf.mxu0
      %v1266 = vadd.f32 %v674, %v1265
      %v1267 = vpop.f32.mrf.mxu0
      %v1268 = vpop.f32.mrf.mxu0
      %v1269 = vadd.f32 %v674, %v1268
      %v1270 = vpop.f32.mrf.mxu0
      %1271 = vmatprep.mubr.bf16.mxu0 0
      %1272 = vmatmul.mubr.bf16.gmra.mxu0 %v1021
      %v1273 = vpop.f32.mrf.mxu0
      %v1274 = vadd.f32 %v674, %v1273
      %v1275 = vpop.f32.mrf.mxu0
      %v1276 = vpop.f32.mrf.mxu0
      %v1277 = vadd.f32 %v674, %v1276
      %v1278 = vpop.f32.mrf.mxu0
      %1279 = vmatprep.mubr.bf16.mxu0 0
      %1280 = vmatmul.mubr.bf16.gmra.mxu0 %v1024
      %v1281 = vpop.f32.mrf.mxu0
      %v1282 = vadd.f32 %v674, %v1281
      %v1283 = vpop.f32.mrf.mxu0
      %v1284 = vpop.f32.mrf.mxu0
      %v1285 = vadd.f32 %v674, %v1284
      %v1286 = vpop.f32.mrf.mxu0
      %1287 = vmatprep.mubr.bf16.mxu0 0
      %1288 = vmatmul.mubr.bf16.gmra.mxu0 %v1027
      %v1289 = vpop.f32.mrf.mxu0
      %v1290 = vadd.f32 %v674, %v1289
      %v1291 = vpop.f32.mrf.mxu0
      %v1292 = vpop.f32.mrf.mxu0
      %v1293 = vadd.f32 %v674, %v1292
      %v1294 = vpop.f32.mrf.mxu0
      %1295 = vmatprep.mubr.bf16.mxu0 0
      %1296 = vmatmul.mubr.bf16.gmra.mxu0 %v1030
      %v1297 = vpop.f32.mrf.mxu0
      %v1298 = vadd.f32 %v674, %v1297
      %v1299 = vpop.f32.mrf.mxu0
      %v1300 = vpop.f32.mrf.mxu0
      %v1301 = vadd.f32 %v674, %v1300
      %v1302 = vpop.f32.mrf.mxu0
      %1303 = vmatprep.mubr.bf16.mxu0 0
      %1304 = vmatmul.mubr.bf16.gmra.mxu0 %v1033
      %v1305 = vpop.f32.mrf.mxu0
      %v1306 = vadd.f32 %v674, %v1305
      %v1307 = vpop.f32.mrf.mxu0
      %v1308 = vpop.f32.mrf.mxu0
      %v1309 = vadd.f32 %v674, %v1308
      %v1310 = vpop.f32.mrf.mxu0
      %1311 = vmatprep.mubr.bf16.mxu0 0
      %1312 = vmatmul.mubr.bf16.gmra.mxu0 %v1036
      %v1313 = vpop.f32.mrf.mxu0
      %v1314 = vadd.f32 %v674, %v1313
      %v1315 = vpop.f32.mrf.mxu0
      %v1316 = vpop.f32.mrf.mxu0
      %v1317 = vadd.f32 %v674, %v1316
      %v1318 = vpop.f32.mrf.mxu0
      %1319 = vmatprep.mubr.bf16.mxu0 0
      %1320 = vmatmul.mubr.bf16.gmra.mxu0 %v1039
      %v1321 = vpop.f32.mrf.mxu0
      %v1322 = vadd.f32 %v674, %v1321
      %v1323 = vpop.f32.mrf.mxu0
      %v1324 = vpop.f32.mrf.mxu0
      %v1325 = vadd.f32 %v674, %v1324
      %v1326 = vpop.f32.mrf.mxu0
      %1327 = vmatprep.mubr.bf16.mxu0 0
      %1328 = vmatmul.mubr.bf16.gmra.mxu0 %v1042
      %v1329 = vpop.f32.mrf.mxu0
      %v1330 = vadd.f32 %v674, %v1329
      %v1331 = vpop.f32.mrf.mxu0
      %v1332 = vpop.f32.mrf.mxu0
      %v1333 = vadd.f32 %v674, %v1332
      %v1334 = vpop.f32.mrf.mxu0
      %1335 = vmatprep.mubr.bf16.mxu0 0
      %1336 = vmatmul.mubr.bf16.gmra.mxu0 %v1045
      %v1337 = vpop.f32.mrf.mxu0
      %v1338 = vadd.f32 %v674, %v1337
      %v1339 = vpop.f32.mrf.mxu0
      %v1340 = vpop.f32.mrf.mxu0
      %v1341 = vadd.f32 %v674, %v1340
      %v1342 = vpop.f32.mrf.mxu0
      %1343 = vmatprep.mubr.bf16.mxu0 0
      %1344 = vmatmul.mubr.bf16.gmra.mxu0 %v1048
      %v1345 = vpop.f32.mrf.mxu0
      %v1346 = vadd.f32 %v674, %v1345
      %v1347 = vpop.f32.mrf.mxu0
      %v1348 = vpop.f32.mrf.mxu0
      %v1349 = vadd.f32 %v674, %v1348
      %v1350 = vpop.f32.mrf.mxu0
      %1351 = vmatprep.mubr.bf16.mxu0 0
      %1352 = vmatmul.mubr.bf16.gmra.mxu0 %v1051
      %v1353 = vpop.f32.mrf.mxu0
      %v1354 = vadd.f32 %v674, %v1353
      %v1355 = vpop.f32.mrf.mxu0
      %v1356 = vpop.f32.mrf.mxu0
      %v1357 = vadd.f32 %v674, %v1356
      %v1358 = vpop.f32.mrf.mxu0
      %1359 = vmatprep.mubr.bf16.mxu0 0
      %1360 = vmatmul.mubr.bf16.gmra.mxu0 %v1054
      %v1361 = vpop.f32.mrf.mxu0
      %v1362 = vadd.f32 %v674, %v1361
      %v1363 = vpop.f32.mrf.mxu0
      %v1364 = vpop.f32.mrf.mxu0
      %v1365 = vadd.f32 %v674, %v1364
      %v1366 = vpop.f32.mrf.mxu0
      %1367 = vmatprep.mubr.bf16.mxu0 0
      %1368 = vmatmul.mubr.bf16.gmra.mxu0 %v1057
      %v1369 = vpop.f32.mrf.mxu0
      %v1370 = vadd.f32 %v674, %v1369
      %v1371 = vpop.f32.mrf.mxu0
      %v1372 = vpop.f32.mrf.mxu0
      %v1373 = vadd.f32 %v674, %v1372
      %v1374 = vpop.f32.mrf.mxu0
      %1375 = vmatprep.mubr.bf16.mxu0 0
      %1376 = vmatmul.mubr.bf16.gmra.mxu0 %v1060
      %v1377 = vpop.f32.mrf.mxu0
      %v1378 = vadd.f32 %v674, %v1377
      %v1379 = vpop.f32.mrf.mxu0
      %v1380 = vpop.f32.mrf.mxu0
      %v1381 = vadd.f32 %v674, %v1380
      %v1382 = vpop.f32.mrf.mxu0
      %1383 = vmatprep.mubr.bf16.mxu0 0
      %1384 = vmatmul.mubr.bf16.gmra.mxu0 %v1063
      %v1385 = vpop.f32.mrf.mxu0
      %v1386 = vadd.f32 %v674, %v1385
      %v1387 = vpop.f32.mrf.mxu0
      %v1388 = vpop.f32.mrf.mxu0
      %v1389 = vadd.f32 %v674, %v1388
      %v1390 = vpop.f32.mrf.mxu0
      %1391 = vmatprep.mubr.bf16.mxu0 0
      %1392 = vmatmul.mubr.bf16.gmra.mxu0 %v1066
      %v1393 = vpop.f32.mrf.mxu0
      %v1394 = vadd.f32 %v674, %v1393
      %v1395 = vpop.f32.mrf.mxu0
      %v1396 = vpop.f32.mrf.mxu0
      %v1397 = vadd.f32 %v674, %v1396
      %v1398 = vpop.f32.mrf.mxu0
      %1399 = vmatprep.mubr.bf16.mxu0 0
      %1400 = vmatmul.mubr.bf16.gmra.mxu0 %v1069
      %v1401 = vpop.f32.mrf.mxu0
      %v1402 = vadd.f32 %v674, %v1401
      %v1403 = vpop.f32.mrf.mxu0
      %v1404 = vpop.f32.mrf.mxu0
      %v1405 = vadd.f32 %v674, %v1404
      %v1406 = vpop.f32.mrf.mxu0
      %1407 = vmatprep.mubr.bf16.mxu0 0
      %1408 = vmatmul.mubr.bf16.gmra.mxu0 %v1072
      %v1409 = vpop.f32.mrf.mxu0
      %v1410 = vadd.f32 %v674, %v1409
      %v1411 = vpop.f32.mrf.mxu0
      %v1412 = vpop.f32.mrf.mxu0
      %v1413 = vadd.f32 %v674, %v1412
      %v1414 = vpop.f32.mrf.mxu0
      %1415 = vmatprep.mubr.bf16.mxu0 0
      %1416 = vmatmul.mubr.bf16.gmra.mxu0 %v1075
      %v1417 = vpop.f32.mrf.mxu0
      %v1418 = vadd.f32 %v674, %v1417
      %v1419 = vpop.f32.mrf.mxu0
      %v1420 = vpop.f32.mrf.mxu0
      %v1421 = vadd.f32 %v674, %v1420
      %v1422 = vpop.f32.mrf.mxu0
      %1423 = vmatprep.mubr.bf16.mxu0 0
      %1424 = vmatmul.mubr.bf16.gmra.mxu0 %v1078
      %v1425 = vpop.f32.mrf.mxu0
      %v1426 = vadd.f32 %v674, %v1425
      %v1427 = vpop.f32.mrf.mxu0
      %v1428 = vpop.f32.mrf.mxu0
      %v1429 = vadd.f32 %v674, %v1428
      %v1430 = vpop.f32.mrf.mxu0
      %1431 = vmatprep.mubr.bf16.mxu0 0
      %1432 = vmatmul.mubr.bf16.gmra.mxu0 %v1081
      %v1433 = vpop.f32.mrf.mxu0
      %v1434 = vadd.f32 %v674, %v1433
      %v1435 = vpop.f32.mrf.mxu0
      %v1436 = vpop.f32.mrf.mxu0
      %v1437 = vadd.f32 %v674, %v1436
      %v1438 = vpop.f32.mrf.mxu0
      %1439 = vmatprep.mubr.bf16.mxu0 0
      %1440 = vmatmul.mubr.bf16.gmra.mxu0 %v1084
      %v1441 = vpop.f32.mrf.mxu0
      %v1442 = vadd.f32 %v674, %v1441
      %v1443 = vpop.f32.mrf.mxu0
      %v1444 = vpop.f32.mrf.mxu0
      %v1445 = vadd.f32 %v674, %v1444
      %v1446 = vpop.f32.mrf.mxu0
      %1447 = vmatprep.mubr.bf16.mxu0 0
      %1448 = vmatmul.mubr.bf16.gmra.mxu0 %v1087
      %v1449 = vpop.f32.mrf.mxu0
      %v1450 = vadd.f32 %v674, %v1449
      %v1451 = vpop.f32.mrf.mxu0
      %v1452 = vpop.f32.mrf.mxu0
      %v1453 = vadd.f32 %v674, %v1452
      %v1454 = vpop.f32.mrf.mxu0
      %1455 = vmatprep.mubr.bf16.mxu0 0
      %1456 = vmatmul.mubr.bf16.gmra.mxu0 %v1090
      %v1457 = vpop.f32.mrf.mxu0
      %v1458 = vadd.f32 %v674, %v1457
      %v1459 = vpop.f32.mrf.mxu0
      %v1460 = vpop.f32.mrf.mxu0
      %v1461 = vadd.f32 %v674, %v1460
      %v1462 = vpop.f32.mrf.mxu0
      %1463 = vmatprep.mubr.bf16.mxu0 0
      %1464 = vmatmul.mubr.bf16.gmra.mxu0 %v1093
      %v1465 = vpop.f32.mrf.mxu0
      %v1466 = vadd.f32 %v674, %v1465
      %v1467 = vpop.f32.mrf.mxu0
      %v1468 = vpop.f32.mrf.mxu0
      %v1469 = vadd.f32 %v674, %v1468
      %v1470 = vpop.f32.mrf.mxu0
      %1471 = vmatprep.mubr.bf16.mxu0 0
      %1472 = vmatmul.mubr.bf16.gmra.mxu0 %v1096
      %v1473 = vpop.f32.mrf.mxu0
      %v1474 = vadd.f32 %v674, %v1473
      %v1475 = vpop.f32.mrf.mxu0
      %v1476 = vpop.f32.mrf.mxu0
      %v1477 = vadd.f32 %v674, %v1476
      %v1478 = vpop.f32.mrf.mxu0
      %1479 = vmatprep.mubr.bf16.mxu0 0
      %1480 = vmatmul.mubr.bf16.gmra.mxu0 %v1099
      %v1481 = vpop.f32.mrf.mxu0
      %v1482 = vadd.f32 %v674, %v1481
      %v1483 = vpop.f32.mrf.mxu0
      %v1484 = vpop.f32.mrf.mxu0
      %v1485 = vadd.f32 %v674, %v1484
      %v1486 = vpop.f32.mrf.mxu0
      %1487 = vmatprep.mubr.bf16.mxu0 0
      %1488 = vmatmul.mubr.bf16.gmra.mxu0 %v1102
      %v1489 = vpop.f32.mrf.mxu0
      %v1490 = vadd.f32 %v674, %v1489
      %v1491 = vpop.f32.mrf.mxu0
      %v1492 = vpop.f32.mrf.mxu0
      %v1493 = vadd.f32 %v674, %v1492
      %v1494 = vpop.f32.mrf.mxu0
      %1495 = vmatprep.mubr.bf16.mxu0 0
      %1496 = vmatmul.mubr.bf16.gmra.mxu0 %v1105
      %v1497 = vpop.f32.mrf.mxu0
      %v1498 = vadd.f32 %v674, %v1497
      %v1499 = vpop.f32.mrf.mxu0
      %v1500 = vpop.f32.mrf.mxu0
      %v1501 = vadd.f32 %v674, %v1500
      %v1502 = vpop.f32.mrf.mxu0
      %1503 = vmatprep.mubr.bf16.mxu0 0
      %1504 = vmatmul.mubr.bf16.gmra.mxu0 %v1108
      %v1505 = vpop.f32.mrf.mxu0
      %v1506 = vadd.f32 %v674, %v1505
      %v1507 = vpop.f32.mrf.mxu0
      %v1508 = vpop.f32.mrf.mxu0
      %v1509 = vadd.f32 %v674, %v1508
      %v1510 = vpop.f32.mrf.mxu0
      %1511 = vmatprep.mubr.bf16.mxu0 0
      %1512 = vmatmul.mubr.bf16.gmra.mxu0 %v1111
      %v1513 = vpop.f32.mrf.mxu0
      %v1514 = vadd.f32 %v674, %v1513
      %v1515 = vpop.f32.mrf.mxu0
      %v1516 = vpop.f32.mrf.mxu0
      %v1517 = vadd.f32 %v674, %v1516
      %v1518 = vpop.f32.mrf.mxu0
      %1519 = vmatprep.mubr.bf16.mxu0 0
      %1520 = vmatmul.mubr.bf16.gmra.mxu0 %v1114
      %v1521 = vpop.f32.mrf.mxu0
      %v1522 = vadd.f32 %v674, %v1521
      %v1523 = vpop.f32.mrf.mxu0
      %v1524 = vpop.f32.mrf.mxu0
      %v1525 = vadd.f32 %v674, %v1524
      %v1526 = vpop.f32.mrf.mxu0
      %1527 = vmatprep.mubr.bf16.mxu0 0
      %1528 = vmatmul.mubr.bf16.gmra.mxu0 %v1117
      %v1529 = vpop.f32.mrf.mxu0
      %v1530 = vadd.f32 %v674, %v1529
      %v1531 = vpop.f32.mrf.mxu0
      %v1532 = vpop.f32.mrf.mxu0
      %v1533 = vadd.f32 %v674, %v1532
      %v1534 = vpop.f32.mrf.mxu0
      %1535 = vmatprep.mubr.bf16.mxu0 0
      %1536 = vmatmul.mubr.bf16.gmra.mxu0 %v1120
      %v1537 = vpop.f32.mrf.mxu0
      %v1538 = vadd.f32 %v674, %v1537
      %v1539 = vpop.f32.mrf.mxu0
      %v1540 = vpop.f32.mrf.mxu0
      %v1541 = vadd.f32 %v674, %v1540
      %v1542 = vpop.f32.mrf.mxu0
      %1543 = vmatprep.mubr.bf16.mxu0 0
      %1544 = vmatmul.mubr.bf16.gmra.mxu0 %v1123
      %v1545 = vpop.f32.mrf.mxu0
      %v1546 = vadd.f32 %v674, %v1545
      %v1547 = vpop.f32.mrf.mxu0
      %v1548 = vpop.f32.mrf.mxu0
      %v1549 = vadd.f32 %v674, %v1548
      %v1550 = vpop.f32.mrf.mxu0
      %1551 = vmatprep.mubr.bf16.mxu0 0
      %1552 = vmatmul.mubr.bf16.gmra.mxu0 %v1126
      %v1553 = vpop.f32.mrf.mxu0
      %v1554 = vadd.f32 %v674, %v1553
      %v1555 = vpop.f32.mrf.mxu0
      %v1556 = vpop.f32.mrf.mxu0
      %v1557 = vadd.f32 %v674, %v1556
      %v1558 = vpop.f32.mrf.mxu0
      %1559 = vmatprep.mubr.bf16.mxu0 0
      %1560 = vmatmul.mubr.bf16.gmra.mxu0 %v1129
      %v1561 = vpop.f32.mrf.mxu0
      %v1562 = vadd.f32 %v674, %v1561
      %v1563 = vpop.f32.mrf.mxu0
      %v1564 = vpop.f32.mrf.mxu0
      %v1565 = vadd.f32 %v674, %v1564
      %v1566 = vpop.f32.mrf.mxu0
      %1567 = vmatprep.mubr.bf16.mxu0 0
      %1568 = vmatmul.mubr.bf16.gmra.mxu0 %v1132
      %v1569 = vpop.f32.mrf.mxu0
      %v1570 = vadd.f32 %v674, %v1569
      %v1571 = vpop.f32.mrf.mxu0
      %v1572 = vpop.f32.mrf.mxu0
      %v1573 = vadd.f32 %v674, %v1572
      %v1574 = vpop.f32.mrf.mxu0
      %1575 = vmatprep.mubr.bf16.mxu0 0
      %1576 = vmatmul.mubr.bf16.gmra.mxu0 %v1135
      %v1577 = vpop.f32.mrf.mxu0
      %v1578 = vadd.f32 %v674, %v1577
      %v1579 = vpop.f32.mrf.mxu0
      %v1580 = vpop.f32.mrf.mxu0
      %v1581 = vadd.f32 %v674, %v1580
      %v1582 = vpop.f32.mrf.mxu0
      %1583 = vmatprep.mubr.bf16.mxu0 0
      %1584 = vmatmul.mubr.bf16.gmra.mxu0 %v1138
      %v1585 = vpop.f32.mrf.mxu0
      %v1586 = vadd.f32 %v674, %v1585
      %v1587 = vpop.f32.mrf.mxu0
      %v1588 = vpop.f32.mrf.mxu0
      %v1589 = vadd.f32 %v674, %v1588
      %v1590 = vpop.f32.mrf.mxu0
      %1591 = vmatprep.mubr.bf16.mxu0 0
      %1592 = vmatmul.mubr.bf16.gmra.mxu0 %v1141
      %v1593 = vpop.f32.mrf.mxu0
      %v1594 = vadd.f32 %v674, %v1593
      %v1595 = vpop.f32.mrf.mxu0
      %v1596 = vpop.f32.mrf.mxu0
      %v1597 = vadd.f32 %v674, %v1596
      %v1598 = vpop.f32.mrf.mxu0
      %1599 = vmatprep.mubr.bf16.mxu0 0
      %1600 = vmatmul.mubr.bf16.gmra.mxu0 %v1144
      %v1601 = vpop.f32.mrf.mxu0
      %v1602 = vadd.f32 %v674, %v1601
      %v1603 = vpop.f32.mrf.mxu0
      %v1604 = vpop.f32.mrf.mxu0
      %v1605 = vadd.f32 %v674, %v1604
      %v1606 = vpop.f32.mrf.mxu0
      %1607 = vmatprep.mubr.bf16.mxu0 0
      %1608 = vmatmul.mubr.bf16.gmra.mxu0 %v1147
      %v1609 = vpop.f32.mrf.mxu0
      %v1610 = vadd.f32 %v674, %v1609
      %v1611 = vpop.f32.mrf.mxu0
      %v1612 = vpop.f32.mrf.mxu0
      %v1613 = vadd.f32 %v674, %v1612
      %v1614 = vpop.f32.mrf.mxu0
      %1615 = vmatprep.mubr.bf16.mxu0 0
      %1616 = vmatmul.mubr.bf16.gmra.mxu0 %v1150
      %v1617 = vpop.f32.mrf.mxu0
      %v1618 = vadd.f32 %v674, %v1617
      %v1619 = vpop.f32.mrf.mxu0
      %v1620 = vpop.f32.mrf.mxu0
      %v1621 = vadd.f32 %v674, %v1620
      %v1622 = vpop.f32.mrf.mxu0
      %1623 = vmatprep.mubr.bf16.mxu0 0
      %1624 = vmatmul.mubr.bf16.gmra.mxu0 %v1153
      %v1625 = vpop.f32.mrf.mxu0
      %v1626 = vadd.f32 %v674, %v1625
      %v1627 = vpop.f32.mrf.mxu0
      %v1628 = vpop.f32.mrf.mxu0
      %v1629 = vadd.f32 %v674, %v1628
      %v1630 = vpop.f32.mrf.mxu0
      %1631 = vmatprep.mubr.bf16.mxu0 0
      %1632 = vmatmul.mubr.bf16.gmra.mxu0 %v1156
      %v1633 = vpop.f32.mrf.mxu0
      %v1634 = vadd.f32 %v674, %v1633
      %v1635 = vpop.f32.mrf.mxu0
      %v1636 = vpop.f32.mrf.mxu0
      %v1637 = vadd.f32 %v674, %v1636
      %v1638 = vpop.f32.mrf.mxu0
      %1639 = vmatprep.mubr.bf16.mxu0 0
      %1640 = vmatmul.mubr.bf16.gmra.mxu0 %v1159
      %v1641 = vpop.f32.mrf.mxu0
      %v1642 = vadd.f32 %v674, %v1641
      %v1643 = vpop.f32.mrf.mxu0
      %v1644 = vpop.f32.mrf.mxu0
      %v1645 = vadd.f32 %v674, %v1644
      %v1646 = vpop.f32.mrf.mxu0
      %1647 = vmatprep.mubr.bf16.mxu0 0
      %1648 = vmatmul.mubr.bf16.gmra.mxu0 %v1162
      %v1649 = vpop.f32.mrf.mxu0
      %v1650 = vadd.f32 %v674, %v1649
      %v1651 = vpop.f32.mrf.mxu0
      %v1652 = vpop.f32.mrf.mxu0
      %v1653 = vadd.f32 %v674, %v1652
      %v1654 = vpop.f32.mrf.mxu0
      %1655 = vmatprep.mubr.bf16.mxu0 0
      %1656 = vmatmul.mubr.bf16.gmra.mxu0 %v1165
      %v1657 = vpop.f32.mrf.mxu0
      %v1658 = vadd.f32 %v674, %v1657
      %v1659 = vpop.f32.mrf.mxu0
      %v1660 = vpop.f32.mrf.mxu0
      %v1661 = vadd.f32 %v674, %v1660
      %v1662 = vpop.f32.mrf.mxu0
      %1663 = vmatprep.mubr.bf16.mxu0 0
      %1664 = vmatmul.mubr.bf16.gmra.mxu0 %v1168
      %v1665 = vpop.f32.mrf.mxu0
      %v1666 = vadd.f32 %v674, %v1665
      %v1667 = vpop.f32.mrf.mxu0
      %v1668 = vpop.f32.mrf.mxu0
      %v1669 = vadd.f32 %v674, %v1668
      %v1670 = vpop.f32.mrf.mxu0
      %1671 = vmatprep.mubr.bf16.mxu0 0
      %1672 = vmatmul.mubr.bf16.gmra.mxu0 %v1171
      %v1673 = vpop.f32.mrf.mxu0
      %v1674 = vadd.f32 %v674, %v1673
      %v1675 = vpop.f32.mrf.mxu0
      %v1676 = vpop.f32.mrf.mxu0
      %v1677 = vadd.f32 %v674, %v1676
      %v1678 = vpop.f32.mrf.mxu0
      %1679 = vmatprep.mubr.bf16.mxu0 0
      %1680 = vmatmul.mubr.bf16.gmra.mxu0 %v1174
      %v1681 = vpop.f32.mrf.mxu0
      %v1682 = vadd.f32 %v674, %v1681
      %v1683 = vpop.f32.mrf.mxu0
      %v1684 = vpop.f32.mrf.mxu0
      %v1685 = vadd.f32 %v674, %v1684
      %v1686 = vpop.f32.mrf.mxu0
      %1687 = vmatprep.mubr.bf16.mxu0 0
      %1688 = vmatmul.mubr.bf16.gmra.mxu0 %v1177
      %v1689 = vpop.f32.mrf.mxu0
      %v1690 = vadd.f32 %v674, %v1689
      %v1691 = vpop.f32.mrf.mxu0
      %v1692 = vpop.f32.mrf.mxu0
      %v1693 = vadd.f32 %v674, %v1692
      %v1694 = vpop.f32.mrf.mxu0
      %1695 = vmatprep.mubr.bf16.mxu0 0
      %1696 = vmatmul.mubr.bf16.gmra.mxu0 %v1180
      %v1697 = vpop.f32.mrf.mxu0
      %v1698 = vadd.f32 %v674, %v1697
      %v1699 = vpop.f32.mrf.mxu0
      %v1700 = vpop.f32.mrf.mxu0
      %v1701 = vadd.f32 %v674, %v1700
      %v1702 = vpop.f32.mrf.mxu0
      %1703 = vmatprep.mubr.bf16.mxu0 0
      %1704 = vmatmul.mubr.bf16.gmra.mxu0 %v1183
      %v1705 = vpop.f32.mrf.mxu0
      %v1706 = vadd.f32 %v674, %v1705
      %v1707 = vpop.f32.mrf.mxu0
      %v1708 = vpop.f32.mrf.mxu0
      %v1709 = vadd.f32 %v674, %v1708
      %v1710 = vpop.f32.mrf.mxu0
      %1711 = vmatprep.mubr.bf16.mxu0 0
      %1712 = vmatmul.mubr.bf16.gmra.mxu0 %v1186
      %v1713 = vpop.f32.mrf.mxu0
      %v1714 = vadd.f32 %v674, %v1713
      %v1715 = vpop.f32.mrf.mxu0
      %v1716 = vpop.f32.mrf.mxu0
      %v1717 = vadd.f32 %v674, %v1716
      %v1718 = vpop.f32.mrf.mxu0
      %1719 = vmatprep.mubr.bf16.mxu0 0
      %1720 = vmatmul.mubr.bf16.gmra.mxu0 %v1189
      %v1721 = vpop.f32.mrf.mxu0
      %v1722 = vadd.f32 %v674, %v1721
      %v1723 = vpop.f32.mrf.mxu0
      %v1724 = vpop.f32.mrf.mxu0
      %v1725 = vadd.f32 %v674, %v1724
      %v1726 = vpop.f32.mrf.mxu0
      %1727 = vmatprep.mubr.bf16.mxu0 0
      %1728 = vmatmul.mubr.bf16.gmra.mxu0 %v1192
      %v1729 = vpop.f32.mrf.mxu0
      %v1730 = vadd.f32 %v674, %v1729
      %v1731 = vpop.f32.mrf.mxu0
      %v1732 = vpop.f32.mrf.mxu0
      %v1733 = vadd.f32 %v674, %v1732
      %v1734 = vpop.f32.mrf.mxu0
      %1735 = vmatprep.mubr.bf16.mxu0 0
      %1736 = vmatmul.mubr.bf16.gmra.mxu0 %v1195
      %v1737 = vpop.f32.mrf.mxu0
      %v1738 = vadd.f32 %v674, %v1737
      %v1739 = vpop.f32.mrf.mxu0
      %v1740 = vpop.f32.mrf.mxu0
      %v1741 = vadd.f32 %v674, %v1740
      %v1742 = vpop.f32.mrf.mxu0
      %1743 = vmatprep.mubr.bf16.mxu0 0
      %1744 = vmatmul.mubr.bf16.gmra.mxu0 %v1198
      %v1745 = vpop.f32.mrf.mxu0
      %v1746 = vadd.f32 %v674, %v1745
      %v1747 = vpop.f32.mrf.mxu0
      %v1748 = vpop.f32.mrf.mxu0
      %v1749 = vadd.f32 %v674, %v1748
      %v1750 = vpop.f32.mrf.mxu0
      %1751 = vdwg.mxu0
      %vm1752 = vcmp.gt.f32.partialorder %v1242, 0.0
      %vm1753 = vcmp.gt.f32.partialorder %v1245, 0.0
      %vm1754 = vcmp.gt.f32.partialorder %v1250, 0.0
      %vm1755 = vcmp.gt.f32.partialorder %v1253, 0.0
      %vm1756 = vcmp.gt.f32.partialorder %v1258, 0.0
      %vm1757 = vcmp.gt.f32.partialorder %v1261, 0.0
      %vm1758 = vcmp.gt.f32.partialorder %v1266, 0.0
      %vm1759 = vcmp.gt.f32.partialorder %v1269, 0.0
      %vm1760 = vcmp.gt.f32.partialorder %v1274, 0.0
      %vm1761 = vcmp.gt.f32.partialorder %v1277, 0.0
      %vm1762 = vcmp.gt.f32.partialorder %v1282, 0.0
      %vm1763 = vcmp.gt.f32.partialorder %v1285, 0.0
      %vm1764 = vcmp.gt.f32.partialorder %v1290, 0.0
      %vm1765 = vcmp.gt.f32.partialorder %v1293, 0.0
      %vm1766 = vcmp.gt.f32.partialorder %v1298, 0.0
      %vm1767 = vcmp.gt.f32.partialorder %v1301, 0.0
      %vm1768 = vcmp.gt.f32.partialorder %v1306, 0.0
      %vm1769 = vcmp.gt.f32.partialorder %v1309, 0.0
      %vm1770 = vcmp.gt.f32.partialorder %v1314, 0.0
      %vm1771 = vcmp.gt.f32.partialorder %v1317, 0.0
      %vm1772 = vcmp.gt.f32.partialorder %v1322, 0.0
      %vm1773 = vcmp.gt.f32.partialorder %v1325, 0.0
      %vm1774 = vcmp.gt.f32.partialorder %v1330, 0.0
      %vm1775 = vcmp.gt.f32.partialorder %v1333, 0.0
      %vm1776 = vcmp.gt.f32.partialorder %v1338, 0.0
      %vm1777 = vcmp.gt.f32.partialorder %v1341, 0.0
      %vm1778 = vcmp.gt.f32.partialorder %v1346, 0.0
      %vm1779 = vcmp.gt.f32.partialorder %v1349, 0.0
      %vm1780 = vcmp.gt.f32.partialorder %v1354, 0.0
      %vm1781 = vcmp.gt.f32.partialorder %v1357, 0.0
      %vm1782 = vcmp.gt.f32.partialorder %v1362, 0.0
      %vm1783 = vcmp.gt.f32.partialorder %v1365, 0.0
      %vm1784 = vcmp.gt.f32.partialorder %v1370, 0.0
      %vm1785 = vcmp.gt.f32.partialorder %v1373, 0.0
      %vm1786 = vcmp.gt.f32.partialorder %v1378, 0.0
      %vm1787 = vcmp.gt.f32.partialorder %v1381, 0.0
      %vm1788 = vcmp.gt.f32.partialorder %v1386, 0.0
      %vm1789 = vcmp.gt.f32.partialorder %v1389, 0.0
      %vm1790 = vcmp.gt.f32.partialorder %v1394, 0.0
      %vm1791 = vcmp.gt.f32.partialorder %v1397, 0.0
      %vm1792 = vcmp.gt.f32.partialorder %v1402, 0.0
      %vm1793 = vcmp.gt.f32.partialorder %v1405, 0.0
      %vm1794 = vcmp.gt.f32.partialorder %v1410, 0.0
      %vm1795 = vcmp.gt.f32.partialorder %v1413, 0.0
      %vm1796 = vcmp.gt.f32.partialorder %v1418, 0.0
      %vm1797 = vcmp.gt.f32.partialorder %v1421, 0.0
      %vm1798 = vcmp.gt.f32.partialorder %v1426, 0.0
      %vm1799 = vcmp.gt.f32.partialorder %v1429, 0.0
      %vm1800 = vcmp.gt.f32.partialorder %v1434, 0.0
      %vm1801 = vcmp.gt.f32.partialorder %v1437, 0.0
      %vm1802 = vcmp.gt.f32.partialorder %v1442, 0.0
      %vm1803 = vcmp.gt.f32.partialorder %v1445, 0.0
      %vm1804 = vcmp.gt.f32.partialorder %v1450, 0.0
      %vm1805 = vcmp.gt.f32.partialorder %v1453, 0.0
      %vm1806 = vcmp.gt.f32.partialorder %v1458, 0.0
      %vm1807 = vcmp.gt.f32.partialorder %v1461, 0.0
      %vm1808 = vcmp.gt.f32.partialorder %v1466, 0.0
      %vm1809 = vcmp.gt.f32.partialorder %v1469, 0.0
      %vm1810 = vcmp.gt.f32.partialorder %v1474, 0.0
      %vm1811 = vcmp.gt.f32.partialorder %v1477, 0.0
      %vm1812 = vcmp.gt.f32.partialorder %v1482, 0.0
      %vm1813 = vcmp.gt.f32.partialorder %v1485, 0.0
      %vm1814 = vcmp.gt.f32.partialorder %v1490, 0.0
      %vm1815 = vcmp.gt.f32.partialorder %v1493, 0.0
      %vm1816 = vcmp.gt.f32.partialorder %v1498, 0.0
      %vm1817 = vcmp.gt.f32.partialorder %v1501, 0.0
      %vm1818 = vcmp.gt.f32.partialorder %v1506, 0.0
      %vm1819 = vcmp.gt.f32.partialorder %v1509, 0.0
      %vm1820 = vcmp.gt.f32.partialorder %v1514, 0.0
      %vm1821 = vcmp.gt.f32.partialorder %v1517, 0.0
      %vm1822 = vcmp.gt.f32.partialorder %v1522, 0.0
      %vm1823 = vcmp.gt.f32.partialorder %v1525, 0.0
      %vm1824 = vcmp.gt.f32.partialorder %v1530, 0.0
      %vm1825 = vcmp.gt.f32.partialorder %v1533, 0.0
      %vm1826 = vcmp.gt.f32.partialorder %v1538, 0.0
      %vm1827 = vcmp.gt.f32.partialorder %v1541, 0.0
      %vm1828 = vcmp.gt.f32.partialorder %v1546, 0.0
      %vm1829 = vcmp.gt.f32.partialorder %v1549, 0.0
      %vm1830 = vcmp.gt.f32.partialorder %v1554, 0.0
      %vm1831 = vcmp.gt.f32.partialorder %v1557, 0.0
      %vm1832 = vcmp.gt.f32.partialorder %v1562, 0.0
      %vm1833 = vcmp.gt.f32.partialorder %v1565, 0.0
      %vm1834 = vcmp.gt.f32.partialorder %v1570, 0.0
      %vm1835 = vcmp.gt.f32.partialorder %v1573, 0.0
      %vm1836 = vcmp.gt.f32.partialorder %v1578, 0.0
      %vm1837 = vcmp.gt.f32.partialorder %v1581, 0.0
      %vm1838 = vcmp.gt.f32.partialorder %v1586, 0.0
      %vm1839 = vcmp.gt.f32.partialorder %v1589, 0.0
      %vm1840 = vcmp.gt.f32.partialorder %v1594, 0.0
      %vm1841 = vcmp.gt.f32.partialorder %v1597, 0.0
      %vm1842 = vcmp.gt.f32.partialorder %v1602, 0.0
      %vm1843 = vcmp.gt.f32.partialorder %v1605, 0.0
      %vm1844 = vcmp.gt.f32.partialorder %v1610, 0.0
      %vm1845 = vcmp.gt.f32.partialorder %v1613, 0.0
      %vm1846 = vcmp.gt.f32.partialorder %v1618, 0.0
      %vm1847 = vcmp.gt.f32.partialorder %v1621, 0.0
      %vm1848 = vcmp.gt.f32.partialorder %v1626, 0.0
      %vm1849 = vcmp.gt.f32.partialorder %v1629, 0.0
      %vm1850 = vcmp.gt.f32.partialorder %v1634, 0.0
      %vm1851 = vcmp.gt.f32.partialorder %v1637, 0.0
      %vm1852 = vcmp.gt.f32.partialorder %v1642, 0.0
      %vm1853 = vcmp.gt.f32.partialorder %v1645, 0.0
      %vm1854 = vcmp.gt.f32.partialorder %v1650, 0.0
      %vm1855 = vcmp.gt.f32.partialorder %v1653, 0.0
      %vm1856 = vcmp.gt.f32.partialorder %v1658, 0.0
      %vm1857 = vcmp.gt.f32.partialorder %v1661, 0.0
      %vm1858 = vcmp.gt.f32.partialorder %v1666, 0.0
      %vm1859 = vcmp.gt.f32.partialorder %v1669, 0.0
      %vm1860 = vcmp.gt.f32.partialorder %v1674, 0.0
      %vm1861 = vcmp.gt.f32.partialorder %v1677, 0.0
      %vm1862 = vcmp.gt.f32.partialorder %v1682, 0.0
      %vm1863 = vcmp.gt.f32.partialorder %v1685, 0.0
      %vm1864 = vcmp.gt.f32.partialorder %v1690, 0.0
      %vm1865 = vcmp.gt.f32.partialorder %v1693, 0.0
      %vm1866 = vcmp.gt.f32.partialorder %v1698, 0.0
      %vm1867 = vcmp.gt.f32.partialorder %v1701, 0.0
      %vm1868 = vcmp.gt.f32.partialorder %v1706, 0.0
      %vm1869 = vcmp.gt.f32.partialorder %v1709, 0.0
      %vm1870 = vcmp.gt.f32.partialorder %v1714, 0.0
      %vm1871 = vcmp.gt.f32.partialorder %v1717, 0.0
      %vm1872 = vcmp.gt.f32.partialorder %v1722, 0.0
      %vm1873 = vcmp.gt.f32.partialorder %v1725, 0.0
      %vm1874 = vcmp.gt.f32.partialorder %v1730, 0.0
      %vm1875 = vcmp.gt.f32.partialorder %v1733, 0.0
      %vm1876 = vcmp.gt.f32.partialorder %v1738, 0.0
      %vm1877 = vcmp.gt.f32.partialorder %v1741, 0.0
      %vm1878 = vcmp.gt.f32.partialorder %v1746, 0.0
      %vm1879 = vcmp.gt.f32.partialorder %v1749, 0.0
      %v1880 = vmul.f32 %v1242, 0.2
      %v1881 = vmul.f32 %v1245, 0.2
      %v1882 = vmul.f32 %v1250, 0.2
      %v1883 = vmul.f32 %v1253, 0.2
      %v1884 = vmul.f32 %v1258, 0.2
      %v1885 = vmul.f32 %v1261, 0.2
      %v1886 = vmul.f32 %v1266, 0.2
      %v1887 = vmul.f32 %v1269, 0.2
      %v1888 = vmul.f32 %v1274, 0.2
      %v1889 = vmul.f32 %v1277, 0.2
      %v1890 = vmul.f32 %v1282, 0.2
      %v1891 = vmul.f32 %v1285, 0.2
      %v1892 = vmul.f32 %v1290, 0.2
      %v1893 = vmul.f32 %v1293, 0.2
      %v1894 = vmul.f32 %v1298, 0.2
      %v1895 = vmul.f32 %v1301, 0.2
      %v1896 = vmul.f32 %v1306, 0.2
      %v1897 = vmul.f32 %v1309, 0.2
      %v1898 = vmul.f32 %v1314, 0.2
      %v1899 = vmul.f32 %v1317, 0.2
      %v1900 = vmul.f32 %v1322, 0.2
      %v1901 = vmul.f32 %v1325, 0.2
      %v1902 = vmul.f32 %v1330, 0.2
      %v1903 = vmul.f32 %v1333, 0.2
      %v1904 = vmul.f32 %v1338, 0.2
      %v1905 = vmul.f32 %v1341, 0.2
      %v1906 = vmul.f32 %v1346, 0.2
      %v1907 = vmul.f32 %v1349, 0.2
      %v1908 = vmul.f32 %v1354, 0.2
      %v1909 = vmul.f32 %v1357, 0.2
      %v1910 = vmul.f32 %v1362, 0.2
      %v1911 = vmul.f32 %v1365, 0.2
      %v1912 = vmul.f32 %v1370, 0.2
      %v1913 = vmul.f32 %v1373, 0.2
      %v1914 = vmul.f32 %v1378, 0.2
      %v1915 = vmul.f32 %v1381, 0.2
      %v1916 = vmul.f32 %v1386, 0.2
      %v1917 = vmul.f32 %v1389, 0.2
      %v1918 = vmul.f32 %v1394, 0.2
      %v1919 = vmul.f32 %v1397, 0.2
      %v1920 = vmul.f32 %v1402, 0.2
      %v1921 = vmul.f32 %v1405, 0.2
      %v1922 = vmul.f32 %v1410, 0.2
      %v1923 = vmul.f32 %v1413, 0.2
      %v1924 = vmul.f32 %v1418, 0.2
      %v1925 = vmul.f32 %v1421, 0.2
      %v1926 = vmul.f32 %v1426, 0.2
      %v1927 = vmul.f32 %v1429, 0.2
      %v1928 = vmul.f32 %v1434, 0.2
      %v1929 = vmul.f32 %v1437, 0.2
      %v1930 = vmul.f32 %v1442, 0.2
      %v1931 = vmul.f32 %v1445, 0.2
      %v1932 = vmul.f32 %v1450, 0.2
      %v1933 = vmul.f32 %v1453, 0.2
      %v1934 = vmul.f32 %v1458, 0.2
      %v1935 = vmul.f32 %v1461, 0.2
      %v1936 = vmul.f32 %v1466, 0.2
      %v1937 = vmul.f32 %v1469, 0.2
      %v1938 = vmul.f32 %v1474, 0.2
      %v1939 = vmul.f32 %v1477, 0.2
      %v1940 = vmul.f32 %v1482, 0.2
      %v1941 = vmul.f32 %v1485, 0.2
      %v1942 = vmul.f32 %v1490, 0.2
      %v1943 = vmul.f32 %v1493, 0.2
      %v1944 = vmul.f32 %v1498, 0.2
      %v1945 = vmul.f32 %v1501, 0.2
      %v1946 = vmul.f32 %v1506, 0.2
      %v1947 = vmul.f32 %v1509, 0.2
      %v1948 = vmul.f32 %v1514, 0.2
      %v1949 = vmul.f32 %v1517, 0.2
      %v1950 = vmul.f32 %v1522, 0.2
      %v1951 = vmul.f32 %v1525, 0.2
      %v1952 = vmul.f32 %v1530, 0.2
      %v1953 = vmul.f32 %v1533, 0.2
      %v1954 = vmul.f32 %v1538, 0.2
      %v1955 = vmul.f32 %v1541, 0.2
      %v1956 = vmul.f32 %v1546, 0.2
      %v1957 = vmul.f32 %v1549, 0.2
      %v1958 = vmul.f32 %v1554, 0.2
      %v1959 = vmul.f32 %v1557, 0.2
      %v1960 = vmul.f32 %v1562, 0.2
      %v1961 = vmul.f32 %v1565, 0.2
      %v1962 = vmul.f32 %v1570, 0.2
      %v1963 = vmul.f32 %v1573, 0.2
      %v1964 = vmul.f32 %v1578, 0.2
      %v1965 = vmul.f32 %v1581, 0.2
      %v1966 = vmul.f32 %v1586, 0.2
      %v1967 = vmul.f32 %v1589, 0.2
      %v1968 = vmul.f32 %v1594, 0.2
      %v1969 = vmul.f32 %v1597, 0.2
      %v1970 = vmul.f32 %v1602, 0.2
      %v1971 = vmul.f32 %v1605, 0.2
      %v1972 = vmul.f32 %v1610, 0.2
      %v1973 = vmul.f32 %v1613, 0.2
      %v1974 = vmul.f32 %v1618, 0.2
      %v1975 = vmul.f32 %v1621, 0.2
      %v1976 = vmul.f32 %v1626, 0.2
      %v1977 = vmul.f32 %v1629, 0.2
      %v1978 = vmul.f32 %v1634, 0.2
      %v1979 = vmul.f32 %v1637, 0.2
      %v1980 = vmul.f32 %v1642, 0.2
      %v1981 = vmul.f32 %v1645, 0.2
      %v1982 = vmul.f32 %v1650, 0.2
      %v1983 = vmul.f32 %v1653, 0.2
      %v1984 = vmul.f32 %v1658, 0.2
      %v1985 = vmul.f32 %v1661, 0.2
      %v1986 = vmul.f32 %v1666, 0.2
      %v1987 = vmul.f32 %v1669, 0.2
      %v1988 = vmul.f32 %v1674, 0.2
      %v1989 = vmul.f32 %v1677, 0.2
      %v1990 = vmul.f32 %v1682, 0.2
      %v1991 = vmul.f32 %v1685, 0.2
      %v1992 = vmul.f32 %v1690, 0.2
      %v1993 = vmul.f32 %v1693, 0.2
      %v1994 = vmul.f32 %v1698, 0.2
      %v1995 = vmul.f32 %v1701, 0.2
      %v1996 = vmul.f32 %v1706, 0.2
      %v1997 = vmul.f32 %v1709, 0.2
      %v1998 = vmul.f32 %v1714, 0.2
      %v1999 = vmul.f32 %v1717, 0.2
      %v2000 = vmul.f32 %v1722, 0.2
      %v2001 = vmul.f32 %v1725, 0.2
      %v2002 = vmul.f32 %v1730, 0.2
      %v2003 = vmul.f32 %v1733, 0.2
      %v2004 = vmul.f32 %v1738, 0.2
      %v2005 = vmul.f32 %v1741, 0.2
      %v2006 = vmul.f32 %v1746, 0.2
      %v2007 = vmul.f32 %v1749, 0.2
      %v2008 = vsel %vm1752, %v1242, %v1880
      %v2009 = vsel %vm1753, %v1245, %v1881
      %v2010 = vsel %vm1754, %v1250, %v1882
      %v2011 = vsel %vm1755, %v1253, %v1883
      %v2012 = vsel %vm1756, %v1258, %v1884
      %v2013 = vsel %vm1757, %v1261, %v1885
      %v2014 = vsel %vm1758, %v1266, %v1886
      %v2015 = vsel %vm1759, %v1269, %v1887
      %v2016 = vsel %vm1760, %v1274, %v1888
      %v2017 = vsel %vm1761, %v1277, %v1889
      %v2018 = vsel %vm1762, %v1282, %v1890
      %v2019 = vsel %vm1763, %v1285, %v1891
      %v2020 = vsel %vm1764, %v1290, %v1892
      %v2021 = vsel %vm1765, %v1293, %v1893
      %v2022 = vsel %vm1766, %v1298, %v1894
      %v2023 = vsel %vm1767, %v1301, %v1895
      %v2024 = vsel %vm1768, %v1306, %v1896
      %v2025 = vsel %vm1769, %v1309, %v1897
      %v2026 = vsel %vm1770, %v1314, %v1898
      %v2027 = vsel %vm1771, %v1317, %v1899
      %v2028 = vsel %vm1772, %v1322, %v1900
      %v2029 = vsel %vm1773, %v1325, %v1901
      %v2030 = vsel %vm1774, %v1330, %v1902
      %v2031 = vsel %vm1775, %v1333, %v1903
      %v2032 = vsel %vm1776, %v1338, %v1904
      %v2033 = vsel %vm1777, %v1341, %v1905
      %v2034 = vsel %vm1778, %v1346, %v1906
      %v2035 = vsel %vm1779, %v1349, %v1907
      %v2036 = vsel %vm1780, %v1354, %v1908
      %v2037 = vsel %vm1781, %v1357, %v1909
      %v2038 = vsel %vm1782, %v1362, %v1910
      %v2039 = vsel %vm1783, %v1365, %v1911
      %v2040 = vsel %vm1784, %v1370, %v1912
      %v2041 = vsel %vm1785, %v1373, %v1913
      %v2042 = vsel %vm1786, %v1378, %v1914
      %v2043 = vsel %vm1787, %v1381, %v1915
      %v2044 = vsel %vm1788, %v1386, %v1916
      %v2045 = vsel %vm1789, %v1389, %v1917
      %v2046 = vsel %vm1790, %v1394, %v1918
      %v2047 = vsel %vm1791, %v1397, %v1919
      %v2048 = vsel %vm1792, %v1402, %v1920
      %v2049 = vsel %vm1793, %v1405, %v1921
      %v2050 = vsel %vm1794, %v1410, %v1922
      %v2051 = vsel %vm1795, %v1413, %v1923
      %v2052 = vsel %vm1796, %v1418, %v1924
      %v2053 = vsel %vm1797, %v1421, %v1925
      %v2054 = vsel %vm1798, %v1426, %v1926
      %v2055 = vsel %vm1799, %v1429, %v1927
      %v2056 = vsel %vm1800, %v1434, %v1928
      %v2057 = vsel %vm1801, %v1437, %v1929
      %v2058 = vsel %vm1802, %v1442, %v1930
      %v2059 = vsel %vm1803, %v1445, %v1931
      %v2060 = vsel %vm1804, %v1450, %v1932
      %v2061 = vsel %vm1805, %v1453, %v1933
      %v2062 = vsel %vm1806, %v1458, %v1934
      %v2063 = vsel %vm1807, %v1461, %v1935
      %v2064 = vsel %vm1808, %v1466, %v1936
      %v2065 = vsel %vm1809, %v1469, %v1937
      %v2066 = vsel %vm1810, %v1474, %v1938
      %v2067 = vsel %vm1811, %v1477, %v1939
      %v2068 = vsel %vm1812, %v1482, %v1940
      %v2069 = vsel %vm1813, %v1485, %v1941
      %v2070 = vsel %vm1814, %v1490, %v1942
      %v2071 = vsel %vm1815, %v1493, %v1943
      %v2072 = vsel %vm1816, %v1498, %v1944
      %v2073 = vsel %vm1817, %v1501, %v1945
      %v2074 = vsel %vm1818, %v1506, %v1946
      %v2075 = vsel %vm1819, %v1509, %v1947
      %v2076 = vsel %vm1820, %v1514, %v1948
      %v2077 = vsel %vm1821, %v1517, %v1949
      %v2078 = vsel %vm1822, %v1522, %v1950
      %v2079 = vsel %vm1823, %v1525, %v1951
      %v2080 = vsel %vm1824, %v1530, %v1952
      %v2081 = vsel %vm1825, %v1533, %v1953
      %v2082 = vsel %vm1826, %v1538, %v1954
      %v2083 = vsel %vm1827, %v1541, %v1955
      %v2084 = vsel %vm1828, %v1546, %v1956
      %v2085 = vsel %vm1829, %v1549, %v1957
      %v2086 = vsel %vm1830, %v1554, %v1958
      %v2087 = vsel %vm1831, %v1557, %v1959
      %v2088 = vsel %vm1832, %v1562, %v1960
      %v2089 = vsel %vm1833, %v1565, %v1961
      %v2090 = vsel %vm1834, %v1570, %v1962
      %v2091 = vsel %vm1835, %v1573, %v1963
      %v2092 = vsel %vm1836, %v1578, %v1964
      %v2093 = vsel %vm1837, %v1581, %v1965
      %v2094 = vsel %vm1838, %v1586, %v1966
      %v2095 = vsel %vm1839, %v1589, %v1967
      %v2096 = vsel %vm1840, %v1594, %v1968
      %v2097 = vsel %vm1841, %v1597, %v1969
      %v2098 = vsel %vm1842, %v1602, %v1970
      %v2099 = vsel %vm1843, %v1605, %v1971
      %v2100 = vsel %vm1844, %v1610, %v1972
      %v2101 = vsel %vm1845, %v1613, %v1973
      %v2102 = vsel %vm1846, %v1618, %v1974
      %v2103 = vsel %vm1847, %v1621, %v1975
      %v2104 = vsel %vm1848, %v1626, %v1976
      %v2105 = vsel %vm1849, %v1629, %v1977
      %v2106 = vsel %vm1850, %v1634, %v1978
      %v2107 = vsel %vm1851, %v1637, %v1979
      %v2108 = vsel %vm1852, %v1642, %v1980
      %v2109 = vsel %vm1853, %v1645, %v1981
      %v2110 = vsel %vm1854, %v1650, %v1982
      %v2111 = vsel %vm1855, %v1653, %v1983
      %v2112 = vsel %vm1856, %v1658, %v1984
      %v2113 = vsel %vm1857, %v1661, %v1985
      %v2114 = vsel %vm1858, %v1666, %v1986
      %v2115 = vsel %vm1859, %v1669, %v1987
      %v2116 = vsel %vm1860, %v1674, %v1988
      %v2117 = vsel %vm1861, %v1677, %v1989
      %v2118 = vsel %vm1862, %v1682, %v1990
      %v2119 = vsel %vm1863, %v1685, %v1991
      %v2120 = vsel %vm1864, %v1690, %v1992
      %v2121 = vsel %vm1865, %v1693, %v1993
      %v2122 = vsel %vm1866, %v1698, %v1994
      %v2123 = vsel %vm1867, %v1701, %v1995
      %v2124 = vsel %vm1868, %v1706, %v1996
      %v2125 = vsel %vm1869, %v1709, %v1997
      %v2126 = vsel %vm1870, %v1714, %v1998
      %v2127 = vsel %vm1871, %v1717, %v1999
      %v2128 = vsel %vm1872, %v1722, %v2000
      %v2129 = vsel %vm1873, %v1725, %v2001
      %v2130 = vsel %vm1874, %v1730, %v2002
      %v2131 = vsel %vm1875, %v1733, %v2003
      %v2132 = vsel %vm1876, %v1738, %v2004
      %v2133 = vsel %vm1877, %v1741, %v2005
      %v2134 = vsel %vm1878, %v1746, %v2006
      %v2135 = vsel %vm1879, %v1749, %v2007
      %s2136 = scalar_lea.vmem [#allocation2], 40
      %2137 = vst.msk [vmem:[%s2136 + $0x1] sm:$0xff] %vm440, %v2008
      %2138 = vst.msk [vmem:[%s2136 + $0x9] sm:$0xff] %vm440, %v2009
      %2139 = vst.msk [vmem:[%s2136 + $0x11] sm:$0xff] %vm440, %v2010
      %2140 = vst.msk [vmem:[%s2136 + $0x19] sm:$0xff] %vm440, %v2011
      %2141 = vst.msk [vmem:[%s2136 + $0x29] sm:$0xff] %vm440, %v2012
      %2142 = vst.msk [vmem:[%s2136 + $0x31] sm:$0xff] %vm440, %v2013
      %2143 = vst.msk [vmem:[%s2136 + $0x39] sm:$0xff] %vm440, %v2014
      %2144 = vst.msk [vmem:[%s2136 + $0x41] sm:$0xff] %vm440, %v2015
      %2145 = vst.msk [vmem:[%s2136 + $0x51] sm:$0xff] %vm440, %v2016
      %2146 = vst.msk [vmem:[%s2136 + $0x59] sm:$0xff] %vm440, %v2017
      %2147 = vst.msk [vmem:[%s2136 + $0x61] sm:$0xff] %vm440, %v2018
      %2148 = vst.msk [vmem:[%s2136 + $0x69] sm:$0xff] %vm440, %v2019
      %2149 = vst.msk [vmem:[%s2136 + $0x79] sm:$0xff] %vm440, %v2020
      %2150 = vst.msk [vmem:[%s2136 + $0x81] sm:$0xff] %vm440, %v2021
      %2151 = vst.msk [vmem:[%s2136 + $0x89] sm:$0xff] %vm440, %v2022
      %2152 = vst.msk [vmem:[%s2136 + $0x91] sm:$0xff] %vm440, %v2023
      %2153 = vst.msk [vmem:[%s2136 + $0xa1] sm:$0xff] %vm440, %v2024
      %2154 = vst.msk [vmem:[%s2136 + $0xa9] sm:$0xff] %vm440, %v2025
      %2155 = vst.msk [vmem:[%s2136 + $0xb1] sm:$0xff] %vm440, %v2026
      %2156 = vst.msk [vmem:[%s2136 + $0xb9] sm:$0xff] %vm440, %v2027
      %2157 = vst.msk [vmem:[%s2136 + $0xc9] sm:$0xff] %vm440, %v2028
      %2158 = vst.msk [vmem:[%s2136 + $0xd1] sm:$0xff] %vm440, %v2029
      %2159 = vst.msk [vmem:[%s2136 + $0xd9] sm:$0xff] %vm440, %v2030
      %2160 = vst.msk [vmem:[%s2136 + $0xe1] sm:$0xff] %vm440, %v2031
      %2161 = vst.msk [vmem:[%s2136 + $0xf1] sm:$0xff] %vm440, %v2032
      %2162 = vst.msk [vmem:[%s2136 + $0xf9] sm:$0xff] %vm440, %v2033
      %2163 = vst.msk [vmem:[%s2136 + $0x101] sm:$0xff] %vm440, %v2034
      %2164 = vst.msk [vmem:[%s2136 + $0x109] sm:$0xff] %vm440, %v2035
      %2165 = vst.msk [vmem:[%s2136 + $0x119] sm:$0xff] %vm440, %v2036
      %2166 = vst.msk [vmem:[%s2136 + $0x121] sm:$0xff] %vm440, %v2037
      %2167 = vst.msk [vmem:[%s2136 + $0x129] sm:$0xff] %vm440, %v2038
      %2168 = vst.msk [vmem:[%s2136 + $0x131] sm:$0xff] %vm440, %v2039
      %2169 = vst.msk [vmem:[%s2136 + $0x141] sm:$0xff] %vm440, %v2040
      %2170 = vst.msk [vmem:[%s2136 + $0x149] sm:$0xff] %vm440, %v2041
      %2171 = vst.msk [vmem:[%s2136 + $0x151] sm:$0xff] %vm440, %v2042
      %2172 = vst.msk [vmem:[%s2136 + $0x159] sm:$0xff] %vm440, %v2043
      %2173 = vst.msk [vmem:[%s2136 + $0x169] sm:$0xff] %vm440, %v2044
      %2174 = vst.msk [vmem:[%s2136 + $0x171] sm:$0xff] %vm440, %v2045
      %2175 = vst.msk [vmem:[%s2136 + $0x179] sm:$0xff] %vm440, %v2046
      %2176 = vst.msk [vmem:[%s2136 + $0x181] sm:$0xff] %vm440, %v2047
      %2177 = vst.msk [vmem:[%s2136 + $0x191] sm:$0xff] %vm440, %v2048
      %2178 = vst.msk [vmem:[%s2136 + $0x199] sm:$0xff] %vm440, %v2049
      %2179 = vst.msk [vmem:[%s2136 + $0x1a1] sm:$0xff] %vm440, %v2050
      %2180 = vst.msk [vmem:[%s2136 + $0x1a9] sm:$0xff] %vm440, %v2051
      %2181 = vst.msk [vmem:[%s2136 + $0x1b9] sm:$0xff] %vm440, %v2052
      %2182 = vst.msk [vmem:[%s2136 + $0x1c1] sm:$0xff] %vm440, %v2053
      %2183 = vst.msk [vmem:[%s2136 + $0x1c9] sm:$0xff] %vm440, %v2054
      %2184 = vst.msk [vmem:[%s2136 + $0x1d1] sm:$0xff] %vm440, %v2055
      %2185 = vst.msk [vmem:[%s2136 + $0x1e1] sm:$0xff] %vm440, %v2056
      %2186 = vst.msk [vmem:[%s2136 + $0x1e9] sm:$0xff] %vm440, %v2057
      %2187 = vst.msk [vmem:[%s2136 + $0x1f1] sm:$0xff] %vm440, %v2058
      %2188 = vst.msk [vmem:[%s2136 + $0x1f9] sm:$0xff] %vm440, %v2059
      %2189 = vst.msk [vmem:[%s2136 + $0x209] sm:$0xff] %vm440, %v2060
      %2190 = vst.msk [vmem:[%s2136 + $0x211] sm:$0xff] %vm440, %v2061
      %2191 = vst.msk [vmem:[%s2136 + $0x219] sm:$0xff] %vm440, %v2062
      %2192 = vst.msk [vmem:[%s2136 + $0x221] sm:$0xff] %vm440, %v2063
      %2193 = vst.msk [vmem:[%s2136 + $0x231] sm:$0xff] %vm440, %v2064
      %2194 = vst.msk [vmem:[%s2136 + $0x239] sm:$0xff] %vm440, %v2065
      %2195 = vst.msk [vmem:[%s2136 + $0x241] sm:$0xff] %vm440, %v2066
      %2196 = vst.msk [vmem:[%s2136 + $0x249] sm:$0xff] %vm440, %v2067
      %2197 = vst.msk [vmem:[%s2136 + $0x259] sm:$0xff] %vm440, %v2068
      %2198 = vst.msk [vmem:[%s2136 + $0x261] sm:$0xff] %vm440, %v2069
      %2199 = vst.msk [vmem:[%s2136 + $0x269] sm:$0xff] %vm440, %v2070
      %2200 = vst.msk [vmem:[%s2136 + $0x271] sm:$0xff] %vm440, %v2071
      %2201 = vst.msk [vmem:[%s2136 + $0x281] sm:$0xff] %vm440, %v2072
      %2202 = vst.msk [vmem:[%s2136 + $0x289] sm:$0xff] %vm440, %v2073
      %2203 = vst.msk [vmem:[%s2136 + $0x291] sm:$0xff] %vm440, %v2074
      %2204 = vst.msk [vmem:[%s2136 + $0x299] sm:$0xff] %vm440, %v2075
      %2205 = vst.msk [vmem:[%s2136 + $0x2a9] sm:$0xff] %vm440, %v2076
      %2206 = vst.msk [vmem:[%s2136 + $0x2b1] sm:$0xff] %vm440, %v2077
      %2207 = vst.msk [vmem:[%s2136 + $0x2b9] sm:$0xff] %vm440, %v2078
      %2208 = vst.msk [vmem:[%s2136 + $0x2c1] sm:$0xff] %vm440, %v2079
      %2209 = vst.msk [vmem:[%s2136 + $0x2d1] sm:$0xff] %vm440, %v2080
      %2210 = vst.msk [vmem:[%s2136 + $0x2d9] sm:$0xff] %vm440, %v2081
      %2211 = vst.msk [vmem:[%s2136 + $0x2e1] sm:$0xff] %vm440, %v2082
      %2212 = vst.msk [vmem:[%s2136 + $0x2e9] sm:$0xff] %vm440, %v2083
      %2213 = vst.msk [vmem:[%s2136 + $0x2f9] sm:$0xff] %vm440, %v2084
      %2214 = vst.msk [vmem:[%s2136 + $0x301] sm:$0xff] %vm440, %v2085
      %2215 = vst.msk [vmem:[%s2136 + $0x309] sm:$0xff] %vm440, %v2086
      %2216 = vst.msk [vmem:[%s2136 + $0x311] sm:$0xff] %vm440, %v2087
      %2217 = vst.msk [vmem:[%s2136 + $0x321] sm:$0xff] %vm440, %v2088
      %2218 = vst.msk [vmem:[%s2136 + $0x329] sm:$0xff] %vm440, %v2089
      %2219 = vst.msk [vmem:[%s2136 + $0x331] sm:$0xff] %vm440, %v2090
      %2220 = vst.msk [vmem:[%s2136 + $0x339] sm:$0xff] %vm440, %v2091
      %2221 = vst.msk [vmem:[%s2136 + $0x349] sm:$0xff] %vm440, %v2092
      %2222 = vst.msk [vmem:[%s2136 + $0x351] sm:$0xff] %vm440, %v2093
      %2223 = vst.msk [vmem:[%s2136 + $0x359] sm:$0xff] %vm440, %v2094
      %2224 = vst.msk [vmem:[%s2136 + $0x361] sm:$0xff] %vm440, %v2095
      %2225 = vst.msk [vmem:[%s2136 + $0x371] sm:$0xff] %vm440, %v2096
      %2226 = vst.msk [vmem:[%s2136 + $0x379] sm:$0xff] %vm440, %v2097
      %2227 = vst.msk [vmem:[%s2136 + $0x381] sm:$0xff] %vm440, %v2098
      %2228 = vst.msk [vmem:[%s2136 + $0x389] sm:$0xff] %vm440, %v2099
      %2229 = vst.msk [vmem:[%s2136 + $0x399] sm:$0xff] %vm440, %v2100
      %2230 = vst.msk [vmem:[%s2136 + $0x3a1] sm:$0xff] %vm440, %v2101
      %2231 = vst.msk [vmem:[%s2136 + $0x3a9] sm:$0xff] %vm440, %v2102
      %2232 = vst.msk [vmem:[%s2136 + $0x3b1] sm:$0xff] %vm440, %v2103
      %2233 = vst.msk [vmem:[%s2136 + $0x3c1] sm:$0xff] %vm440, %v2104
      %2234 = vst.msk [vmem:[%s2136 + $0x3c9] sm:$0xff] %vm440, %v2105
      %2235 = vst.msk [vmem:[%s2136 + $0x3d1] sm:$0xff] %vm440, %v2106
      %2236 = vst.msk [vmem:[%s2136 + $0x3d9] sm:$0xff] %vm440, %v2107
      %2237 = vst.msk [vmem:[%s2136 + $0x3e9] sm:$0xff] %vm440, %v2108
      %2238 = vst.msk [vmem:[%s2136 + $0x3f1] sm:$0xff] %vm440, %v2109
      %2239 = vst.msk [vmem:[%s2136 + $0x3f9] sm:$0xff] %vm440, %v2110
      %2240 = vst.msk [vmem:[%s2136 + $0x401] sm:$0xff] %vm440, %v2111
      %2241 = vst.msk [vmem:[%s2136 + $0x411] sm:$0xff] %vm440, %v2112
      %2242 = vst.msk [vmem:[%s2136 + $0x419] sm:$0xff] %vm440, %v2113
      %2243 = vst.msk [vmem:[%s2136 + $0x421] sm:$0xff] %vm440, %v2114
      %2244 = vst.msk [vmem:[%s2136 + $0x429] sm:$0xff] %vm440, %v2115
      %2245 = vst.msk [vmem:[%s2136 + $0x439] sm:$0xff] %vm440, %v2116
      %2246 = vst.msk [vmem:[%s2136 + $0x441] sm:$0xff] %vm440, %v2117
      %2247 = vst.msk [vmem:[%s2136 + $0x449] sm:$0xff] %vm440, %v2118
      %2248 = vst.msk [vmem:[%s2136 + $0x451] sm:$0xff] %vm440, %v2119
      %2249 = vst.msk [vmem:[%s2136 + $0x461] sm:$0xff] %vm440, %v2120
      %2250 = vst.msk [vmem:[%s2136 + $0x469] sm:$0xff] %vm440, %v2121
      %2251 = vst.msk [vmem:[%s2136 + $0x471] sm:$0xff] %vm440, %v2122
      %2252 = vst.msk [vmem:[%s2136 + $0x479] sm:$0xff] %vm440, %v2123
      %2253 = vst.msk [vmem:[%s2136 + $0x489] sm:$0xff] %vm440, %v2124
      %2254 = vst.msk [vmem:[%s2136 + $0x491] sm:$0xff] %vm440, %v2125
      %2255 = vst.msk [vmem:[%s2136 + $0x499] sm:$0xff] %vm440, %v2126
      %2256 = vst.msk [vmem:[%s2136 + $0x4a1] sm:$0xff] %vm440, %v2127
      %2257 = vst.msk [vmem:[%s2136 + $0x4b1] sm:$0xff] %vm440, %v2128
      %2258 = vst.msk [vmem:[%s2136 + $0x4b9] sm:$0xff] %vm440, %v2129
      %2259 = vst.msk [vmem:[%s2136 + $0x4c1] sm:$0xff] %vm440, %v2130
      %2260 = vst.msk [vmem:[%s2136 + $0x4c9] sm:$0xff] %vm440, %v2131
      %2261 = vst.msk [vmem:[%s2136 + $0x4d9] sm:$0xff] %vm440, %v2132
      %2262 = vst.msk [vmem:[%s2136 + $0x4e1] sm:$0xff] %vm440, %v2133
      %2263 = vst.msk [vmem:[%s2136 + $0x4e9] sm:$0xff] %vm440, %v2134
      %2264 = vst.msk [vmem:[%s2136 + $0x4f1] sm:$0xff] %vm440, %v2135
      %v2265 = vld [vmem:[#allocation2] ss:$2 sm:$0xff]
      %s2266 = scalar_lea.vmem [#allocation2], 16
      %v2267 = vld [vmem:[%s2266] ss:$2 sm:$0xff]
      %s2268 = scalar_lea.vmem [#allocation2], 80
      %v2269 = vld [vmem:[%s2268] ss:$2 sm:$0xff]
      %s2270 = scalar_lea.vmem [#allocation2], 96
      %v2271 = vld [vmem:[%s2270] ss:$2 sm:$0xff]
      %s2272 = scalar_lea.vmem [#allocation2], 160
      %v2273 = vld [vmem:[%s2272] ss:$2 sm:$0xff]
      %s2274 = scalar_lea.vmem [#allocation2], 176
      %v2275 = vld [vmem:[%s2274] ss:$2 sm:$0xff]
      %s2276 = scalar_lea.vmem [#allocation2], 240
      %v2277 = vld [vmem:[%s2276] ss:$2 sm:$0xff]
      %s2278 = scalar_lea.vmem [#allocation2], 256
      %v2279 = vld [vmem:[%s2278] ss:$2 sm:$0xff]
      %s2280 = scalar_lea.vmem [#allocation2], 320
      %v2281 = vld [vmem:[%s2280] ss:$2 sm:$0xff]
      %s2282 = scalar_lea.vmem [#allocation2], 336
      %v2283 = vld [vmem:[%s2282] ss:$2 sm:$0xff]
      %s2284 = scalar_lea.vmem [#allocation2], 400
      %v2285 = vld [vmem:[%s2284] ss:$2 sm:$0xff]
      %s2286 = scalar_lea.vmem [#allocation2], 416
      %v2287 = vld [vmem:[%s2286] ss:$2 sm:$0xff]
      %s2288 = scalar_lea.vmem [#allocation2], 480
      %v2289 = vld [vmem:[%s2288] ss:$2 sm:$0xff]
      %s2290 = scalar_lea.vmem [#allocation2], 496
      %v2291 = vld [vmem:[%s2290] ss:$2 sm:$0xff]
      %s2292 = scalar_lea.vmem [#allocation2], 560
      %v2293 = vld [vmem:[%s2292] ss:$2 sm:$0xff]
      %s2294 = scalar_lea.vmem [#allocation2], 576
      %v2295 = vld [vmem:[%s2294] ss:$2 sm:$0xff]
      %s2296 = scalar_lea.vmem [#allocation2], 640
      %v2297 = vld [vmem:[%s2296] ss:$2 sm:$0xff]
      %s2298 = scalar_lea.vmem [#allocation2], 656
      %v2299 = vld [vmem:[%s2298] ss:$2 sm:$0xff]
      %s2300 = scalar_lea.vmem [#allocation2], 720
      %v2301 = vld [vmem:[%s2300] ss:$2 sm:$0xff]
      %s2302 = scalar_lea.vmem [#allocation2], 736
      %v2303 = vld [vmem:[%s2302] ss:$2 sm:$0xff]
      %s2304 = scalar_lea.vmem [#allocation2], 800
      %v2305 = vld [vmem:[%s2304] ss:$2 sm:$0xff]
      %s2306 = scalar_lea.vmem [#allocation2], 816
      %v2307 = vld [vmem:[%s2306] ss:$2 sm:$0xff]
      %s2308 = scalar_lea.vmem [#allocation2], 880
      %v2309 = vld [vmem:[%s2308] ss:$2 sm:$0xff]
      %s2310 = scalar_lea.vmem [#allocation2], 896
      %v2311 = vld [vmem:[%s2310] ss:$2 sm:$0xff]
      %s2312 = scalar_lea.vmem [#allocation2], 960
      %v2313 = vld [vmem:[%s2312] ss:$2 sm:$0xff]
      %s2314 = scalar_lea.vmem [#allocation2], 976
      %v2315 = vld [vmem:[%s2314] ss:$2 sm:$0xff]
      %s2316 = scalar_lea.vmem [#allocation2], 1040
      %v2317 = vld [vmem:[%s2316] ss:$2 sm:$0xff]
      %s2318 = scalar_lea.vmem [#allocation2], 1056
      %v2319 = vld [vmem:[%s2318] ss:$2 sm:$0xff]
      %s2320 = scalar_lea.vmem [#allocation2], 1120
      %v2321 = vld [vmem:[%s2320] ss:$2 sm:$0xff]
      %s2322 = scalar_lea.vmem [#allocation2], 1136
      %v2323 = vld [vmem:[%s2322] ss:$2 sm:$0xff]
      %s2324 = scalar_lea.vmem [#allocation2], 1200
      %v2325 = vld [vmem:[%s2324] ss:$2 sm:$0xff]
      %s2326 = scalar_lea.vmem [#allocation2], 1216
      %v2327 = vld [vmem:[%s2326] ss:$2 sm:$0xff]
      %s2328 = scalar_lea.vmem [#allocation2], 1
      %v2329 = vld [vmem:[%s2328] ss:$2 sm:$0xff]
      %s2330 = scalar_lea.vmem [#allocation2], 17
      %v2331 = vld [vmem:[%s2330] ss:$2 sm:$0xff]
      %s2332 = scalar_lea.vmem [#allocation2], 81
      %v2333 = vld [vmem:[%s2332] ss:$2 sm:$0xff]
      %s2334 = scalar_lea.vmem [#allocation2], 97
      %v2335 = vld [vmem:[%s2334] ss:$2 sm:$0xff]
      %s2336 = scalar_lea.vmem [#allocation2], 161
      %v2337 = vld [vmem:[%s2336] ss:$2 sm:$0xff]
      %s2338 = scalar_lea.vmem [#allocation2], 177
      %v2339 = vld [vmem:[%s2338] ss:$2 sm:$0xff]
      %s2340 = scalar_lea.vmem [#allocation2], 241
      %v2341 = vld [vmem:[%s2340] ss:$2 sm:$0xff]
      %s2342 = scalar_lea.vmem [#allocation2], 257
      %v2343 = vld [vmem:[%s2342] ss:$2 sm:$0xff]
      %s2344 = scalar_lea.vmem [#allocation2], 321
      %v2345 = vld [vmem:[%s2344] ss:$2 sm:$0xff]
      %s2346 = scalar_lea.vmem [#allocation2], 337
      %v2347 = vld [vmem:[%s2346] ss:$2 sm:$0xff]
      %s2348 = scalar_lea.vmem [#allocation2], 401
      %v2349 = vld [vmem:[%s2348] ss:$2 sm:$0xff]
      %s2350 = scalar_lea.vmem [#allocation2], 417
      %v2351 = vld [vmem:[%s2350] ss:$2 sm:$0xff]
      %s2352 = scalar_lea.vmem [#allocation2], 481
      %v2353 = vld [vmem:[%s2352] ss:$2 sm:$0xff]
      %s2354 = scalar_lea.vmem [#allocation2], 497
      %v2355 = vld [vmem:[%s2354] ss:$2 sm:$0xff]
      %s2356 = scalar_lea.vmem [#allocation2], 561
      %v2357 = vld [vmem:[%s2356] ss:$2 sm:$0xff]
      %s2358 = scalar_lea.vmem [#allocation2], 577
      %v2359 = vld [vmem:[%s2358] ss:$2 sm:$0xff]
      %s2360 = scalar_lea.vmem [#allocation2], 641
      %v2361 = vld [vmem:[%s2360] ss:$2 sm:$0xff]
      %s2362 = scalar_lea.vmem [#allocation2], 657
      %v2363 = vld [vmem:[%s2362] ss:$2 sm:$0xff]
      %s2364 = scalar_lea.vmem [#allocation2], 721
      %v2365 = vld [vmem:[%s2364] ss:$2 sm:$0xff]
      %s2366 = scalar_lea.vmem [#allocation2], 737
      %v2367 = vld [vmem:[%s2366] ss:$2 sm:$0xff]
      %s2368 = scalar_lea.vmem [#allocation2], 801
      %v2369 = vld [vmem:[%s2368] ss:$2 sm:$0xff]
      %s2370 = scalar_lea.vmem [#allocation2], 817
      %v2371 = vld [vmem:[%s2370] ss:$2 sm:$0xff]
      %s2372 = scalar_lea.vmem [#allocation2], 881
      %v2373 = vld [vmem:[%s2372] ss:$2 sm:$0xff]
      %s2374 = scalar_lea.vmem [#allocation2], 897
      %v2375 = vld [vmem:[%s2374] ss:$2 sm:$0xff]
      %s2376 = scalar_lea.vmem [#allocation2], 961
      %v2377 = vld [vmem:[%s2376] ss:$2 sm:$0xff]
      %s2378 = scalar_lea.vmem [#allocation2], 977
      %v2379 = vld [vmem:[%s2378] ss:$2 sm:$0xff]
      %s2380 = scalar_lea.vmem [#allocation2], 1041
      %v2381 = vld [vmem:[%s2380] ss:$2 sm:$0xff]
      %s2382 = scalar_lea.vmem [#allocation2], 1057
      %v2383 = vld [vmem:[%s2382] ss:$2 sm:$0xff]
      %s2384 = scalar_lea.vmem [#allocation2], 1121
      %v2385 = vld [vmem:[%s2384] ss:$2 sm:$0xff]
      %s2386 = scalar_lea.vmem [#allocation2], 1137
      %v2387 = vld [vmem:[%s2386] ss:$2 sm:$0xff]
      %s2388 = scalar_lea.vmem [#allocation2], 1201
      %v2389 = vld [vmem:[%s2388] ss:$2 sm:$0xff]
      %s2390 = scalar_lea.vmem [#allocation2], 1217
      %v2391 = vld [vmem:[%s2390] ss:$2 sm:$0xff]
      %s2392 = scalar_lea.vmem [#allocation2], 2
      %v2393 = vld [vmem:[%s2392] ss:$2 sm:$0xff]
      %s2394 = scalar_lea.vmem [#allocation2], 18
      %v2395 = vld [vmem:[%s2394] ss:$2 sm:$0xff]
      %s2396 = scalar_lea.vmem [#allocation2], 82
      %v2397 = vld [vmem:[%s2396] ss:$2 sm:$0xff]
      %s2398 = scalar_lea.vmem [#allocation2], 98
      %v2399 = vld [vmem:[%s2398] ss:$2 sm:$0xff]
      %s2400 = scalar_lea.vmem [#allocation2], 162
      %v2401 = vld [vmem:[%s2400] ss:$2 sm:$0xff]
      %s2402 = scalar_lea.vmem [#allocation2], 178
      %v2403 = vld [vmem:[%s2402] ss:$2 sm:$0xff]
      %s2404 = scalar_lea.vmem [#allocation2], 242
      %v2405 = vld [vmem:[%s2404] ss:$2 sm:$0xff]
      %s2406 = scalar_lea.vmem [#allocation2], 258
      %v2407 = vld [vmem:[%s2406] ss:$2 sm:$0xff]
      %s2408 = scalar_lea.vmem [#allocation2], 322
      %v2409 = vld [vmem:[%s2408] ss:$2 sm:$0xff]
      %s2410 = scalar_lea.vmem [#allocation2], 338
      %v2411 = vld [vmem:[%s2410] ss:$2 sm:$0xff]
      %s2412 = scalar_lea.vmem [#allocation2], 402
      %v2413 = vld [vmem:[%s2412] ss:$2 sm:$0xff]
      %s2414 = scalar_lea.vmem [#allocation2], 418
      %v2415 = vld [vmem:[%s2414] ss:$2 sm:$0xff]
      %s2416 = scalar_lea.vmem [#allocation2], 482
      %v2417 = vld [vmem:[%s2416] ss:$2 sm:$0xff]
      %s2418 = scalar_lea.vmem [#allocation2], 498
      %v2419 = vld [vmem:[%s2418] ss:$2 sm:$0xff]
      %s2420 = scalar_lea.vmem [#allocation2], 562
      %v2421 = vld [vmem:[%s2420] ss:$2 sm:$0xff]
      %s2422 = scalar_lea.vmem [#allocation2], 578
      %v2423 = vld [vmem:[%s2422] ss:$2 sm:$0xff]
      %s2424 = scalar_lea.vmem [#allocation2], 642
      %v2425 = vld [vmem:[%s2424] ss:$2 sm:$0xff]
      %s2426 = scalar_lea.vmem [#allocation2], 658
      %v2427 = vld [vmem:[%s2426] ss:$2 sm:$0xff]
      %s2428 = scalar_lea.vmem [#allocation2], 722
      %v2429 = vld [vmem:[%s2428] ss:$2 sm:$0xff]
      %s2430 = scalar_lea.vmem [#allocation2], 738
      %v2431 = vld [vmem:[%s2430] ss:$2 sm:$0xff]
      %s2432 = scalar_lea.vmem [#allocation2], 802
      %v2433 = vld [vmem:[%s2432] ss:$2 sm:$0xff]
      %s2434 = scalar_lea.vmem [#allocation2], 818
      %v2435 = vld [vmem:[%s2434] ss:$2 sm:$0xff]
      %s2436 = scalar_lea.vmem [#allocation2], 882
      %v2437 = vld [vmem:[%s2436] ss:$2 sm:$0xff]
      %s2438 = scalar_lea.vmem [#allocation2], 898
      %v2439 = vld [vmem:[%s2438] ss:$2 sm:$0xff]
      %s2440 = scalar_lea.vmem [#allocation2], 962
      %v2441 = vld [vmem:[%s2440] ss:$2 sm:$0xff]
      %s2442 = scalar_lea.vmem [#allocation2], 978
      %v2443 = vld [vmem:[%s2442] ss:$2 sm:$0xff]
      %s2444 = scalar_lea.vmem [#allocation2], 1042
      %v2445 = vld [vmem:[%s2444] ss:$2 sm:$0xff]
      %s2446 = scalar_lea.vmem [#allocation2], 1058
      %v2447 = vld [vmem:[%s2446] ss:$2 sm:$0xff]
      %s2448 = scalar_lea.vmem [#allocation2], 1122
      %v2449 = vld [vmem:[%s2448] ss:$2 sm:$0xff]
      %s2450 = scalar_lea.vmem [#allocation2], 1138
      %v2451 = vld [vmem:[%s2450] ss:$2 sm:$0xff]
      %s2452 = scalar_lea.vmem [#allocation2], 1202
      %v2453 = vld [vmem:[%s2452] ss:$2 sm:$0xff]
      %s2454 = scalar_lea.vmem [#allocation2], 1218
      %v2455 = vld [vmem:[%s2454] ss:$2 sm:$0xff]
      %v2456 = vld [vmem:[%s2136] ss:$2 sm:$0xff]
      %s2457 = scalar_lea.vmem %s2136, 16 [#allocation2]
      %v2458 = vld [vmem:[%s2457] ss:$2 sm:$0xff]
      %s2459 = scalar_lea.vmem %s2136, 80 [#allocation2]
      %v2460 = vld [vmem:[%s2459] ss:$2 sm:$0xff]
      %s2461 = scalar_lea.vmem %s2136, 96 [#allocation2]
      %v2462 = vld [vmem:[%s2461] ss:$2 sm:$0xff]
      %s2463 = scalar_lea.vmem %s2136, 160 [#allocation2]
      %v2464 = vld [vmem:[%s2463] ss:$2 sm:$0xff]
      %s2465 = scalar_lea.vmem %s2136, 176 [#allocation2]
      %v2466 = vld [vmem:[%s2465] ss:$2 sm:$0xff]
      %s2467 = scalar_lea.vmem %s2136, 240 [#allocation2]
      %v2468 = vld [vmem:[%s2467] ss:$2 sm:$0xff]
      %s2469 = scalar_lea.vmem %s2136, 256 [#allocation2]
      %v2470 = vld [vmem:[%s2469] ss:$2 sm:$0xff]
      %s2471 = scalar_lea.vmem %s2136, 320 [#allocation2]
      %v2472 = vld [vmem:[%s2471] ss:$2 sm:$0xff]
      %s2473 = scalar_lea.vmem %s2136, 336 [#allocation2]
      %v2474 = vld [vmem:[%s2473] ss:$2 sm:$0xff]
      %s2475 = scalar_lea.vmem %s2136, 400 [#allocation2]
      %v2476 = vld [vmem:[%s2475] ss:$2 sm:$0xff]
      %s2477 = scalar_lea.vmem %s2136, 416 [#allocation2]
      %v2478 = vld [vmem:[%s2477] ss:$2 sm:$0xff]
      %s2479 = scalar_lea.vmem %s2136, 480 [#allocation2]
      %v2480 = vld [vmem:[%s2479] ss:$2 sm:$0xff]
      %s2481 = scalar_lea.vmem %s2136, 496 [#allocation2]
      %v2482 = vld [vmem:[%s2481] ss:$2 sm:$0xff]
      %s2483 = scalar_lea.vmem %s2136, 560 [#allocation2]
      %v2484 = vld [vmem:[%s2483] ss:$2 sm:$0xff]
      %s2485 = scalar_lea.vmem %s2136, 576 [#allocation2]
      %v2486 = vld [vmem:[%s2485] ss:$2 sm:$0xff]
      %s2487 = scalar_lea.vmem %s2136, 640 [#allocation2]
      %v2488 = vld [vmem:[%s2487] ss:$2 sm:$0xff]
      %s2489 = scalar_lea.vmem %s2136, 656 [#allocation2]
      %v2490 = vld [vmem:[%s2489] ss:$2 sm:$0xff]
      %s2491 = scalar_lea.vmem %s2136, 720 [#allocation2]
      %v2492 = vld [vmem:[%s2491] ss:$2 sm:$0xff]
      %s2493 = scalar_lea.vmem %s2136, 736 [#allocation2]
      %v2494 = vld [vmem:[%s2493] ss:$2 sm:$0xff]
      %s2495 = scalar_lea.vmem %s2136, 800 [#allocation2]
      %v2496 = vld [vmem:[%s2495] ss:$2 sm:$0xff]
      %s2497 = scalar_lea.vmem %s2136, 816 [#allocation2]
      %v2498 = vld [vmem:[%s2497] ss:$2 sm:$0xff]
      %s2499 = scalar_lea.vmem %s2136, 880 [#allocation2]
      %v2500 = vld [vmem:[%s2499] ss:$2 sm:$0xff]
      %s2501 = scalar_lea.vmem %s2136, 896 [#allocation2]
      %v2502 = vld [vmem:[%s2501] ss:$2 sm:$0xff]
      %s2503 = scalar_lea.vmem %s2136, 960 [#allocation2]
      %v2504 = vld [vmem:[%s2503] ss:$2 sm:$0xff]
      %s2505 = scalar_lea.vmem %s2136, 976 [#allocation2]
      %v2506 = vld [vmem:[%s2505] ss:$2 sm:$0xff]
      %s2507 = scalar_lea.vmem %s2136, 1040 [#allocation2]
      %v2508 = vld [vmem:[%s2507] ss:$2 sm:$0xff]
      %s2509 = scalar_lea.vmem %s2136, 1056 [#allocation2]
      %v2510 = vld [vmem:[%s2509] ss:$2 sm:$0xff]
      %s2511 = scalar_lea.vmem %s2136, 1120 [#allocation2]
      %v2512 = vld [vmem:[%s2511] ss:$2 sm:$0xff]
      %s2513 = scalar_lea.vmem %s2136, 1136 [#allocation2]
      %v2514 = vld [vmem:[%s2513] ss:$2 sm:$0xff]
      %s2515 = scalar_lea.vmem %s2136, 1200 [#allocation2]
      %v2516 = vld [vmem:[%s2515] ss:$2 sm:$0xff]
      %s2517 = scalar_lea.vmem %s2136, 1216 [#allocation2]
      %v2518 = vld [vmem:[%s2517] ss:$2 sm:$0xff]
      %s2519 = scalar_lea.vmem %s2136, 1 [#allocation2]
      %v2520 = vld [vmem:[%s2519] ss:$2 sm:$0xff]
      %s2521 = scalar_lea.vmem %s2136, 17 [#allocation2]
      %v2522 = vld [vmem:[%s2521] ss:$2 sm:$0xff]
      %s2523 = scalar_lea.vmem %s2136, 81 [#allocation2]
      %v2524 = vld [vmem:[%s2523] ss:$2 sm:$0xff]
      %s2525 = scalar_lea.vmem %s2136, 97 [#allocation2]
      %v2526 = vld [vmem:[%s2525] ss:$2 sm:$0xff]
      %s2527 = scalar_lea.vmem %s2136, 161 [#allocation2]
      %v2528 = vld [vmem:[%s2527] ss:$2 sm:$0xff]
      %s2529 = scalar_lea.vmem %s2136, 177 [#allocation2]
      %v2530 = vld [vmem:[%s2529] ss:$2 sm:$0xff]
      %s2531 = scalar_lea.vmem %s2136, 241 [#allocation2]
      %v2532 = vld [vmem:[%s2531] ss:$2 sm:$0xff]
      %s2533 = scalar_lea.vmem %s2136, 257 [#allocation2]
      %v2534 = vld [vmem:[%s2533] ss:$2 sm:$0xff]
      %s2535 = scalar_lea.vmem %s2136, 321 [#allocation2]
      %v2536 = vld [vmem:[%s2535] ss:$2 sm:$0xff]
      %s2537 = scalar_lea.vmem %s2136, 337 [#allocation2]
      %v2538 = vld [vmem:[%s2537] ss:$2 sm:$0xff]
      %s2539 = scalar_lea.vmem %s2136, 401 [#allocation2]
      %v2540 = vld [vmem:[%s2539] ss:$2 sm:$0xff]
      %s2541 = scalar_lea.vmem %s2136, 417 [#allocation2]
      %v2542 = vld [vmem:[%s2541] ss:$2 sm:$0xff]
      %s2543 = scalar_lea.vmem %s2136, 481 [#allocation2]
      %v2544 = vld [vmem:[%s2543] ss:$2 sm:$0xff]
      %s2545 = scalar_lea.vmem %s2136, 497 [#allocation2]
      %v2546 = vld [vmem:[%s2545] ss:$2 sm:$0xff]
      %s2547 = scalar_lea.vmem %s2136, 561 [#allocation2]
      %v2548 = vld [vmem:[%s2547] ss:$2 sm:$0xff]
      %s2549 = scalar_lea.vmem %s2136, 577 [#allocation2]
      %v2550 = vld [vmem:[%s2549] ss:$2 sm:$0xff]
      %s2551 = scalar_lea.vmem %s2136, 641 [#allocation2]
      %v2552 = vld [vmem:[%s2551] ss:$2 sm:$0xff]
      %s2553 = scalar_lea.vmem %s2136, 657 [#allocation2]
      %v2554 = vld [vmem:[%s2553] ss:$2 sm:$0xff]
      %s2555 = scalar_lea.vmem %s2136, 721 [#allocation2]
      %v2556 = vld [vmem:[%s2555] ss:$2 sm:$0xff]
      %s2557 = scalar_lea.vmem %s2136, 737 [#allocation2]
      %v2558 = vld [vmem:[%s2557] ss:$2 sm:$0xff]
      %s2559 = scalar_lea.vmem %s2136, 801 [#allocation2]
      %v2560 = vld [vmem:[%s2559] ss:$2 sm:$0xff]
      %s2561 = scalar_lea.vmem %s2136, 817 [#allocation2]
      %v2562 = vld [vmem:[%s2561] ss:$2 sm:$0xff]
      %s2563 = scalar_lea.vmem %s2136, 881 [#allocation2]
      %v2564 = vld [vmem:[%s2563] ss:$2 sm:$0xff]
      %s2565 = scalar_lea.vmem %s2136, 897 [#allocation2]
      %v2566 = vld [vmem:[%s2565] ss:$2 sm:$0xff]
      %s2567 = scalar_lea.vmem %s2136, 961 [#allocation2]
      %v2568 = vld [vmem:[%s2567] ss:$2 sm:$0xff]
      %s2569 = scalar_lea.vmem %s2136, 977 [#allocation2]
      %v2570 = vld [vmem:[%s2569] ss:$2 sm:$0xff]
      %s2571 = scalar_lea.vmem %s2136, 1041 [#allocation2]
      %v2572 = vld [vmem:[%s2571] ss:$2 sm:$0xff]
      %s2573 = scalar_lea.vmem %s2136, 1057 [#allocation2]
      %v2574 = vld [vmem:[%s2573] ss:$2 sm:$0xff]
      %s2575 = scalar_lea.vmem %s2136, 1121 [#allocation2]
      %v2576 = vld [vmem:[%s2575] ss:$2 sm:$0xff]
      %s2577 = scalar_lea.vmem %s2136, 1137 [#allocation2]
      %v2578 = vld [vmem:[%s2577] ss:$2 sm:$0xff]
      %s2579 = scalar_lea.vmem %s2136, 1201 [#allocation2]
      %v2580 = vld [vmem:[%s2579] ss:$2 sm:$0xff]
      %s2581 = scalar_lea.vmem %s2136, 1217 [#allocation2]
      %v2582 = vld [vmem:[%s2581] ss:$2 sm:$0xff]
      %s2583 = scalar_lea.vmem %s2136, 2 [#allocation2]
      %v2584 = vld [vmem:[%s2583] ss:$2 sm:$0xff]
      %s2585 = scalar_lea.vmem %s2136, 18 [#allocation2]
      %v2586 = vld [vmem:[%s2585] ss:$2 sm:$0xff]
      %s2587 = scalar_lea.vmem %s2136, 82 [#allocation2]
      %v2588 = vld [vmem:[%s2587] ss:$2 sm:$0xff]
      %s2589 = scalar_lea.vmem %s2136, 98 [#allocation2]
      %v2590 = vld [vmem:[%s2589] ss:$2 sm:$0xff]
      %s2591 = scalar_lea.vmem %s2136, 162 [#allocation2]
      %v2592 = vld [vmem:[%s2591] ss:$2 sm:$0xff]
      %s2593 = scalar_lea.vmem %s2136, 178 [#allocation2]
      %v2594 = vld [vmem:[%s2593] ss:$2 sm:$0xff]
      %s2595 = scalar_lea.vmem %s2136, 242 [#allocation2]
      %v2596 = vld [vmem:[%s2595] ss:$2 sm:$0xff]
      %s2597 = scalar_lea.vmem %s2136, 258 [#allocation2]
      %v2598 = vld [vmem:[%s2597] ss:$2 sm:$0xff]
      %s2599 = scalar_lea.vmem %s2136, 322 [#allocation2]
      %v2600 = vld [vmem:[%s2599] ss:$2 sm:$0xff]
      %s2601 = scalar_lea.vmem %s2136, 338 [#allocation2]
      %v2602 = vld [vmem:[%s2601] ss:$2 sm:$0xff]
      %s2603 = scalar_lea.vmem %s2136, 402 [#allocation2]
      %v2604 = vld [vmem:[%s2603] ss:$2 sm:$0xff]
      %s2605 = scalar_lea.vmem %s2136, 418 [#allocation2]
      %v2606 = vld [vmem:[%s2605] ss:$2 sm:$0xff]
      %s2607 = scalar_lea.vmem %s2136, 482 [#allocation2]
      %v2608 = vld [vmem:[%s2607] ss:$2 sm:$0xff]
      %s2609 = scalar_lea.vmem %s2136, 498 [#allocation2]
      %v2610 = vld [vmem:[%s2609] ss:$2 sm:$0xff]
      %s2611 = scalar_lea.vmem %s2136, 562 [#allocation2]
      %v2612 = vld [vmem:[%s2611] ss:$2 sm:$0xff]
      %s2613 = scalar_lea.vmem %s2136, 578 [#allocation2]
      %v2614 = vld [vmem:[%s2613] ss:$2 sm:$0xff]
      %s2615 = scalar_lea.vmem %s2136, 642 [#allocation2]
      %v2616 = vld [vmem:[%s2615] ss:$2 sm:$0xff]
      %s2617 = scalar_lea.vmem %s2136, 658 [#allocation2]
      %v2618 = vld [vmem:[%s2617] ss:$2 sm:$0xff]
      %s2619 = scalar_lea.vmem %s2136, 722 [#allocation2]
      %v2620 = vld [vmem:[%s2619] ss:$2 sm:$0xff]
      %s2621 = scalar_lea.vmem %s2136, 738 [#allocation2]
      %v2622 = vld [vmem:[%s2621] ss:$2 sm:$0xff]
      %s2623 = scalar_lea.vmem %s2136, 802 [#allocation2]
      %v2624 = vld [vmem:[%s2623] ss:$2 sm:$0xff]
      %s2625 = scalar_lea.vmem %s2136, 818 [#allocation2]
      %v2626 = vld [vmem:[%s2625] ss:$2 sm:$0xff]
      %s2627 = scalar_lea.vmem %s2136, 882 [#allocation2]
      %v2628 = vld [vmem:[%s2627] ss:$2 sm:$0xff]
      %s2629 = scalar_lea.vmem %s2136, 898 [#allocation2]
      %v2630 = vld [vmem:[%s2629] ss:$2 sm:$0xff]
      %s2631 = scalar_lea.vmem %s2136, 962 [#allocation2]
      %v2632 = vld [vmem:[%s2631] ss:$2 sm:$0xff]
      %s2633 = scalar_lea.vmem %s2136, 978 [#allocation2]
      %v2634 = vld [vmem:[%s2633] ss:$2 sm:$0xff]
      %s2635 = scalar_lea.vmem %s2136, 1042 [#allocation2]
      %v2636 = vld [vmem:[%s2635] ss:$2 sm:$0xff]
      %s2637 = scalar_lea.vmem %s2136, 1058 [#allocation2]
      %v2638 = vld [vmem:[%s2637] ss:$2 sm:$0xff]
      %s2639 = scalar_lea.vmem %s2136, 1122 [#allocation2]
      %v2640 = vld [vmem:[%s2639] ss:$2 sm:$0xff]
      %s2641 = scalar_lea.vmem %s2136, 1138 [#allocation2]
      %v2642 = vld [vmem:[%s2641] ss:$2 sm:$0xff]
      %s2643 = scalar_lea.vmem %s2136, 1202 [#allocation2]
      %v2644 = vld [vmem:[%s2643] ss:$2 sm:$0xff]
      %s2645 = scalar_lea.vmem %s2136, 1218 [#allocation2]
      %v2646 = vld [vmem:[%s2645] ss:$2 sm:$0xff]
      %s2647 = scalar_lea.vmem [#allocation2], 80
      %v2648 = vld [vmem:[%s2647] ss:$2 sm:$0xff]
      %s2649 = scalar_lea.vmem %s2647, 16 [#allocation2]
      %v2650 = vld [vmem:[%s2649] ss:$2 sm:$0xff]
      %s2651 = scalar_lea.vmem %s2647, 80 [#allocation2]
      %v2652 = vld [vmem:[%s2651] ss:$2 sm:$0xff]
      %s2653 = scalar_lea.vmem %s2647, 96 [#allocation2]
      %v2654 = vld [vmem:[%s2653] ss:$2 sm:$0xff]
      %s2655 = scalar_lea.vmem %s2647, 160 [#allocation2]
      %v2656 = vld [vmem:[%s2655] ss:$2 sm:$0xff]
      %s2657 = scalar_lea.vmem %s2647, 176 [#allocation2]
      %v2658 = vld [vmem:[%s2657] ss:$2 sm:$0xff]
      %s2659 = scalar_lea.vmem %s2647, 240 [#allocation2]
      %v2660 = vld [vmem:[%s2659] ss:$2 sm:$0xff]
      %s2661 = scalar_lea.vmem %s2647, 256 [#allocation2]
      %v2662 = vld [vmem:[%s2661] ss:$2 sm:$0xff]
      %s2663 = scalar_lea.vmem %s2647, 320 [#allocation2]
      %v2664 = vld [vmem:[%s2663] ss:$2 sm:$0xff]
      %s2665 = scalar_lea.vmem %s2647, 336 [#allocation2]
      %v2666 = vld [vmem:[%s2665] ss:$2 sm:$0xff]
      %s2667 = scalar_lea.vmem %s2647, 400 [#allocation2]
      %v2668 = vld [vmem:[%s2667] ss:$2 sm:$0xff]
      %s2669 = scalar_lea.vmem %s2647, 416 [#allocation2]
      %v2670 = vld [vmem:[%s2669] ss:$2 sm:$0xff]
      %s2671 = scalar_lea.vmem %s2647, 480 [#allocation2]
      %v2672 = vld [vmem:[%s2671] ss:$2 sm:$0xff]
      %s2673 = scalar_lea.vmem %s2647, 496 [#allocation2]
      %v2674 = vld [vmem:[%s2673] ss:$2 sm:$0xff]
      %s2675 = scalar_lea.vmem %s2647, 560 [#allocation2]
      %v2676 = vld [vmem:[%s2675] ss:$2 sm:$0xff]
      %s2677 = scalar_lea.vmem %s2647, 576 [#allocation2]
      %v2678 = vld [vmem:[%s2677] ss:$2 sm:$0xff]
      %s2679 = scalar_lea.vmem %s2647, 640 [#allocation2]
      %v2680 = vld [vmem:[%s2679] ss:$2 sm:$0xff]
      %s2681 = scalar_lea.vmem %s2647, 656 [#allocation2]
      %v2682 = vld [vmem:[%s2681] ss:$2 sm:$0xff]
      %s2683 = scalar_lea.vmem %s2647, 720 [#allocation2]
      %v2684 = vld [vmem:[%s2683] ss:$2 sm:$0xff]
      %s2685 = scalar_lea.vmem %s2647, 736 [#allocation2]
      %v2686 = vld [vmem:[%s2685] ss:$2 sm:$0xff]
      %s2687 = scalar_lea.vmem %s2647, 800 [#allocation2]
      %v2688 = vld [vmem:[%s2687] ss:$2 sm:$0xff]
      %s2689 = scalar_lea.vmem %s2647, 816 [#allocation2]
      %v2690 = vld [vmem:[%s2689] ss:$2 sm:$0xff]
      %s2691 = scalar_lea.vmem %s2647, 880 [#allocation2]
      %v2692 = vld [vmem:[%s2691] ss:$2 sm:$0xff]
      %s2693 = scalar_lea.vmem %s2647, 896 [#allocation2]
      %v2694 = vld [vmem:[%s2693] ss:$2 sm:$0xff]
      %s2695 = scalar_lea.vmem %s2647, 960 [#allocation2]
      %v2696 = vld [vmem:[%s2695] ss:$2 sm:$0xff]
      %s2697 = scalar_lea.vmem %s2647, 976 [#allocation2]
      %v2698 = vld [vmem:[%s2697] ss:$2 sm:$0xff]
      %s2699 = scalar_lea.vmem %s2647, 1040 [#allocation2]
      %v2700 = vld [vmem:[%s2699] ss:$2 sm:$0xff]
      %s2701 = scalar_lea.vmem %s2647, 1056 [#allocation2]
      %v2702 = vld [vmem:[%s2701] ss:$2 sm:$0xff]
      %s2703 = scalar_lea.vmem %s2647, 1120 [#allocation2]
      %v2704 = vld [vmem:[%s2703] ss:$2 sm:$0xff]
      %s2705 = scalar_lea.vmem %s2647, 1136 [#allocation2]
      %v2706 = vld [vmem:[%s2705] ss:$2 sm:$0xff]
      %s2707 = scalar_lea.vmem %s2647, 1200 [#allocation2]
      %v2708 = vld [vmem:[%s2707] ss:$2 sm:$0xff]
      %s2709 = scalar_lea.vmem %s2647, 1216 [#allocation2]
      %v2710 = vld [vmem:[%s2709] ss:$2 sm:$0xff]
      %s2711 = scalar_lea.vmem %s2647, 1 [#allocation2]
      %v2712 = vld [vmem:[%s2711] ss:$2 sm:$0xff]
      %s2713 = scalar_lea.vmem %s2647, 17 [#allocation2]
      %v2714 = vld [vmem:[%s2713] ss:$2 sm:$0xff]
      %s2715 = scalar_lea.vmem %s2647, 81 [#allocation2]
      %v2716 = vld [vmem:[%s2715] ss:$2 sm:$0xff]
      %s2717 = scalar_lea.vmem %s2647, 97 [#allocation2]
      %v2718 = vld [vmem:[%s2717] ss:$2 sm:$0xff]
      %s2719 = scalar_lea.vmem %s2647, 161 [#allocation2]
      %v2720 = vld [vmem:[%s2719] ss:$2 sm:$0xff]
      %s2721 = scalar_lea.vmem %s2647, 177 [#allocation2]
      %v2722 = vld [vmem:[%s2721] ss:$2 sm:$0xff]
      %s2723 = scalar_lea.vmem %s2647, 241 [#allocation2]
      %v2724 = vld [vmem:[%s2723] ss:$2 sm:$0xff]
      %s2725 = scalar_lea.vmem %s2647, 257 [#allocation2]
      %v2726 = vld [vmem:[%s2725] ss:$2 sm:$0xff]
      %s2727 = scalar_lea.vmem %s2647, 321 [#allocation2]
      %v2728 = vld [vmem:[%s2727] ss:$2 sm:$0xff]
      %s2729 = scalar_lea.vmem %s2647, 337 [#allocation2]
      %v2730 = vld [vmem:[%s2729] ss:$2 sm:$0xff]
      %s2731 = scalar_lea.vmem %s2647, 401 [#allocation2]
      %v2732 = vld [vmem:[%s2731] ss:$2 sm:$0xff]
      %s2733 = scalar_lea.vmem %s2647, 417 [#allocation2]
      %v2734 = vld [vmem:[%s2733] ss:$2 sm:$0xff]
      %s2735 = scalar_lea.vmem %s2647, 481 [#allocation2]
      %v2736 = vld [vmem:[%s2735] ss:$2 sm:$0xff]
      %s2737 = scalar_lea.vmem %s2647, 497 [#allocation2]
      %v2738 = vld [vmem:[%s2737] ss:$2 sm:$0xff]
      %s2739 = scalar_lea.vmem %s2647, 561 [#allocation2]
      %v2740 = vld [vmem:[%s2739] ss:$2 sm:$0xff]
      %s2741 = scalar_lea.vmem %s2647, 577 [#allocation2]
      %v2742 = vld [vmem:[%s2741] ss:$2 sm:$0xff]
      %s2743 = scalar_lea.vmem %s2647, 641 [#allocation2]
      %v2744 = vld [vmem:[%s2743] ss:$2 sm:$0xff]
      %s2745 = scalar_lea.vmem %s2647, 657 [#allocation2]
      %v2746 = vld [vmem:[%s2745] ss:$2 sm:$0xff]
      %s2747 = scalar_lea.vmem %s2647, 721 [#allocation2]
      %v2748 = vld [vmem:[%s2747] ss:$2 sm:$0xff]
      %s2749 = scalar_lea.vmem %s2647, 737 [#allocation2]
      %v2750 = vld [vmem:[%s2749] ss:$2 sm:$0xff]
      %s2751 = scalar_lea.vmem %s2647, 801 [#allocation2]
      %v2752 = vld [vmem:[%s2751] ss:$2 sm:$0xff]
      %s2753 = scalar_lea.vmem %s2647, 817 [#allocation2]
      %v2754 = vld [vmem:[%s2753] ss:$2 sm:$0xff]
      %s2755 = scalar_lea.vmem %s2647, 881 [#allocation2]
      %v2756 = vld [vmem:[%s2755] ss:$2 sm:$0xff]
      %s2757 = scalar_lea.vmem %s2647, 897 [#allocation2]
      %v2758 = vld [vmem:[%s2757] ss:$2 sm:$0xff]
      %s2759 = scalar_lea.vmem %s2647, 961 [#allocation2]
      %v2760 = vld [vmem:[%s2759] ss:$2 sm:$0xff]
      %s2761 = scalar_lea.vmem %s2647, 977 [#allocation2]
      %v2762 = vld [vmem:[%s2761] ss:$2 sm:$0xff]
      %s2763 = scalar_lea.vmem %s2647, 1041 [#allocation2]
      %v2764 = vld [vmem:[%s2763] ss:$2 sm:$0xff]
      %s2765 = scalar_lea.vmem %s2647, 1057 [#allocation2]
      %v2766 = vld [vmem:[%s2765] ss:$2 sm:$0xff]
      %s2767 = scalar_lea.vmem %s2647, 1121 [#allocation2]
      %v2768 = vld [vmem:[%s2767] ss:$2 sm:$0xff]
      %s2769 = scalar_lea.vmem %s2647, 1137 [#allocation2]
      %v2770 = vld [vmem:[%s2769] ss:$2 sm:$0xff]
      %s2771 = scalar_lea.vmem %s2647, 1201 [#allocation2]
      %v2772 = vld [vmem:[%s2771] ss:$2 sm:$0xff]
      %s2773 = scalar_lea.vmem %s2647, 1217 [#allocation2]
      %v2774 = vld [vmem:[%s2773] ss:$2 sm:$0xff]
      %s2775 = scalar_lea.vmem %s2647, 2 [#allocation2]
      %v2776 = vld [vmem:[%s2775] ss:$2 sm:$0xff]
      %s2777 = scalar_lea.vmem %s2647, 18 [#allocation2]
      %v2778 = vld [vmem:[%s2777] ss:$2 sm:$0xff]
      %s2779 = scalar_lea.vmem %s2647, 82 [#allocation2]
      %v2780 = vld [vmem:[%s2779] ss:$2 sm:$0xff]
      %s2781 = scalar_lea.vmem %s2647, 98 [#allocation2]
      %v2782 = vld [vmem:[%s2781] ss:$2 sm:$0xff]
      %s2783 = scalar_lea.vmem %s2647, 162 [#allocation2]
      %v2784 = vld [vmem:[%s2783] ss:$2 sm:$0xff]
      %s2785 = scalar_lea.vmem %s2647, 178 [#allocation2]
      %v2786 = vld [vmem:[%s2785] ss:$2 sm:$0xff]
      %s2787 = scalar_lea.vmem %s2647, 242 [#allocation2]
      %v2788 = vld [vmem:[%s2787] ss:$2 sm:$0xff]
      %s2789 = scalar_lea.vmem %s2647, 258 [#allocation2]
      %v2790 = vld [vmem:[%s2789] ss:$2 sm:$0xff]
      %s2791 = scalar_lea.vmem %s2647, 322 [#allocation2]
      %v2792 = vld [vmem:[%s2791] ss:$2 sm:$0xff]
      %s2793 = scalar_lea.vmem %s2647, 338 [#allocation2]
      %v2794 = vld [vmem:[%s2793] ss:$2 sm:$0xff]
      %s2795 = scalar_lea.vmem %s2647, 402 [#allocation2]
      %v2796 = vld [vmem:[%s2795] ss:$2 sm:$0xff]
      %s2797 = scalar_lea.vmem %s2647, 418 [#allocation2]
      %v2798 = vld [vmem:[%s2797] ss:$2 sm:$0xff]
      %s2799 = scalar_lea.vmem %s2647, 482 [#allocation2]
      %v2800 = vld [vmem:[%s2799] ss:$2 sm:$0xff]
      %s2801 = scalar_lea.vmem %s2647, 498 [#allocation2]
      %v2802 = vld [vmem:[%s2801] ss:$2 sm:$0xff]
      %s2803 = scalar_lea.vmem %s2647, 562 [#allocation2]
      %v2804 = vld [vmem:[%s2803] ss:$2 sm:$0xff]
      %s2805 = scalar_lea.vmem %s2647, 578 [#allocation2]
      %v2806 = vld [vmem:[%s2805] ss:$2 sm:$0xff]
      %s2807 = scalar_lea.vmem %s2647, 642 [#allocation2]
      %v2808 = vld [vmem:[%s2807] ss:$2 sm:$0xff]
      %s2809 = scalar_lea.vmem %s2647, 658 [#allocation2]
      %v2810 = vld [vmem:[%s2809] ss:$2 sm:$0xff]
      %s2811 = scalar_lea.vmem %s2647, 722 [#allocation2]
      %v2812 = vld [vmem:[%s2811] ss:$2 sm:$0xff]
      %s2813 = scalar_lea.vmem %s2647, 738 [#allocation2]
      %v2814 = vld [vmem:[%s2813] ss:$2 sm:$0xff]
      %s2815 = scalar_lea.vmem %s2647, 802 [#allocation2]
      %v2816 = vld [vmem:[%s2815] ss:$2 sm:$0xff]
      %s2817 = scalar_lea.vmem %s2647, 818 [#allocation2]
      %v2818 = vld [vmem:[%s2817] ss:$2 sm:$0xff]
      %s2819 = scalar_lea.vmem %s2647, 882 [#allocation2]
      %v2820 = vld [vmem:[%s2819] ss:$2 sm:$0xff]
      %s2821 = scalar_lea.vmem %s2647, 898 [#allocation2]
      %v2822 = vld [vmem:[%s2821] ss:$2 sm:$0xff]
      %s2823 = scalar_lea.vmem %s2647, 962 [#allocation2]
      %v2824 = vld [vmem:[%s2823] ss:$2 sm:$0xff]
      %s2825 = scalar_lea.vmem %s2647, 978 [#allocation2]
      %v2826 = vld [vmem:[%s2825] ss:$2 sm:$0xff]
      %s2827 = scalar_lea.vmem %s2647, 1042 [#allocation2]
      %v2828 = vld [vmem:[%s2827] ss:$2 sm:$0xff]
      %s2829 = scalar_lea.vmem %s2647, 1058 [#allocation2]
      %v2830 = vld [vmem:[%s2829] ss:$2 sm:$0xff]
      %s2831 = scalar_lea.vmem %s2647, 1122 [#allocation2]
      %v2832 = vld [vmem:[%s2831] ss:$2 sm:$0xff]
      %s2833 = scalar_lea.vmem %s2647, 1138 [#allocation2]
      %v2834 = vld [vmem:[%s2833] ss:$2 sm:$0xff]
      %s2835 = scalar_lea.vmem %s2647, 1202 [#allocation2]
      %v2836 = vld [vmem:[%s2835] ss:$2 sm:$0xff]
      %s2837 = scalar_lea.vmem %s2647, 1218 [#allocation2]
      %v2838 = vld [vmem:[%s2837] ss:$2 sm:$0xff]
      %2871 = vrot.lane.b32.xlu0 %v2329, 32
      %v2872 = vpop.permute.xlu0 %2871
      %2873 = vrot.lane.b32.xlu0 %v2331, 32
      %v2874 = vpop.permute.xlu0 %2873
      %2875 = vrot.lane.b32.xlu0 %v2333, 32
      %v2876 = vpop.permute.xlu0 %2875
      %2877 = vrot.lane.b32.xlu0 %v2335, 32
      %v2878 = vpop.permute.xlu0 %2877
      %2879 = vrot.lane.b32.xlu0 %v2337, 32
      %v2880 = vpop.permute.xlu0 %2879
      %2881 = vrot.lane.b32.xlu0 %v2339, 32
      %v2882 = vpop.permute.xlu0 %2881
      %2883 = vrot.lane.b32.xlu0 %v2341, 32
      %v2884 = vpop.permute.xlu0 %2883
      %2885 = vrot.lane.b32.xlu0 %v2343, 32
      %v2886 = vpop.permute.xlu0 %2885
      %2887 = vrot.lane.b32.xlu0 %v2345, 32
      %v2888 = vpop.permute.xlu0 %2887
      %2889 = vrot.lane.b32.xlu0 %v2347, 32
      %v2890 = vpop.permute.xlu0 %2889
      %2891 = vrot.lane.b32.xlu0 %v2349, 32
      %v2892 = vpop.permute.xlu0 %2891
      %2893 = vrot.lane.b32.xlu0 %v2351, 32
      %v2894 = vpop.permute.xlu0 %2893
      %2895 = vrot.lane.b32.xlu0 %v2353, 32
      %v2896 = vpop.permute.xlu0 %2895
      %2897 = vrot.lane.b32.xlu0 %v2355, 32
      %v2898 = vpop.permute.xlu0 %2897
      %2899 = vrot.lane.b32.xlu0 %v2357, 32
      %v2900 = vpop.permute.xlu0 %2899
      %2901 = vrot.lane.b32.xlu0 %v2359, 32
      %v2902 = vpop.permute.xlu0 %2901
      %2903 = vrot.lane.b32.xlu0 %v2361, 32
      %v2904 = vpop.permute.xlu0 %2903
      %2905 = vrot.lane.b32.xlu0 %v2363, 32
      %v2906 = vpop.permute.xlu0 %2905
      %2907 = vrot.lane.b32.xlu0 %v2365, 32
      %v2908 = vpop.permute.xlu0 %2907
      %2909 = vrot.lane.b32.xlu0 %v2367, 32
      %v2910 = vpop.permute.xlu0 %2909
      %2911 = vrot.lane.b32.xlu0 %v2369, 32
      %v2912 = vpop.permute.xlu0 %2911
      %2913 = vrot.lane.b32.xlu0 %v2371, 32
      %v2914 = vpop.permute.xlu0 %2913
      %2915 = vrot.lane.b32.xlu0 %v2373, 32
      %v2916 = vpop.permute.xlu0 %2915
      %2917 = vrot.lane.b32.xlu0 %v2375, 32
      %v2918 = vpop.permute.xlu0 %2917
      %2919 = vrot.lane.b32.xlu0 %v2377, 32
      %v2920 = vpop.permute.xlu0 %2919
      %2921 = vrot.lane.b32.xlu0 %v2379, 32
      %v2922 = vpop.permute.xlu0 %2921
      %2923 = vrot.lane.b32.xlu0 %v2381, 32
      %v2924 = vpop.permute.xlu0 %2923
      %2925 = vrot.lane.b32.xlu0 %v2383, 32
      %v2926 = vpop.permute.xlu0 %2925
      %2927 = vrot.lane.b32.xlu0 %v2385, 32
      %v2928 = vpop.permute.xlu0 %2927
      %2929 = vrot.lane.b32.xlu0 %v2387, 32
      %v2930 = vpop.permute.xlu0 %2929
      %2931 = vrot.lane.b32.xlu0 %v2389, 32
      %v2932 = vpop.permute.xlu0 %2931
      %2933 = vrot.lane.b32.xlu0 %v2391, 32
      %v2934 = vpop.permute.xlu0 %2933
      %2999 = vrot.lane.b32.xlu0 %v2393, 64
      %v3000 = vpop.permute.xlu0 %2999
      %3001 = vrot.lane.b32.xlu0 %v2395, 64
      %v3002 = vpop.permute.xlu0 %3001
      %3003 = vrot.lane.b32.xlu0 %v2397, 64
      %v3004 = vpop.permute.xlu0 %3003
      %3005 = vrot.lane.b32.xlu0 %v2399, 64
      %v3006 = vpop.permute.xlu0 %3005
      %3007 = vrot.lane.b32.xlu0 %v2401, 64
      %v3008 = vpop.permute.xlu0 %3007
      %3009 = vrot.lane.b32.xlu0 %v2403, 64
      %v3010 = vpop.permute.xlu0 %3009
      %3011 = vrot.lane.b32.xlu0 %v2405, 64
      %v3012 = vpop.permute.xlu0 %3011
      %3013 = vrot.lane.b32.xlu0 %v2407, 64
      %v3014 = vpop.permute.xlu0 %3013
      %3015 = vrot.lane.b32.xlu0 %v2409, 64
      %v3016 = vpop.permute.xlu0 %3015
      %3017 = vrot.lane.b32.xlu0 %v2411, 64
      %v3018 = vpop.permute.xlu0 %3017
      %3019 = vrot.lane.b32.xlu0 %v2413, 64
      %v3020 = vpop.permute.xlu0 %3019
      %3021 = vrot.lane.b32.xlu0 %v2415, 64
      %v3022 = vpop.permute.xlu0 %3021
      %3023 = vrot.lane.b32.xlu0 %v2417, 64
      %v3024 = vpop.permute.xlu0 %3023
      %3025 = vrot.lane.b32.xlu0 %v2419, 64
      %v3026 = vpop.permute.xlu0 %3025
      %3027 = vrot.lane.b32.xlu0 %v2421, 64
      %v3028 = vpop.permute.xlu0 %3027
      %3029 = vrot.lane.b32.xlu0 %v2423, 64
      %v3030 = vpop.permute.xlu0 %3029
      %3031 = vrot.lane.b32.xlu0 %v2425, 64
      %v3032 = vpop.permute.xlu0 %3031
      %3033 = vrot.lane.b32.xlu0 %v2427, 64
      %v3034 = vpop.permute.xlu0 %3033
      %3035 = vrot.lane.b32.xlu0 %v2429, 64
      %v3036 = vpop.permute.xlu0 %3035
      %3037 = vrot.lane.b32.xlu0 %v2431, 64
      %v3038 = vpop.permute.xlu0 %3037
      %3039 = vrot.lane.b32.xlu0 %v2433, 64
      %v3040 = vpop.permute.xlu0 %3039
      %3041 = vrot.lane.b32.xlu0 %v2435, 64
      %v3042 = vpop.permute.xlu0 %3041
      %3043 = vrot.lane.b32.xlu0 %v2437, 64
      %v3044 = vpop.permute.xlu0 %3043
      %3045 = vrot.lane.b32.xlu0 %v2439, 64
      %v3046 = vpop.permute.xlu0 %3045
      %3047 = vrot.lane.b32.xlu0 %v2441, 64
      %v3048 = vpop.permute.xlu0 %3047
      %3049 = vrot.lane.b32.xlu0 %v2443, 64
      %v3050 = vpop.permute.xlu0 %3049
      %3051 = vrot.lane.b32.xlu0 %v2445, 64
      %v3052 = vpop.permute.xlu0 %3051
      %3053 = vrot.lane.b32.xlu0 %v2447, 64
      %v3054 = vpop.permute.xlu0 %3053
      %3055 = vrot.lane.b32.xlu0 %v2449, 64
      %v3056 = vpop.permute.xlu0 %3055
      %3057 = vrot.lane.b32.xlu0 %v2451, 64
      %v3058 = vpop.permute.xlu0 %3057
      %3059 = vrot.lane.b32.xlu0 %v2453, 64
      %v3060 = vpop.permute.xlu0 %3059
      %3061 = vrot.lane.b32.xlu0 %v2455, 64
      %v3062 = vpop.permute.xlu0 %3061
      %3127 = vrot.lane.b32.xlu0 %v2456, 96
      %v3128 = vpop.permute.xlu0 %3127
      %3129 = vrot.lane.b32.xlu0 %v2458, 96
      %v3130 = vpop.permute.xlu0 %3129
      %3131 = vrot.lane.b32.xlu0 %v2460, 96
      %v3132 = vpop.permute.xlu0 %3131
      %3133 = vrot.lane.b32.xlu0 %v2462, 96
      %v3134 = vpop.permute.xlu0 %3133
      %3135 = vrot.lane.b32.xlu0 %v2464, 96
      %v3136 = vpop.permute.xlu0 %3135
      %3137 = vrot.lane.b32.xlu0 %v2466, 96
      %v3138 = vpop.permute.xlu0 %3137
      %3139 = vrot.lane.b32.xlu0 %v2468, 96
      %v3140 = vpop.permute.xlu0 %3139
      %3141 = vrot.lane.b32.xlu0 %v2470, 96
      %v3142 = vpop.permute.xlu0 %3141
      %3143 = vrot.lane.b32.xlu0 %v2472, 96
      %v3144 = vpop.permute.xlu0 %3143
      %3145 = vrot.lane.b32.xlu0 %v2474, 96
      %v3146 = vpop.permute.xlu0 %3145
      %3147 = vrot.lane.b32.xlu0 %v2476, 96
      %v3148 = vpop.permute.xlu0 %3147
      %3149 = vrot.lane.b32.xlu0 %v2478, 96
      %v3150 = vpop.permute.xlu0 %3149
      %3151 = vrot.lane.b32.xlu0 %v2480, 96
      %v3152 = vpop.permute.xlu0 %3151
      %3153 = vrot.lane.b32.xlu0 %v2482, 96
      %v3154 = vpop.permute.xlu0 %3153
      %3155 = vrot.lane.b32.xlu0 %v2484, 96
      %v3156 = vpop.permute.xlu0 %3155
      %3157 = vrot.lane.b32.xlu0 %v2486, 96
      %v3158 = vpop.permute.xlu0 %3157
      %3159 = vrot.lane.b32.xlu0 %v2488, 96
      %v3160 = vpop.permute.xlu0 %3159
      %3161 = vrot.lane.b32.xlu0 %v2490, 96
      %v3162 = vpop.permute.xlu0 %3161
      %3163 = vrot.lane.b32.xlu0 %v2492, 96
      %v3164 = vpop.permute.xlu0 %3163
      %3165 = vrot.lane.b32.xlu0 %v2494, 96
      %v3166 = vpop.permute.xlu0 %3165
      %3167 = vrot.lane.b32.xlu0 %v2496, 96
      %v3168 = vpop.permute.xlu0 %3167
      %3169 = vrot.lane.b32.xlu0 %v2498, 96
      %v3170 = vpop.permute.xlu0 %3169
      %3171 = vrot.lane.b32.xlu0 %v2500, 96
      %v3172 = vpop.permute.xlu0 %3171
      %3173 = vrot.lane.b32.xlu0 %v2502, 96
      %v3174 = vpop.permute.xlu0 %3173
      %3175 = vrot.lane.b32.xlu0 %v2504, 96
      %v3176 = vpop.permute.xlu0 %3175
      %3177 = vrot.lane.b32.xlu0 %v2506, 96
      %v3178 = vpop.permute.xlu0 %3177
      %3179 = vrot.lane.b32.xlu0 %v2508, 96
      %v3180 = vpop.permute.xlu0 %3179
      %3181 = vrot.lane.b32.xlu0 %v2510, 96
      %v3182 = vpop.permute.xlu0 %3181
      %3183 = vrot.lane.b32.xlu0 %v2512, 96
      %v3184 = vpop.permute.xlu0 %3183
      %3185 = vrot.lane.b32.xlu0 %v2514, 96
      %v3186 = vpop.permute.xlu0 %3185
      %3187 = vrot.lane.b32.xlu0 %v2516, 96
      %v3188 = vpop.permute.xlu0 %3187
      %3189 = vrot.lane.b32.xlu0 %v2518, 96
      %v3190 = vpop.permute.xlu0 %3189
      %3255 = vrot.lane.b32.xlu0 %v2584, 32
      %v3256 = vpop.permute.xlu0 %3255
      %3257 = vrot.lane.b32.xlu0 %v2586, 32
      %v3258 = vpop.permute.xlu0 %3257
      %3259 = vrot.lane.b32.xlu0 %v2588, 32
      %v3260 = vpop.permute.xlu0 %3259
      %3261 = vrot.lane.b32.xlu0 %v2590, 32
      %v3262 = vpop.permute.xlu0 %3261
      %3263 = vrot.lane.b32.xlu0 %v2592, 32
      %v3264 = vpop.permute.xlu0 %3263
      %3265 = vrot.lane.b32.xlu0 %v2594, 32
      %v3266 = vpop.permute.xlu0 %3265
      %3267 = vrot.lane.b32.xlu0 %v2596, 32
      %v3268 = vpop.permute.xlu0 %3267
      %3269 = vrot.lane.b32.xlu0 %v2598, 32
      %v3270 = vpop.permute.xlu0 %3269
      %3271 = vrot.lane.b32.xlu0 %v2600, 32
      %v3272 = vpop.permute.xlu0 %3271
      %3273 = vrot.lane.b32.xlu0 %v2602, 32
      %v3274 = vpop.permute.xlu0 %3273
      %3275 = vrot.lane.b32.xlu0 %v2604, 32
      %v3276 = vpop.permute.xlu0 %3275
      %3277 = vrot.lane.b32.xlu0 %v2606, 32
      %v3278 = vpop.permute.xlu0 %3277
      %3279 = vrot.lane.b32.xlu0 %v2608, 32
      %v3280 = vpop.permute.xlu0 %3279
      %3281 = vrot.lane.b32.xlu0 %v2610, 32
      %v3282 = vpop.permute.xlu0 %3281
      %3283 = vrot.lane.b32.xlu0 %v2612, 32
      %v3284 = vpop.permute.xlu0 %3283
      %3285 = vrot.lane.b32.xlu0 %v2614, 32
      %v3286 = vpop.permute.xlu0 %3285
      %3287 = vrot.lane.b32.xlu0 %v2616, 32
      %v3288 = vpop.permute.xlu0 %3287
      %3289 = vrot.lane.b32.xlu0 %v2618, 32
      %v3290 = vpop.permute.xlu0 %3289
      %3291 = vrot.lane.b32.xlu0 %v2620, 32
      %v3292 = vpop.permute.xlu0 %3291
      %3293 = vrot.lane.b32.xlu0 %v2622, 32
      %v3294 = vpop.permute.xlu0 %3293
      %3295 = vrot.lane.b32.xlu0 %v2624, 32
      %v3296 = vpop.permute.xlu0 %3295
      %3297 = vrot.lane.b32.xlu0 %v2626, 32
      %v3298 = vpop.permute.xlu0 %3297
      %3299 = vrot.lane.b32.xlu0 %v2628, 32
      %v3300 = vpop.permute.xlu0 %3299
      %3301 = vrot.lane.b32.xlu0 %v2630, 32
      %v3302 = vpop.permute.xlu0 %3301
      %3303 = vrot.lane.b32.xlu0 %v2632, 32
      %v3304 = vpop.permute.xlu0 %3303
      %3305 = vrot.lane.b32.xlu0 %v2634, 32
      %v3306 = vpop.permute.xlu0 %3305
      %3307 = vrot.lane.b32.xlu0 %v2636, 32
      %v3308 = vpop.permute.xlu0 %3307
      %3309 = vrot.lane.b32.xlu0 %v2638, 32
      %v3310 = vpop.permute.xlu0 %3309
      %3311 = vrot.lane.b32.xlu0 %v2640, 32
      %v3312 = vpop.permute.xlu0 %3311
      %3313 = vrot.lane.b32.xlu0 %v2642, 32
      %v3314 = vpop.permute.xlu0 %3313
      %3315 = vrot.lane.b32.xlu0 %v2644, 32
      %v3316 = vpop.permute.xlu0 %3315
      %3317 = vrot.lane.b32.xlu0 %v2646, 32
      %v3318 = vpop.permute.xlu0 %3317
      %3383 = vrot.lane.b32.xlu0 %v2648, 64
      %v3384 = vpop.permute.xlu0 %3383
      %3385 = vrot.lane.b32.xlu0 %v2650, 64
      %v3386 = vpop.permute.xlu0 %3385
      %3387 = vrot.lane.b32.xlu0 %v2652, 64
      %v3388 = vpop.permute.xlu0 %3387
      %3389 = vrot.lane.b32.xlu0 %v2654, 64
      %v3390 = vpop.permute.xlu0 %3389
      %3391 = vrot.lane.b32.xlu0 %v2656, 64
      %v3392 = vpop.permute.xlu0 %3391
      %3393 = vrot.lane.b32.xlu0 %v2658, 64
      %v3394 = vpop.permute.xlu0 %3393
      %3395 = vrot.lane.b32.xlu0 %v2660, 64
      %v3396 = vpop.permute.xlu0 %3395
      %3397 = vrot.lane.b32.xlu0 %v2662, 64
      %v3398 = vpop.permute.xlu0 %3397
      %3399 = vrot.lane.b32.xlu0 %v2664, 64
      %v3400 = vpop.permute.xlu0 %3399
      %3401 = vrot.lane.b32.xlu0 %v2666, 64
      %v3402 = vpop.permute.xlu0 %3401
      %3403 = vrot.lane.b32.xlu0 %v2668, 64
      %v3404 = vpop.permute.xlu0 %3403
      %3405 = vrot.lane.b32.xlu0 %v2670, 64
      %v3406 = vpop.permute.xlu0 %3405
      %3407 = vrot.lane.b32.xlu0 %v2672, 64
      %v3408 = vpop.permute.xlu0 %3407
      %3409 = vrot.lane.b32.xlu0 %v2674, 64
      %v3410 = vpop.permute.xlu0 %3409
      %3411 = vrot.lane.b32.xlu0 %v2676, 64
      %v3412 = vpop.permute.xlu0 %3411
      %3413 = vrot.lane.b32.xlu0 %v2678, 64
      %v3414 = vpop.permute.xlu0 %3413
      %3415 = vrot.lane.b32.xlu0 %v2680, 64
      %v3416 = vpop.permute.xlu0 %3415
      %3417 = vrot.lane.b32.xlu0 %v2682, 64
      %v3418 = vpop.permute.xlu0 %3417
      %3419 = vrot.lane.b32.xlu0 %v2684, 64
      %v3420 = vpop.permute.xlu0 %3419
      %3421 = vrot.lane.b32.xlu0 %v2686, 64
      %v3422 = vpop.permute.xlu0 %3421
      %3423 = vrot.lane.b32.xlu0 %v2688, 64
      %v3424 = vpop.permute.xlu0 %3423
      %3425 = vrot.lane.b32.xlu0 %v2690, 64
      %v3426 = vpop.permute.xlu0 %3425
      %3427 = vrot.lane.b32.xlu0 %v2692, 64
      %v3428 = vpop.permute.xlu0 %3427
      %3429 = vrot.lane.b32.xlu0 %v2694, 64
      %v3430 = vpop.permute.xlu0 %3429
      %3431 = vrot.lane.b32.xlu0 %v2696, 64
      %v3432 = vpop.permute.xlu0 %3431
      %3433 = vrot.lane.b32.xlu0 %v2698, 64
      %v3434 = vpop.permute.xlu0 %3433
      %3435 = vrot.lane.b32.xlu0 %v2700, 64
      %v3436 = vpop.permute.xlu0 %3435
      %3437 = vrot.lane.b32.xlu0 %v2702, 64
      %v3438 = vpop.permute.xlu0 %3437
      %3439 = vrot.lane.b32.xlu0 %v2704, 64
      %v3440 = vpop.permute.xlu0 %3439
      %3441 = vrot.lane.b32.xlu0 %v2706, 64
      %v3442 = vpop.permute.xlu0 %3441
      %3443 = vrot.lane.b32.xlu0 %v2708, 64
      %v3444 = vpop.permute.xlu0 %3443
      %3445 = vrot.lane.b32.xlu0 %v2710, 64
      %v3446 = vpop.permute.xlu0 %3445
      %3511 = vrot.lane.b32.xlu0 %v2712, 96
      %v3512 = vpop.permute.xlu0 %3511
      %3513 = vrot.lane.b32.xlu0 %v2714, 96
      %v3514 = vpop.permute.xlu0 %3513
      %3515 = vrot.lane.b32.xlu0 %v2716, 96
      %v3516 = vpop.permute.xlu0 %3515
      %3517 = vrot.lane.b32.xlu0 %v2718, 96
      %v3518 = vpop.permute.xlu0 %3517
      %3519 = vrot.lane.b32.xlu0 %v2720, 96
      %v3520 = vpop.permute.xlu0 %3519
      %3521 = vrot.lane.b32.xlu0 %v2722, 96
      %v3522 = vpop.permute.xlu0 %3521
      %3523 = vrot.lane.b32.xlu0 %v2724, 96
      %v3524 = vpop.permute.xlu0 %3523
      %3525 = vrot.lane.b32.xlu0 %v2726, 96
      %v3526 = vpop.permute.xlu0 %3525
      %3527 = vrot.lane.b32.xlu0 %v2728, 96
      %v3528 = vpop.permute.xlu0 %3527
      %3529 = vrot.lane.b32.xlu0 %v2730, 96
      %v3530 = vpop.permute.xlu0 %3529
      %3531 = vrot.lane.b32.xlu0 %v2732, 96
      %v3532 = vpop.permute.xlu0 %3531
      %3533 = vrot.lane.b32.xlu0 %v2734, 96
      %v3534 = vpop.permute.xlu0 %3533
      %3535 = vrot.lane.b32.xlu0 %v2736, 96
      %v3536 = vpop.permute.xlu0 %3535
      %3537 = vrot.lane.b32.xlu0 %v2738, 96
      %v3538 = vpop.permute.xlu0 %3537
      %3539 = vrot.lane.b32.xlu0 %v2740, 96
      %v3540 = vpop.permute.xlu0 %3539
      %3541 = vrot.lane.b32.xlu0 %v2742, 96
      %v3542 = vpop.permute.xlu0 %3541
      %3543 = vrot.lane.b32.xlu0 %v2744, 96
      %v3544 = vpop.permute.xlu0 %3543
      %3545 = vrot.lane.b32.xlu0 %v2746, 96
      %v3546 = vpop.permute.xlu0 %3545
      %3547 = vrot.lane.b32.xlu0 %v2748, 96
      %v3548 = vpop.permute.xlu0 %3547
      %3549 = vrot.lane.b32.xlu0 %v2750, 96
      %v3550 = vpop.permute.xlu0 %3549
      %3551 = vrot.lane.b32.xlu0 %v2752, 96
      %v3552 = vpop.permute.xlu0 %3551
      %3553 = vrot.lane.b32.xlu0 %v2754, 96
      %v3554 = vpop.permute.xlu0 %3553
      %3555 = vrot.lane.b32.xlu0 %v2756, 96
      %v3556 = vpop.permute.xlu0 %3555
      %3557 = vrot.lane.b32.xlu0 %v2758, 96
      %v3558 = vpop.permute.xlu0 %3557
      %3559 = vrot.lane.b32.xlu0 %v2760, 96
      %v3560 = vpop.permute.xlu0 %3559
      %3561 = vrot.lane.b32.xlu0 %v2762, 96
      %v3562 = vpop.permute.xlu0 %3561
      %3563 = vrot.lane.b32.xlu0 %v2764, 96
      %v3564 = vpop.permute.xlu0 %3563
      %3565 = vrot.lane.b32.xlu0 %v2766, 96
      %v3566 = vpop.permute.xlu0 %3565
      %3567 = vrot.lane.b32.xlu0 %v2768, 96
      %v3568 = vpop.permute.xlu0 %3567
      %3569 = vrot.lane.b32.xlu0 %v2770, 96
      %v3570 = vpop.permute.xlu0 %3569
      %3571 = vrot.lane.b32.xlu0 %v2772, 96
      %v3572 = vpop.permute.xlu0 %3571
      %3573 = vrot.lane.b32.xlu0 %v2774, 96
      %v3574 = vpop.permute.xlu0 %3573
      %v3607 = vsel %vm440, %v2265, %v2872
      %v3608 = vsel %vm440, %v2267, %v2874
      %v3609 = vsel %vm440, %v2269, %v2876
      %v3610 = vsel %vm440, %v2271, %v2878
      %v3611 = vsel %vm440, %v2273, %v2880
      %v3612 = vsel %vm440, %v2275, %v2882
      %v3613 = vsel %vm440, %v2277, %v2884
      %v3614 = vsel %vm440, %v2279, %v2886
      %v3615 = vsel %vm440, %v2281, %v2888
      %v3616 = vsel %vm440, %v2283, %v2890
      %v3617 = vsel %vm440, %v2285, %v2892
      %v3618 = vsel %vm440, %v2287, %v2894
      %v3619 = vsel %vm440, %v2289, %v2896
      %v3620 = vsel %vm440, %v2291, %v2898
      %v3621 = vsel %vm440, %v2293, %v2900
      %v3622 = vsel %vm440, %v2295, %v2902
      %v3623 = vsel %vm440, %v2297, %v2904
      %v3624 = vsel %vm440, %v2299, %v2906
      %v3625 = vsel %vm440, %v2301, %v2908
      %v3626 = vsel %vm440, %v2303, %v2910
      %v3627 = vsel %vm440, %v2305, %v2912
      %v3628 = vsel %vm440, %v2307, %v2914
      %v3629 = vsel %vm440, %v2309, %v2916
      %v3630 = vsel %vm440, %v2311, %v2918
      %v3631 = vsel %vm440, %v2313, %v2920
      %v3632 = vsel %vm440, %v2315, %v2922
      %v3633 = vsel %vm440, %v2317, %v2924
      %v3634 = vsel %vm440, %v2319, %v2926
      %v3635 = vsel %vm440, %v2321, %v2928
      %v3636 = vsel %vm440, %v2323, %v2930
      %v3637 = vsel %vm440, %v2325, %v2932
      %v3638 = vsel %vm440, %v2327, %v2934
      %v3639 = vsel %vm482, %v3607, %v3000
      %v3640 = vsel %vm482, %v3608, %v3002
      %v3641 = vsel %vm482, %v3609, %v3004
      %v3642 = vsel %vm482, %v3610, %v3006
      %v3643 = vsel %vm482, %v3611, %v3008
      %v3644 = vsel %vm482, %v3612, %v3010
      %v3645 = vsel %vm482, %v3613, %v3012
      %v3646 = vsel %vm482, %v3614, %v3014
      %v3647 = vsel %vm482, %v3615, %v3016
      %v3648 = vsel %vm482, %v3616, %v3018
      %v3649 = vsel %vm482, %v3617, %v3020
      %v3650 = vsel %vm482, %v3618, %v3022
      %v3651 = vsel %vm482, %v3619, %v3024
      %v3652 = vsel %vm482, %v3620, %v3026
      %v3653 = vsel %vm482, %v3621, %v3028
      %v3654 = vsel %vm482, %v3622, %v3030
      %v3655 = vsel %vm482, %v3623, %v3032
      %v3656 = vsel %vm482, %v3624, %v3034
      %v3657 = vsel %vm482, %v3625, %v3036
      %v3658 = vsel %vm482, %v3626, %v3038
      %v3659 = vsel %vm482, %v3627, %v3040
      %v3660 = vsel %vm482, %v3628, %v3042
      %v3661 = vsel %vm482, %v3629, %v3044
      %v3662 = vsel %vm482, %v3630, %v3046
      %v3663 = vsel %vm482, %v3631, %v3048
      %v3664 = vsel %vm482, %v3632, %v3050
      %v3665 = vsel %vm482, %v3633, %v3052
      %v3666 = vsel %vm482, %v3634, %v3054
      %v3667 = vsel %vm482, %v3635, %v3056
      %v3668 = vsel %vm482, %v3636, %v3058
      %v3669 = vsel %vm482, %v3637, %v3060
      %v3670 = vsel %vm482, %v3638, %v3062
      %vm3671 = vcmask 785408
      %v3672 = vsel %vm3671, %v3639, %v3128
      %v3673 = vsel %vm3671, %v3640, %v3130
      %v3674 = vsel %vm3671, %v3641, %v3132
      %v3675 = vsel %vm3671, %v3642, %v3134
      %v3676 = vsel %vm3671, %v3643, %v3136
      %v3677 = vsel %vm3671, %v3644, %v3138
      %v3678 = vsel %vm3671, %v3645, %v3140
      %v3679 = vsel %vm3671, %v3646, %v3142
      %v3680 = vsel %vm3671, %v3647, %v3144
      %v3681 = vsel %vm3671, %v3648, %v3146
      %v3682 = vsel %vm3671, %v3649, %v3148
      %v3683 = vsel %vm3671, %v3650, %v3150
      %v3684 = vsel %vm3671, %v3651, %v3152
      %v3685 = vsel %vm3671, %v3652, %v3154
      %v3686 = vsel %vm3671, %v3653, %v3156
      %v3687 = vsel %vm3671, %v3654, %v3158
      %v3688 = vsel %vm3671, %v3655, %v3160
      %v3689 = vsel %vm3671, %v3656, %v3162
      %v3690 = vsel %vm3671, %v3657, %v3164
      %v3691 = vsel %vm3671, %v3658, %v3166
      %v3692 = vsel %vm3671, %v3659, %v3168
      %v3693 = vsel %vm3671, %v3660, %v3170
      %v3694 = vsel %vm3671, %v3661, %v3172
      %v3695 = vsel %vm3671, %v3662, %v3174
      %v3696 = vsel %vm3671, %v3663, %v3176
      %v3697 = vsel %vm3671, %v3664, %v3178
      %v3698 = vsel %vm3671, %v3665, %v3180
      %v3699 = vsel %vm3671, %v3666, %v3182
      %v3700 = vsel %vm3671, %v3667, %v3184
      %v3701 = vsel %vm3671, %v3668, %v3186
      %v3702 = vsel %vm3671, %v3669, %v3188
      %v3703 = vsel %vm3671, %v3670, %v3190
      %v3704 = vsel %vm440, %v2520, %v3256
      %v3705 = vsel %vm440, %v2522, %v3258
      %v3706 = vsel %vm440, %v2524, %v3260
      %v3707 = vsel %vm440, %v2526, %v3262
      %v3708 = vsel %vm440, %v2528, %v3264
      %v3709 = vsel %vm440, %v2530, %v3266
      %v3710 = vsel %vm440, %v2532, %v3268
      %v3711 = vsel %vm440, %v2534, %v3270
      %v3712 = vsel %vm440, %v2536, %v3272
      %v3713 = vsel %vm440, %v2538, %v3274
      %v3714 = vsel %vm440, %v2540, %v3276
      %v3715 = vsel %vm440, %v2542, %v3278
      %v3716 = vsel %vm440, %v2544, %v3280
      %v3717 = vsel %vm440, %v2546, %v3282
      %v3718 = vsel %vm440, %v2548, %v3284
      %v3719 = vsel %vm440, %v2550, %v3286
      %v3720 = vsel %vm440, %v2552, %v3288
      %v3721 = vsel %vm440, %v2554, %v3290
      %v3722 = vsel %vm440, %v2556, %v3292
      %v3723 = vsel %vm440, %v2558, %v3294
      %v3724 = vsel %vm440, %v2560, %v3296
      %v3725 = vsel %vm440, %v2562, %v3298
      %v3726 = vsel %vm440, %v2564, %v3300
      %v3727 = vsel %vm440, %v2566, %v3302
      %v3728 = vsel %vm440, %v2568, %v3304
      %v3729 = vsel %vm440, %v2570, %v3306
      %v3730 = vsel %vm440, %v2572, %v3308
      %v3731 = vsel %vm440, %v2574, %v3310
      %v3732 = vsel %vm440, %v2576, %v3312
      %v3733 = vsel %vm440, %v2578, %v3314
      %v3734 = vsel %vm440, %v2580, %v3316
      %v3735 = vsel %vm440, %v2582, %v3318
      %v3736 = vsel %vm482, %v3704, %v3384
      %v3737 = vsel %vm482, %v3705, %v3386
      %v3738 = vsel %vm482, %v3706, %v3388
      %v3739 = vsel %vm482, %v3707, %v3390
      %v3740 = vsel %vm482, %v3708, %v3392
      %v3741 = vsel %vm482, %v3709, %v3394
      %v3742 = vsel %vm482, %v3710, %v3396
      %v3743 = vsel %vm482, %v3711, %v3398
      %v3744 = vsel %vm482, %v3712, %v3400
      %v3745 = vsel %vm482, %v3713, %v3402
      %v3746 = vsel %vm482, %v3714, %v3404
      %v3747 = vsel %vm482, %v3715, %v3406
      %v3748 = vsel %vm482, %v3716, %v3408
      %v3749 = vsel %vm482, %v3717, %v3410
      %v3750 = vsel %vm482, %v3718, %v3412
      %v3751 = vsel %vm482, %v3719, %v3414
      %v3752 = vsel %vm482, %v3720, %v3416
      %v3753 = vsel %vm482, %v3721, %v3418
      %v3754 = vsel %vm482, %v3722, %v3420
      %v3755 = vsel %vm482, %v3723, %v3422
      %v3756 = vsel %vm482, %v3724, %v3424
      %v3757 = vsel %vm482, %v3725, %v3426
      %v3758 = vsel %vm482, %v3726, %v3428
      %v3759 = vsel %vm482, %v3727, %v3430
      %v3760 = vsel %vm482, %v3728, %v3432
      %v3761 = vsel %vm482, %v3729, %v3434
      %v3762 = vsel %vm482, %v3730, %v3436
      %v3763 = vsel %vm482, %v3731, %v3438
      %v3764 = vsel %vm482, %v3732, %v3440
      %v3765 = vsel %vm482, %v3733, %v3442
      %v3766 = vsel %vm482, %v3734, %v3444
      %v3767 = vsel %vm482, %v3735, %v3446
      %v3768 = vsel %vm3671, %v3736, %v3512
      %v3769 = vsel %vm3671, %v3737, %v3514
      %v3770 = vsel %vm3671, %v3738, %v3516
      %v3771 = vsel %vm3671, %v3739, %v3518
      %v3772 = vsel %vm3671, %v3740, %v3520
      %v3773 = vsel %vm3671, %v3741, %v3522
      %v3774 = vsel %vm3671, %v3742, %v3524
      %v3775 = vsel %vm3671, %v3743, %v3526
      %v3776 = vsel %vm3671, %v3744, %v3528
      %v3777 = vsel %vm3671, %v3745, %v3530
      %v3778 = vsel %vm3671, %v3746, %v3532
      %v3779 = vsel %vm3671, %v3747, %v3534
      %v3780 = vsel %vm3671, %v3748, %v3536
      %v3781 = vsel %vm3671, %v3749, %v3538
      %v3782 = vsel %vm3671, %v3750, %v3540
      %v3783 = vsel %vm3671, %v3751, %v3542
      %v3784 = vsel %vm3671, %v3752, %v3544
      %v3785 = vsel %vm3671, %v3753, %v3546
      %v3786 = vsel %vm3671, %v3754, %v3548
      %v3787 = vsel %vm3671, %v3755, %v3550
      %v3788 = vsel %vm3671, %v3756, %v3552
      %v3789 = vsel %vm3671, %v3757, %v3554
      %v3790 = vsel %vm3671, %v3758, %v3556
      %v3791 = vsel %vm3671, %v3759, %v3558
      %v3792 = vsel %vm3671, %v3760, %v3560
      %v3793 = vsel %vm3671, %v3761, %v3562
      %v3794 = vsel %vm3671, %v3762, %v3564
      %v3795 = vsel %vm3671, %v3763, %v3566
      %v3796 = vsel %vm3671, %v3764, %v3568
      %v3797 = vsel %vm3671, %v3765, %v3570
      %v3798 = vsel %vm3671, %v3766, %v3572
      %v3799 = vsel %vm3671, %v3767, %v3574
      %v3800 = vpack.c.bf16 %v3673, %v3672
      %v3801 = vpack.c.bf16 %v3769, %v3768
      %v3802 = vpack.c.bf16 %v2778, %v2776
      %v3803 = vpack.c.bf16 %v3675, %v3674
      %v3804 = vpack.c.bf16 %v3771, %v3770
      %v3805 = vpack.c.bf16 %v2782, %v2780
      %v3806 = vpack.c.bf16 %v3677, %v3676
      %v3807 = vpack.c.bf16 %v3773, %v3772
      %v3808 = vpack.c.bf16 %v2786, %v2784
      %v3809 = vpack.c.bf16 %v3679, %v3678
      %v3810 = vpack.c.bf16 %v3775, %v3774
      %v3811 = vpack.c.bf16 %v2790, %v2788
      %v3812 = vpack.c.bf16 %v3681, %v3680
      %v3813 = vpack.c.bf16 %v3777, %v3776
      %v3814 = vpack.c.bf16 %v2794, %v2792
      %v3815 = vpack.c.bf16 %v3683, %v3682
      %v3816 = vpack.c.bf16 %v3779, %v3778
      %v3817 = vpack.c.bf16 %v2798, %v2796
      %v3818 = vpack.c.bf16 %v3685, %v3684
      %v3819 = vpack.c.bf16 %v3781, %v3780
      %v3820 = vpack.c.bf16 %v2802, %v2800
      %v3821 = vpack.c.bf16 %v3687, %v3686
      %v3822 = vpack.c.bf16 %v3783, %v3782
      %v3823 = vpack.c.bf16 %v2806, %v2804
      %v3824 = vpack.c.bf16 %v3689, %v3688
      %v3825 = vpack.c.bf16 %v3785, %v3784
      %v3826 = vpack.c.bf16 %v2810, %v2808
      %v3827 = vpack.c.bf16 %v3691, %v3690
      %v3828 = vpack.c.bf16 %v3787, %v3786
      %v3829 = vpack.c.bf16 %v2814, %v2812
      %v3830 = vpack.c.bf16 %v3693, %v3692
      %v3831 = vpack.c.bf16 %v3789, %v3788
      %v3832 = vpack.c.bf16 %v2818, %v2816
      %v3833 = vpack.c.bf16 %v3695, %v3694
      %v3834 = vpack.c.bf16 %v3791, %v3790
      %v3835 = vpack.c.bf16 %v2822, %v2820
      %v3836 = vpack.c.bf16 %v3697, %v3696
      %v3837 = vpack.c.bf16 %v3793, %v3792
      %v3838 = vpack.c.bf16 %v2826, %v2824
      %v3839 = vpack.c.bf16 %v3699, %v3698
      %v3840 = vpack.c.bf16 %v3795, %v3794
      %v3841 = vpack.c.bf16 %v2830, %v2828
      %v3842 = vpack.c.bf16 %v3701, %v3700
      %v3843 = vpack.c.bf16 %v3797, %v3796
      %v3844 = vpack.c.bf16 %v2834, %v2832
      %v3845 = vpack.c.bf16 %v3703, %v3702
      %v3846 = vpack.c.bf16 %v3799, %v3798
      %v3847 = vpack.c.bf16 %v2838, %v2836
      %v3848 = vld [vmem:[%s2] sm:$0xf]
      %v3849 = vld [vmem:[%s2 + $0x4] sm:$0xf]
      %v3850 = vld [vmem:[%s2 + $0x8] sm:$0xf]
      %v3851 = vld [vmem:[%s2 + $0xc] sm:$0xf]
      %v3852 = vld [vmem:[%s2 + $0x10] sm:$0xf]
      %v3853 = vld [vmem:[%s2 + $0x14] sm:$0xf]
      %v3854 = vld [vmem:[%s2 + $0x18] sm:$0xf]
      %v3855 = vld [vmem:[%s2 + $0x1c] sm:$0xf]
      %v3856 = vld [vmem:[%s2 + $0x20] sm:$0xf]
      %v3857 = vld [vmem:[%s2 + $0x24] sm:$0xf]
      %v3858 = vld [vmem:[%s2 + $0x28] sm:$0xf]
      %v3859 = vld [vmem:[%s2 + $0x2c] sm:$0xf]
      %v3860 = vld [vmem:[%s2 + $0x30] sm:$0xf]
      %v3861 = vld [vmem:[%s2 + $0x34] sm:$0xf]
      %v3862 = vld [vmem:[%s2 + $0x38] sm:$0xf]
      %v3863 = vld [vmem:[%s2 + $0x3c] sm:$0xf]
      %v3864 = vld [vmem:[%s2 + $0x40] sm:$0xf]
      %v3865 = vld [vmem:[%s2 + $0x44] sm:$0xf]
      %v3866 = vld [vmem:[%s2 + $0x48] sm:$0xf]
      %v3867 = vld [vmem:[%s2 + $0x4c] sm:$0xf]
      %v3868 = vld [vmem:[%s2 + $0x50] sm:$0xf]
      %v3869 = vld [vmem:[%s2 + $0x54] sm:$0xf]
      %v3870 = vld [vmem:[%s2 + $0x58] sm:$0xf]
      %v3871 = vld [vmem:[%s2 + $0x5c] sm:$0xf]
      %v3872 = vld [vmem:[%s2 + $0x60] sm:$0xf]
      %v3873 = vld [vmem:[%s2 + $0x64] sm:$0xf]
      %v3874 = vld [vmem:[%s2 + $0x68] sm:$0xf]
      %v3875 = vld [vmem:[%s2 + $0x6c] sm:$0xf]
      %v3876 = vld [vmem:[%s2 + $0x70] sm:$0xf]
      %v3877 = vld [vmem:[%s2 + $0x74] sm:$0xf]
      %v3878 = vld [vmem:[%s2 + $0x78] sm:$0xf]
      %v3879 = vld [vmem:[%s2 + $0x7c] sm:$0xf]
      %v3880 = vld [vmem:[%s2 + $0x80] sm:$0xf]
      %v3881 = vld [vmem:[%s2 + $0x84] sm:$0xf]
      %v3882 = vld [vmem:[%s2 + $0x88] sm:$0xf]
      %v3883 = vld [vmem:[%s2 + $0x8c] sm:$0xf]
      %v3884 = vld [vmem:[%s8] sm:$0x1]
      %v3886 = vlaneseq
      %v3887 = vshrl.u32 %v3886, 7
      %v3888 = vsub.s32 0, %v3887
      %v3889 = vrot.slane %v3884, %v3888
      %v3927 = vunpack.c.l.b16 %v3848
      %v3928 = vunpack.c.l.b16 %v3849
      %v3929 = vunpack.c.l.b16 %v3850
      %v3930 = vunpack.c.l.b16 %v3851
      %v3931 = vunpack.c.l.b16 %v3852
      %v3932 = vunpack.c.l.b16 %v3853
      %v3933 = vunpack.c.l.b16 %v3854
      %v3934 = vunpack.c.l.b16 %v3855
      %v3935 = vunpack.c.l.b16 %v3856
      %v3936 = vunpack.c.l.b16 %v3857
      %v3937 = vunpack.c.l.b16 %v3858
      %v3938 = vunpack.c.l.b16 %v3859
      %v3939 = vunpack.c.l.b16 %v3860
      %v3940 = vunpack.c.l.b16 %v3861
      %v3941 = vunpack.c.l.b16 %v3862
      %v3942 = vunpack.c.l.b16 %v3863
      %v3943 = vunpack.c.l.b16 %v3864
      %v3944 = vunpack.c.l.b16 %v3865
      %v3945 = vunpack.c.l.b16 %v3866
      %v3946 = vunpack.c.l.b16 %v3867
      %v3947 = vunpack.c.l.b16 %v3868
      %v3948 = vunpack.c.l.b16 %v3869
      %v3949 = vunpack.c.l.b16 %v3870
      %v3950 = vunpack.c.l.b16 %v3871
      %v3951 = vunpack.c.l.b16 %v3872
      %v3952 = vunpack.c.l.b16 %v3873
      %v3953 = vunpack.c.l.b16 %v3874
      %v3954 = vunpack.c.l.b16 %v3875
      %v3955 = vunpack.c.l.b16 %v3876
      %v3956 = vunpack.c.l.b16 %v3877
      %v3957 = vunpack.c.l.b16 %v3878
      %v3958 = vunpack.c.l.b16 %v3879
      %v3959 = vunpack.c.l.b16 %v3880
      %v3960 = vunpack.c.l.b16 %v3881
      %v3961 = vunpack.c.l.b16 %v3882
      %v3962 = vunpack.c.l.b16 %v3883
      %v3963 = vpack.c.b16 %v3928, %v3927
      %v3964 = vpack.c.b16 %v3930, %v3929
      %v3965 = vpack.c.b16 %v3932, %v3931
      %v3966 = vpack.c.b16 %v3934, %v3933
      %v3967 = vpack.c.b16 %v3936, %v3935
      %v3968 = vpack.c.b16 %v3938, %v3937
      %v3969 = vpack.c.b16 %v3940, %v3939
      %v3970 = vpack.c.b16 %v3942, %v3941
      %v3971 = vpack.c.b16 %v3944, %v3943
      %v3972 = vpack.c.b16 %v3946, %v3945
      %v3973 = vpack.c.b16 %v3948, %v3947
      %v3974 = vpack.c.b16 %v3950, %v3949
      %v3975 = vpack.c.b16 %v3952, %v3951
      %v3976 = vpack.c.b16 %v3954, %v3953
      %v3977 = vpack.c.b16 %v3956, %v3955
      %v3978 = vpack.c.b16 %v3958, %v3957
      %v3979 = vpack.c.b16 %v3960, %v3959
      %v3980 = vpack.c.b16 %v3962, %v3961
      %v4000 = vsel %vm440, %v3802, 0
      %v4003 = vsel %vm440, %v3805, 0
      %v4006 = vsel %vm440, %v3808, 0
      %v4009 = vsel %vm440, %v3811, 0
      %v4012 = vsel %vm440, %v3814, 0
      %v4015 = vsel %vm440, %v3817, 0
      %v4018 = vsel %vm440, %v3820, 0
      %v4021 = vsel %vm440, %v3823, 0
      %v4024 = vsel %vm440, %v3826, 0
      %v4027 = vsel %vm440, %v3829, 0
      %v4030 = vsel %vm440, %v3832, 0
      %v4033 = vsel %vm440, %v3835, 0
      %v4036 = vsel %vm440, %v3838, 0
      %v4039 = vsel %vm440, %v3841, 0
      %v4042 = vsel %vm440, %v3844, 0
      %v4045 = vsel %vm440, %v3847, 0
      %4047 = vmatprep.subr.bf16.mxu0 0
      %4048 = vmatpush1.bf16.msra.mxu0 %v3970
      %4049 = vmatprep.subr.bf16.mxu0 0
      %4050 = vmatpush1.bf16.msra.mxu0 %v3969
      %4051 = vmatprep.subr.bf16.mxu0 0
      %4052 = vmatpush1.bf16.msra.mxu0 %v3968
      %4053 = vmatprep.subr.bf16.mxu0 0
      %4054 = vmatpush1.bf16.msra.mxu0 %v3967
      %4055 = vmatprep.subr.bf16.mxu0 0
      %4056 = vmatpush1.bf16.msra.mxu0 %v3966
      %4057 = vmatprep.subr.bf16.mxu0 0
      %4058 = vmatpush1.bf16.msra.mxu0 %v3965
      %4059 = vmatprep.subr.bf16.mxu0 0
      %4060 = vmatpush1.bf16.msra.mxu0 %v3964
      %4061 = vmatprep.subr.bf16.mxu0 0
      %4062 = vmatpush1.bf16.msra.mxu0 %v3963
      %4063 = vmatprep.subr.bf16.mxu0 0
      %4064 = vmatpush2.bf16.msra.mxu0 %v3978
      %4065 = vmatprep.subr.bf16.mxu0 0
      %4066 = vmatpush2.bf16.msra.mxu0 %v3977
      %4067 = vmatprep.subr.bf16.mxu0 0
      %4068 = vmatpush2.bf16.msra.mxu0 %v3976
      %4069 = vmatprep.subr.bf16.mxu0 0
      %4070 = vmatpush2.bf16.msra.mxu0 %v3975
      %4071 = vmatprep.subr.bf16.mxu0 0
      %4072 = vmatpush2.bf16.msra.mxu0 %v3974
      %4073 = vmatprep.subr.bf16.mxu0 0
      %4074 = vmatpush2.bf16.msra.mxu0 %v3973
      %4075 = vmatprep.subr.bf16.mxu0 0
      %4076 = vmatpush2.bf16.msra.mxu0 %v3972
      %4077 = vmatprep.subr.bf16.mxu0 0
      %4078 = vmatpush2.bf16.msra.mxu0 %v3971
      %4079 = vmatprep.mubr.bf16.mxu0 %v3801
      %4080 = vmatmul.mubr.bf16.gmra.mxu0 %v3800
      %v4081 = vpop.f32.mrf.mxu0
      %v4082 = vadd.f32 %v3889, %v4081
      %v4083 = vpop.f32.mrf.mxu0
      %v4084 = vpop.f32.mrf.mxu0
      %v4085 = vadd.f32 %v3889, %v4084
      %v4086 = vpop.f32.mrf.mxu0
      %4087 = vmatprep.mubr.bf16.mxu0 %v3804
      %4088 = vmatmul.mubr.bf16.gmra.mxu0 %v3803
      %v4089 = vpop.f32.mrf.mxu0
      %v4090 = vadd.f32 %v3889, %v4089
      %v4091 = vpop.f32.mrf.mxu0
      %v4092 = vpop.f32.mrf.mxu0
      %v4093 = vadd.f32 %v3889, %v4092
      %v4094 = vpop.f32.mrf.mxu0
      %4095 = vmatprep.mubr.bf16.mxu0 %v3807
      %4096 = vmatmul.mubr.bf16.gmra.mxu0 %v3806
      %v4097 = vpop.f32.mrf.mxu0
      %v4098 = vadd.f32 %v3889, %v4097
      %v4099 = vpop.f32.mrf.mxu0
      %v4100 = vpop.f32.mrf.mxu0
      %v4101 = vadd.f32 %v3889, %v4100
      %v4102 = vpop.f32.mrf.mxu0
      %4103 = vmatprep.mubr.bf16.mxu0 %v3810
      %4104 = vmatmul.mubr.bf16.gmra.mxu0 %v3809
      %v4105 = vpop.f32.mrf.mxu0
      %v4106 = vadd.f32 %v3889, %v4105
      %v4107 = vpop.f32.mrf.mxu0
      %v4108 = vpop.f32.mrf.mxu0
      %v4109 = vadd.f32 %v3889, %v4108
      %v4110 = vpop.f32.mrf.mxu0
      %4111 = vmatprep.mubr.bf16.mxu0 %v3813
      %4112 = vmatmul.mubr.bf16.gmra.mxu0 %v3812
      %v4113 = vpop.f32.mrf.mxu0
      %v4114 = vadd.f32 %v3889, %v4113
      %v4115 = vpop.f32.mrf.mxu0
      %v4116 = vpop.f32.mrf.mxu0
      %v4117 = vadd.f32 %v3889, %v4116
      %v4118 = vpop.f32.mrf.mxu0
      %4119 = vmatprep.mubr.bf16.mxu0 %v3816
      %4120 = vmatmul.mubr.bf16.gmra.mxu0 %v3815
      %v4121 = vpop.f32.mrf.mxu0
      %v4122 = vadd.f32 %v3889, %v4121
      %v4123 = vpop.f32.mrf.mxu0
      %v4124 = vpop.f32.mrf.mxu0
      %v4125 = vadd.f32 %v3889, %v4124
      %v4126 = vpop.f32.mrf.mxu0
      %4127 = vmatprep.mubr.bf16.mxu0 %v3819
      %4128 = vmatmul.mubr.bf16.gmra.mxu0 %v3818
      %v4129 = vpop.f32.mrf.mxu0
      %v4130 = vadd.f32 %v3889, %v4129
      %v4131 = vpop.f32.mrf.mxu0
      %v4132 = vpop.f32.mrf.mxu0
      %v4133 = vadd.f32 %v3889, %v4132
      %v4134 = vpop.f32.mrf.mxu0
      %4135 = vmatprep.mubr.bf16.mxu0 %v3822
      %4136 = vmatmul.mubr.bf16.gmra.mxu0 %v3821
      %v4137 = vpop.f32.mrf.mxu0
      %v4138 = vadd.f32 %v3889, %v4137
      %v4139 = vpop.f32.mrf.mxu0
      %v4140 = vpop.f32.mrf.mxu0
      %v4141 = vadd.f32 %v3889, %v4140
      %v4142 = vpop.f32.mrf.mxu0
      %4143 = vmatprep.mubr.bf16.mxu0 %v3825
      %4144 = vmatmul.mubr.bf16.gmra.mxu0 %v3824
      %v4145 = vpop.f32.mrf.mxu0
      %v4146 = vadd.f32 %v3889, %v4145
      %v4147 = vpop.f32.mrf.mxu0
      %v4148 = vpop.f32.mrf.mxu0
      %v4149 = vadd.f32 %v3889, %v4148
      %v4150 = vpop.f32.mrf.mxu0
      %4151 = vmatprep.mubr.bf16.mxu0 %v3828
      %4152 = vmatmul.mubr.bf16.gmra.mxu0 %v3827
      %v4153 = vpop.f32.mrf.mxu0
      %v4154 = vadd.f32 %v3889, %v4153
      %v4155 = vpop.f32.mrf.mxu0
      %v4156 = vpop.f32.mrf.mxu0
      %v4157 = vadd.f32 %v3889, %v4156
      %v4158 = vpop.f32.mrf.mxu0
      %4159 = vmatprep.mubr.bf16.mxu0 %v3831
      %4160 = vmatmul.mubr.bf16.gmra.mxu0 %v3830
      %v4161 = vpop.f32.mrf.mxu0
      %v4162 = vadd.f32 %v3889, %v4161
      %v4163 = vpop.f32.mrf.mxu0
      %v4164 = vpop.f32.mrf.mxu0
      %v4165 = vadd.f32 %v3889, %v4164
      %v4166 = vpop.f32.mrf.mxu0
      %4167 = vmatprep.mubr.bf16.mxu0 %v3834
      %4168 = vmatmul.mubr.bf16.gmra.mxu0 %v3833
      %v4169 = vpop.f32.mrf.mxu0
      %v4170 = vadd.f32 %v3889, %v4169
      %v4171 = vpop.f32.mrf.mxu0
      %v4172 = vpop.f32.mrf.mxu0
      %v4173 = vadd.f32 %v3889, %v4172
      %v4174 = vpop.f32.mrf.mxu0
      %4175 = vmatprep.mubr.bf16.mxu0 %v3837
      %4176 = vmatmul.mubr.bf16.gmra.mxu0 %v3836
      %v4177 = vpop.f32.mrf.mxu0
      %v4178 = vadd.f32 %v3889, %v4177
      %v4179 = vpop.f32.mrf.mxu0
      %v4180 = vpop.f32.mrf.mxu0
      %v4181 = vadd.f32 %v3889, %v4180
      %v4182 = vpop.f32.mrf.mxu0
      %4183 = vmatprep.mubr.bf16.mxu0 %v3840
      %4184 = vmatmul.mubr.bf16.gmra.mxu0 %v3839
      %v4185 = vpop.f32.mrf.mxu0
      %v4186 = vadd.f32 %v3889, %v4185
      %v4187 = vpop.f32.mrf.mxu0
      %v4188 = vpop.f32.mrf.mxu0
      %v4189 = vadd.f32 %v3889, %v4188
      %v4190 = vpop.f32.mrf.mxu0
      %4191 = vmatprep.mubr.bf16.mxu0 %v3843
      %4192 = vmatmul.mubr.bf16.gmra.mxu0 %v3842
      %v4193 = vpop.f32.mrf.mxu0
      %v4194 = vadd.f32 %v3889, %v4193
      %v4195 = vpop.f32.mrf.mxu0
      %v4196 = vpop.f32.mrf.mxu0
      %v4197 = vadd.f32 %v3889, %v4196
      %v4198 = vpop.f32.mrf.mxu0
      %4199 = vmatprep.mubr.bf16.mxu0 %v3846
      %4200 = vmatmul.mubr.bf16.gmra.mxu0 %v3845
      %v4201 = vpop.f32.mrf.mxu0
      %v4202 = vadd.f32 %v3889, %v4201
      %v4203 = vpop.f32.mrf.mxu0
      %v4204 = vpop.f32.mrf.mxu0
      %v4205 = vadd.f32 %v3889, %v4204
      %v4206 = vpop.f32.mrf.mxu0
      %4207 = vdwg.mxu0
      %4208 = vmatprep.subr.bf16.mxu0 0
      %4209 = vmatpush1.bf16.msra.mxu0 0
      %4210 = vmatprep.subr.bf16.mxu0 0
      %4211 = vmatpush1.bf16.msra.mxu0 0
      %4212 = vmatprep.subr.bf16.mxu0 0
      %4213 = vmatpush1.bf16.msra.mxu0 0
      %4214 = vmatprep.subr.bf16.mxu0 0
      %4215 = vmatpush1.bf16.msra.mxu0 0
      %4216 = vmatprep.subr.bf16.mxu0 0
      %4217 = vmatpush1.bf16.msra.mxu0 0
      %4218 = vmatprep.subr.bf16.mxu0 0
      %4219 = vmatpush1.bf16.msra.mxu0 0
      %4220 = vmatprep.subr.bf16.mxu0 0
      %4221 = vmatpush1.bf16.msra.mxu0 %v3980
      %4222 = vmatprep.subr.bf16.mxu0 0
      %4223 = vmatpush1.bf16.msra.mxu0 %v3979
      %4224 = vmatprep.subr.bf16.mxu0 0
      %4225 = vmatpush2.bf16.msra.mxu0 0
      %4226 = vmatprep.subr.bf16.mxu0 0
      %4227 = vmatpush2.bf16.msra.mxu0 0
      %4228 = vmatprep.subr.bf16.mxu0 0
      %4229 = vmatpush2.bf16.msra.mxu0 0
      %4230 = vmatprep.subr.bf16.mxu0 0
      %4231 = vmatpush2.bf16.msra.mxu0 0
      %4232 = vmatprep.subr.bf16.mxu0 0
      %4233 = vmatpush2.bf16.msra.mxu0 0
      %4234 = vmatprep.subr.bf16.mxu0 0
      %4235 = vmatpush2.bf16.msra.mxu0 0
      %4236 = vmatprep.subr.bf16.mxu0 0
      %4237 = vmatpush2.bf16.msra.mxu0 0
      %4238 = vmatprep.subr.bf16.mxu0 0
      %4239 = vmatpush2.bf16.msra.mxu0 0
      %4240 = vmatprep.mubr.bf16.mxu0 0
      %4241 = vmatmul.mubr.bf16.gmra.mxu0 %v4000
      %v4242 = vpop.f32.mrf.mxu0
      %v4243 = vadd.f32 %v4082, %v4242
      %v4244 = vpop.f32.mrf.mxu0
      %v4245 = vpop.f32.mrf.mxu0
      %v4246 = vadd.f32 %v4085, %v4245
      %v4247 = vpop.f32.mrf.mxu0
      %4248 = vmatprep.mubr.bf16.mxu0 0
      %4249 = vmatmul.mubr.bf16.gmra.mxu0 %v4003
      %v4250 = vpop.f32.mrf.mxu0
      %v4251 = vadd.f32 %v4090, %v4250
      %v4252 = vpop.f32.mrf.mxu0
      %v4253 = vpop.f32.mrf.mxu0
      %v4254 = vadd.f32 %v4093, %v4253
      %v4255 = vpop.f32.mrf.mxu0
      %4256 = vmatprep.mubr.bf16.mxu0 0
      %4257 = vmatmul.mubr.bf16.gmra.mxu0 %v4006
      %v4258 = vpop.f32.mrf.mxu0
      %v4259 = vadd.f32 %v4098, %v4258
      %v4260 = vpop.f32.mrf.mxu0
      %v4261 = vpop.f32.mrf.mxu0
      %v4262 = vadd.f32 %v4101, %v4261
      %v4263 = vpop.f32.mrf.mxu0
      %4264 = vmatprep.mubr.bf16.mxu0 0
      %4265 = vmatmul.mubr.bf16.gmra.mxu0 %v4009
      %v4266 = vpop.f32.mrf.mxu0
      %v4267 = vadd.f32 %v4106, %v4266
      %v4268 = vpop.f32.mrf.mxu0
      %v4269 = vpop.f32.mrf.mxu0
      %v4270 = vadd.f32 %v4109, %v4269
      %v4271 = vpop.f32.mrf.mxu0
      %4272 = vmatprep.mubr.bf16.mxu0 0
      %4273 = vmatmul.mubr.bf16.gmra.mxu0 %v4012
      %v4274 = vpop.f32.mrf.mxu0
      %v4275 = vadd.f32 %v4114, %v4274
      %v4276 = vpop.f32.mrf.mxu0
      %v4277 = vpop.f32.mrf.mxu0
      %v4278 = vadd.f32 %v4117, %v4277
      %v4279 = vpop.f32.mrf.mxu0
      %4280 = vmatprep.mubr.bf16.mxu0 0
      %4281 = vmatmul.mubr.bf16.gmra.mxu0 %v4015
      %v4282 = vpop.f32.mrf.mxu0
      %v4283 = vadd.f32 %v4122, %v4282
      %v4284 = vpop.f32.mrf.mxu0
      %v4285 = vpop.f32.mrf.mxu0
      %v4286 = vadd.f32 %v4125, %v4285
      %v4287 = vpop.f32.mrf.mxu0
      %4288 = vmatprep.mubr.bf16.mxu0 0
      %4289 = vmatmul.mubr.bf16.gmra.mxu0 %v4018
      %v4290 = vpop.f32.mrf.mxu0
      %v4291 = vadd.f32 %v4130, %v4290
      %v4292 = vpop.f32.mrf.mxu0
      %v4293 = vpop.f32.mrf.mxu0
      %v4294 = vadd.f32 %v4133, %v4293
      %v4295 = vpop.f32.mrf.mxu0
      %4296 = vmatprep.mubr.bf16.mxu0 0
      %4297 = vmatmul.mubr.bf16.gmra.mxu0 %v4021
      %v4298 = vpop.f32.mrf.mxu0
      %v4299 = vadd.f32 %v4138, %v4298
      %v4300 = vpop.f32.mrf.mxu0
      %v4301 = vpop.f32.mrf.mxu0
      %v4302 = vadd.f32 %v4141, %v4301
      %v4303 = vpop.f32.mrf.mxu0
      %4304 = vmatprep.mubr.bf16.mxu0 0
      %4305 = vmatmul.mubr.bf16.gmra.mxu0 %v4024
      %v4306 = vpop.f32.mrf.mxu0
      %v4307 = vadd.f32 %v4146, %v4306
      %v4308 = vpop.f32.mrf.mxu0
      %v4309 = vpop.f32.mrf.mxu0
      %v4310 = vadd.f32 %v4149, %v4309
      %v4311 = vpop.f32.mrf.mxu0
      %4312 = vmatprep.mubr.bf16.mxu0 0
      %4313 = vmatmul.mubr.bf16.gmra.mxu0 %v4027
      %v4314 = vpop.f32.mrf.mxu0
      %v4315 = vadd.f32 %v4154, %v4314
      %v4316 = vpop.f32.mrf.mxu0
      %v4317 = vpop.f32.mrf.mxu0
      %v4318 = vadd.f32 %v4157, %v4317
      %v4319 = vpop.f32.mrf.mxu0
      %4320 = vmatprep.mubr.bf16.mxu0 0
      %4321 = vmatmul.mubr.bf16.gmra.mxu0 %v4030
      %v4322 = vpop.f32.mrf.mxu0
      %v4323 = vadd.f32 %v4162, %v4322
      %v4324 = vpop.f32.mrf.mxu0
      %v4325 = vpop.f32.mrf.mxu0
      %v4326 = vadd.f32 %v4165, %v4325
      %v4327 = vpop.f32.mrf.mxu0
      %4328 = vmatprep.mubr.bf16.mxu0 0
      %4329 = vmatmul.mubr.bf16.gmra.mxu0 %v4033
      %v4330 = vpop.f32.mrf.mxu0
      %v4331 = vadd.f32 %v4170, %v4330
      %v4332 = vpop.f32.mrf.mxu0
      %v4333 = vpop.f32.mrf.mxu0
      %v4334 = vadd.f32 %v4173, %v4333
      %v4335 = vpop.f32.mrf.mxu0
      %4336 = vmatprep.mubr.bf16.mxu0 0
      %4337 = vmatmul.mubr.bf16.gmra.mxu0 %v4036
      %v4338 = vpop.f32.mrf.mxu0
      %v4339 = vadd.f32 %v4178, %v4338
      %v4340 = vpop.f32.mrf.mxu0
      %v4341 = vpop.f32.mrf.mxu0
      %v4342 = vadd.f32 %v4181, %v4341
      %v4343 = vpop.f32.mrf.mxu0
      %4344 = vmatprep.mubr.bf16.mxu0 0
      %4345 = vmatmul.mubr.bf16.gmra.mxu0 %v4039
      %v4346 = vpop.f32.mrf.mxu0
      %v4347 = vadd.f32 %v4186, %v4346
      %v4348 = vpop.f32.mrf.mxu0
      %v4349 = vpop.f32.mrf.mxu0
      %v4350 = vadd.f32 %v4189, %v4349
      %v4351 = vpop.f32.mrf.mxu0
      %4352 = vmatprep.mubr.bf16.mxu0 0
      %4353 = vmatmul.mubr.bf16.gmra.mxu0 %v4042
      %v4354 = vpop.f32.mrf.mxu0
      %v4355 = vadd.f32 %v4194, %v4354
      %v4356 = vpop.f32.mrf.mxu0
      %v4357 = vpop.f32.mrf.mxu0
      %v4358 = vadd.f32 %v4197, %v4357
      %v4359 = vpop.f32.mrf.mxu0
      %4360 = vmatprep.mubr.bf16.mxu0 0
      %4361 = vmatmul.mubr.bf16.gmra.mxu0 %v4045
      %v4362 = vpop.f32.mrf.mxu0
      %v4363 = vadd.f32 %v4202, %v4362
      %v4364 = vpop.f32.mrf.mxu0
      %v4365 = vpop.f32.mrf.mxu0
      %v4366 = vadd.f32 %v4205, %v4365
      %v4367 = vpop.f32.mrf.mxu0
      %4368 = vdwg.mxu0
      %vm4369 = vcmp.gt.f32.partialorder %v4243, 0.0
      %vm4370 = vcmp.gt.f32.partialorder %v4246, 0.0
      %vm4371 = vcmp.gt.f32.partialorder %v4251, 0.0
      %vm4372 = vcmp.gt.f32.partialorder %v4254, 0.0
      %vm4373 = vcmp.gt.f32.partialorder %v4259, 0.0
      %vm4374 = vcmp.gt.f32.partialorder %v4262, 0.0
      %vm4375 = vcmp.gt.f32.partialorder %v4267, 0.0
      %vm4376 = vcmp.gt.f32.partialorder %v4270, 0.0
      %vm4377 = vcmp.gt.f32.partialorder %v4275, 0.0
      %vm4378 = vcmp.gt.f32.partialorder %v4278, 0.0
      %vm4379 = vcmp.gt.f32.partialorder %v4283, 0.0
      %vm4380 = vcmp.gt.f32.partialorder %v4286, 0.0
      %vm4381 = vcmp.gt.f32.partialorder %v4291, 0.0
      %vm4382 = vcmp.gt.f32.partialorder %v4294, 0.0
      %vm4383 = vcmp.gt.f32.partialorder %v4299, 0.0
      %vm4384 = vcmp.gt.f32.partialorder %v4302, 0.0
      %vm4385 = vcmp.gt.f32.partialorder %v4307, 0.0
      %vm4386 = vcmp.gt.f32.partialorder %v4310, 0.0
      %vm4387 = vcmp.gt.f32.partialorder %v4315, 0.0
      %vm4388 = vcmp.gt.f32.partialorder %v4318, 0.0
      %vm4389 = vcmp.gt.f32.partialorder %v4323, 0.0
      %vm4390 = vcmp.gt.f32.partialorder %v4326, 0.0
      %vm4391 = vcmp.gt.f32.partialorder %v4331, 0.0
      %vm4392 = vcmp.gt.f32.partialorder %v4334, 0.0
      %vm4393 = vcmp.gt.f32.partialorder %v4339, 0.0
      %vm4394 = vcmp.gt.f32.partialorder %v4342, 0.0
      %vm4395 = vcmp.gt.f32.partialorder %v4347, 0.0
      %vm4396 = vcmp.gt.f32.partialorder %v4350, 0.0
      %vm4397 = vcmp.gt.f32.partialorder %v4355, 0.0
      %vm4398 = vcmp.gt.f32.partialorder %v4358, 0.0
      %vm4399 = vcmp.gt.f32.partialorder %v4363, 0.0
      %vm4400 = vcmp.gt.f32.partialorder %v4366, 0.0
      %v4401 = vmul.f32 %v4243, 0.2
      %v4402 = vmul.f32 %v4246, 0.2
      %v4403 = vmul.f32 %v4251, 0.2
      %v4404 = vmul.f32 %v4254, 0.2
      %v4405 = vmul.f32 %v4259, 0.2
      %v4406 = vmul.f32 %v4262, 0.2
      %v4407 = vmul.f32 %v4267, 0.2
      %v4408 = vmul.f32 %v4270, 0.2
      %v4409 = vmul.f32 %v4275, 0.2
      %v4410 = vmul.f32 %v4278, 0.2
      %v4411 = vmul.f32 %v4283, 0.2
      %v4412 = vmul.f32 %v4286, 0.2
      %v4413 = vmul.f32 %v4291, 0.2
      %v4414 = vmul.f32 %v4294, 0.2
      %v4415 = vmul.f32 %v4299, 0.2
      %v4416 = vmul.f32 %v4302, 0.2
      %v4417 = vmul.f32 %v4307, 0.2
      %v4418 = vmul.f32 %v4310, 0.2
      %v4419 = vmul.f32 %v4315, 0.2
      %v4420 = vmul.f32 %v4318, 0.2
      %v4421 = vmul.f32 %v4323, 0.2
      %v4422 = vmul.f32 %v4326, 0.2
      %v4423 = vmul.f32 %v4331, 0.2
      %v4424 = vmul.f32 %v4334, 0.2
      %v4425 = vmul.f32 %v4339, 0.2
      %v4426 = vmul.f32 %v4342, 0.2
      %v4427 = vmul.f32 %v4347, 0.2
      %v4428 = vmul.f32 %v4350, 0.2
      %v4429 = vmul.f32 %v4355, 0.2
      %v4430 = vmul.f32 %v4358, 0.2
      %v4431 = vmul.f32 %v4363, 0.2
      %v4432 = vmul.f32 %v4366, 0.2
      %v4433 = vsel %vm4369, %v4243, %v4401
      %v4434 = vsel %vm4370, %v4246, %v4402
      %v4435 = vsel %vm4371, %v4251, %v4403
      %v4436 = vsel %vm4372, %v4254, %v4404
      %v4437 = vsel %vm4373, %v4259, %v4405
      %v4438 = vsel %vm4374, %v4262, %v4406
      %v4439 = vsel %vm4375, %v4267, %v4407
      %v4440 = vsel %vm4376, %v4270, %v4408
      %v4441 = vsel %vm4377, %v4275, %v4409
      %v4442 = vsel %vm4378, %v4278, %v4410
      %v4443 = vsel %vm4379, %v4283, %v4411
      %v4444 = vsel %vm4380, %v4286, %v4412
      %v4445 = vsel %vm4381, %v4291, %v4413
      %v4446 = vsel %vm4382, %v4294, %v4414
      %v4447 = vsel %vm4383, %v4299, %v4415
      %v4448 = vsel %vm4384, %v4302, %v4416
      %v4449 = vsel %vm4385, %v4307, %v4417
      %v4450 = vsel %vm4386, %v4310, %v4418
      %v4451 = vsel %vm4387, %v4315, %v4419
      %v4452 = vsel %vm4388, %v4318, %v4420
      %v4453 = vsel %vm4389, %v4323, %v4421
      %v4454 = vsel %vm4390, %v4326, %v4422
      %v4455 = vsel %vm4391, %v4331, %v4423
      %v4456 = vsel %vm4392, %v4334, %v4424
      %v4457 = vsel %vm4393, %v4339, %v4425
      %v4458 = vsel %vm4394, %v4342, %v4426
      %v4459 = vsel %vm4395, %v4347, %v4427
      %v4460 = vsel %vm4396, %v4350, %v4428
      %v4461 = vsel %vm4397, %v4355, %v4429
      %v4462 = vsel %vm4398, %v4358, %v4430
      %v4463 = vsel %vm4399, %v4363, %v4431
      %v4464 = vsel %vm4400, %v4366, %v4432
      %s4465 = scalar_lea.vmem [#allocation3], 24
      %4466 = vst.msk [vmem:[%s4465 + $0x1] sm:$0xff] %vm482, %v4433
      %4467 = vst.msk [vmem:[%s4465 + $0x9] sm:$0xff] %vm482, %v4434
      %4468 = vst.msk [vmem:[%s4465 + $0x19] sm:$0xff] %vm482, %v4435
      %4469 = vst.msk [vmem:[%s4465 + $0x21] sm:$0xff] %vm482, %v4436
      %4470 = vst.msk [vmem:[%s4465 + $0x31] sm:$0xff] %vm482, %v4437
      %4471 = vst.msk [vmem:[%s4465 + $0x39] sm:$0xff] %vm482, %v4438
      %4472 = vst.msk [vmem:[%s4465 + $0x49] sm:$0xff] %vm482, %v4439
      %4473 = vst.msk [vmem:[%s4465 + $0x51] sm:$0xff] %vm482, %v4440
      %4474 = vst.msk [vmem:[%s4465 + $0x61] sm:$0xff] %vm482, %v4441
      %4475 = vst.msk [vmem:[%s4465 + $0x69] sm:$0xff] %vm482, %v4442
      %4476 = vst.msk [vmem:[%s4465 + $0x79] sm:$0xff] %vm482, %v4443
      %4477 = vst.msk [vmem:[%s4465 + $0x81] sm:$0xff] %vm482, %v4444
      %4478 = vst.msk [vmem:[%s4465 + $0x91] sm:$0xff] %vm482, %v4445
      %4479 = vst.msk [vmem:[%s4465 + $0x99] sm:$0xff] %vm482, %v4446
      %4480 = vst.msk [vmem:[%s4465 + $0xa9] sm:$0xff] %vm482, %v4447
      %4481 = vst.msk [vmem:[%s4465 + $0xb1] sm:$0xff] %vm482, %v4448
      %4482 = vst.msk [vmem:[%s4465 + $0xc1] sm:$0xff] %vm482, %v4449
      %4483 = vst.msk [vmem:[%s4465 + $0xc9] sm:$0xff] %vm482, %v4450
      %4484 = vst.msk [vmem:[%s4465 + $0xd9] sm:$0xff] %vm482, %v4451
      %4485 = vst.msk [vmem:[%s4465 + $0xe1] sm:$0xff] %vm482, %v4452
      %4486 = vst.msk [vmem:[%s4465 + $0xf1] sm:$0xff] %vm482, %v4453
      %4487 = vst.msk [vmem:[%s4465 + $0xf9] sm:$0xff] %vm482, %v4454
      %4488 = vst.msk [vmem:[%s4465 + $0x109] sm:$0xff] %vm482, %v4455
      %4489 = vst.msk [vmem:[%s4465 + $0x111] sm:$0xff] %vm482, %v4456
      %4490 = vst.msk [vmem:[%s4465 + $0x121] sm:$0xff] %vm482, %v4457
      %4491 = vst.msk [vmem:[%s4465 + $0x129] sm:$0xff] %vm482, %v4458
      %4492 = vst.msk [vmem:[%s4465 + $0x139] sm:$0xff] %vm482, %v4459
      %4493 = vst.msk [vmem:[%s4465 + $0x141] sm:$0xff] %vm482, %v4460
      %4494 = vst.msk [vmem:[%s4465 + $0x151] sm:$0xff] %vm482, %v4461
      %4495 = vst.msk [vmem:[%s4465 + $0x159] sm:$0xff] %vm482, %v4462
      %4496 = vst.msk [vmem:[%s4465 + $0x169] sm:$0xff] %vm482, %v4463
      %4497 = vst.msk [vmem:[%s4465 + $0x171] sm:$0xff] %vm482, %v4464
      %v4498 = vld [vmem:[#allocation3] ss:$2 sm:$0xff]
      %s4499 = scalar_lea.vmem [#allocation3], 48
      %v4500 = vld [vmem:[%s4499] ss:$2 sm:$0xff]
      %s4501 = scalar_lea.vmem [#allocation3], 96
      %v4502 = vld [vmem:[%s4501] ss:$2 sm:$0xff]
      %s4503 = scalar_lea.vmem [#allocation3], 144
      %v4504 = vld [vmem:[%s4503] ss:$2 sm:$0xff]
      %s4505 = scalar_lea.vmem [#allocation3], 192
      %v4506 = vld [vmem:[%s4505] ss:$2 sm:$0xff]
      %s4507 = scalar_lea.vmem [#allocation3], 240
      %v4508 = vld [vmem:[%s4507] ss:$2 sm:$0xff]
      %s4509 = scalar_lea.vmem [#allocation3], 288
      %v4510 = vld [vmem:[%s4509] ss:$2 sm:$0xff]
      %s4511 = scalar_lea.vmem [#allocation3], 336
      %v4512 = vld [vmem:[%s4511] ss:$2 sm:$0xff]
      %s4513 = scalar_lea.vmem [#allocation3], 1
      %v4514 = vld [vmem:[%s4513] ss:$2 sm:$0xff]
      %s4515 = scalar_lea.vmem [#allocation3], 49
      %v4516 = vld [vmem:[%s4515] ss:$2 sm:$0xff]
      %s4517 = scalar_lea.vmem [#allocation3], 97
      %v4518 = vld [vmem:[%s4517] ss:$2 sm:$0xff]
      %s4519 = scalar_lea.vmem [#allocation3], 145
      %v4520 = vld [vmem:[%s4519] ss:$2 sm:$0xff]
      %s4521 = scalar_lea.vmem [#allocation3], 193
      %v4522 = vld [vmem:[%s4521] ss:$2 sm:$0xff]
      %s4523 = scalar_lea.vmem [#allocation3], 241
      %v4524 = vld [vmem:[%s4523] ss:$2 sm:$0xff]
      %s4525 = scalar_lea.vmem [#allocation3], 289
      %v4526 = vld [vmem:[%s4525] ss:$2 sm:$0xff]
      %s4527 = scalar_lea.vmem [#allocation3], 337
      %v4528 = vld [vmem:[%s4527] ss:$2 sm:$0xff]
      %s4529 = scalar_lea.vmem [#allocation3], 2
      %v4530 = vld [vmem:[%s4529] ss:$2 sm:$0xff]
      %s4531 = scalar_lea.vmem [#allocation3], 50
      %v4532 = vld [vmem:[%s4531] ss:$2 sm:$0xff]
      %s4533 = scalar_lea.vmem [#allocation3], 98
      %v4534 = vld [vmem:[%s4533] ss:$2 sm:$0xff]
      %s4535 = scalar_lea.vmem [#allocation3], 146
      %v4536 = vld [vmem:[%s4535] ss:$2 sm:$0xff]
      %s4537 = scalar_lea.vmem [#allocation3], 194
      %v4538 = vld [vmem:[%s4537] ss:$2 sm:$0xff]
      %s4539 = scalar_lea.vmem [#allocation3], 242
      %v4540 = vld [vmem:[%s4539] ss:$2 sm:$0xff]
      %s4541 = scalar_lea.vmem [#allocation3], 290
      %v4542 = vld [vmem:[%s4541] ss:$2 sm:$0xff]
      %s4543 = scalar_lea.vmem [#allocation3], 338
      %v4544 = vld [vmem:[%s4543] ss:$2 sm:$0xff]
      %v4545 = vld [vmem:[%s4465] ss:$2 sm:$0xff]
      %s4546 = scalar_lea.vmem %s4465, 48 [#allocation3]
      %v4547 = vld [vmem:[%s4546] ss:$2 sm:$0xff]
      %s4548 = scalar_lea.vmem %s4465, 96 [#allocation3]
      %v4549 = vld [vmem:[%s4548] ss:$2 sm:$0xff]
      %s4550 = scalar_lea.vmem %s4465, 144 [#allocation3]
      %v4551 = vld [vmem:[%s4550] ss:$2 sm:$0xff]
      %s4552 = scalar_lea.vmem %s4465, 192 [#allocation3]
      %v4553 = vld [vmem:[%s4552] ss:$2 sm:$0xff]
      %s4554 = scalar_lea.vmem %s4465, 240 [#allocation3]
      %v4555 = vld [vmem:[%s4554] ss:$2 sm:$0xff]
      %s4556 = scalar_lea.vmem %s4465, 288 [#allocation3]
      %v4557 = vld [vmem:[%s4556] ss:$2 sm:$0xff]
      %s4558 = scalar_lea.vmem %s4465, 336 [#allocation3]
      %v4559 = vld [vmem:[%s4558] ss:$2 sm:$0xff]
      %s4560 = scalar_lea.vmem %s4465, 1 [#allocation3]
      %v4561 = vld [vmem:[%s4560] ss:$2 sm:$0xff]
      %s4562 = scalar_lea.vmem %s4465, 49 [#allocation3]
      %v4563 = vld [vmem:[%s4562] ss:$2 sm:$0xff]
      %s4564 = scalar_lea.vmem %s4465, 97 [#allocation3]
      %v4565 = vld [vmem:[%s4564] ss:$2 sm:$0xff]
      %s4566 = scalar_lea.vmem %s4465, 145 [#allocation3]
      %v4567 = vld [vmem:[%s4566] ss:$2 sm:$0xff]
      %s4568 = scalar_lea.vmem %s4465, 193 [#allocation3]
      %v4569 = vld [vmem:[%s4568] ss:$2 sm:$0xff]
      %s4570 = scalar_lea.vmem %s4465, 241 [#allocation3]
      %v4571 = vld [vmem:[%s4570] ss:$2 sm:$0xff]
      %s4572 = scalar_lea.vmem %s4465, 289 [#allocation3]
      %v4573 = vld [vmem:[%s4572] ss:$2 sm:$0xff]
      %s4574 = scalar_lea.vmem %s4465, 337 [#allocation3]
      %v4575 = vld [vmem:[%s4574] ss:$2 sm:$0xff]
      %s4576 = scalar_lea.vmem %s4465, 2 [#allocation3]
      %v4577 = vld [vmem:[%s4576] ss:$2 sm:$0xff]
      %s4578 = scalar_lea.vmem %s4465, 50 [#allocation3]
      %v4579 = vld [vmem:[%s4578] ss:$2 sm:$0xff]
      %s4580 = scalar_lea.vmem %s4465, 98 [#allocation3]
      %v4581 = vld [vmem:[%s4580] ss:$2 sm:$0xff]
      %s4582 = scalar_lea.vmem %s4465, 146 [#allocation3]
      %v4583 = vld [vmem:[%s4582] ss:$2 sm:$0xff]
      %s4584 = scalar_lea.vmem %s4465, 194 [#allocation3]
      %v4585 = vld [vmem:[%s4584] ss:$2 sm:$0xff]
      %s4586 = scalar_lea.vmem %s4465, 242 [#allocation3]
      %v4587 = vld [vmem:[%s4586] ss:$2 sm:$0xff]
      %s4588 = scalar_lea.vmem %s4465, 290 [#allocation3]
      %v4589 = vld [vmem:[%s4588] ss:$2 sm:$0xff]
      %s4590 = scalar_lea.vmem %s4465, 338 [#allocation3]
      %v4591 = vld [vmem:[%s4590] ss:$2 sm:$0xff]
      %s4592 = scalar_lea.vmem [#allocation3], 48
      %v4593 = vld [vmem:[%s4592] ss:$2 sm:$0xff]
      %s4594 = scalar_lea.vmem %s4592, 48 [#allocation3]
      %v4595 = vld [vmem:[%s4594] ss:$2 sm:$0xff]
      %s4596 = scalar_lea.vmem %s4592, 96 [#allocation3]
      %v4597 = vld [vmem:[%s4596] ss:$2 sm:$0xff]
      %s4598 = scalar_lea.vmem %s4592, 144 [#allocation3]
      %v4599 = vld [vmem:[%s4598] ss:$2 sm:$0xff]
      %s4600 = scalar_lea.vmem %s4592, 192 [#allocation3]
      %v4601 = vld [vmem:[%s4600] ss:$2 sm:$0xff]
      %s4602 = scalar_lea.vmem %s4592, 240 [#allocation3]
      %v4603 = vld [vmem:[%s4602] ss:$2 sm:$0xff]
      %s4604 = scalar_lea.vmem %s4592, 288 [#allocation3]
      %v4605 = vld [vmem:[%s4604] ss:$2 sm:$0xff]
      %s4606 = scalar_lea.vmem %s4592, 336 [#allocation3]
      %v4607 = vld [vmem:[%s4606] ss:$2 sm:$0xff]
      %s4608 = scalar_lea.vmem %s4592, 1 [#allocation3]
      %v4609 = vld [vmem:[%s4608] ss:$2 sm:$0xff]
      %s4610 = scalar_lea.vmem %s4592, 49 [#allocation3]
      %v4611 = vld [vmem:[%s4610] ss:$2 sm:$0xff]
      %s4612 = scalar_lea.vmem %s4592, 97 [#allocation3]
      %v4613 = vld [vmem:[%s4612] ss:$2 sm:$0xff]
      %s4614 = scalar_lea.vmem %s4592, 145 [#allocation3]
      %v4615 = vld [vmem:[%s4614] ss:$2 sm:$0xff]
      %s4616 = scalar_lea.vmem %s4592, 193 [#allocation3]
      %v4617 = vld [vmem:[%s4616] ss:$2 sm:$0xff]
      %s4618 = scalar_lea.vmem %s4592, 241 [#allocation3]
      %v4619 = vld [vmem:[%s4618] ss:$2 sm:$0xff]
      %s4620 = scalar_lea.vmem %s4592, 289 [#allocation3]
      %v4621 = vld [vmem:[%s4620] ss:$2 sm:$0xff]
      %s4622 = scalar_lea.vmem %s4592, 337 [#allocation3]
      %v4623 = vld [vmem:[%s4622] ss:$2 sm:$0xff]
      %s4624 = scalar_lea.vmem %s4592, 2 [#allocation3]
      %v4625 = vld [vmem:[%s4624] ss:$2 sm:$0xff]
      %s4626 = scalar_lea.vmem %s4592, 50 [#allocation3]
      %v4627 = vld [vmem:[%s4626] ss:$2 sm:$0xff]
      %s4628 = scalar_lea.vmem %s4592, 98 [#allocation3]
      %v4629 = vld [vmem:[%s4628] ss:$2 sm:$0xff]
      %s4630 = scalar_lea.vmem %s4592, 146 [#allocation3]
      %v4631 = vld [vmem:[%s4630] ss:$2 sm:$0xff]
      %s4632 = scalar_lea.vmem %s4592, 194 [#allocation3]
      %v4633 = vld [vmem:[%s4632] ss:$2 sm:$0xff]
      %s4634 = scalar_lea.vmem %s4592, 242 [#allocation3]
      %v4635 = vld [vmem:[%s4634] ss:$2 sm:$0xff]
      %s4636 = scalar_lea.vmem %s4592, 290 [#allocation3]
      %v4637 = vld [vmem:[%s4636] ss:$2 sm:$0xff]
      %s4638 = scalar_lea.vmem %s4592, 338 [#allocation3]
      %v4639 = vld [vmem:[%s4638] ss:$2 sm:$0xff]
      %4648 = vrot.lane.b32.xlu0 %v4514, 64
      %v4649 = vpop.permute.xlu0 %4648
      %4650 = vrot.lane.b32.xlu0 %v4516, 64
      %v4651 = vpop.permute.xlu0 %4650
      %4652 = vrot.lane.b32.xlu0 %v4518, 64
      %v4653 = vpop.permute.xlu0 %4652
      %4654 = vrot.lane.b32.xlu0 %v4520, 64
      %v4655 = vpop.permute.xlu0 %4654
      %4656 = vrot.lane.b32.xlu0 %v4522, 64
      %v4657 = vpop.permute.xlu0 %4656
      %4658 = vrot.lane.b32.xlu0 %v4524, 64
      %v4659 = vpop.permute.xlu0 %4658
      %4660 = vrot.lane.b32.xlu0 %v4526, 64
      %v4661 = vpop.permute.xlu0 %4660
      %4662 = vrot.lane.b32.xlu0 %v4528, 64
      %v4663 = vpop.permute.xlu0 %4662
      %4680 = vrot.lane.b32.xlu0 %v4545, 64
      %v4681 = vpop.permute.xlu0 %4680
      %4682 = vrot.lane.b32.xlu0 %v4547, 64
      %v4683 = vpop.permute.xlu0 %4682
      %4684 = vrot.lane.b32.xlu0 %v4549, 64
      %v4685 = vpop.permute.xlu0 %4684
      %4686 = vrot.lane.b32.xlu0 %v4551, 64
      %v4687 = vpop.permute.xlu0 %4686
      %4688 = vrot.lane.b32.xlu0 %v4553, 64
      %v4689 = vpop.permute.xlu0 %4688
      %4690 = vrot.lane.b32.xlu0 %v4555, 64
      %v4691 = vpop.permute.xlu0 %4690
      %4692 = vrot.lane.b32.xlu0 %v4557, 64
      %v4693 = vpop.permute.xlu0 %4692
      %4694 = vrot.lane.b32.xlu0 %v4559, 64
      %v4695 = vpop.permute.xlu0 %4694
      %4712 = vrot.lane.b32.xlu0 %v4577, 64
      %v4713 = vpop.permute.xlu0 %4712
      %4714 = vrot.lane.b32.xlu0 %v4579, 64
      %v4715 = vpop.permute.xlu0 %4714
      %4716 = vrot.lane.b32.xlu0 %v4581, 64
      %v4717 = vpop.permute.xlu0 %4716
      %4718 = vrot.lane.b32.xlu0 %v4583, 64
      %v4719 = vpop.permute.xlu0 %4718
      %4720 = vrot.lane.b32.xlu0 %v4585, 64
      %v4721 = vpop.permute.xlu0 %4720
      %4722 = vrot.lane.b32.xlu0 %v4587, 64
      %v4723 = vpop.permute.xlu0 %4722
      %4724 = vrot.lane.b32.xlu0 %v4589, 64
      %v4725 = vpop.permute.xlu0 %4724
      %4726 = vrot.lane.b32.xlu0 %v4591, 64
      %v4727 = vpop.permute.xlu0 %4726
      %4744 = vrot.lane.b32.xlu0 %v4609, 64
      %v4745 = vpop.permute.xlu0 %4744
      %4746 = vrot.lane.b32.xlu0 %v4611, 64
      %v4747 = vpop.permute.xlu0 %4746
      %4748 = vrot.lane.b32.xlu0 %v4613, 64
      %v4749 = vpop.permute.xlu0 %4748
      %4750 = vrot.lane.b32.xlu0 %v4615, 64
      %v4751 = vpop.permute.xlu0 %4750
      %4752 = vrot.lane.b32.xlu0 %v4617, 64
      %v4753 = vpop.permute.xlu0 %4752
      %4754 = vrot.lane.b32.xlu0 %v4619, 64
      %v4755 = vpop.permute.xlu0 %4754
      %4756 = vrot.lane.b32.xlu0 %v4621, 64
      %v4757 = vpop.permute.xlu0 %4756
      %4758 = vrot.lane.b32.xlu0 %v4623, 64
      %v4759 = vpop.permute.xlu0 %4758
      %v4768 = vsel %vm482, %v4498, %v4649
      %v4769 = vsel %vm482, %v4500, %v4651
      %v4770 = vsel %vm482, %v4502, %v4653
      %v4771 = vsel %vm482, %v4504, %v4655
      %v4772 = vsel %vm482, %v4506, %v4657
      %v4773 = vsel %vm482, %v4508, %v4659
      %v4774 = vsel %vm482, %v4510, %v4661
      %v4775 = vsel %vm482, %v4512, %v4663
      %v4776 = vsel %vm482, %v4530, %v4681
      %v4777 = vsel %vm482, %v4532, %v4683
      %v4778 = vsel %vm482, %v4534, %v4685
      %v4779 = vsel %vm482, %v4536, %v4687
      %v4780 = vsel %vm482, %v4538, %v4689
      %v4781 = vsel %vm482, %v4540, %v4691
      %v4782 = vsel %vm482, %v4542, %v4693
      %v4783 = vsel %vm482, %v4544, %v4695
      %v4784 = vsel %vm482, %v4561, %v4713
      %v4785 = vsel %vm482, %v4563, %v4715
      %v4786 = vsel %vm482, %v4565, %v4717
      %v4787 = vsel %vm482, %v4567, %v4719
      %v4788 = vsel %vm482, %v4569, %v4721
      %v4789 = vsel %vm482, %v4571, %v4723
      %v4790 = vsel %vm482, %v4573, %v4725
      %v4791 = vsel %vm482, %v4575, %v4727
      %v4792 = vsel %vm482, %v4593, %v4745
      %v4793 = vsel %vm482, %v4595, %v4747
      %v4794 = vsel %vm482, %v4597, %v4749
      %v4795 = vsel %vm482, %v4599, %v4751
      %v4796 = vsel %vm482, %v4601, %v4753
      %v4797 = vsel %vm482, %v4603, %v4755
      %v4798 = vsel %vm482, %v4605, %v4757
      %v4799 = vsel %vm482, %v4607, %v4759
      %v4800 = vpack.c.bf16 %v4769, %v4768
      %v4801 = vpack.c.bf16 %v4777, %v4776
      %v4802 = vpack.c.bf16 %v4785, %v4784
      %v4803 = vpack.c.bf16 %v4793, %v4792
      %v4804 = vpack.c.bf16 %v4627, %v4625
      %v4805 = vpack.c.bf16 %v4771, %v4770
      %v4806 = vpack.c.bf16 %v4779, %v4778
      %v4807 = vpack.c.bf16 %v4787, %v4786
      %v4808 = vpack.c.bf16 %v4795, %v4794
      %v4809 = vpack.c.bf16 %v4631, %v4629
      %v4810 = vpack.c.bf16 %v4773, %v4772
      %v4811 = vpack.c.bf16 %v4781, %v4780
      %v4812 = vpack.c.bf16 %v4789, %v4788
      %v4813 = vpack.c.bf16 %v4797, %v4796
      %v4814 = vpack.c.bf16 %v4635, %v4633
      %v4815 = vpack.c.bf16 %v4775, %v4774
      %v4816 = vpack.c.bf16 %v4783, %v4782
      %v4817 = vpack.c.bf16 %v4791, %v4790
      %v4818 = vpack.c.bf16 %v4799, %v4798
      %v4819 = vpack.c.bf16 %v4639, %v4637
      %v4820 = vld [vmem:[%s3] sm:$0xf]
      %v4821 = vld [vmem:[%s3 + $0x4] sm:$0xf]
      %v4822 = vld [vmem:[%s3 + $0x8] sm:$0xf]
      %v4823 = vld [vmem:[%s3 + $0xc] sm:$0xf]
      %v4824 = vld [vmem:[%s3 + $0x10] sm:$0xf]
      %v4825 = vld [vmem:[%s3 + $0x14] sm:$0xf]
      %v4826 = vld [vmem:[%s3 + $0x18] sm:$0xf]
      %v4827 = vld [vmem:[%s3 + $0x1c] sm:$0xf]
      %v4828 = vld [vmem:[%s3 + $0x20] sm:$0xf]
      %v4829 = vld [vmem:[%s3 + $0x24] sm:$0xf]
      %v4830 = vld [vmem:[%s3 + $0x28] sm:$0xf]
      %v4831 = vld [vmem:[%s3 + $0x2c] sm:$0xf]
      %v4832 = vld [vmem:[%s3 + $0x30] sm:$0xf]
      %v4833 = vld [vmem:[%s3 + $0x34] sm:$0xf]
      %v4834 = vld [vmem:[%s3 + $0x38] sm:$0xf]
      %v4835 = vld [vmem:[%s3 + $0x3c] sm:$0xf]
      %v4836 = vld [vmem:[%s3 + $0x40] sm:$0xf]
      %v4837 = vld [vmem:[%s3 + $0x44] sm:$0xf]
      %v4838 = vld [vmem:[%s3 + $0x48] sm:$0xf]
      %v4839 = vld [vmem:[%s3 + $0x4c] sm:$0xf]
      %v4840 = vld [vmem:[%s3 + $0x50] sm:$0xf]
      %v4841 = vld [vmem:[%s3 + $0x54] sm:$0xf]
      %v4842 = vld [vmem:[%s3 + $0x58] sm:$0xf]
      %v4843 = vld [vmem:[%s3 + $0x5c] sm:$0xf]
      %v4844 = vld [vmem:[%s3 + $0x60] sm:$0xf]
      %v4845 = vld [vmem:[%s3 + $0x64] sm:$0xf]
      %v4846 = vld [vmem:[%s3 + $0x68] sm:$0xf]
      %v4847 = vld [vmem:[%s3 + $0x6c] sm:$0xf]
      %v4848 = vld [vmem:[%s3 + $0x70] sm:$0xf]
      %v4849 = vld [vmem:[%s3 + $0x74] sm:$0xf]
      %v4850 = vld [vmem:[%s3 + $0x78] sm:$0xf]
      %v4851 = vld [vmem:[%s3 + $0x7c] sm:$0xf]
      %v4852 = vld [vmem:[%s3 + $0x80] sm:$0xf]
      %v4853 = vld [vmem:[%s3 + $0x84] sm:$0xf]
      %v4854 = vld [vmem:[%s3 + $0x88] sm:$0xf]
      %v4855 = vld [vmem:[%s3 + $0x8c] sm:$0xf]
      %v4856 = vld [vmem:[%s3 + $0x90] sm:$0xf]
      %v4857 = vld [vmem:[%s3 + $0x94] sm:$0xf]
      %v4858 = vld [vmem:[%s3 + $0x98] sm:$0xf]
      %v4859 = vld [vmem:[%s3 + $0x9c] sm:$0xf]
      %v4860 = vld [vmem:[%s3 + $0xa0] sm:$0xf]
      %v4861 = vld [vmem:[%s3 + $0xa4] sm:$0xf]
      %v4862 = vld [vmem:[%s3 + $0xa8] sm:$0xf]
      %v4863 = vld [vmem:[%s3 + $0xac] sm:$0xf]
      %v4864 = vld [vmem:[%s3 + $0xb0] sm:$0xf]
      %v4865 = vld [vmem:[%s3 + $0xb4] sm:$0xf]
      %v4866 = vld [vmem:[%s3 + $0xb8] sm:$0xf]
      %v4867 = vld [vmem:[%s3 + $0xbc] sm:$0xf]
      %v4868 = vld [vmem:[%s3 + $0xc0] sm:$0xf]
      %v4869 = vld [vmem:[%s3 + $0xc4] sm:$0xf]
      %v4870 = vld [vmem:[%s3 + $0xc8] sm:$0xf]
      %v4871 = vld [vmem:[%s3 + $0xcc] sm:$0xf]
      %v4872 = vld [vmem:[%s3 + $0xd0] sm:$0xf]
      %v4873 = vld [vmem:[%s3 + $0xd4] sm:$0xf]
      %v4874 = vld [vmem:[%s3 + $0xd8] sm:$0xf]
      %v4875 = vld [vmem:[%s3 + $0xdc] sm:$0xf]
      %v4876 = vld [vmem:[%s3 + $0xe0] sm:$0xf]
      %v4877 = vld [vmem:[%s3 + $0xe4] sm:$0xf]
      %v4878 = vld [vmem:[%s3 + $0xe8] sm:$0xf]
      %v4879 = vld [vmem:[%s3 + $0xec] sm:$0xf]
      %v4880 = vld [vmem:[%s3 + $0xf0] sm:$0xf]
      %v4881 = vld [vmem:[%s3 + $0xf4] sm:$0xf]
      %v4882 = vld [vmem:[%s3 + $0xf8] sm:$0xf]
      %v4883 = vld [vmem:[%s3 + $0xfc] sm:$0xf]
      %v4884 = vld [vmem:[%s3 + $0x100] sm:$0xf]
      %v4885 = vld [vmem:[%s3 + $0x104] sm:$0xf]
      %v4886 = vld [vmem:[%s3 + $0x108] sm:$0xf]
      %v4887 = vld [vmem:[%s3 + $0x10c] sm:$0xf]
      %v4888 = vld [vmem:[%s3 + $0x110] sm:$0xf]
      %v4889 = vld [vmem:[%s3 + $0x114] sm:$0xf]
      %v4890 = vld [vmem:[%s3 + $0x118] sm:$0xf]
      %v4891 = vld [vmem:[%s3 + $0x11c] sm:$0xf]
      %v4892 = vld [vmem:[%s9] sm:$0x1]
      %v4894 = vlaneseq
      %v4895 = vshrl.u32 %v4894, 7
      %v4896 = vsub.s32 0, %v4895
      %v4897 = vrot.slane %v4892, %v4896
      %v4971 = vunpack.c.l.b16 %v4820
      %v4972 = vunpack.c.l.b16 %v4821
      %v4973 = vunpack.c.l.b16 %v4822
      %v4974 = vunpack.c.l.b16 %v4823
      %v4975 = vunpack.c.l.b16 %v4824
      %v4976 = vunpack.c.l.b16 %v4825
      %v4977 = vunpack.c.l.b16 %v4826
      %v4978 = vunpack.c.l.b16 %v4827
      %v4979 = vunpack.c.l.b16 %v4828
      %v4980 = vunpack.c.l.b16 %v4829
      %v4981 = vunpack.c.l.b16 %v4830
      %v4982 = vunpack.c.l.b16 %v4831
      %v4983 = vunpack.c.l.b16 %v4832
      %v4984 = vunpack.c.l.b16 %v4833
      %v4985 = vunpack.c.l.b16 %v4834
      %v4986 = vunpack.c.l.b16 %v4835
      %v4987 = vunpack.c.l.b16 %v4836
      %v4988 = vunpack.c.l.b16 %v4837
      %v4989 = vunpack.c.l.b16 %v4838
      %v4990 = vunpack.c.l.b16 %v4839
      %v4991 = vunpack.c.l.b16 %v4840
      %v4992 = vunpack.c.l.b16 %v4841
      %v4993 = vunpack.c.l.b16 %v4842
      %v4994 = vunpack.c.l.b16 %v4843
      %v4995 = vunpack.c.l.b16 %v4844
      %v4996 = vunpack.c.l.b16 %v4845
      %v4997 = vunpack.c.l.b16 %v4846
      %v4998 = vunpack.c.l.b16 %v4847
      %v4999 = vunpack.c.l.b16 %v4848
      %v5000 = vunpack.c.l.b16 %v4849
      %v5001 = vunpack.c.l.b16 %v4850
      %v5002 = vunpack.c.l.b16 %v4851
      %v5003 = vunpack.c.l.b16 %v4852
      %v5004 = vunpack.c.l.b16 %v4853
      %v5005 = vunpack.c.l.b16 %v4854
      %v5006 = vunpack.c.l.b16 %v4855
      %v5007 = vunpack.c.l.b16 %v4856
      %v5008 = vunpack.c.l.b16 %v4857
      %v5009 = vunpack.c.l.b16 %v4858
      %v5010 = vunpack.c.l.b16 %v4859
      %v5011 = vunpack.c.l.b16 %v4860
      %v5012 = vunpack.c.l.b16 %v4861
      %v5013 = vunpack.c.l.b16 %v4862
      %v5014 = vunpack.c.l.b16 %v4863
      %v5015 = vunpack.c.l.b16 %v4864
      %v5016 = vunpack.c.l.b16 %v4865
      %v5017 = vunpack.c.l.b16 %v4866
      %v5018 = vunpack.c.l.b16 %v4867
      %v5019 = vunpack.c.l.b16 %v4868
      %v5020 = vunpack.c.l.b16 %v4869
      %v5021 = vunpack.c.l.b16 %v4870
      %v5022 = vunpack.c.l.b16 %v4871
      %v5023 = vunpack.c.l.b16 %v4872
      %v5024 = vunpack.c.l.b16 %v4873
      %v5025 = vunpack.c.l.b16 %v4874
      %v5026 = vunpack.c.l.b16 %v4875
      %v5027 = vunpack.c.l.b16 %v4876
      %v5028 = vunpack.c.l.b16 %v4877
      %v5029 = vunpack.c.l.b16 %v4878
      %v5030 = vunpack.c.l.b16 %v4879
      %v5031 = vunpack.c.l.b16 %v4880
      %v5032 = vunpack.c.l.b16 %v4881
      %v5033 = vunpack.c.l.b16 %v4882
      %v5034 = vunpack.c.l.b16 %v4883
      %v5035 = vunpack.c.l.b16 %v4884
      %v5036 = vunpack.c.l.b16 %v4885
      %v5037 = vunpack.c.l.b16 %v4886
      %v5038 = vunpack.c.l.b16 %v4887
      %v5039 = vunpack.c.l.b16 %v4888
      %v5040 = vunpack.c.l.b16 %v4889
      %v5041 = vunpack.c.l.b16 %v4890
      %v5042 = vunpack.c.l.b16 %v4891
      %v5043 = vpack.c.b16 %v4972, %v4971
      %v5044 = vpack.c.b16 %v4974, %v4973
      %v5045 = vpack.c.b16 %v4976, %v4975
      %v5046 = vpack.c.b16 %v4978, %v4977
      %v5047 = vpack.c.b16 %v4980, %v4979
      %v5048 = vpack.c.b16 %v4982, %v4981
      %v5049 = vpack.c.b16 %v4984, %v4983
      %v5050 = vpack.c.b16 %v4986, %v4985
      %v5051 = vpack.c.b16 %v4988, %v4987
      %v5052 = vpack.c.b16 %v4990, %v4989
      %v5053 = vpack.c.b16 %v4992, %v4991
      %v5054 = vpack.c.b16 %v4994, %v4993
      %v5055 = vpack.c.b16 %v4996, %v4995
      %v5056 = vpack.c.b16 %v4998, %v4997
      %v5057 = vpack.c.b16 %v5000, %v4999
      %v5058 = vpack.c.b16 %v5002, %v5001
      %v5059 = vpack.c.b16 %v5004, %v5003
      %v5060 = vpack.c.b16 %v5006, %v5005
      %v5061 = vpack.c.b16 %v5008, %v5007
      %v5062 = vpack.c.b16 %v5010, %v5009
      %v5063 = vpack.c.b16 %v5012, %v5011
      %v5064 = vpack.c.b16 %v5014, %v5013
      %v5065 = vpack.c.b16 %v5016, %v5015
      %v5066 = vpack.c.b16 %v5018, %v5017
      %v5067 = vpack.c.b16 %v5020, %v5019
      %v5068 = vpack.c.b16 %v5022, %v5021
      %v5069 = vpack.c.b16 %v5024, %v5023
      %v5070 = vpack.c.b16 %v5026, %v5025
      %v5071 = vpack.c.b16 %v5028, %v5027
      %v5072 = vpack.c.b16 %v5030, %v5029
      %v5073 = vpack.c.b16 %v5032, %v5031
      %v5074 = vpack.c.b16 %v5034, %v5033
      %v5075 = vpack.c.b16 %v5036, %v5035
      %v5076 = vpack.c.b16 %v5038, %v5037
      %v5077 = vpack.c.b16 %v5040, %v5039
      %v5078 = vpack.c.b16 %v5042, %v5041
      %v5116 = vsel %vm482, %v4804, 0
      %v5119 = vsel %vm482, %v4809, 0
      %v5122 = vsel %vm482, %v4814, 0
      %v5125 = vsel %vm482, %v4819, 0
      %5127 = vmatprep.subr.bf16.mxu0 0
      %5128 = vmatpush1.bf16.msra.mxu0 %v5050
      %5129 = vmatprep.subr.bf16.mxu0 0
      %5130 = vmatpush1.bf16.msra.mxu0 %v5049
      %5131 = vmatprep.subr.bf16.mxu0 0
      %5132 = vmatpush1.bf16.msra.mxu0 %v5048
      %5133 = vmatprep.subr.bf16.mxu0 0
      %5134 = vmatpush1.bf16.msra.mxu0 %v5047
      %5135 = vmatprep.subr.bf16.mxu0 0
      %5136 = vmatpush1.bf16.msra.mxu0 %v5046
      %5137 = vmatprep.subr.bf16.mxu0 0
      %5138 = vmatpush1.bf16.msra.mxu0 %v5045
      %5139 = vmatprep.subr.bf16.mxu0 0
      %5140 = vmatpush1.bf16.msra.mxu0 %v5044
      %5141 = vmatprep.subr.bf16.mxu0 0
      %5142 = vmatpush1.bf16.msra.mxu0 %v5043
      %5143 = vmatprep.subr.bf16.mxu0 0
      %5144 = vmatpush2.bf16.msra.mxu0 %v5058
      %5145 = vmatprep.subr.bf16.mxu0 0
      %5146 = vmatpush2.bf16.msra.mxu0 %v5057
      %5147 = vmatprep.subr.bf16.mxu0 0
      %5148 = vmatpush2.bf16.msra.mxu0 %v5056
      %5149 = vmatprep.subr.bf16.mxu0 0
      %5150 = vmatpush2.bf16.msra.mxu0 %v5055
      %5151 = vmatprep.subr.bf16.mxu0 0
      %5152 = vmatpush2.bf16.msra.mxu0 %v5054
      %5153 = vmatprep.subr.bf16.mxu0 0
      %5154 = vmatpush2.bf16.msra.mxu0 %v5053
      %5155 = vmatprep.subr.bf16.mxu0 0
      %5156 = vmatpush2.bf16.msra.mxu0 %v5052
      %5157 = vmatprep.subr.bf16.mxu0 0
      %5158 = vmatpush2.bf16.msra.mxu0 %v5051
      %5159 = vmatprep.mubr.bf16.mxu0 %v4801
      %5160 = vmatmul.mubr.bf16.gmra.mxu0 %v4800
      %v5161 = vpop.f32.mrf.mxu0
      %v5162 = vadd.f32 %v4897, %v5161
      %v5163 = vpop.f32.mrf.mxu0
      %v5164 = vpop.f32.mrf.mxu0
      %v5165 = vadd.f32 %v4897, %v5164
      %v5166 = vpop.f32.mrf.mxu0
      %5167 = vmatprep.mubr.bf16.mxu0 %v4806
      %5168 = vmatmul.mubr.bf16.gmra.mxu0 %v4805
      %v5169 = vpop.f32.mrf.mxu0
      %v5170 = vadd.f32 %v4897, %v5169
      %v5171 = vpop.f32.mrf.mxu0
      %v5172 = vpop.f32.mrf.mxu0
      %v5173 = vadd.f32 %v4897, %v5172
      %v5174 = vpop.f32.mrf.mxu0
      %5175 = vmatprep.mubr.bf16.mxu0 %v4811
      %5176 = vmatmul.mubr.bf16.gmra.mxu0 %v4810
      %v5177 = vpop.f32.mrf.mxu0
      %v5178 = vadd.f32 %v4897, %v5177
      %v5179 = vpop.f32.mrf.mxu0
      %v5180 = vpop.f32.mrf.mxu0
      %v5181 = vadd.f32 %v4897, %v5180
      %v5182 = vpop.f32.mrf.mxu0
      %5183 = vmatprep.mubr.bf16.mxu0 %v4816
      %5184 = vmatmul.mubr.bf16.gmra.mxu0 %v4815
      %v5185 = vpop.f32.mrf.mxu0
      %v5186 = vadd.f32 %v4897, %v5185
      %v5187 = vpop.f32.mrf.mxu0
      %v5188 = vpop.f32.mrf.mxu0
      %v5189 = vadd.f32 %v4897, %v5188
      %v5190 = vpop.f32.mrf.mxu0
      %5191 = vdwg.mxu0
      %5192 = vmatprep.subr.bf16.mxu0 0
      %5193 = vmatpush1.bf16.msra.mxu0 %v5066
      %5194 = vmatprep.subr.bf16.mxu0 0
      %5195 = vmatpush1.bf16.msra.mxu0 %v5065
      %5196 = vmatprep.subr.bf16.mxu0 0
      %5197 = vmatpush1.bf16.msra.mxu0 %v5064
      %5198 = vmatprep.subr.bf16.mxu0 0
      %5199 = vmatpush1.bf16.msra.mxu0 %v5063
      %5200 = vmatprep.subr.bf16.mxu0 0
      %5201 = vmatpush1.bf16.msra.mxu0 %v5062
      %5202 = vmatprep.subr.bf16.mxu0 0
      %5203 = vmatpush1.bf16.msra.mxu0 %v5061
      %5204 = vmatprep.subr.bf16.mxu0 0
      %5205 = vmatpush1.bf16.msra.mxu0 %v5060
      %5206 = vmatprep.subr.bf16.mxu0 0
      %5207 = vmatpush1.bf16.msra.mxu0 %v5059
      %5208 = vmatprep.subr.bf16.mxu0 0
      %5209 = vmatpush2.bf16.msra.mxu0 %v5074
      %5210 = vmatprep.subr.bf16.mxu0 0
      %5211 = vmatpush2.bf16.msra.mxu0 %v5073
      %5212 = vmatprep.subr.bf16.mxu0 0
      %5213 = vmatpush2.bf16.msra.mxu0 %v5072
      %5214 = vmatprep.subr.bf16.mxu0 0
      %5215 = vmatpush2.bf16.msra.mxu0 %v5071
      %5216 = vmatprep.subr.bf16.mxu0 0
      %5217 = vmatpush2.bf16.msra.mxu0 %v5070
      %5218 = vmatprep.subr.bf16.mxu0 0
      %5219 = vmatpush2.bf16.msra.mxu0 %v5069
      %5220 = vmatprep.subr.bf16.mxu0 0
      %5221 = vmatpush2.bf16.msra.mxu0 %v5068
      %5222 = vmatprep.subr.bf16.mxu0 0
      %5223 = vmatpush2.bf16.msra.mxu0 %v5067
      %5224 = vmatprep.mubr.bf16.mxu0 %v4803
      %5225 = vmatmul.mubr.bf16.gmra.mxu0 %v4802
      %v5226 = vpop.f32.mrf.mxu0
      %v5227 = vadd.f32 %v5162, %v5226
      %v5228 = vpop.f32.mrf.mxu0
      %v5229 = vpop.f32.mrf.mxu0
      %v5230 = vadd.f32 %v5165, %v5229
      %v5231 = vpop.f32.mrf.mxu0
      %5232 = vmatprep.mubr.bf16.mxu0 %v4808
      %5233 = vmatmul.mubr.bf16.gmra.mxu0 %v4807
      %v5234 = vpop.f32.mrf.mxu0
      %v5235 = vadd.f32 %v5170, %v5234
      %v5236 = vpop.f32.mrf.mxu0
      %v5237 = vpop.f32.mrf.mxu0
      %v5238 = vadd.f32 %v5173, %v5237
      %v5239 = vpop.f32.mrf.mxu0
      %5240 = vmatprep.mubr.bf16.mxu0 %v4813
      %5241 = vmatmul.mubr.bf16.gmra.mxu0 %v4812
      %v5242 = vpop.f32.mrf.mxu0
      %v5243 = vadd.f32 %v5178, %v5242
      %v5244 = vpop.f32.mrf.mxu0
      %v5245 = vpop.f32.mrf.mxu0
      %v5246 = vadd.f32 %v5181, %v5245
      %v5247 = vpop.f32.mrf.mxu0
      %5248 = vmatprep.mubr.bf16.mxu0 %v4818
      %5249 = vmatmul.mubr.bf16.gmra.mxu0 %v4817
      %v5250 = vpop.f32.mrf.mxu0
      %v5251 = vadd.f32 %v5186, %v5250
      %v5252 = vpop.f32.mrf.mxu0
      %v5253 = vpop.f32.mrf.mxu0
      %v5254 = vadd.f32 %v5189, %v5253
      %v5255 = vpop.f32.mrf.mxu0
      %5256 = vdwg.mxu0
      %5257 = vmatprep.subr.bf16.mxu0 0
      %5258 = vmatpush1.bf16.msra.mxu0 0
      %5259 = vmatprep.subr.bf16.mxu0 0
      %5260 = vmatpush1.bf16.msra.mxu0 0
      %5261 = vmatprep.subr.bf16.mxu0 0
      %5262 = vmatpush1.bf16.msra.mxu0 0
      %5263 = vmatprep.subr.bf16.mxu0 0
      %5264 = vmatpush1.bf16.msra.mxu0 0
      %5265 = vmatprep.subr.bf16.mxu0 0
      %5266 = vmatpush1.bf16.msra.mxu0 %v5078
      %5267 = vmatprep.subr.bf16.mxu0 0
      %5268 = vmatpush1.bf16.msra.mxu0 %v5077
      %5269 = vmatprep.subr.bf16.mxu0 0
      %5270 = vmatpush1.bf16.msra.mxu0 %v5076
      %5271 = vmatprep.subr.bf16.mxu0 0
      %5272 = vmatpush1.bf16.msra.mxu0 %v5075
      %5273 = vmatprep.subr.bf16.mxu0 0
      %5274 = vmatpush2.bf16.msra.mxu0 0
      %5275 = vmatprep.subr.bf16.mxu0 0
      %5276 = vmatpush2.bf16.msra.mxu0 0
      %5277 = vmatprep.subr.bf16.mxu0 0
      %5278 = vmatpush2.bf16.msra.mxu0 0
      %5279 = vmatprep.subr.bf16.mxu0 0
      %5280 = vmatpush2.bf16.msra.mxu0 0
      %5281 = vmatprep.subr.bf16.mxu0 0
      %5282 = vmatpush2.bf16.msra.mxu0 0
      %5283 = vmatprep.subr.bf16.mxu0 0
      %5284 = vmatpush2.bf16.msra.mxu0 0
      %5285 = vmatprep.subr.bf16.mxu0 0
      %5286 = vmatpush2.bf16.msra.mxu0 0
      %5287 = vmatprep.subr.bf16.mxu0 0
      %5288 = vmatpush2.bf16.msra.mxu0 0
      %5289 = vmatprep.mubr.bf16.mxu0 0
      %5290 = vmatmul.mubr.bf16.gmra.mxu0 %v5116
      %v5291 = vpop.f32.mrf.mxu0
      %v5292 = vadd.f32 %v5227, %v5291
      %v5293 = vpop.f32.mrf.mxu0
      %v5294 = vpop.f32.mrf.mxu0
      %v5295 = vadd.f32 %v5230, %v5294
      %v5296 = vpop.f32.mrf.mxu0
      %5297 = vmatprep.mubr.bf16.mxu0 0
      %5298 = vmatmul.mubr.bf16.gmra.mxu0 %v5119
      %v5299 = vpop.f32.mrf.mxu0
      %v5300 = vadd.f32 %v5235, %v5299
      %v5301 = vpop.f32.mrf.mxu0
      %v5302 = vpop.f32.mrf.mxu0
      %v5303 = vadd.f32 %v5238, %v5302
      %v5304 = vpop.f32.mrf.mxu0
      %5305 = vmatprep.mubr.bf16.mxu0 0
      %5306 = vmatmul.mubr.bf16.gmra.mxu0 %v5122
      %v5307 = vpop.f32.mrf.mxu0
      %v5308 = vadd.f32 %v5243, %v5307
      %v5309 = vpop.f32.mrf.mxu0
      %v5310 = vpop.f32.mrf.mxu0
      %v5311 = vadd.f32 %v5246, %v5310
      %v5312 = vpop.f32.mrf.mxu0
      %5313 = vmatprep.mubr.bf16.mxu0 0
      %5314 = vmatmul.mubr.bf16.gmra.mxu0 %v5125
      %v5315 = vpop.f32.mrf.mxu0
      %v5316 = vadd.f32 %v5251, %v5315
      %v5317 = vpop.f32.mrf.mxu0
      %v5318 = vpop.f32.mrf.mxu0
      %v5319 = vadd.f32 %v5254, %v5318
      %v5320 = vpop.f32.mrf.mxu0
      %5321 = vdwg.mxu0
      %vm5322 = vcmp.gt.f32.partialorder %v5292, 0.0
      %vm5323 = vcmp.gt.f32.partialorder %v5295, 0.0
      %vm5324 = vcmp.gt.f32.partialorder %v5300, 0.0
      %vm5325 = vcmp.gt.f32.partialorder %v5303, 0.0
      %vm5326 = vcmp.gt.f32.partialorder %v5308, 0.0
      %vm5327 = vcmp.gt.f32.partialorder %v5311, 0.0
      %vm5328 = vcmp.gt.f32.partialorder %v5316, 0.0
      %vm5329 = vcmp.gt.f32.partialorder %v5319, 0.0
      %v5330 = vmul.f32 %v5292, 0.2
      %v5331 = vmul.f32 %v5295, 0.2
      %v5332 = vmul.f32 %v5300, 0.2
      %v5333 = vmul.f32 %v5303, 0.2
      %v5334 = vmul.f32 %v5308, 0.2
      %v5335 = vmul.f32 %v5311, 0.2
      %v5336 = vmul.f32 %v5316, 0.2
      %v5337 = vmul.f32 %v5319, 0.2
      %v5338 = vsel %vm5322, %v5292, %v5330
      %v5339 = vsel %vm5323, %v5295, %v5331
      %v5340 = vsel %vm5324, %v5300, %v5332
      %v5341 = vsel %vm5325, %v5303, %v5333
      %v5342 = vsel %vm5326, %v5308, %v5334
      %v5343 = vsel %vm5327, %v5311, %v5335
      %v5344 = vsel %vm5328, %v5316, %v5336
      %v5345 = vsel %vm5329, %v5319, %v5337
      %s5346 = scalar_lea.vmem [#allocation4], 16
      %5347 = vst.msk [vmem:[%s5346 + $0x1] sm:$0xff] %vm482, %v5338
      %5348 = vst.msk [vmem:[%s5346 + $0x11] sm:$0xff] %vm482, %v5339
      %5349 = vst.msk [vmem:[%s5346 + $0x21] sm:$0xff] %vm482, %v5340
      %5350 = vst.msk [vmem:[%s5346 + $0x31] sm:$0xff] %vm482, %v5341
      %5351 = vst.msk [vmem:[%s5346 + $0x41] sm:$0xff] %vm482, %v5342
      %5352 = vst.msk [vmem:[%s5346 + $0x51] sm:$0xff] %vm482, %v5343
      %5353 = vst.msk [vmem:[%s5346 + $0x61] sm:$0xff] %vm482, %v5344
      %5354 = vst.msk [vmem:[%s5346 + $0x71] sm:$0xff] %vm482, %v5345
      %v5355 = vld [vmem:[#allocation4] ss:$2 sm:$0xf]
      %s5356 = scalar_lea.vmem [#allocation4], 32
      %v5357 = vld [vmem:[%s5356] ss:$2 sm:$0xf]
      %s5358 = scalar_lea.vmem [#allocation4], 64
      %v5359 = vld [vmem:[%s5358] ss:$2 sm:$0xf]
      %s5360 = scalar_lea.vmem [#allocation4], 96
      %v5361 = vld [vmem:[%s5360] ss:$2 sm:$0xf]
      %s5362 = scalar_lea.vmem [#allocation4], 1
      %v5363 = vld [vmem:[%s5362] ss:$2 sm:$0xf]
      %s5364 = scalar_lea.vmem [#allocation4], 33
      %v5365 = vld [vmem:[%s5364] ss:$2 sm:$0xf]
      %s5366 = scalar_lea.vmem [#allocation4], 65
      %v5367 = vld [vmem:[%s5366] ss:$2 sm:$0xf]
      %s5368 = scalar_lea.vmem [#allocation4], 97
      %v5369 = vld [vmem:[%s5368] ss:$2 sm:$0xf]
      %s5370 = scalar_lea.vmem [#allocation4], 2
      %v5371 = vld [vmem:[%s5370] ss:$2 sm:$0xf]
      %s5372 = scalar_lea.vmem [#allocation4], 34
      %v5373 = vld [vmem:[%s5372] ss:$2 sm:$0xf]
      %s5374 = scalar_lea.vmem [#allocation4], 66
      %v5375 = vld [vmem:[%s5374] ss:$2 sm:$0xf]
      %s5376 = scalar_lea.vmem [#allocation4], 98
      %v5377 = vld [vmem:[%s5376] ss:$2 sm:$0xf]
      %v5378 = vld [vmem:[%s5346] ss:$2 sm:$0xf]
      %s5379 = scalar_lea.vmem %s5346, 32 [#allocation4]
      %v5380 = vld [vmem:[%s5379] ss:$2 sm:$0xf]
      %s5381 = scalar_lea.vmem %s5346, 64 [#allocation4]
      %v5382 = vld [vmem:[%s5381] ss:$2 sm:$0xf]
      %s5383 = scalar_lea.vmem %s5346, 96 [#allocation4]
      %v5384 = vld [vmem:[%s5383] ss:$2 sm:$0xf]
      %s5385 = scalar_lea.vmem %s5346, 1 [#allocation4]
      %v5386 = vld [vmem:[%s5385] ss:$2 sm:$0xf]
      %s5387 = scalar_lea.vmem %s5346, 33 [#allocation4]
      %v5388 = vld [vmem:[%s5387] ss:$2 sm:$0xf]
      %s5389 = scalar_lea.vmem %s5346, 65 [#allocation4]
      %v5390 = vld [vmem:[%s5389] ss:$2 sm:$0xf]
      %s5391 = scalar_lea.vmem %s5346, 97 [#allocation4]
      %v5392 = vld [vmem:[%s5391] ss:$2 sm:$0xf]
      %s5393 = scalar_lea.vmem %s5346, 2 [#allocation4]
      %v5394 = vld [vmem:[%s5393] ss:$2 sm:$0xf]
      %s5395 = scalar_lea.vmem %s5346, 34 [#allocation4]
      %v5396 = vld [vmem:[%s5395] ss:$2 sm:$0xf]
      %s5397 = scalar_lea.vmem %s5346, 66 [#allocation4]
      %v5398 = vld [vmem:[%s5397] ss:$2 sm:$0xf]
      %s5399 = scalar_lea.vmem %s5346, 98 [#allocation4]
      %v5400 = vld [vmem:[%s5399] ss:$2 sm:$0xf]
      %s5401 = scalar_lea.vmem [#allocation4], 32
      %v5402 = vld [vmem:[%s5401] ss:$2 sm:$0xf]
      %s5403 = scalar_lea.vmem %s5401, 32 [#allocation4]
      %v5404 = vld [vmem:[%s5403] ss:$2 sm:$0xf]
      %s5405 = scalar_lea.vmem %s5401, 64 [#allocation4]
      %v5406 = vld [vmem:[%s5405] ss:$2 sm:$0xf]
      %s5407 = scalar_lea.vmem %s5401, 96 [#allocation4]
      %v5408 = vld [vmem:[%s5407] ss:$2 sm:$0xf]
      %s5409 = scalar_lea.vmem %s5401, 1 [#allocation4]
      %v5410 = vld [vmem:[%s5409] ss:$2 sm:$0xf]
      %s5411 = scalar_lea.vmem %s5401, 33 [#allocation4]
      %v5412 = vld [vmem:[%s5411] ss:$2 sm:$0xf]
      %s5413 = scalar_lea.vmem %s5401, 65 [#allocation4]
      %v5414 = vld [vmem:[%s5413] ss:$2 sm:$0xf]
      %s5415 = scalar_lea.vmem %s5401, 97 [#allocation4]
      %v5416 = vld [vmem:[%s5415] ss:$2 sm:$0xf]
      %s5417 = scalar_lea.vmem %s5401, 2 [#allocation4]
      %v5418 = vld [vmem:[%s5417] ss:$2 sm:$0xf]
      %s5419 = scalar_lea.vmem %s5401, 34 [#allocation4]
      %v5420 = vld [vmem:[%s5419] ss:$2 sm:$0xf]
      %s5421 = scalar_lea.vmem %s5401, 66 [#allocation4]
      %v5422 = vld [vmem:[%s5421] ss:$2 sm:$0xf]
      %s5423 = scalar_lea.vmem %s5401, 98 [#allocation4]
      %v5424 = vld [vmem:[%s5423] ss:$2 sm:$0xf]
      %5429 = vrot.lane.b32.xlu0 %v5363, 64
      %v5430 = vpop.permute.xlu0 %5429
      %5431 = vrot.lane.b32.xlu0 %v5365, 64
      %v5432 = vpop.permute.xlu0 %5431
      %5433 = vrot.lane.b32.xlu0 %v5367, 64
      %v5434 = vpop.permute.xlu0 %5433
      %5435 = vrot.lane.b32.xlu0 %v5369, 64
      %v5436 = vpop.permute.xlu0 %5435
      %5445 = vrot.lane.b32.xlu0 %v5378, 64
      %v5446 = vpop.permute.xlu0 %5445
      %5447 = vrot.lane.b32.xlu0 %v5380, 64
      %v5448 = vpop.permute.xlu0 %5447
      %5449 = vrot.lane.b32.xlu0 %v5382, 64
      %v5450 = vpop.permute.xlu0 %5449
      %5451 = vrot.lane.b32.xlu0 %v5384, 64
      %v5452 = vpop.permute.xlu0 %5451
      %5461 = vrot.lane.b32.xlu0 %v5394, 64
      %v5462 = vpop.permute.xlu0 %5461
      %5463 = vrot.lane.b32.xlu0 %v5396, 64
      %v5464 = vpop.permute.xlu0 %5463
      %5465 = vrot.lane.b32.xlu0 %v5398, 64
      %v5466 = vpop.permute.xlu0 %5465
      %5467 = vrot.lane.b32.xlu0 %v5400, 64
      %v5468 = vpop.permute.xlu0 %5467
      %5477 = vrot.lane.b32.xlu0 %v5410, 64
      %v5478 = vpop.permute.xlu0 %5477
      %5479 = vrot.lane.b32.xlu0 %v5412, 64
      %v5480 = vpop.permute.xlu0 %5479
      %5481 = vrot.lane.b32.xlu0 %v5414, 64
      %v5482 = vpop.permute.xlu0 %5481
      %5483 = vrot.lane.b32.xlu0 %v5416, 64
      %v5484 = vpop.permute.xlu0 %5483
      %v5489 = vsel %vm482, %v5355, %v5430
      %v5490 = vsel %vm482, %v5357, %v5432
      %v5491 = vsel %vm482, %v5359, %v5434
      %v5492 = vsel %vm482, %v5361, %v5436
      %v5493 = vsel %vm482, %v5371, %v5446
      %v5494 = vsel %vm482, %v5373, %v5448
      %v5495 = vsel %vm482, %v5375, %v5450
      %v5496 = vsel %vm482, %v5377, %v5452
      %v5497 = vsel %vm482, %v5386, %v5462
      %v5498 = vsel %vm482, %v5388, %v5464
      %v5499 = vsel %vm482, %v5390, %v5466
      %v5500 = vsel %vm482, %v5392, %v5468
      %v5501 = vsel %vm482, %v5402, %v5478
      %v5502 = vsel %vm482, %v5404, %v5480
      %v5503 = vsel %vm482, %v5406, %v5482
      %v5504 = vsel %vm482, %v5408, %v5484
      %v5525 = vcombine.low %v5489, %v5493
      %v5526 = vcombine.low %v5497, %v5501
      %v5527 = vcombine.low %v5490, %v5494
      %v5528 = vcombine.low %v5498, %v5502
      %v5529 = vcombine.low %v5491, %v5495
      %v5530 = vcombine.low %v5499, %v5503
      %v5531 = vcombine.low %v5492, %v5496
      %v5532 = vcombine.low %v5500, %v5504
      %v5533 = vcombine.low %v5525, %v5527
      %v5534 = vcombine.high %v5525, %v5527
      %v5535 = vcombine.low %v5526, %v5528
      %v5536 = vcombine.high %v5526, %v5528
      %v5537 = vcombine.low %v5418, %v5420
      %v5538 = vcombine.low %v5529, %v5531
      %v5539 = vcombine.high %v5529, %v5531
      %v5540 = vcombine.low %v5530, %v5532
      %v5541 = vcombine.high %v5530, %v5532
      %v5542 = vcombine.low %v5422, %v5424
      %v5553 = vpack.c.bf16 %v5538, %v5533
      %v5554 = vpack.c.bf16 %v5539, %v5534
      %v5555 = vpack.c.bf16 %v5540, %v5535
      %v5556 = vpack.c.bf16 %v5541, %v5536
      %v5557 = vpack.c.bf16 %v5542, %v5537
      %v5558 = vld [vmem:[%s4] sm:$0xf]
      %v5559 = vld [vmem:[%s4 + $0x4] sm:$0xf]
      %v5560 = vld [vmem:[%s4 + $0x8] sm:$0xf]
      %v5561 = vld [vmem:[%s4 + $0xc] sm:$0xf]
      %v5562 = vld [vmem:[%s4 + $0x10] sm:$0xf]
      %v5563 = vld [vmem:[%s4 + $0x14] sm:$0xf]
      %v5564 = vld [vmem:[%s4 + $0x18] sm:$0xf]
      %v5565 = vld [vmem:[%s4 + $0x1c] sm:$0xf]
      %v5566 = vld [vmem:[%s4 + $0x20] sm:$0xf]
      %v5567 = vld [vmem:[%s4 + $0x24] sm:$0xf]
      %v5568 = vld [vmem:[%s4 + $0x28] sm:$0xf]
      %v5569 = vld [vmem:[%s4 + $0x2c] sm:$0xf]
      %v5570 = vld [vmem:[%s4 + $0x30] sm:$0xf]
      %v5571 = vld [vmem:[%s4 + $0x34] sm:$0xf]
      %v5572 = vld [vmem:[%s4 + $0x38] sm:$0xf]
      %v5573 = vld [vmem:[%s4 + $0x3c] sm:$0xf]
      %v5574 = vld [vmem:[%s4 + $0x40] sm:$0xf]
      %v5575 = vld [vmem:[%s4 + $0x44] sm:$0xf]
      %v5576 = vld [vmem:[%s4 + $0x48] sm:$0xf]
      %v5577 = vld [vmem:[%s4 + $0x4c] sm:$0xf]
      %v5578 = vld [vmem:[%s4 + $0x50] sm:$0xf]
      %v5579 = vld [vmem:[%s4 + $0x54] sm:$0xf]
      %v5580 = vld [vmem:[%s4 + $0x58] sm:$0xf]
      %v5581 = vld [vmem:[%s4 + $0x5c] sm:$0xf]
      %v5582 = vld [vmem:[%s4 + $0x60] sm:$0xf]
      %v5583 = vld [vmem:[%s4 + $0x64] sm:$0xf]
      %v5584 = vld [vmem:[%s4 + $0x68] sm:$0xf]
      %v5585 = vld [vmem:[%s4 + $0x6c] sm:$0xf]
      %v5586 = vld [vmem:[%s4 + $0x70] sm:$0xf]
      %v5587 = vld [vmem:[%s4 + $0x74] sm:$0xf]
      %v5588 = vld [vmem:[%s4 + $0x78] sm:$0xf]
      %v5589 = vld [vmem:[%s4 + $0x7c] sm:$0xf]
      %v5590 = vld [vmem:[%s4 + $0x80] sm:$0xf]
      %v5591 = vld [vmem:[%s4 + $0x84] sm:$0xf]
      %v5592 = vld [vmem:[%s4 + $0x88] sm:$0xf]
      %v5593 = vld [vmem:[%s4 + $0x8c] sm:$0xf]
      %v5594 = vld [vmem:[%s4 + $0x90] sm:$0xf]
      %v5595 = vld [vmem:[%s4 + $0x94] sm:$0xf]
      %v5596 = vld [vmem:[%s4 + $0x98] sm:$0xf]
      %v5597 = vld [vmem:[%s4 + $0x9c] sm:$0xf]
      %v5598 = vld [vmem:[%s4 + $0xa0] sm:$0xf]
      %v5599 = vld [vmem:[%s4 + $0xa4] sm:$0xf]
      %v5600 = vld [vmem:[%s4 + $0xa8] sm:$0xf]
      %v5601 = vld [vmem:[%s4 + $0xac] sm:$0xf]
      %v5602 = vld [vmem:[%s4 + $0xb0] sm:$0xf]
      %v5603 = vld [vmem:[%s4 + $0xb4] sm:$0xf]
      %v5604 = vld [vmem:[%s4 + $0xb8] sm:$0xf]
      %v5605 = vld [vmem:[%s4 + $0xbc] sm:$0xf]
      %v5606 = vld [vmem:[%s4 + $0xc0] sm:$0xf]
      %v5607 = vld [vmem:[%s4 + $0xc4] sm:$0xf]
      %v5608 = vld [vmem:[%s4 + $0xc8] sm:$0xf]
      %v5609 = vld [vmem:[%s4 + $0xcc] sm:$0xf]
      %v5610 = vld [vmem:[%s4 + $0xd0] sm:$0xf]
      %v5611 = vld [vmem:[%s4 + $0xd4] sm:$0xf]
      %v5612 = vld [vmem:[%s4 + $0xd8] sm:$0xf]
      %v5613 = vld [vmem:[%s4 + $0xdc] sm:$0xf]
      %v5614 = vld [vmem:[%s4 + $0xe0] sm:$0xf]
      %v5615 = vld [vmem:[%s4 + $0xe4] sm:$0xf]
      %v5616 = vld [vmem:[%s4 + $0xe8] sm:$0xf]
      %v5617 = vld [vmem:[%s4 + $0xec] sm:$0xf]
      %v5618 = vld [vmem:[%s4 + $0xf0] sm:$0xf]
      %v5619 = vld [vmem:[%s4 + $0xf4] sm:$0xf]
      %v5620 = vld [vmem:[%s4 + $0xf8] sm:$0xf]
      %v5621 = vld [vmem:[%s4 + $0xfc] sm:$0xf]
      %v5622 = vld [vmem:[%s4 + $0x100] sm:$0xf]
      %v5623 = vld [vmem:[%s4 + $0x104] sm:$0xf]
      %v5624 = vld [vmem:[%s4 + $0x108] sm:$0xf]
      %v5625 = vld [vmem:[%s4 + $0x10c] sm:$0xf]
      %v5626 = vld [vmem:[%s4 + $0x110] sm:$0xf]
      %v5627 = vld [vmem:[%s4 + $0x114] sm:$0xf]
      %v5628 = vld [vmem:[%s4 + $0x118] sm:$0xf]
      %v5629 = vld [vmem:[%s4 + $0x11c] sm:$0xf]
      %v5630 = vld [vmem:[%s10] sm:$0x1]
      %v5632 = vlaneseq
      %v5633 = vshrl.u32 %v5632, 7
      %v5634 = vsub.s32 0, %v5633
      %v5635 = vrot.slane %v5630, %v5634
      %v5709 = vunpack.c.l.b16 %v5558
      %v5710 = vunpack.c.l.b16 %v5559
      %v5711 = vunpack.c.l.b16 %v5560
      %v5712 = vunpack.c.l.b16 %v5561
      %v5713 = vunpack.c.l.b16 %v5562
      %v5714 = vunpack.c.l.b16 %v5563
      %v5715 = vunpack.c.l.b16 %v5564
      %v5716 = vunpack.c.l.b16 %v5565
      %v5717 = vunpack.c.l.b16 %v5566
      %v5718 = vunpack.c.l.b16 %v5567
      %v5719 = vunpack.c.l.b16 %v5568
      %v5720 = vunpack.c.l.b16 %v5569
      %v5721 = vunpack.c.l.b16 %v5570
      %v5722 = vunpack.c.l.b16 %v5571
      %v5723 = vunpack.c.l.b16 %v5572
      %v5724 = vunpack.c.l.b16 %v5573
      %v5725 = vunpack.c.l.b16 %v5574
      %v5726 = vunpack.c.l.b16 %v5575
      %v5727 = vunpack.c.l.b16 %v5576
      %v5728 = vunpack.c.l.b16 %v5577
      %v5729 = vunpack.c.l.b16 %v5578
      %v5730 = vunpack.c.l.b16 %v5579
      %v5731 = vunpack.c.l.b16 %v5580
      %v5732 = vunpack.c.l.b16 %v5581
      %v5733 = vunpack.c.l.b16 %v5582
      %v5734 = vunpack.c.l.b16 %v5583
      %v5735 = vunpack.c.l.b16 %v5584
      %v5736 = vunpack.c.l.b16 %v5585
      %v5737 = vunpack.c.l.b16 %v5586
      %v5738 = vunpack.c.l.b16 %v5587
      %v5739 = vunpack.c.l.b16 %v5588
      %v5740 = vunpack.c.l.b16 %v5589
      %v5741 = vunpack.c.l.b16 %v5590
      %v5742 = vunpack.c.l.b16 %v5591
      %v5743 = vunpack.c.l.b16 %v5592
      %v5744 = vunpack.c.l.b16 %v5593
      %v5745 = vunpack.c.l.b16 %v5594
      %v5746 = vunpack.c.l.b16 %v5595
      %v5747 = vunpack.c.l.b16 %v5596
      %v5748 = vunpack.c.l.b16 %v5597
      %v5749 = vunpack.c.l.b16 %v5598
      %v5750 = vunpack.c.l.b16 %v5599
      %v5751 = vunpack.c.l.b16 %v5600
      %v5752 = vunpack.c.l.b16 %v5601
      %v5753 = vunpack.c.l.b16 %v5602
      %v5754 = vunpack.c.l.b16 %v5603
      %v5755 = vunpack.c.l.b16 %v5604
      %v5756 = vunpack.c.l.b16 %v5605
      %v5757 = vunpack.c.l.b16 %v5606
      %v5758 = vunpack.c.l.b16 %v5607
      %v5759 = vunpack.c.l.b16 %v5608
      %v5760 = vunpack.c.l.b16 %v5609
      %v5761 = vunpack.c.l.b16 %v5610
      %v5762 = vunpack.c.l.b16 %v5611
      %v5763 = vunpack.c.l.b16 %v5612
      %v5764 = vunpack.c.l.b16 %v5613
      %v5765 = vunpack.c.l.b16 %v5614
      %v5766 = vunpack.c.l.b16 %v5615
      %v5767 = vunpack.c.l.b16 %v5616
      %v5768 = vunpack.c.l.b16 %v5617
      %v5769 = vunpack.c.l.b16 %v5618
      %v5770 = vunpack.c.l.b16 %v5619
      %v5771 = vunpack.c.l.b16 %v5620
      %v5772 = vunpack.c.l.b16 %v5621
      %v5773 = vunpack.c.l.b16 %v5622
      %v5774 = vunpack.c.l.b16 %v5623
      %v5775 = vunpack.c.l.b16 %v5624
      %v5776 = vunpack.c.l.b16 %v5625
      %v5777 = vunpack.c.l.b16 %v5626
      %v5778 = vunpack.c.l.b16 %v5627
      %v5779 = vunpack.c.l.b16 %v5628
      %v5780 = vunpack.c.l.b16 %v5629
      %v5781 = vpack.c.b16 %v5710, %v5709
      %v5782 = vpack.c.b16 %v5712, %v5711
      %v5783 = vpack.c.b16 %v5714, %v5713
      %v5784 = vpack.c.b16 %v5716, %v5715
      %v5785 = vpack.c.b16 %v5718, %v5717
      %v5786 = vpack.c.b16 %v5720, %v5719
      %v5787 = vpack.c.b16 %v5722, %v5721
      %v5788 = vpack.c.b16 %v5724, %v5723
      %v5789 = vpack.c.b16 %v5726, %v5725
      %v5790 = vpack.c.b16 %v5728, %v5727
      %v5791 = vpack.c.b16 %v5730, %v5729
      %v5792 = vpack.c.b16 %v5732, %v5731
      %v5793 = vpack.c.b16 %v5734, %v5733
      %v5794 = vpack.c.b16 %v5736, %v5735
      %v5795 = vpack.c.b16 %v5738, %v5737
      %v5796 = vpack.c.b16 %v5740, %v5739
      %v5797 = vpack.c.b16 %v5742, %v5741
      %v5798 = vpack.c.b16 %v5744, %v5743
      %v5799 = vpack.c.b16 %v5746, %v5745
      %v5800 = vpack.c.b16 %v5748, %v5747
      %v5801 = vpack.c.b16 %v5750, %v5749
      %v5802 = vpack.c.b16 %v5752, %v5751
      %v5803 = vpack.c.b16 %v5754, %v5753
      %v5804 = vpack.c.b16 %v5756, %v5755
      %v5805 = vpack.c.b16 %v5758, %v5757
      %v5806 = vpack.c.b16 %v5760, %v5759
      %v5807 = vpack.c.b16 %v5762, %v5761
      %v5808 = vpack.c.b16 %v5764, %v5763
      %v5809 = vpack.c.b16 %v5766, %v5765
      %v5810 = vpack.c.b16 %v5768, %v5767
      %v5811 = vpack.c.b16 %v5770, %v5769
      %v5812 = vpack.c.b16 %v5772, %v5771
      %v5813 = vpack.c.b16 %v5774, %v5773
      %v5814 = vpack.c.b16 %v5776, %v5775
      %v5815 = vpack.c.b16 %v5778, %v5777
      %v5816 = vpack.c.b16 %v5780, %v5779
      %v5854 = vsel %vm482, %v5557, 0
      %5856 = vmatprep.subr.bf16.mxu0 0
      %5857 = vmatpush1.bf16.msra.mxu0 %v5788
      %5858 = vmatprep.subr.bf16.mxu0 0
      %5859 = vmatpush1.bf16.msra.mxu0 %v5787
      %5860 = vmatprep.subr.bf16.mxu0 0
      %5861 = vmatpush1.bf16.msra.mxu0 %v5786
      %5862 = vmatprep.subr.bf16.mxu0 0
      %5863 = vmatpush1.bf16.msra.mxu0 %v5785
      %5864 = vmatprep.subr.bf16.mxu0 0
      %5865 = vmatpush1.bf16.msra.mxu0 %v5784
      %5866 = vmatprep.subr.bf16.mxu0 0
      %5867 = vmatpush1.bf16.msra.mxu0 %v5783
      %5868 = vmatprep.subr.bf16.mxu0 0
      %5869 = vmatpush1.bf16.msra.mxu0 %v5782
      %5870 = vmatprep.subr.bf16.mxu0 0
      %5871 = vmatpush1.bf16.msra.mxu0 %v5781
      %5872 = vmatprep.subr.bf16.mxu0 0
      %5873 = vmatpush2.bf16.msra.mxu0 %v5796
      %5874 = vmatprep.subr.bf16.mxu0 0
      %5875 = vmatpush2.bf16.msra.mxu0 %v5795
      %5876 = vmatprep.subr.bf16.mxu0 0
      %5877 = vmatpush2.bf16.msra.mxu0 %v5794
      %5878 = vmatprep.subr.bf16.mxu0 0
      %5879 = vmatpush2.bf16.msra.mxu0 %v5793
      %5880 = vmatprep.subr.bf16.mxu0 0
      %5881 = vmatpush2.bf16.msra.mxu0 %v5792
      %5882 = vmatprep.subr.bf16.mxu0 0
      %5883 = vmatpush2.bf16.msra.mxu0 %v5791
      %5884 = vmatprep.subr.bf16.mxu0 0
      %5885 = vmatpush2.bf16.msra.mxu0 %v5790
      %5886 = vmatprep.subr.bf16.mxu0 0
      %5887 = vmatpush2.bf16.msra.mxu0 %v5789
      %5888 = vmatprep.mubr.bf16.mxu0 %v5554
      %5889 = vmatmul.mubr.bf16.gmra.mxu0 %v5553
      %v5890 = vpop.f32.mrf.mxu0
      %v5891 = vadd.f32 %v5635, %v5890
      %v5892 = vpop.f32.mrf.mxu0
      %v5893 = vpop.f32.mrf.mxu0
      %v5894 = vadd.f32 %v5635, %v5893
      %v5895 = vpop.f32.mrf.mxu0
      %5896 = vdwg.mxu0
      %5897 = vmatprep.subr.bf16.mxu0 0
      %5898 = vmatpush1.bf16.msra.mxu0 %v5804
      %5899 = vmatprep.subr.bf16.mxu0 0
      %5900 = vmatpush1.bf16.msra.mxu0 %v5803
      %5901 = vmatprep.subr.bf16.mxu0 0
      %5902 = vmatpush1.bf16.msra.mxu0 %v5802
      %5903 = vmatprep.subr.bf16.mxu0 0
      %5904 = vmatpush1.bf16.msra.mxu0 %v5801
      %5905 = vmatprep.subr.bf16.mxu0 0
      %5906 = vmatpush1.bf16.msra.mxu0 %v5800
      %5907 = vmatprep.subr.bf16.mxu0 0
      %5908 = vmatpush1.bf16.msra.mxu0 %v5799
      %5909 = vmatprep.subr.bf16.mxu0 0
      %5910 = vmatpush1.bf16.msra.mxu0 %v5798
      %5911 = vmatprep.subr.bf16.mxu0 0
      %5912 = vmatpush1.bf16.msra.mxu0 %v5797
      %5913 = vmatprep.subr.bf16.mxu0 0
      %5914 = vmatpush2.bf16.msra.mxu0 %v5812
      %5915 = vmatprep.subr.bf16.mxu0 0
      %5916 = vmatpush2.bf16.msra.mxu0 %v5811
      %5917 = vmatprep.subr.bf16.mxu0 0
      %5918 = vmatpush2.bf16.msra.mxu0 %v5810
      %5919 = vmatprep.subr.bf16.mxu0 0
      %5920 = vmatpush2.bf16.msra.mxu0 %v5809
      %5921 = vmatprep.subr.bf16.mxu0 0
      %5922 = vmatpush2.bf16.msra.mxu0 %v5808
      %5923 = vmatprep.subr.bf16.mxu0 0
      %5924 = vmatpush2.bf16.msra.mxu0 %v5807
      %5925 = vmatprep.subr.bf16.mxu0 0
      %5926 = vmatpush2.bf16.msra.mxu0 %v5806
      %5927 = vmatprep.subr.bf16.mxu0 0
      %5928 = vmatpush2.bf16.msra.mxu0 %v5805
      %5929 = vmatprep.mubr.bf16.mxu0 %v5556
      %5930 = vmatmul.mubr.bf16.gmra.mxu0 %v5555
      %v5931 = vpop.f32.mrf.mxu0
      %v5932 = vadd.f32 %v5891, %v5931
      %v5933 = vpop.f32.mrf.mxu0
      %v5934 = vpop.f32.mrf.mxu0
      %v5935 = vadd.f32 %v5894, %v5934
      %v5936 = vpop.f32.mrf.mxu0
      %5937 = vdwg.mxu0
      %5938 = vmatprep.subr.bf16.mxu0 0
      %5939 = vmatpush1.bf16.msra.mxu0 0
      %5940 = vmatprep.subr.bf16.mxu0 0
      %5941 = vmatpush1.bf16.msra.mxu0 0
      %5942 = vmatprep.subr.bf16.mxu0 0
      %5943 = vmatpush1.bf16.msra.mxu0 0
      %5944 = vmatprep.subr.bf16.mxu0 0
      %5945 = vmatpush1.bf16.msra.mxu0 0
      %5946 = vmatprep.subr.bf16.mxu0 0
      %5947 = vmatpush1.bf16.msra.mxu0 %v5816
      %5948 = vmatprep.subr.bf16.mxu0 0
      %5949 = vmatpush1.bf16.msra.mxu0 %v5815
      %5950 = vmatprep.subr.bf16.mxu0 0
      %5951 = vmatpush1.bf16.msra.mxu0 %v5814
      %5952 = vmatprep.subr.bf16.mxu0 0
      %5953 = vmatpush1.bf16.msra.mxu0 %v5813
      %5954 = vmatprep.subr.bf16.mxu0 0
      %5955 = vmatpush2.bf16.msra.mxu0 0
      %5956 = vmatprep.subr.bf16.mxu0 0
      %5957 = vmatpush2.bf16.msra.mxu0 0
      %5958 = vmatprep.subr.bf16.mxu0 0
      %5959 = vmatpush2.bf16.msra.mxu0 0
      %5960 = vmatprep.subr.bf16.mxu0 0
      %5961 = vmatpush2.bf16.msra.mxu0 0
      %5962 = vmatprep.subr.bf16.mxu0 0
      %5963 = vmatpush2.bf16.msra.mxu0 0
      %5964 = vmatprep.subr.bf16.mxu0 0
      %5965 = vmatpush2.bf16.msra.mxu0 0
      %5966 = vmatprep.subr.bf16.mxu0 0
      %5967 = vmatpush2.bf16.msra.mxu0 0
      %5968 = vmatprep.subr.bf16.mxu0 0
      %5969 = vmatpush2.bf16.msra.mxu0 0
      %5970 = vmatprep.mubr.bf16.mxu0 0
      %5971 = vmatmul.mubr.bf16.gmra.mxu0 %v5854
      %v5972 = vpop.f32.mrf.mxu0
      %v5973 = vadd.f32 %v5932, %v5972
      %v5974 = vpop.f32.mrf.mxu0
      %v5975 = vpop.f32.mrf.mxu0
      %v5976 = vadd.f32 %v5935, %v5975
      %v5977 = vpop.f32.mrf.mxu0
      %5978 = vdwg.mxu0
      %vm5979 = vcmp.gt.f32.partialorder %v5973, 0.0
      %vm5980 = vcmp.gt.f32.partialorder %v5976, 0.0
      %v5981 = vmul.f32 %v5973, 0.2
      %v5982 = vmul.f32 %v5976, 0.2
      %v5983 = vsel %vm5979, %v5973, %v5981
      %v5984 = vsel %vm5980, %v5976, %v5982
      %v5987 = vcombine.high %v5983, %v5983
      %v5988 = vcombine.high %v5984, %v5984
      %s5991 = scalar_lea.vmem [#allocation5], 8
      %5992 = vst [vmem:[%s5991 + $0x1] sm:$0xf] %v5983
      %5993 = vst [vmem:[%s5991 + $0x9] sm:$0xf] %v5987
      %5994 = vst [vmem:[%s5991 + $0x11] sm:$0xf] %v5984
      %5995 = vst [vmem:[%s5991 + $0x19] sm:$0xf] %v5988
      %v5996 = vld [vmem:[#allocation5] ss:$2 sm:$0x3]
      %s5997 = scalar_lea.vmem [#allocation5], 16
      %v5998 = vld [vmem:[%s5997] ss:$2 sm:$0x3]
      %s5999 = scalar_lea.vmem [#allocation5], 1
      %v6000 = vld [vmem:[%s5999] ss:$2 sm:$0x3]
      %s6001 = scalar_lea.vmem [#allocation5], 17
      %v6002 = vld [vmem:[%s6001] ss:$2 sm:$0x3]
      %s6003 = scalar_lea.vmem [#allocation5], 2
      %v6004 = vld [vmem:[%s6003] ss:$2 sm:$0x3]
      %s6005 = scalar_lea.vmem [#allocation5], 18
      %v6006 = vld [vmem:[%s6005] ss:$2 sm:$0x3]
      %v6007 = vld [vmem:[%s5991] ss:$2 sm:$0x3]
      %s6008 = scalar_lea.vmem %s5991, 16 [#allocation5]
      %v6009 = vld [vmem:[%s6008] ss:$2 sm:$0x3]
      %s6010 = scalar_lea.vmem %s5991, 1 [#allocation5]
      %v6011 = vld [vmem:[%s6010] ss:$2 sm:$0x3]
      %s6012 = scalar_lea.vmem %s5991, 17 [#allocation5]
      %v6013 = vld [vmem:[%s6012] ss:$2 sm:$0x3]
      %s6014 = scalar_lea.vmem %s5991, 2 [#allocation5]
      %v6015 = vld [vmem:[%s6014] ss:$2 sm:$0x3]
      %s6016 = scalar_lea.vmem %s5991, 18 [#allocation5]
      %v6017 = vld [vmem:[%s6016] ss:$2 sm:$0x3]
      %s6018 = scalar_lea.vmem [#allocation5], 16
      %v6019 = vld [vmem:[%s6018] ss:$2 sm:$0x3]
      %s6020 = scalar_lea.vmem %s6018, 16 [#allocation5]
      %v6021 = vld [vmem:[%s6020] ss:$2 sm:$0x3]
      %s6022 = scalar_lea.vmem %s6018, 1 [#allocation5]
      %v6023 = vld [vmem:[%s6022] ss:$2 sm:$0x3]
      %s6024 = scalar_lea.vmem %s6018, 17 [#allocation5]
      %v6025 = vld [vmem:[%s6024] ss:$2 sm:$0x3]
      %s6026 = scalar_lea.vmem %s6018, 2 [#allocation5]
      %v6027 = vld [vmem:[%s6026] ss:$2 sm:$0x3]
      %s6028 = scalar_lea.vmem %s6018, 18 [#allocation5]
      %v6029 = vld [vmem:[%s6028] ss:$2 sm:$0x3]
      %v6048 = vcombine.low %v5996, %v6000
      %v6049 = vcombine.low %v6004, %v6007
      %v6051 = vunpack.c.l.s4 1983009808
      %v6052 = vunpack.c.0.s8 %v6051
      %v6053 = vlaneseq
      %v6054 = vshrl.u32 %v6053, 7
      %v6055 = vsub.s32 %v6052, %v6054
      %v6056 = vrot.slane %v6048, %v6055
      %v6058 = vunpack.c.l.s4 1983009808
      %v6059 = vunpack.c.0.s8 %v6058
      %v6060 = vlaneseq
      %v6061 = vshrl.u32 %v6060, 7
      %v6062 = vsub.s32 %v6059, %v6061
      %v6063 = vrot.slane %v6049, %v6062
      %v6064 = vcombine.low %v6056, %v6063
      %v6065 = vcombine.low %v6011, %v6015
      %v6066 = vcombine.low %v6019, %v6023
      %v6068 = vunpack.c.l.s4 1983009808
      %v6069 = vunpack.c.0.s8 %v6068
      %v6070 = vlaneseq
      %v6071 = vshrl.u32 %v6070, 7
      %v6072 = vsub.s32 %v6069, %v6071
      %v6073 = vrot.slane %v6065, %v6072
      %v6075 = vunpack.c.l.s4 1983009808
      %v6076 = vunpack.c.0.s8 %v6075
      %v6077 = vlaneseq
      %v6078 = vshrl.u32 %v6077, 7
      %v6079 = vsub.s32 %v6076, %v6078
      %v6080 = vrot.slane %v6066, %v6079
      %v6081 = vcombine.low %v6073, %v6080
      %v6083 = vunpack.c.l.s4 1983009808
      %v6084 = vunpack.c.0.s8 %v6083
      %v6085 = vlaneseq
      %v6086 = vshrl.u32 %v6085, 7
      %v6087 = vsub.s32 %v6084, %v6086
      %v6088 = vrot.slane %v6027, %v6087
      %v6089 = vcombine.low %v5998, %v6002
      %v6090 = vcombine.low %v6006, %v6009
      %v6092 = vunpack.c.l.s4 1983009808
      %v6093 = vunpack.c.0.s8 %v6092
      %v6094 = vlaneseq
      %v6095 = vshrl.u32 %v6094, 7
      %v6096 = vsub.s32 %v6093, %v6095
      %v6097 = vrot.slane %v6089, %v6096
      %v6099 = vunpack.c.l.s4 1983009808
      %v6100 = vunpack.c.0.s8 %v6099
      %v6101 = vlaneseq
      %v6102 = vshrl.u32 %v6101, 7
      %v6103 = vsub.s32 %v6100, %v6102
      %v6104 = vrot.slane %v6090, %v6103
      %v6105 = vcombine.low %v6097, %v6104
      %v6106 = vcombine.low %v6013, %v6017
      %v6107 = vcombine.low %v6021, %v6025
      %v6109 = vunpack.c.l.s4 1983009808
      %v6110 = vunpack.c.0.s8 %v6109
      %v6111 = vlaneseq
      %v6112 = vshrl.u32 %v6111, 7
      %v6113 = vsub.s32 %v6110, %v6112
      %v6114 = vrot.slane %v6106, %v6113
      %v6116 = vunpack.c.l.s4 1983009808
      %v6117 = vunpack.c.0.s8 %v6116
      %v6118 = vlaneseq
      %v6119 = vshrl.u32 %v6118, 7
      %v6120 = vsub.s32 %v6117, %v6119
      %v6121 = vrot.slane %v6107, %v6120
      %v6122 = vcombine.low %v6114, %v6121
      %v6124 = vunpack.c.l.s4 1983009808
      %v6125 = vunpack.c.0.s8 %v6124
      %v6126 = vlaneseq
      %v6127 = vshrl.u32 %v6126, 7
      %v6128 = vsub.s32 %v6125, %v6127
      %v6129 = vrot.slane %v6029, %v6128
      %v6130 = vcombine.low %v6064, %v6105
      %v6131 = vcombine.high %v6064, %v6105
      %v6133 = vunpack.c.l.s4 1983009808
      %v6134 = vunpack.c.0.s8 %v6133
      %v6135 = vlaneseq
      %v6136 = vshrl.u32 %v6135, 7
      %v6137 = vsub.s32 %v6134, %v6136
      %v6138 = vrot.slane %v6130, %v6137
      %v6140 = vunpack.c.l.s4 1983009808
      %v6141 = vunpack.c.0.s8 %v6140
      %v6142 = vlaneseq
      %v6143 = vshrl.u32 %v6142, 7
      %v6144 = vsub.s32 %v6141, %v6143
      %v6145 = vrot.slane %v6131, %v6144
      %v6146 = vcombine.high %v6138, %v6138
      %v6147 = vcombine.high %v6145, %v6145
      %v6148 = vcombine.low %v6081, %v6122
      %v6149 = vcombine.high %v6081, %v6122
      %v6151 = vunpack.c.l.s4 1983009808
      %v6152 = vunpack.c.0.s8 %v6151
      %v6153 = vlaneseq
      %v6154 = vshrl.u32 %v6153, 7
      %v6155 = vsub.s32 %v6152, %v6154
      %v6156 = vrot.slane %v6148, %v6155
      %v6158 = vunpack.c.l.s4 1983009808
      %v6159 = vunpack.c.0.s8 %v6158
      %v6160 = vlaneseq
      %v6161 = vshrl.u32 %v6160, 7
      %v6162 = vsub.s32 %v6159, %v6161
      %v6163 = vrot.slane %v6149, %v6162
      %v6164 = vcombine.high %v6156, %v6156
      %v6165 = vcombine.high %v6163, %v6163
      %v6166 = vcombine.low %v6088, %v6129
      %v6168 = vunpack.c.l.s4 1983009808
      %v6169 = vunpack.c.0.s8 %v6168
      %v6170 = vlaneseq
      %v6171 = vshrl.u32 %v6170, 7
      %v6172 = vsub.s32 %v6169, %v6171
      %v6173 = vrot.slane %v6166, %v6172
      %v6183 = vpack.c.bf16 %v6138, %v6138
      %v6184 = vpack.c.bf16 %v6146, %v6146
      %v6185 = vpack.c.bf16 %v6145, %v6145
      %v6186 = vpack.c.bf16 %v6147, %v6147
      %v6187 = vpack.c.bf16 %v6156, %v6156
      %v6188 = vpack.c.bf16 %v6164, %v6164
      %v6189 = vpack.c.bf16 %v6163, %v6163
      %v6190 = vpack.c.bf16 %v6165, %v6165
      %v6191 = vpack.c.bf16 %v6173, %v6173
      %v6192 = vld [vmem:[%s5] sm:$0xff]
      %v6193 = vld [vmem:[%s5 + $0x8] sm:$0xff]
      %v6194 = vld [vmem:[%s5 + $0x10] sm:$0xff]
      %v6195 = vld [vmem:[%s5 + $0x18] sm:$0xff]
      %v6196 = vld [vmem:[%s5 + $0x20] sm:$0xff]
      %v6197 = vld [vmem:[%s5 + $0x28] sm:$0xff]
      %v6198 = vld [vmem:[%s5 + $0x30] sm:$0xff]
      %v6199 = vld [vmem:[%s5 + $0x38] sm:$0xff]
      %v6200 = vld [vmem:[%s5 + $0x40] sm:$0xff]
      %v6201 = vld [vmem:[%s5 + $0x48] sm:$0xff]
      %v6202 = vld [vmem:[%s5 + $0x50] sm:$0xff]
      %v6203 = vld [vmem:[%s5 + $0x58] sm:$0xff]
      %v6204 = vld [vmem:[%s5 + $0x60] sm:$0xff]
      %v6205 = vld [vmem:[%s5 + $0x68] sm:$0xff]
      %v6206 = vld [vmem:[%s5 + $0x70] sm:$0xff]
      %v6207 = vld [vmem:[%s5 + $0x78] sm:$0xff]
      %v6208 = vld [vmem:[%s5 + $0x80] sm:$0xff]
      %v6209 = vld [vmem:[%s5 + $0x88] sm:$0xff]
      %v6210 = vld [vmem:[%s5 + $0x90] sm:$0xff]
      %v6211 = vld [vmem:[%s5 + $0x98] sm:$0xff]
      %v6212 = vld [vmem:[%s5 + $0xa0] sm:$0xff]
      %v6213 = vld [vmem:[%s5 + $0xa8] sm:$0xff]
      %v6214 = vld [vmem:[%s5 + $0xb0] sm:$0xff]
      %v6215 = vld [vmem:[%s5 + $0xb8] sm:$0xff]
      %v6216 = vld [vmem:[%s5 + $0xc0] sm:$0xff]
      %v6217 = vld [vmem:[%s5 + $0xc8] sm:$0xff]
      %v6218 = vld [vmem:[%s5 + $0xd0] sm:$0xff]
      %v6219 = vld [vmem:[%s5 + $0xd8] sm:$0xff]
      %v6220 = vld [vmem:[%s5 + $0xe0] sm:$0xff]
      %v6221 = vld [vmem:[%s5 + $0xe8] sm:$0xff]
      %v6222 = vld [vmem:[%s5 + $0xf0] sm:$0xff]
      %v6223 = vld [vmem:[%s5 + $0xf8] sm:$0xff]
      %v6224 = vld [vmem:[%s5 + $0x100] sm:$0xff]
      %v6225 = vld [vmem:[%s5 + $0x108] sm:$0xff]
      %v6226 = vld [vmem:[%s5 + $0x110] sm:$0xff]
      %v6227 = vld [vmem:[%s5 + $0x118] sm:$0xff]
      %v6228 = vld [vmem:[%s5 + $0x120] sm:$0xff]
      %v6229 = vld [vmem:[%s5 + $0x128] sm:$0xff]
      %v6230 = vld [vmem:[%s5 + $0x130] sm:$0xff]
      %v6231 = vld [vmem:[%s5 + $0x138] sm:$0xff]
      %v6232 = vld [vmem:[%s5 + $0x140] sm:$0xff]
      %v6233 = vld [vmem:[%s5 + $0x148] sm:$0xff]
      %v6234 = vld [vmem:[%s5 + $0x150] sm:$0xff]
      %v6235 = vld [vmem:[%s5 + $0x158] sm:$0xff]
      %v6236 = vld [vmem:[%s5 + $0x160] sm:$0xff]
      %v6237 = vld [vmem:[%s5 + $0x168] sm:$0xff]
      %v6238 = vld [vmem:[%s5 + $0x170] sm:$0xff]
      %v6239 = vld [vmem:[%s5 + $0x178] sm:$0xff]
      %v6240 = vld [vmem:[%s5 + $0x180] sm:$0xff]
      %v6241 = vld [vmem:[%s5 + $0x188] sm:$0xff]
      %v6242 = vld [vmem:[%s5 + $0x190] sm:$0xff]
      %v6243 = vld [vmem:[%s5 + $0x198] sm:$0xff]
      %v6244 = vld [vmem:[%s5 + $0x1a0] sm:$0xff]
      %v6245 = vld [vmem:[%s5 + $0x1a8] sm:$0xff]
      %v6246 = vld [vmem:[%s5 + $0x1b0] sm:$0xff]
      %v6247 = vld [vmem:[%s5 + $0x1b8] sm:$0xff]
      %v6248 = vld [vmem:[%s5 + $0x1c0] sm:$0xff]
      %v6249 = vld [vmem:[%s5 + $0x1c8] sm:$0xff]
      %v6250 = vld [vmem:[%s5 + $0x1d0] sm:$0xff]
      %v6251 = vld [vmem:[%s5 + $0x1d8] sm:$0xff]
      %v6252 = vld [vmem:[%s5 + $0x1e0] sm:$0xff]
      %v6253 = vld [vmem:[%s5 + $0x1e8] sm:$0xff]
      %v6254 = vld [vmem:[%s5 + $0x1f0] sm:$0xff]
      %v6255 = vld [vmem:[%s5 + $0x1f8] sm:$0xff]
      %v6256 = vld [vmem:[%s5 + $0x200] sm:$0xff]
      %v6257 = vld [vmem:[%s5 + $0x208] sm:$0xff]
      %v6258 = vld [vmem:[%s5 + $0x210] sm:$0xff]
      %v6259 = vld [vmem:[%s5 + $0x218] sm:$0xff]
      %v6260 = vld [vmem:[%s5 + $0x220] sm:$0xff]
      %v6261 = vld [vmem:[%s5 + $0x228] sm:$0xff]
      %v6262 = vld [vmem:[%s5 + $0x230] sm:$0xff]
      %v6263 = vld [vmem:[%s5 + $0x238] sm:$0xff]
      %v6264 = vld [vmem:[%s5 + $0x240] sm:$0xff]
      %v6265 = vld [vmem:[%s5 + $0x248] sm:$0xff]
      %v6266 = vld [vmem:[%s5 + $0x250] sm:$0xff]
      %v6267 = vld [vmem:[%s5 + $0x258] sm:$0xff]
      %v6268 = vld [vmem:[%s5 + $0x260] sm:$0xff]
      %v6269 = vld [vmem:[%s5 + $0x268] sm:$0xff]
      %v6270 = vld [vmem:[%s5 + $0x270] sm:$0xff]
      %v6271 = vld [vmem:[%s5 + $0x278] sm:$0xff]
      %v6272 = vld [vmem:[%s5 + $0x280] sm:$0xff]
      %v6273 = vld [vmem:[%s5 + $0x288] sm:$0xff]
      %v6274 = vld [vmem:[%s5 + $0x290] sm:$0xff]
      %v6275 = vld [vmem:[%s5 + $0x298] sm:$0xff]
      %v6276 = vld [vmem:[%s5 + $0x2a0] sm:$0xff]
      %v6277 = vld [vmem:[%s5 + $0x2a8] sm:$0xff]
      %v6278 = vld [vmem:[%s5 + $0x2b0] sm:$0xff]
      %v6279 = vld [vmem:[%s5 + $0x2b8] sm:$0xff]
      %v6280 = vld [vmem:[%s5 + $0x2c0] sm:$0xff]
      %v6281 = vld [vmem:[%s5 + $0x2c8] sm:$0xff]
      %v6282 = vld [vmem:[%s5 + $0x2d0] sm:$0xff]
      %v6283 = vld [vmem:[%s5 + $0x2d8] sm:$0xff]
      %v6284 = vld [vmem:[%s5 + $0x2e0] sm:$0xff]
      %v6285 = vld [vmem:[%s5 + $0x2e8] sm:$0xff]
      %v6286 = vld [vmem:[%s5 + $0x2f0] sm:$0xff]
      %v6287 = vld [vmem:[%s5 + $0x2f8] sm:$0xff]
      %v6288 = vld [vmem:[%s5 + $0x300] sm:$0xff]
      %v6289 = vld [vmem:[%s5 + $0x308] sm:$0xff]
      %v6290 = vld [vmem:[%s5 + $0x310] sm:$0xff]
      %v6291 = vld [vmem:[%s5 + $0x318] sm:$0xff]
      %v6292 = vld [vmem:[%s5 + $0x320] sm:$0xff]
      %v6293 = vld [vmem:[%s5 + $0x328] sm:$0xff]
      %v6294 = vld [vmem:[%s5 + $0x330] sm:$0xff]
      %v6295 = vld [vmem:[%s5 + $0x338] sm:$0xff]
      %v6296 = vld [vmem:[%s5 + $0x340] sm:$0xff]
      %v6297 = vld [vmem:[%s5 + $0x348] sm:$0xff]
      %v6298 = vld [vmem:[%s5 + $0x350] sm:$0xff]
      %v6299 = vld [vmem:[%s5 + $0x358] sm:$0xff]
      %v6300 = vld [vmem:[%s5 + $0x360] sm:$0xff]
      %v6301 = vld [vmem:[%s5 + $0x368] sm:$0xff]
      %v6302 = vld [vmem:[%s5 + $0x370] sm:$0xff]
      %v6303 = vld [vmem:[%s5 + $0x378] sm:$0xff]
      %v6304 = vld [vmem:[%s5 + $0x380] sm:$0xff]
      %v6305 = vld [vmem:[%s5 + $0x388] sm:$0xff]
      %v6306 = vld [vmem:[%s5 + $0x390] sm:$0xff]
      %v6307 = vld [vmem:[%s5 + $0x398] sm:$0xff]
      %v6308 = vld [vmem:[%s5 + $0x3a0] sm:$0xff]
      %v6309 = vld [vmem:[%s5 + $0x3a8] sm:$0xff]
      %v6310 = vld [vmem:[%s5 + $0x3b0] sm:$0xff]
      %v6311 = vld [vmem:[%s5 + $0x3b8] sm:$0xff]
      %v6312 = vld [vmem:[%s5 + $0x3c0] sm:$0xff]
      %v6313 = vld [vmem:[%s5 + $0x3c8] sm:$0xff]
      %v6314 = vld [vmem:[%s5 + $0x3d0] sm:$0xff]
      %v6315 = vld [vmem:[%s5 + $0x3d8] sm:$0xff]
      %v6316 = vld [vmem:[%s5 + $0x3e0] sm:$0xff]
      %v6317 = vld [vmem:[%s5 + $0x3e8] sm:$0xff]
      %v6318 = vld [vmem:[%s5 + $0x3f0] sm:$0xff]
      %v6319 = vld [vmem:[%s5 + $0x3f8] sm:$0xff]
      %v6320 = vld [vmem:[%s5 + $0x400] sm:$0xff]
      %v6321 = vld [vmem:[%s5 + $0x408] sm:$0xff]
      %v6322 = vld [vmem:[%s5 + $0x410] sm:$0xff]
      %v6323 = vld [vmem:[%s5 + $0x418] sm:$0xff]
      %v6324 = vld [vmem:[%s5 + $0x420] sm:$0xff]
      %v6325 = vld [vmem:[%s5 + $0x428] sm:$0xff]
      %v6326 = vld [vmem:[%s5 + $0x430] sm:$0xff]
      %v6327 = vld [vmem:[%s5 + $0x438] sm:$0xff]
      %v6328 = vld [vmem:[%s5 + $0x440] sm:$0xff]
      %v6329 = vld [vmem:[%s5 + $0x448] sm:$0xff]
      %v6330 = vld [vmem:[%s5 + $0x450] sm:$0xff]
      %v6331 = vld [vmem:[%s5 + $0x458] sm:$0xff]
      %v6332 = vld [vmem:[%s5 + $0x460] sm:$0xff]
      %v6333 = vld [vmem:[%s5 + $0x468] sm:$0xff]
      %v6334 = vld [vmem:[%s5 + $0x470] sm:$0xff]
      %v6335 = vld [vmem:[%s5 + $0x478] sm:$0xff]
      %v6336 = vld [vmem:[%s11] sm:$0x3]
      %v6338 = vlaneseq
      %v6339 = vshrl.u32 %v6338, 7
      %v6340 = vsub.s32 0, %v6339
      %v6341 = vrot.slane %v6336, %v6340
      %v6342 = vlaneseq
      %v6343 = vshrl.u32 %v6342, 7
      %v6344 = vsub.s32 1, %v6343
      %v6345 = vrot.slane %v6336, %v6344
      %v6492 = vunpack.c.l.b16 %v6192
      %v6493 = vunpack.c.h.b16 %v6192
      %v6494 = vunpack.c.l.b16 %v6193
      %v6495 = vunpack.c.h.b16 %v6193
      %v6496 = vunpack.c.l.b16 %v6194
      %v6497 = vunpack.c.h.b16 %v6194
      %v6498 = vunpack.c.l.b16 %v6195
      %v6499 = vunpack.c.h.b16 %v6195
      %v6500 = vunpack.c.l.b16 %v6196
      %v6501 = vunpack.c.h.b16 %v6196
      %v6502 = vunpack.c.l.b16 %v6197
      %v6503 = vunpack.c.h.b16 %v6197
      %v6504 = vunpack.c.l.b16 %v6198
      %v6505 = vunpack.c.h.b16 %v6198
      %v6506 = vunpack.c.l.b16 %v6199
      %v6507 = vunpack.c.h.b16 %v6199
      %v6508 = vunpack.c.l.b16 %v6200
      %v6509 = vunpack.c.h.b16 %v6200
      %v6510 = vunpack.c.l.b16 %v6201
      %v6511 = vunpack.c.h.b16 %v6201
      %v6512 = vunpack.c.l.b16 %v6202
      %v6513 = vunpack.c.h.b16 %v6202
      %v6514 = vunpack.c.l.b16 %v6203
      %v6515 = vunpack.c.h.b16 %v6203
      %v6516 = vunpack.c.l.b16 %v6204
      %v6517 = vunpack.c.h.b16 %v6204
      %v6518 = vunpack.c.l.b16 %v6205
      %v6519 = vunpack.c.h.b16 %v6205
      %v6520 = vunpack.c.l.b16 %v6206
      %v6521 = vunpack.c.h.b16 %v6206
      %v6522 = vunpack.c.l.b16 %v6207
      %v6523 = vunpack.c.h.b16 %v6207
      %v6524 = vunpack.c.l.b16 %v6208
      %v6525 = vunpack.c.h.b16 %v6208
      %v6526 = vunpack.c.l.b16 %v6209
      %v6527 = vunpack.c.h.b16 %v6209
      %v6528 = vunpack.c.l.b16 %v6210
      %v6529 = vunpack.c.h.b16 %v6210
      %v6530 = vunpack.c.l.b16 %v6211
      %v6531 = vunpack.c.h.b16 %v6211
      %v6532 = vunpack.c.l.b16 %v6212
      %v6533 = vunpack.c.h.b16 %v6212
      %v6534 = vunpack.c.l.b16 %v6213
      %v6535 = vunpack.c.h.b16 %v6213
      %v6536 = vunpack.c.l.b16 %v6214
      %v6537 = vunpack.c.h.b16 %v6214
      %v6538 = vunpack.c.l.b16 %v6215
      %v6539 = vunpack.c.h.b16 %v6215
      %v6540 = vunpack.c.l.b16 %v6216
      %v6541 = vunpack.c.h.b16 %v6216
      %v6542 = vunpack.c.l.b16 %v6217
      %v6543 = vunpack.c.h.b16 %v6217
      %v6544 = vunpack.c.l.b16 %v6218
      %v6545 = vunpack.c.h.b16 %v6218
      %v6546 = vunpack.c.l.b16 %v6219
      %v6547 = vunpack.c.h.b16 %v6219
      %v6548 = vunpack.c.l.b16 %v6220
      %v6549 = vunpack.c.h.b16 %v6220
      %v6550 = vunpack.c.l.b16 %v6221
      %v6551 = vunpack.c.h.b16 %v6221
      %v6552 = vunpack.c.l.b16 %v6222
      %v6553 = vunpack.c.h.b16 %v6222
      %v6554 = vunpack.c.l.b16 %v6223
      %v6555 = vunpack.c.h.b16 %v6223
      %v6556 = vunpack.c.l.b16 %v6224
      %v6557 = vunpack.c.h.b16 %v6224
      %v6558 = vunpack.c.l.b16 %v6225
      %v6559 = vunpack.c.h.b16 %v6225
      %v6560 = vunpack.c.l.b16 %v6226
      %v6561 = vunpack.c.h.b16 %v6226
      %v6562 = vunpack.c.l.b16 %v6227
      %v6563 = vunpack.c.h.b16 %v6227
      %v6564 = vunpack.c.l.b16 %v6228
      %v6565 = vunpack.c.h.b16 %v6228
      %v6566 = vunpack.c.l.b16 %v6229
      %v6567 = vunpack.c.h.b16 %v6229
      %v6568 = vunpack.c.l.b16 %v6230
      %v6569 = vunpack.c.h.b16 %v6230
      %v6570 = vunpack.c.l.b16 %v6231
      %v6571 = vunpack.c.h.b16 %v6231
      %v6572 = vunpack.c.l.b16 %v6232
      %v6573 = vunpack.c.h.b16 %v6232
      %v6574 = vunpack.c.l.b16 %v6233
      %v6575 = vunpack.c.h.b16 %v6233
      %v6576 = vunpack.c.l.b16 %v6234
      %v6577 = vunpack.c.h.b16 %v6234
      %v6578 = vunpack.c.l.b16 %v6235
      %v6579 = vunpack.c.h.b16 %v6235
      %v6580 = vunpack.c.l.b16 %v6236
      %v6581 = vunpack.c.h.b16 %v6236
      %v6582 = vunpack.c.l.b16 %v6237
      %v6583 = vunpack.c.h.b16 %v6237
      %v6584 = vunpack.c.l.b16 %v6238
      %v6585 = vunpack.c.h.b16 %v6238
      %v6586 = vunpack.c.l.b16 %v6239
      %v6587 = vunpack.c.h.b16 %v6239
      %v6588 = vunpack.c.l.b16 %v6240
      %v6589 = vunpack.c.h.b16 %v6240
      %v6590 = vunpack.c.l.b16 %v6241
      %v6591 = vunpack.c.h.b16 %v6241
      %v6592 = vunpack.c.l.b16 %v6242
      %v6593 = vunpack.c.h.b16 %v6242
      %v6594 = vunpack.c.l.b16 %v6243
      %v6595 = vunpack.c.h.b16 %v6243
      %v6596 = vunpack.c.l.b16 %v6244
      %v6597 = vunpack.c.h.b16 %v6244
      %v6598 = vunpack.c.l.b16 %v6245
      %v6599 = vunpack.c.h.b16 %v6245
      %v6600 = vunpack.c.l.b16 %v6246
      %v6601 = vunpack.c.h.b16 %v6246
      %v6602 = vunpack.c.l.b16 %v6247
      %v6603 = vunpack.c.h.b16 %v6247
      %v6604 = vunpack.c.l.b16 %v6248
      %v6605 = vunpack.c.h.b16 %v6248
      %v6606 = vunpack.c.l.b16 %v6249
      %v6607 = vunpack.c.h.b16 %v6249
      %v6608 = vunpack.c.l.b16 %v6250
      %v6609 = vunpack.c.h.b16 %v6250
      %v6610 = vunpack.c.l.b16 %v6251
      %v6611 = vunpack.c.h.b16 %v6251
      %v6612 = vunpack.c.l.b16 %v6252
      %v6613 = vunpack.c.h.b16 %v6252
      %v6614 = vunpack.c.l.b16 %v6253
      %v6615 = vunpack.c.h.b16 %v6253
      %v6616 = vunpack.c.l.b16 %v6254
      %v6617 = vunpack.c.h.b16 %v6254
      %v6618 = vunpack.c.l.b16 %v6255
      %v6619 = vunpack.c.h.b16 %v6255
      %v6620 = vunpack.c.l.b16 %v6256
      %v6621 = vunpack.c.h.b16 %v6256
      %v6622 = vunpack.c.l.b16 %v6257
      %v6623 = vunpack.c.h.b16 %v6257
      %v6624 = vunpack.c.l.b16 %v6258
      %v6625 = vunpack.c.h.b16 %v6258
      %v6626 = vunpack.c.l.b16 %v6259
      %v6627 = vunpack.c.h.b16 %v6259
      %v6628 = vunpack.c.l.b16 %v6260
      %v6629 = vunpack.c.h.b16 %v6260
      %v6630 = vunpack.c.l.b16 %v6261
      %v6631 = vunpack.c.h.b16 %v6261
      %v6632 = vunpack.c.l.b16 %v6262
      %v6633 = vunpack.c.h.b16 %v6262
      %v6634 = vunpack.c.l.b16 %v6263
      %v6635 = vunpack.c.h.b16 %v6263
      %v6636 = vunpack.c.l.b16 %v6264
      %v6637 = vunpack.c.h.b16 %v6264
      %v6638 = vunpack.c.l.b16 %v6265
      %v6639 = vunpack.c.h.b16 %v6265
      %v6640 = vunpack.c.l.b16 %v6266
      %v6641 = vunpack.c.h.b16 %v6266
      %v6642 = vunpack.c.l.b16 %v6267
      %v6643 = vunpack.c.h.b16 %v6267
      %v6644 = vunpack.c.l.b16 %v6268
      %v6645 = vunpack.c.h.b16 %v6268
      %v6646 = vunpack.c.l.b16 %v6269
      %v6647 = vunpack.c.h.b16 %v6269
      %v6648 = vunpack.c.l.b16 %v6270
      %v6649 = vunpack.c.h.b16 %v6270
      %v6650 = vunpack.c.l.b16 %v6271
      %v6651 = vunpack.c.h.b16 %v6271
      %v6652 = vunpack.c.l.b16 %v6272
      %v6653 = vunpack.c.h.b16 %v6272
      %v6654 = vunpack.c.l.b16 %v6273
      %v6655 = vunpack.c.h.b16 %v6273
      %v6656 = vunpack.c.l.b16 %v6274
      %v6657 = vunpack.c.h.b16 %v6274
      %v6658 = vunpack.c.l.b16 %v6275
      %v6659 = vunpack.c.h.b16 %v6275
      %v6660 = vunpack.c.l.b16 %v6276
      %v6661 = vunpack.c.h.b16 %v6276
      %v6662 = vunpack.c.l.b16 %v6277
      %v6663 = vunpack.c.h.b16 %v6277
      %v6664 = vunpack.c.l.b16 %v6278
      %v6665 = vunpack.c.h.b16 %v6278
      %v6666 = vunpack.c.l.b16 %v6279
      %v6667 = vunpack.c.h.b16 %v6279
      %v6668 = vunpack.c.l.b16 %v6280
      %v6669 = vunpack.c.h.b16 %v6280
      %v6670 = vunpack.c.l.b16 %v6281
      %v6671 = vunpack.c.h.b16 %v6281
      %v6672 = vunpack.c.l.b16 %v6282
      %v6673 = vunpack.c.h.b16 %v6282
      %v6674 = vunpack.c.l.b16 %v6283
      %v6675 = vunpack.c.h.b16 %v6283
      %v6676 = vunpack.c.l.b16 %v6284
      %v6677 = vunpack.c.h.b16 %v6284
      %v6678 = vunpack.c.l.b16 %v6285
      %v6679 = vunpack.c.h.b16 %v6285
      %v6680 = vunpack.c.l.b16 %v6286
      %v6681 = vunpack.c.h.b16 %v6286
      %v6682 = vunpack.c.l.b16 %v6287
      %v6683 = vunpack.c.h.b16 %v6287
      %v6684 = vunpack.c.l.b16 %v6288
      %v6685 = vunpack.c.h.b16 %v6288
      %v6686 = vunpack.c.l.b16 %v6289
      %v6687 = vunpack.c.h.b16 %v6289
      %v6688 = vunpack.c.l.b16 %v6290
      %v6689 = vunpack.c.h.b16 %v6290
      %v6690 = vunpack.c.l.b16 %v6291
      %v6691 = vunpack.c.h.b16 %v6291
      %v6692 = vunpack.c.l.b16 %v6292
      %v6693 = vunpack.c.h.b16 %v6292
      %v6694 = vunpack.c.l.b16 %v6293
      %v6695 = vunpack.c.h.b16 %v6293
      %v6696 = vunpack.c.l.b16 %v6294
      %v6697 = vunpack.c.h.b16 %v6294
      %v6698 = vunpack.c.l.b16 %v6295
      %v6699 = vunpack.c.h.b16 %v6295
      %v6700 = vunpack.c.l.b16 %v6296
      %v6701 = vunpack.c.h.b16 %v6296
      %v6702 = vunpack.c.l.b16 %v6297
      %v6703 = vunpack.c.h.b16 %v6297
      %v6704 = vunpack.c.l.b16 %v6298
      %v6705 = vunpack.c.h.b16 %v6298
      %v6706 = vunpack.c.l.b16 %v6299
      %v6707 = vunpack.c.h.b16 %v6299
      %v6708 = vunpack.c.l.b16 %v6300
      %v6709 = vunpack.c.h.b16 %v6300
      %v6710 = vunpack.c.l.b16 %v6301
      %v6711 = vunpack.c.h.b16 %v6301
      %v6712 = vunpack.c.l.b16 %v6302
      %v6713 = vunpack.c.h.b16 %v6302
      %v6714 = vunpack.c.l.b16 %v6303
      %v6715 = vunpack.c.h.b16 %v6303
      %v6716 = vunpack.c.l.b16 %v6304
      %v6717 = vunpack.c.h.b16 %v6304
      %v6718 = vunpack.c.l.b16 %v6305
      %v6719 = vunpack.c.h.b16 %v6305
      %v6720 = vunpack.c.l.b16 %v6306
      %v6721 = vunpack.c.h.b16 %v6306
      %v6722 = vunpack.c.l.b16 %v6307
      %v6723 = vunpack.c.h.b16 %v6307
      %v6724 = vunpack.c.l.b16 %v6308
      %v6725 = vunpack.c.h.b16 %v6308
      %v6726 = vunpack.c.l.b16 %v6309
      %v6727 = vunpack.c.h.b16 %v6309
      %v6728 = vunpack.c.l.b16 %v6310
      %v6729 = vunpack.c.h.b16 %v6310
      %v6730 = vunpack.c.l.b16 %v6311
      %v6731 = vunpack.c.h.b16 %v6311
      %v6732 = vunpack.c.l.b16 %v6312
      %v6733 = vunpack.c.h.b16 %v6312
      %v6734 = vunpack.c.l.b16 %v6313
      %v6735 = vunpack.c.h.b16 %v6313
      %v6736 = vunpack.c.l.b16 %v6314
      %v6737 = vunpack.c.h.b16 %v6314
      %v6738 = vunpack.c.l.b16 %v6315
      %v6739 = vunpack.c.h.b16 %v6315
      %v6740 = vunpack.c.l.b16 %v6316
      %v6741 = vunpack.c.h.b16 %v6316
      %v6742 = vunpack.c.l.b16 %v6317
      %v6743 = vunpack.c.h.b16 %v6317
      %v6744 = vunpack.c.l.b16 %v6318
      %v6745 = vunpack.c.h.b16 %v6318
      %v6746 = vunpack.c.l.b16 %v6319
      %v6747 = vunpack.c.h.b16 %v6319
      %v6748 = vunpack.c.l.b16 %v6320
      %v6749 = vunpack.c.h.b16 %v6320
      %v6750 = vunpack.c.l.b16 %v6321
      %v6751 = vunpack.c.h.b16 %v6321
      %v6752 = vunpack.c.l.b16 %v6322
      %v6753 = vunpack.c.h.b16 %v6322
      %v6754 = vunpack.c.l.b16 %v6323
      %v6755 = vunpack.c.h.b16 %v6323
      %v6756 = vunpack.c.l.b16 %v6324
      %v6757 = vunpack.c.h.b16 %v6324
      %v6758 = vunpack.c.l.b16 %v6325
      %v6759 = vunpack.c.h.b16 %v6325
      %v6760 = vunpack.c.l.b16 %v6326
      %v6761 = vunpack.c.h.b16 %v6326
      %v6762 = vunpack.c.l.b16 %v6327
      %v6763 = vunpack.c.h.b16 %v6327
      %v6764 = vunpack.c.l.b16 %v6328
      %v6765 = vunpack.c.h.b16 %v6328
      %v6766 = vunpack.c.l.b16 %v6329
      %v6767 = vunpack.c.h.b16 %v6329
      %v6768 = vunpack.c.l.b16 %v6330
      %v6769 = vunpack.c.h.b16 %v6330
      %v6770 = vunpack.c.l.b16 %v6331
      %v6771 = vunpack.c.h.b16 %v6331
      %v6772 = vunpack.c.l.b16 %v6332
      %v6773 = vunpack.c.h.b16 %v6332
      %v6774 = vunpack.c.l.b16 %v6333
      %v6775 = vunpack.c.h.b16 %v6333
      %v6776 = vunpack.c.l.b16 %v6334
      %v6777 = vunpack.c.h.b16 %v6334
      %v6778 = vunpack.c.l.b16 %v6335
      %v6779 = vunpack.c.h.b16 %v6335
      %v6780 = vpack.c.b16 %v6494, %v6492
      %v6781 = vpack.c.b16 %v6495, %v6493
      %v6782 = vpack.c.b16 %v6498, %v6496
      %v6783 = vpack.c.b16 %v6499, %v6497
      %v6784 = vpack.c.b16 %v6502, %v6500
      %v6785 = vpack.c.b16 %v6503, %v6501
      %v6786 = vpack.c.b16 %v6506, %v6504
      %v6787 = vpack.c.b16 %v6507, %v6505
      %v6788 = vpack.c.b16 %v6510, %v6508
      %v6789 = vpack.c.b16 %v6511, %v6509
      %v6790 = vpack.c.b16 %v6514, %v6512
      %v6791 = vpack.c.b16 %v6515, %v6513
      %v6792 = vpack.c.b16 %v6518, %v6516
      %v6793 = vpack.c.b16 %v6519, %v6517
      %v6794 = vpack.c.b16 %v6522, %v6520
      %v6795 = vpack.c.b16 %v6523, %v6521
      %v6796 = vpack.c.b16 %v6526, %v6524
      %v6797 = vpack.c.b16 %v6527, %v6525
      %v6798 = vpack.c.b16 %v6530, %v6528
      %v6799 = vpack.c.b16 %v6531, %v6529
      %v6800 = vpack.c.b16 %v6534, %v6532
      %v6801 = vpack.c.b16 %v6535, %v6533
      %v6802 = vpack.c.b16 %v6538, %v6536
      %v6803 = vpack.c.b16 %v6539, %v6537
      %v6804 = vpack.c.b16 %v6542, %v6540
      %v6805 = vpack.c.b16 %v6543, %v6541
      %v6806 = vpack.c.b16 %v6546, %v6544
      %v6807 = vpack.c.b16 %v6547, %v6545
      %v6808 = vpack.c.b16 %v6550, %v6548
      %v6809 = vpack.c.b16 %v6551, %v6549
      %v6810 = vpack.c.b16 %v6554, %v6552
      %v6811 = vpack.c.b16 %v6555, %v6553
      %v6812 = vpack.c.b16 %v6558, %v6556
      %v6813 = vpack.c.b16 %v6559, %v6557
      %v6814 = vpack.c.b16 %v6562, %v6560
      %v6815 = vpack.c.b16 %v6563, %v6561
      %v6816 = vpack.c.b16 %v6566, %v6564
      %v6817 = vpack.c.b16 %v6567, %v6565
      %v6818 = vpack.c.b16 %v6570, %v6568
      %v6819 = vpack.c.b16 %v6571, %v6569
      %v6820 = vpack.c.b16 %v6574, %v6572
      %v6821 = vpack.c.b16 %v6575, %v6573
      %v6822 = vpack.c.b16 %v6578, %v6576
      %v6823 = vpack.c.b16 %v6579, %v6577
      %v6824 = vpack.c.b16 %v6582, %v6580
      %v6825 = vpack.c.b16 %v6583, %v6581
      %v6826 = vpack.c.b16 %v6586, %v6584
      %v6827 = vpack.c.b16 %v6587, %v6585
      %v6828 = vpack.c.b16 %v6590, %v6588
      %v6829 = vpack.c.b16 %v6591, %v6589
      %v6830 = vpack.c.b16 %v6594, %v6592
      %v6831 = vpack.c.b16 %v6595, %v6593
      %v6832 = vpack.c.b16 %v6598, %v6596
      %v6833 = vpack.c.b16 %v6599, %v6597
      %v6834 = vpack.c.b16 %v6602, %v6600
      %v6835 = vpack.c.b16 %v6603, %v6601
      %v6836 = vpack.c.b16 %v6606, %v6604
      %v6837 = vpack.c.b16 %v6607, %v6605
      %v6838 = vpack.c.b16 %v6610, %v6608
      %v6839 = vpack.c.b16 %v6611, %v6609
      %v6840 = vpack.c.b16 %v6614, %v6612
      %v6841 = vpack.c.b16 %v6615, %v6613
      %v6842 = vpack.c.b16 %v6618, %v6616
      %v6843 = vpack.c.b16 %v6619, %v6617
      %v6844 = vpack.c.b16 %v6622, %v6620
      %v6845 = vpack.c.b16 %v6623, %v6621
      %v6846 = vpack.c.b16 %v6626, %v6624
      %v6847 = vpack.c.b16 %v6627, %v6625
      %v6848 = vpack.c.b16 %v6630, %v6628
      %v6849 = vpack.c.b16 %v6631, %v6629
      %v6850 = vpack.c.b16 %v6634, %v6632
      %v6851 = vpack.c.b16 %v6635, %v6633
      %v6852 = vpack.c.b16 %v6638, %v6636
      %v6853 = vpack.c.b16 %v6639, %v6637
      %v6854 = vpack.c.b16 %v6642, %v6640
      %v6855 = vpack.c.b16 %v6643, %v6641
      %v6856 = vpack.c.b16 %v6646, %v6644
      %v6857 = vpack.c.b16 %v6647, %v6645
      %v6858 = vpack.c.b16 %v6650, %v6648
      %v6859 = vpack.c.b16 %v6651, %v6649
      %v6860 = vpack.c.b16 %v6654, %v6652
      %v6861 = vpack.c.b16 %v6655, %v6653
      %v6862 = vpack.c.b16 %v6658, %v6656
      %v6863 = vpack.c.b16 %v6659, %v6657
      %v6864 = vpack.c.b16 %v6662, %v6660
      %v6865 = vpack.c.b16 %v6663, %v6661
      %v6866 = vpack.c.b16 %v6666, %v6664
      %v6867 = vpack.c.b16 %v6667, %v6665
      %v6868 = vpack.c.b16 %v6670, %v6668
      %v6869 = vpack.c.b16 %v6671, %v6669
      %v6870 = vpack.c.b16 %v6674, %v6672
      %v6871 = vpack.c.b16 %v6675, %v6673
      %v6872 = vpack.c.b16 %v6678, %v6676
      %v6873 = vpack.c.b16 %v6679, %v6677
      %v6874 = vpack.c.b16 %v6682, %v6680
      %v6875 = vpack.c.b16 %v6683, %v6681
      %v6876 = vpack.c.b16 %v6686, %v6684
      %v6877 = vpack.c.b16 %v6687, %v6685
      %v6878 = vpack.c.b16 %v6690, %v6688
      %v6879 = vpack.c.b16 %v6691, %v6689
      %v6880 = vpack.c.b16 %v6694, %v6692
      %v6881 = vpack.c.b16 %v6695, %v6693
      %v6882 = vpack.c.b16 %v6698, %v6696
      %v6883 = vpack.c.b16 %v6699, %v6697
      %v6884 = vpack.c.b16 %v6702, %v6700
      %v6885 = vpack.c.b16 %v6703, %v6701
      %v6886 = vpack.c.b16 %v6706, %v6704
      %v6887 = vpack.c.b16 %v6707, %v6705
      %v6888 = vpack.c.b16 %v6710, %v6708
      %v6889 = vpack.c.b16 %v6711, %v6709
      %v6890 = vpack.c.b16 %v6714, %v6712
      %v6891 = vpack.c.b16 %v6715, %v6713
      %v6892 = vpack.c.b16 %v6718, %v6716
      %v6893 = vpack.c.b16 %v6719, %v6717
      %v6894 = vpack.c.b16 %v6722, %v6720
      %v6895 = vpack.c.b16 %v6723, %v6721
      %v6896 = vpack.c.b16 %v6726, %v6724
      %v6897 = vpack.c.b16 %v6727, %v6725
      %v6898 = vpack.c.b16 %v6730, %v6728
      %v6899 = vpack.c.b16 %v6731, %v6729
      %v6900 = vpack.c.b16 %v6734, %v6732
      %v6901 = vpack.c.b16 %v6735, %v6733
      %v6902 = vpack.c.b16 %v6738, %v6736
      %v6903 = vpack.c.b16 %v6739, %v6737
      %v6904 = vpack.c.b16 %v6742, %v6740
      %v6905 = vpack.c.b16 %v6743, %v6741
      %v6906 = vpack.c.b16 %v6746, %v6744
      %v6907 = vpack.c.b16 %v6747, %v6745
      %v6908 = vpack.c.b16 %v6750, %v6748
      %v6909 = vpack.c.b16 %v6751, %v6749
      %v6910 = vpack.c.b16 %v6754, %v6752
      %v6911 = vpack.c.b16 %v6755, %v6753
      %v6912 = vpack.c.b16 %v6758, %v6756
      %v6913 = vpack.c.b16 %v6759, %v6757
      %v6914 = vpack.c.b16 %v6762, %v6760
      %v6915 = vpack.c.b16 %v6763, %v6761
      %v6916 = vpack.c.b16 %v6766, %v6764
      %v6917 = vpack.c.b16 %v6767, %v6765
      %v6918 = vpack.c.b16 %v6770, %v6768
      %v6919 = vpack.c.b16 %v6771, %v6769
      %v6920 = vpack.c.b16 %v6774, %v6772
      %v6921 = vpack.c.b16 %v6775, %v6773
      %v6922 = vpack.c.b16 %v6778, %v6776
      %v6923 = vpack.c.b16 %v6779, %v6777
      %7068 = vmatprep.subr.bf16.mxu0 %v6795
      %7069 = vmatpush1.bf16.msra.mxu0 %v6794
      %7070 = vmatprep.subr.bf16.mxu0 %v6793
      %7071 = vmatpush1.bf16.msra.mxu0 %v6792
      %7072 = vmatprep.subr.bf16.mxu0 %v6791
      %7073 = vmatpush1.bf16.msra.mxu0 %v6790
      %7074 = vmatprep.subr.bf16.mxu0 %v6789
      %7075 = vmatpush1.bf16.msra.mxu0 %v6788
      %7076 = vmatprep.subr.bf16.mxu0 %v6787
      %7077 = vmatpush1.bf16.msra.mxu0 %v6786
      %7078 = vmatprep.subr.bf16.mxu0 %v6785
      %7079 = vmatpush1.bf16.msra.mxu0 %v6784
      %7080 = vmatprep.subr.bf16.mxu0 %v6783
      %7081 = vmatpush1.bf16.msra.mxu0 %v6782
      %7082 = vmatprep.subr.bf16.mxu0 %v6781
      %7083 = vmatpush1.bf16.msra.mxu0 %v6780
      %7084 = vmatprep.subr.bf16.mxu0 %v6811
      %7085 = vmatpush2.bf16.msra.mxu0 %v6810
      %7086 = vmatprep.subr.bf16.mxu0 %v6809
      %7087 = vmatpush2.bf16.msra.mxu0 %v6808
      %7088 = vmatprep.subr.bf16.mxu0 %v6807
      %7089 = vmatpush2.bf16.msra.mxu0 %v6806
      %7090 = vmatprep.subr.bf16.mxu0 %v6805
      %7091 = vmatpush2.bf16.msra.mxu0 %v6804
      %7092 = vmatprep.subr.bf16.mxu0 %v6803
      %7093 = vmatpush2.bf16.msra.mxu0 %v6802
      %7094 = vmatprep.subr.bf16.mxu0 %v6801
      %7095 = vmatpush2.bf16.msra.mxu0 %v6800
      %7096 = vmatprep.subr.bf16.mxu0 %v6799
      %7097 = vmatpush2.bf16.msra.mxu0 %v6798
      %7098 = vmatprep.subr.bf16.mxu0 %v6797
      %7099 = vmatpush2.bf16.msra.mxu0 %v6796
      %7100 = vmatprep.mubr.bf16.mxu0 %v6184
      %7101 = vmatmul.mubr.bf16.gmra.mxu0 %v6183
      %v7102 = vpop.f32.mrf.mxu0
      %v7103 = vadd.f32 %v6341, %v7102
      %v7104 = vpop.f32.mrf.mxu0
      %v7105 = vadd.f32 %v6345, %v7104
      %v7106 = vpop.f32.mrf.mxu0
      %v7107 = vpop.f32.mrf.mxu0
      %7108 = vdwg.mxu0
      %7109 = vmatprep.subr.bf16.mxu0 %v6827
      %7110 = vmatpush1.bf16.msra.mxu0 %v6826
      %7111 = vmatprep.subr.bf16.mxu0 %v6825
      %7112 = vmatpush1.bf16.msra.mxu0 %v6824
      %7113 = vmatprep.subr.bf16.mxu0 %v6823
      %7114 = vmatpush1.bf16.msra.mxu0 %v6822
      %7115 = vmatprep.subr.bf16.mxu0 %v6821
      %7116 = vmatpush1.bf16.msra.mxu0 %v6820
      %7117 = vmatprep.subr.bf16.mxu0 %v6819
      %7118 = vmatpush1.bf16.msra.mxu0 %v6818
      %7119 = vmatprep.subr.bf16.mxu0 %v6817
      %7120 = vmatpush1.bf16.msra.mxu0 %v6816
      %7121 = vmatprep.subr.bf16.mxu0 %v6815
      %7122 = vmatpush1.bf16.msra.mxu0 %v6814
      %7123 = vmatprep.subr.bf16.mxu0 %v6813
      %7124 = vmatpush1.bf16.msra.mxu0 %v6812
      %7125 = vmatprep.subr.bf16.mxu0 %v6843
      %7126 = vmatpush2.bf16.msra.mxu0 %v6842
      %7127 = vmatprep.subr.bf16.mxu0 %v6841
      %7128 = vmatpush2.bf16.msra.mxu0 %v6840
      %7129 = vmatprep.subr.bf16.mxu0 %v6839
      %7130 = vmatpush2.bf16.msra.mxu0 %v6838
      %7131 = vmatprep.subr.bf16.mxu0 %v6837
      %7132 = vmatpush2.bf16.msra.mxu0 %v6836
      %7133 = vmatprep.subr.bf16.mxu0 %v6835
      %7134 = vmatpush2.bf16.msra.mxu0 %v6834
      %7135 = vmatprep.subr.bf16.mxu0 %v6833
      %7136 = vmatpush2.bf16.msra.mxu0 %v6832
      %7137 = vmatprep.subr.bf16.mxu0 %v6831
      %7138 = vmatpush2.bf16.msra.mxu0 %v6830
      %7139 = vmatprep.subr.bf16.mxu0 %v6829
      %7140 = vmatpush2.bf16.msra.mxu0 %v6828
      %7141 = vmatprep.mubr.bf16.mxu0 %v6186
      %7142 = vmatmul.mubr.bf16.gmra.mxu0 %v6185
      %v7143 = vpop.f32.mrf.mxu0
      %v7144 = vadd.f32 %v7103, %v7143
      %v7145 = vpop.f32.mrf.mxu0
      %v7146 = vadd.f32 %v7105, %v7145
      %v7147 = vpop.f32.mrf.mxu0
      %v7148 = vpop.f32.mrf.mxu0
      %7149 = vdwg.mxu0
      %7150 = vmatprep.subr.bf16.mxu0 %v6859
      %7151 = vmatpush1.bf16.msra.mxu0 %v6858
      %7152 = vmatprep.subr.bf16.mxu0 %v6857
      %7153 = vmatpush1.bf16.msra.mxu0 %v6856
      %7154 = vmatprep.subr.bf16.mxu0 %v6855
      %7155 = vmatpush1.bf16.msra.mxu0 %v6854
      %7156 = vmatprep.subr.bf16.mxu0 %v6853
      %7157 = vmatpush1.bf16.msra.mxu0 %v6852
      %7158 = vmatprep.subr.bf16.mxu0 %v6851
      %7159 = vmatpush1.bf16.msra.mxu0 %v6850
      %7160 = vmatprep.subr.bf16.mxu0 %v6849
      %7161 = vmatpush1.bf16.msra.mxu0 %v6848
      %7162 = vmatprep.subr.bf16.mxu0 %v6847
      %7163 = vmatpush1.bf16.msra.mxu0 %v6846
      %7164 = vmatprep.subr.bf16.mxu0 %v6845
      %7165 = vmatpush1.bf16.msra.mxu0 %v6844
      %7166 = vmatprep.subr.bf16.mxu0 %v6875
      %7167 = vmatpush2.bf16.msra.mxu0 %v6874
      %7168 = vmatprep.subr.bf16.mxu0 %v6873
      %7169 = vmatpush2.bf16.msra.mxu0 %v6872
      %7170 = vmatprep.subr.bf16.mxu0 %v6871
      %7171 = vmatpush2.bf16.msra.mxu0 %v6870
      %7172 = vmatprep.subr.bf16.mxu0 %v6869
      %7173 = vmatpush2.bf16.msra.mxu0 %v6868
      %7174 = vmatprep.subr.bf16.mxu0 %v6867
      %7175 = vmatpush2.bf16.msra.mxu0 %v6866
      %7176 = vmatprep.subr.bf16.mxu0 %v6865
      %7177 = vmatpush2.bf16.msra.mxu0 %v6864
      %7178 = vmatprep.subr.bf16.mxu0 %v6863
      %7179 = vmatpush2.bf16.msra.mxu0 %v6862
      %7180 = vmatprep.subr.bf16.mxu0 %v6861
      %7181 = vmatpush2.bf16.msra.mxu0 %v6860
      %7182 = vmatprep.mubr.bf16.mxu0 %v6188
      %7183 = vmatmul.mubr.bf16.gmra.mxu0 %v6187
      %v7184 = vpop.f32.mrf.mxu0
      %v7185 = vadd.f32 %v7144, %v7184
      %v7186 = vpop.f32.mrf.mxu0
      %v7187 = vadd.f32 %v7146, %v7186
      %v7188 = vpop.f32.mrf.mxu0
      %v7189 = vpop.f32.mrf.mxu0
      %7190 = vdwg.mxu0
      %7191 = vmatprep.subr.bf16.mxu0 %v6891
      %7192 = vmatpush1.bf16.msra.mxu0 %v6890
      %7193 = vmatprep.subr.bf16.mxu0 %v6889
      %7194 = vmatpush1.bf16.msra.mxu0 %v6888
      %7195 = vmatprep.subr.bf16.mxu0 %v6887
      %7196 = vmatpush1.bf16.msra.mxu0 %v6886
      %7197 = vmatprep.subr.bf16.mxu0 %v6885
      %7198 = vmatpush1.bf16.msra.mxu0 %v6884
      %7199 = vmatprep.subr.bf16.mxu0 %v6883
      %7200 = vmatpush1.bf16.msra.mxu0 %v6882
      %7201 = vmatprep.subr.bf16.mxu0 %v6881
      %7202 = vmatpush1.bf16.msra.mxu0 %v6880
      %7203 = vmatprep.subr.bf16.mxu0 %v6879
      %7204 = vmatpush1.bf16.msra.mxu0 %v6878
      %7205 = vmatprep.subr.bf16.mxu0 %v6877
      %7206 = vmatpush1.bf16.msra.mxu0 %v6876
      %7207 = vmatprep.subr.bf16.mxu0 %v6907
      %7208 = vmatpush2.bf16.msra.mxu0 %v6906
      %7209 = vmatprep.subr.bf16.mxu0 %v6905
      %7210 = vmatpush2.bf16.msra.mxu0 %v6904
      %7211 = vmatprep.subr.bf16.mxu0 %v6903
      %7212 = vmatpush2.bf16.msra.mxu0 %v6902
      %7213 = vmatprep.subr.bf16.mxu0 %v6901
      %7214 = vmatpush2.bf16.msra.mxu0 %v6900
      %7215 = vmatprep.subr.bf16.mxu0 %v6899
      %7216 = vmatpush2.bf16.msra.mxu0 %v6898
      %7217 = vmatprep.subr.bf16.mxu0 %v6897
      %7218 = vmatpush2.bf16.msra.mxu0 %v6896
      %7219 = vmatprep.subr.bf16.mxu0 %v6895
      %7220 = vmatpush2.bf16.msra.mxu0 %v6894
      %7221 = vmatprep.subr.bf16.mxu0 %v6893
      %7222 = vmatpush2.bf16.msra.mxu0 %v6892
      %7223 = vmatprep.mubr.bf16.mxu0 %v6190
      %7224 = vmatmul.mubr.bf16.gmra.mxu0 %v6189
      %v7225 = vpop.f32.mrf.mxu0
      %v7226 = vadd.f32 %v7185, %v7225
      %v7227 = vpop.f32.mrf.mxu0
      %v7228 = vadd.f32 %v7187, %v7227
      %v7229 = vpop.f32.mrf.mxu0
      %v7230 = vpop.f32.mrf.mxu0
      %7231 = vdwg.mxu0
      %7232 = vmatprep.subr.bf16.mxu0 %v6923
      %7233 = vmatpush1.bf16.msra.mxu0 %v6922
      %7234 = vmatprep.subr.bf16.mxu0 %v6921
      %7235 = vmatpush1.bf16.msra.mxu0 %v6920
      %7236 = vmatprep.subr.bf16.mxu0 %v6919
      %7237 = vmatpush1.bf16.msra.mxu0 %v6918
      %7238 = vmatprep.subr.bf16.mxu0 %v6917
      %7239 = vmatpush1.bf16.msra.mxu0 %v6916
      %7240 = vmatprep.subr.bf16.mxu0 %v6915
      %7241 = vmatpush1.bf16.msra.mxu0 %v6914
      %7242 = vmatprep.subr.bf16.mxu0 %v6913
      %7243 = vmatpush1.bf16.msra.mxu0 %v6912
      %7244 = vmatprep.subr.bf16.mxu0 %v6911
      %7245 = vmatpush1.bf16.msra.mxu0 %v6910
      %7246 = vmatprep.subr.bf16.mxu0 %v6909
      %7247 = vmatpush1.bf16.msra.mxu0 %v6908
      %7248 = vmatprep.subr.bf16.mxu0 0
      %7249 = vmatpush2.bf16.msra.mxu0 0
      %7250 = vmatprep.subr.bf16.mxu0 0
      %7251 = vmatpush2.bf16.msra.mxu0 0
      %7252 = vmatprep.subr.bf16.mxu0 0
      %7253 = vmatpush2.bf16.msra.mxu0 0
      %7254 = vmatprep.subr.bf16.mxu0 0
      %7255 = vmatpush2.bf16.msra.mxu0 0
      %7256 = vmatprep.subr.bf16.mxu0 0
      %7257 = vmatpush2.bf16.msra.mxu0 0
      %7258 = vmatprep.subr.bf16.mxu0 0
      %7259 = vmatpush2.bf16.msra.mxu0 0
      %7260 = vmatprep.subr.bf16.mxu0 0
      %7261 = vmatpush2.bf16.msra.mxu0 0
      %7262 = vmatprep.subr.bf16.mxu0 0
      %7263 = vmatpush2.bf16.msra.mxu0 0
      %7264 = vmatprep.mubr.bf16.mxu0 0
      %7265 = vmatmul.mubr.bf16.gmra.mxu0 %v6191
      %v7266 = vpop.f32.mrf.mxu0
      %v7267 = vadd.f32 %v7226, %v7266
      %v7268 = vpop.f32.mrf.mxu0
      %v7269 = vadd.f32 %v7228, %v7268
      %v7270 = vpop.f32.mrf.mxu0
      %v7271 = vpop.f32.mrf.mxu0
      %7272 = vdwg.mxu0
      %vm7273 = vcmp.gt.f32.partialorder %v7267, 0.0
      %vm7274 = vcmp.gt.f32.partialorder %v7269, 0.0
      %v7275 = vmul.f32 %v7267, 0.2
      %v7276 = vmul.f32 %v7269, 0.2
      %v7277 = vsel %vm7273, %v7267, %v7275
      %v7278 = vsel %vm7274, %v7269, %v7276
      %v7281 = vcombine.low %v7277, %v7278
      %v7283 = vunpack.c.l.s4 1983009808
      %v7284 = vunpack.c.0.s8 %v7283
      %v7285 = vlaneseq
      %v7286 = vshrl.u32 %v7285, 7
      %v7287 = vsub.s32 %v7284, %v7286
      %v7288 = vrot.slane %v7281, %v7287
      %v7289 = vcombine.high %v7288, %v7288
      %v7291 = vunpack.c.l.s4 1983009808
      %v7292 = vunpack.c.0.s8 %v7291
      %v7293 = vlaneseq
      %v7294 = vshrl.u32 %v7293, 7
      %v7295 = vsub.s32 %v7292, %v7294
      %v7296 = vrot.slane %v7288, %v7295
      %v7298 = vunpack.c.l.s4 1983009808
      %v7299 = vunpack.c.0.s8 %v7298
      %v7300 = vlaneseq
      %v7301 = vshrl.u32 %v7300, 7
      %v7302 = vsub.s32 %v7299, %v7301
      %v7303 = vrot.slane %v7289, %v7302
      %v7304 = vrot.slane %v7296, 7
      %v7305 = vrot.slane %v7303, 7
      %s7308 = scalar_lea.vmem [#allocation6], 8
      %7309 = vst [vmem:[%s7308] sm:$0x66] %v7304
      %7310 = vst [vmem:[%s7308 + $0x8] sm:$0x66] %v7305
      %v7311 = vld [vmem:[#allocation6] ss:$4 sm:$0x3]
      %s7312 = scalar_lea.vmem [#allocation6], 1
      %v7313 = vld [vmem:[%s7312] ss:$4 sm:$0x3]
      %s7314 = scalar_lea.vmem [#allocation6], 2
      %v7315 = vld [vmem:[%s7314] ss:$4 sm:$0x3]
      %v7316 = vld [vmem:[%s7308] ss:$4 sm:$0x3]
      %s7317 = scalar_lea.vmem %s7308, 1 [#allocation6]
      %v7318 = vld [vmem:[%s7317] ss:$4 sm:$0x3]
      %s7319 = scalar_lea.vmem %s7308, 2 [#allocation6]
      %v7320 = vld [vmem:[%s7319] ss:$4 sm:$0x3]
      %s7321 = scalar_lea.vmem [#allocation6], 16
      %v7322 = vld [vmem:[%s7321] ss:$4 sm:$0x3]
      %s7323 = scalar_lea.vmem %s7321, 1 [#allocation6]
      %v7324 = vld [vmem:[%s7323] ss:$4 sm:$0x3]
      %s7325 = scalar_lea.vmem %s7321, 2 [#allocation6]
      %v7326 = vld [vmem:[%s7325] ss:$4 sm:$0x3]
      %v7328 = vlaneseq
      %v7329 = vshrl.u32 %v7328, 7
      %v7330 = vsub.s32 0, %v7329
      %v7331 = vrot.slane %v7311, %v7330
      %v7332 = vlaneseq
      %v7333 = vshrl.u32 %v7332, 7
      %v7334 = vsub.s32 1, %v7333
      %v7335 = vrot.slane %v7311, %v7334
      %v7339 = vlaneseq
      %v7340 = vshrl.u32 %v7339, 7
      %v7341 = vsub.s32 0, %v7340
      %v7342 = vrot.slane %v7313, %v7341
      %v7343 = vlaneseq
      %v7344 = vshrl.u32 %v7343, 7
      %v7345 = vsub.s32 1, %v7344
      %v7346 = vrot.slane %v7313, %v7345
      %v7350 = vlaneseq
      %v7351 = vshrl.u32 %v7350, 7
      %v7352 = vsub.s32 0, %v7351
      %v7353 = vrot.slane %v7315, %v7352
      %v7354 = vlaneseq
      %v7355 = vshrl.u32 %v7354, 7
      %v7356 = vsub.s32 1, %v7355
      %v7357 = vrot.slane %v7315, %v7356
      %v7361 = vlaneseq
      %v7362 = vshrl.u32 %v7361, 7
      %v7363 = vsub.s32 0, %v7362
      %v7364 = vrot.slane %v7316, %v7363
      %v7365 = vlaneseq
      %v7366 = vshrl.u32 %v7365, 7
      %v7367 = vsub.s32 1, %v7366
      %v7368 = vrot.slane %v7316, %v7367
      %v7372 = vlaneseq
      %v7373 = vshrl.u32 %v7372, 7
      %v7374 = vsub.s32 0, %v7373
      %v7375 = vrot.slane %v7318, %v7374
      %v7376 = vlaneseq
      %v7377 = vshrl.u32 %v7376, 7
      %v7378 = vsub.s32 1, %v7377
      %v7379 = vrot.slane %v7318, %v7378
      %v7383 = vlaneseq
      %v7384 = vshrl.u32 %v7383, 7
      %v7385 = vsub.s32 0, %v7384
      %v7386 = vrot.slane %v7320, %v7385
      %v7387 = vlaneseq
      %v7388 = vshrl.u32 %v7387, 7
      %v7389 = vsub.s32 1, %v7388
      %v7390 = vrot.slane %v7320, %v7389
      %v7394 = vlaneseq
      %v7395 = vshrl.u32 %v7394, 7
      %v7396 = vsub.s32 0, %v7395
      %v7397 = vrot.slane %v7322, %v7396
      %v7398 = vlaneseq
      %v7399 = vshrl.u32 %v7398, 7
      %v7400 = vsub.s32 1, %v7399
      %v7401 = vrot.slane %v7322, %v7400
      %v7405 = vlaneseq
      %v7406 = vshrl.u32 %v7405, 7
      %v7407 = vsub.s32 0, %v7406
      %v7408 = vrot.slane %v7324, %v7407
      %v7409 = vlaneseq
      %v7410 = vshrl.u32 %v7409, 7
      %v7411 = vsub.s32 1, %v7410
      %v7412 = vrot.slane %v7324, %v7411
      %v7416 = vlaneseq
      %v7417 = vshrl.u32 %v7416, 7
      %v7418 = vsub.s32 0, %v7417
      %v7419 = vrot.slane %v7326, %v7418
      %v7420 = vlaneseq
      %v7421 = vshrl.u32 %v7420, 7
      %v7422 = vsub.s32 1, %v7421
      %v7423 = vrot.slane %v7326, %v7422
      %v7426 = vpack.c.bf16 %v7331, %v7331
      %v7427 = vpack.c.bf16 %v7335, %v7335
      %v7428 = vpack.c.bf16 %v7342, %v7342
      %v7429 = vpack.c.bf16 %v7346, %v7346
      %v7430 = vpack.c.bf16 %v7353, %v7353
      %v7431 = vpack.c.bf16 %v7357, %v7357
      %v7432 = vpack.c.bf16 %v7364, %v7364
      %v7433 = vpack.c.bf16 %v7368, %v7368
      %v7434 = vpack.c.bf16 %v7375, %v7375
      %v7435 = vpack.c.bf16 %v7379, %v7379
      %v7436 = vpack.c.bf16 %v7386, %v7386
      %v7437 = vpack.c.bf16 %v7390, %v7390
      %v7438 = vpack.c.bf16 %v7397, %v7397
      %v7439 = vpack.c.bf16 %v7401, %v7401
      %v7440 = vpack.c.bf16 %v7408, %v7408
      %v7441 = vpack.c.bf16 %v7412, %v7412
      %v7442 = vpack.c.bf16 %v7419, %v7419
      %v7443 = vpack.c.bf16 %v7423, %v7423
      %v7444 = vld [vmem:[%s6] sm:$0xff]
      %v7445 = vld [vmem:[%s6 + $0x8] sm:$0xff]
      %v7446 = vld [vmem:[%s6 + $0x10] sm:$0xff]
      %v7447 = vld [vmem:[%s6 + $0x18] sm:$0xff]
      %v7448 = vld [vmem:[%s6 + $0x20] sm:$0xff]
      %v7449 = vld [vmem:[%s6 + $0x28] sm:$0xff]
      %v7450 = vld [vmem:[%s6 + $0x30] sm:$0xff]
      %v7451 = vld [vmem:[%s6 + $0x38] sm:$0xff]
      %v7452 = vld [vmem:[%s6 + $0x40] sm:$0xff]
      %v7453 = vld [vmem:[%s6 + $0x48] sm:$0xff]
      %v7454 = vld [vmem:[%s6 + $0x50] sm:$0xff]
      %v7455 = vld [vmem:[%s6 + $0x58] sm:$0xff]
      %v7456 = vld [vmem:[%s6 + $0x60] sm:$0xff]
      %v7457 = vld [vmem:[%s6 + $0x68] sm:$0xff]
      %v7458 = vld [vmem:[%s6 + $0x70] sm:$0xff]
      %v7459 = vld [vmem:[%s6 + $0x78] sm:$0xff]
      %v7460 = vld [vmem:[%s6 + $0x80] sm:$0xff]
      %v7461 = vld [vmem:[%s6 + $0x88] sm:$0xff]
      %v7462 = vld [vmem:[%s6 + $0x90] sm:$0xff]
      %v7463 = vld [vmem:[%s6 + $0x98] sm:$0xff]
      %v7464 = vld [vmem:[%s6 + $0xa0] sm:$0xff]
      %v7465 = vld [vmem:[%s6 + $0xa8] sm:$0xff]
      %v7466 = vld [vmem:[%s6 + $0xb0] sm:$0xff]
      %v7467 = vld [vmem:[%s6 + $0xb8] sm:$0xff]
      %v7468 = vld [vmem:[%s6 + $0xc0] sm:$0xff]
      %v7469 = vld [vmem:[%s6 + $0xc8] sm:$0xff]
      %v7470 = vld [vmem:[%s6 + $0xd0] sm:$0xff]
      %v7471 = vld [vmem:[%s6 + $0xd8] sm:$0xff]
      %v7472 = vld [vmem:[%s6 + $0xe0] sm:$0xff]
      %v7473 = vld [vmem:[%s6 + $0xe8] sm:$0xff]
      %v7474 = vld [vmem:[%s6 + $0xf0] sm:$0xff]
      %v7475 = vld [vmem:[%s6 + $0xf8] sm:$0xff]
      %v7476 = vld [vmem:[%s6 + $0x100] sm:$0xff]
      %v7477 = vld [vmem:[%s6 + $0x108] sm:$0xff]
      %v7478 = vld [vmem:[%s6 + $0x110] sm:$0xff]
      %v7479 = vld [vmem:[%s6 + $0x118] sm:$0xff]
      %v7480 = vld [vmem:[%s6 + $0x120] sm:$0xff]
      %v7481 = vld [vmem:[%s6 + $0x128] sm:$0xff]
      %v7482 = vld [vmem:[%s6 + $0x130] sm:$0xff]
      %v7483 = vld [vmem:[%s6 + $0x138] sm:$0xff]
      %v7484 = vld [vmem:[%s6 + $0x140] sm:$0xff]
      %v7485 = vld [vmem:[%s6 + $0x148] sm:$0xff]
      %v7486 = vld [vmem:[%s6 + $0x150] sm:$0xff]
      %v7487 = vld [vmem:[%s6 + $0x158] sm:$0xff]
      %v7488 = vld [vmem:[%s6 + $0x160] sm:$0xff]
      %v7489 = vld [vmem:[%s6 + $0x168] sm:$0xff]
      %v7490 = vld [vmem:[%s6 + $0x170] sm:$0xff]
      %v7491 = vld [vmem:[%s6 + $0x178] sm:$0xff]
      %v7492 = vld [vmem:[%s6 + $0x180] sm:$0xff]
      %v7493 = vld [vmem:[%s6 + $0x188] sm:$0xff]
      %v7494 = vld [vmem:[%s6 + $0x190] sm:$0xff]
      %v7495 = vld [vmem:[%s6 + $0x198] sm:$0xff]
      %v7496 = vld [vmem:[%s6 + $0x1a0] sm:$0xff]
      %v7497 = vld [vmem:[%s6 + $0x1a8] sm:$0xff]
      %v7498 = vld [vmem:[%s6 + $0x1b0] sm:$0xff]
      %v7499 = vld [vmem:[%s6 + $0x1b8] sm:$0xff]
      %v7500 = vld [vmem:[%s6 + $0x1c0] sm:$0xff]
      %v7501 = vld [vmem:[%s6 + $0x1c8] sm:$0xff]
      %v7502 = vld [vmem:[%s6 + $0x1d0] sm:$0xff]
      %v7503 = vld [vmem:[%s6 + $0x1d8] sm:$0xff]
      %v7504 = vld [vmem:[%s6 + $0x1e0] sm:$0xff]
      %v7505 = vld [vmem:[%s6 + $0x1e8] sm:$0xff]
      %v7506 = vld [vmem:[%s6 + $0x1f0] sm:$0xff]
      %v7507 = vld [vmem:[%s6 + $0x1f8] sm:$0xff]
      %v7508 = vld [vmem:[%s6 + $0x200] sm:$0xff]
      %v7509 = vld [vmem:[%s6 + $0x208] sm:$0xff]
      %v7510 = vld [vmem:[%s6 + $0x210] sm:$0xff]
      %v7511 = vld [vmem:[%s6 + $0x218] sm:$0xff]
      %v7512 = vld [vmem:[%s6 + $0x220] sm:$0xff]
      %v7513 = vld [vmem:[%s6 + $0x228] sm:$0xff]
      %v7514 = vld [vmem:[%s6 + $0x230] sm:$0xff]
      %v7515 = vld [vmem:[%s6 + $0x238] sm:$0xff]
      %v7516 = vld [vmem:[%s6 + $0x240] sm:$0xff]
      %v7517 = vld [vmem:[%s6 + $0x248] sm:$0xff]
      %v7518 = vld [vmem:[%s6 + $0x250] sm:$0xff]
      %v7519 = vld [vmem:[%s6 + $0x258] sm:$0xff]
      %v7520 = vld [vmem:[%s6 + $0x260] sm:$0xff]
      %v7521 = vld [vmem:[%s6 + $0x268] sm:$0xff]
      %v7522 = vld [vmem:[%s6 + $0x270] sm:$0xff]
      %v7523 = vld [vmem:[%s6 + $0x278] sm:$0xff]
      %v7524 = vld [vmem:[%s6 + $0x280] sm:$0xff]
      %v7525 = vld [vmem:[%s6 + $0x288] sm:$0xff]
      %v7526 = vld [vmem:[%s6 + $0x290] sm:$0xff]
      %v7527 = vld [vmem:[%s6 + $0x298] sm:$0xff]
      %v7528 = vld [vmem:[%s6 + $0x2a0] sm:$0xff]
      %v7529 = vld [vmem:[%s6 + $0x2a8] sm:$0xff]
      %v7530 = vld [vmem:[%s6 + $0x2b0] sm:$0xff]
      %v7531 = vld [vmem:[%s6 + $0x2b8] sm:$0xff]
      %v7532 = vld [vmem:[%s6 + $0x2c0] sm:$0xff]
      %v7533 = vld [vmem:[%s6 + $0x2c8] sm:$0xff]
      %v7534 = vld [vmem:[%s6 + $0x2d0] sm:$0xff]
      %v7535 = vld [vmem:[%s6 + $0x2d8] sm:$0xff]
      %v7536 = vld [vmem:[%s6 + $0x2e0] sm:$0xff]
      %v7537 = vld [vmem:[%s6 + $0x2e8] sm:$0xff]
      %v7538 = vld [vmem:[%s6 + $0x2f0] sm:$0xff]
      %v7539 = vld [vmem:[%s6 + $0x2f8] sm:$0xff]
      %v7540 = vld [vmem:[%s6 + $0x300] sm:$0xff]
      %v7541 = vld [vmem:[%s6 + $0x308] sm:$0xff]
      %v7542 = vld [vmem:[%s6 + $0x310] sm:$0xff]
      %v7543 = vld [vmem:[%s6 + $0x318] sm:$0xff]
      %v7544 = vld [vmem:[%s6 + $0x320] sm:$0xff]
      %v7545 = vld [vmem:[%s6 + $0x328] sm:$0xff]
      %v7546 = vld [vmem:[%s6 + $0x330] sm:$0xff]
      %v7547 = vld [vmem:[%s6 + $0x338] sm:$0xff]
      %v7548 = vld [vmem:[%s6 + $0x340] sm:$0xff]
      %v7549 = vld [vmem:[%s6 + $0x348] sm:$0xff]
      %v7550 = vld [vmem:[%s6 + $0x350] sm:$0xff]
      %v7551 = vld [vmem:[%s6 + $0x358] sm:$0xff]
      %v7552 = vld [vmem:[%s6 + $0x360] sm:$0xff]
      %v7553 = vld [vmem:[%s6 + $0x368] sm:$0xff]
      %v7554 = vld [vmem:[%s6 + $0x370] sm:$0xff]
      %v7555 = vld [vmem:[%s6 + $0x378] sm:$0xff]
      %v7556 = vld [vmem:[%s6 + $0x380] sm:$0xff]
      %v7557 = vld [vmem:[%s6 + $0x388] sm:$0xff]
      %v7558 = vld [vmem:[%s6 + $0x390] sm:$0xff]
      %v7559 = vld [vmem:[%s6 + $0x398] sm:$0xff]
      %v7560 = vld [vmem:[%s6 + $0x3a0] sm:$0xff]
      %v7561 = vld [vmem:[%s6 + $0x3a8] sm:$0xff]
      %v7562 = vld [vmem:[%s6 + $0x3b0] sm:$0xff]
      %v7563 = vld [vmem:[%s6 + $0x3b8] sm:$0xff]
      %v7564 = vld [vmem:[%s6 + $0x3c0] sm:$0xff]
      %v7565 = vld [vmem:[%s6 + $0x3c8] sm:$0xff]
      %v7566 = vld [vmem:[%s6 + $0x3d0] sm:$0xff]
      %v7567 = vld [vmem:[%s6 + $0x3d8] sm:$0xff]
      %v7568 = vld [vmem:[%s6 + $0x3e0] sm:$0xff]
      %v7569 = vld [vmem:[%s6 + $0x3e8] sm:$0xff]
      %v7570 = vld [vmem:[%s6 + $0x3f0] sm:$0xff]
      %v7571 = vld [vmem:[%s6 + $0x3f8] sm:$0xff]
      %v7572 = vld [vmem:[%s6 + $0x400] sm:$0xff]
      %v7573 = vld [vmem:[%s6 + $0x408] sm:$0xff]
      %v7574 = vld [vmem:[%s6 + $0x410] sm:$0xff]
      %v7575 = vld [vmem:[%s6 + $0x418] sm:$0xff]
      %v7576 = vld [vmem:[%s6 + $0x420] sm:$0xff]
      %v7577 = vld [vmem:[%s6 + $0x428] sm:$0xff]
      %v7578 = vld [vmem:[%s6 + $0x430] sm:$0xff]
      %v7579 = vld [vmem:[%s6 + $0x438] sm:$0xff]
      %v7580 = vld [vmem:[%s6 + $0x440] sm:$0xff]
      %v7581 = vld [vmem:[%s6 + $0x448] sm:$0xff]
      %v7582 = vld [vmem:[%s6 + $0x450] sm:$0xff]
      %v7583 = vld [vmem:[%s6 + $0x458] sm:$0xff]
      %v7584 = vld [vmem:[%s6 + $0x460] sm:$0xff]
      %v7585 = vld [vmem:[%s6 + $0x468] sm:$0xff]
      %v7586 = vld [vmem:[%s6 + $0x470] sm:$0xff]
      %v7587 = vld [vmem:[%s6 + $0x478] sm:$0xff]
      %v7588 = vld [vmem:[%s6 + $0x480] sm:$0xff]
      %v7589 = vld [vmem:[%s6 + $0x488] sm:$0xff]
      %v7590 = vld [vmem:[%s6 + $0x490] sm:$0xff]
      %v7591 = vld [vmem:[%s6 + $0x498] sm:$0xff]
      %v7592 = vld [vmem:[%s6 + $0x4a0] sm:$0xff]
      %v7593 = vld [vmem:[%s6 + $0x4a8] sm:$0xff]
      %v7594 = vld [vmem:[%s6 + $0x4b0] sm:$0xff]
      %v7595 = vld [vmem:[%s6 + $0x4b8] sm:$0xff]
      %v7596 = vld [vmem:[%s6 + $0x4c0] sm:$0xff]
      %v7597 = vld [vmem:[%s6 + $0x4c8] sm:$0xff]
      %v7598 = vld [vmem:[%s6 + $0x4d0] sm:$0xff]
      %v7599 = vld [vmem:[%s6 + $0x4d8] sm:$0xff]
      %v7600 = vld [vmem:[%s6 + $0x4e0] sm:$0xff]
      %v7601 = vld [vmem:[%s6 + $0x4e8] sm:$0xff]
      %v7602 = vld [vmem:[%s6 + $0x4f0] sm:$0xff]
      %v7603 = vld [vmem:[%s6 + $0x4f8] sm:$0xff]
      %v7604 = vld [vmem:[%s6 + $0x500] sm:$0xff]
      %v7605 = vld [vmem:[%s6 + $0x508] sm:$0xff]
      %v7606 = vld [vmem:[%s6 + $0x510] sm:$0xff]
      %v7607 = vld [vmem:[%s6 + $0x518] sm:$0xff]
      %v7608 = vld [vmem:[%s6 + $0x520] sm:$0xff]
      %v7609 = vld [vmem:[%s6 + $0x528] sm:$0xff]
      %v7610 = vld [vmem:[%s6 + $0x530] sm:$0xff]
      %v7611 = vld [vmem:[%s6 + $0x538] sm:$0xff]
      %v7612 = vld [vmem:[%s6 + $0x540] sm:$0xff]
      %v7613 = vld [vmem:[%s6 + $0x548] sm:$0xff]
      %v7614 = vld [vmem:[%s6 + $0x550] sm:$0xff]
      %v7615 = vld [vmem:[%s6 + $0x558] sm:$0xff]
      %v7616 = vld [vmem:[%s6 + $0x560] sm:$0xff]
      %v7617 = vld [vmem:[%s6 + $0x568] sm:$0xff]
      %v7618 = vld [vmem:[%s6 + $0x570] sm:$0xff]
      %v7619 = vld [vmem:[%s6 + $0x578] sm:$0xff]
      %v7620 = vld [vmem:[%s6 + $0x580] sm:$0xff]
      %v7621 = vld [vmem:[%s6 + $0x588] sm:$0xff]
      %v7622 = vld [vmem:[%s6 + $0x590] sm:$0xff]
      %v7623 = vld [vmem:[%s6 + $0x598] sm:$0xff]
      %v7624 = vld [vmem:[%s6 + $0x5a0] sm:$0xff]
      %v7625 = vld [vmem:[%s6 + $0x5a8] sm:$0xff]
      %v7626 = vld [vmem:[%s6 + $0x5b0] sm:$0xff]
      %v7627 = vld [vmem:[%s6 + $0x5b8] sm:$0xff]
      %v7628 = vld [vmem:[%s6 + $0x5c0] sm:$0xff]
      %v7629 = vld [vmem:[%s6 + $0x5c8] sm:$0xff]
      %v7630 = vld [vmem:[%s6 + $0x5d0] sm:$0xff]
      %v7631 = vld [vmem:[%s6 + $0x5d8] sm:$0xff]
      %v7632 = vld [vmem:[%s6 + $0x5e0] sm:$0xff]
      %v7633 = vld [vmem:[%s6 + $0x5e8] sm:$0xff]
      %v7634 = vld [vmem:[%s6 + $0x5f0] sm:$0xff]
      %v7635 = vld [vmem:[%s6 + $0x5f8] sm:$0xff]
      %v7636 = vld [vmem:[%s6 + $0x600] sm:$0xff]
      %v7637 = vld [vmem:[%s6 + $0x608] sm:$0xff]
      %v7638 = vld [vmem:[%s6 + $0x610] sm:$0xff]
      %v7639 = vld [vmem:[%s6 + $0x618] sm:$0xff]
      %v7640 = vld [vmem:[%s6 + $0x620] sm:$0xff]
      %v7641 = vld [vmem:[%s6 + $0x628] sm:$0xff]
      %v7642 = vld [vmem:[%s6 + $0x630] sm:$0xff]
      %v7643 = vld [vmem:[%s6 + $0x638] sm:$0xff]
      %v7644 = vld [vmem:[%s6 + $0x640] sm:$0xff]
      %v7645 = vld [vmem:[%s6 + $0x648] sm:$0xff]
      %v7646 = vld [vmem:[%s6 + $0x650] sm:$0xff]
      %v7647 = vld [vmem:[%s6 + $0x658] sm:$0xff]
      %v7648 = vld [vmem:[%s6 + $0x660] sm:$0xff]
      %v7649 = vld [vmem:[%s6 + $0x668] sm:$0xff]
      %v7650 = vld [vmem:[%s6 + $0x670] sm:$0xff]
      %v7651 = vld [vmem:[%s6 + $0x678] sm:$0xff]
      %v7652 = vld [vmem:[%s6 + $0x680] sm:$0xff]
      %v7653 = vld [vmem:[%s6 + $0x688] sm:$0xff]
      %v7654 = vld [vmem:[%s6 + $0x690] sm:$0xff]
      %v7655 = vld [vmem:[%s6 + $0x698] sm:$0xff]
      %v7656 = vld [vmem:[%s6 + $0x6a0] sm:$0xff]
      %v7657 = vld [vmem:[%s6 + $0x6a8] sm:$0xff]
      %v7658 = vld [vmem:[%s6 + $0x6b0] sm:$0xff]
      %v7659 = vld [vmem:[%s6 + $0x6b8] sm:$0xff]
      %v7660 = vld [vmem:[%s6 + $0x6c0] sm:$0xff]
      %v7661 = vld [vmem:[%s6 + $0x6c8] sm:$0xff]
      %v7662 = vld [vmem:[%s6 + $0x6d0] sm:$0xff]
      %v7663 = vld [vmem:[%s6 + $0x6d8] sm:$0xff]
      %v7664 = vld [vmem:[%s6 + $0x6e0] sm:$0xff]
      %v7665 = vld [vmem:[%s6 + $0x6e8] sm:$0xff]
      %v7666 = vld [vmem:[%s6 + $0x6f0] sm:$0xff]
      %v7667 = vld [vmem:[%s6 + $0x6f8] sm:$0xff]
      %v7668 = vld [vmem:[%s6 + $0x700] sm:$0xff]
      %v7669 = vld [vmem:[%s6 + $0x708] sm:$0xff]
      %v7670 = vld [vmem:[%s6 + $0x710] sm:$0xff]
      %v7671 = vld [vmem:[%s6 + $0x718] sm:$0xff]
      %v7672 = vld [vmem:[%s6 + $0x720] sm:$0xff]
      %v7673 = vld [vmem:[%s6 + $0x728] sm:$0xff]
      %v7674 = vld [vmem:[%s6 + $0x730] sm:$0xff]
      %v7675 = vld [vmem:[%s6 + $0x738] sm:$0xff]
      %v7676 = vld [vmem:[%s6 + $0x740] sm:$0xff]
      %v7677 = vld [vmem:[%s6 + $0x748] sm:$0xff]
      %v7678 = vld [vmem:[%s6 + $0x750] sm:$0xff]
      %v7679 = vld [vmem:[%s6 + $0x758] sm:$0xff]
      %v7680 = vld [vmem:[%s6 + $0x760] sm:$0xff]
      %v7681 = vld [vmem:[%s6 + $0x768] sm:$0xff]
      %v7682 = vld [vmem:[%s6 + $0x770] sm:$0xff]
      %v7683 = vld [vmem:[%s6 + $0x778] sm:$0xff]
      %v7684 = vld [vmem:[%s6 + $0x780] sm:$0xff]
      %v7685 = vld [vmem:[%s6 + $0x788] sm:$0xff]
      %v7686 = vld [vmem:[%s6 + $0x790] sm:$0xff]
      %v7687 = vld [vmem:[%s6 + $0x798] sm:$0xff]
      %v7688 = vld [vmem:[%s6 + $0x7a0] sm:$0xff]
      %v7689 = vld [vmem:[%s6 + $0x7a8] sm:$0xff]
      %v7690 = vld [vmem:[%s6 + $0x7b0] sm:$0xff]
      %v7691 = vld [vmem:[%s6 + $0x7b8] sm:$0xff]
      %v7692 = vld [vmem:[%s6 + $0x7c0] sm:$0xff]
      %v7693 = vld [vmem:[%s6 + $0x7c8] sm:$0xff]
      %v7694 = vld [vmem:[%s6 + $0x7d0] sm:$0xff]
      %v7695 = vld [vmem:[%s6 + $0x7d8] sm:$0xff]
      %v7696 = vld [vmem:[%s6 + $0x7e0] sm:$0xff]
      %v7697 = vld [vmem:[%s6 + $0x7e8] sm:$0xff]
      %v7698 = vld [vmem:[%s6 + $0x7f0] sm:$0xff]
      %v7699 = vld [vmem:[%s6 + $0x7f8] sm:$0xff]
      %v7700 = vld [vmem:[%s6 + $0x800] sm:$0xff]
      %v7701 = vld [vmem:[%s6 + $0x808] sm:$0xff]
      %v7702 = vld [vmem:[%s6 + $0x810] sm:$0xff]
      %v7703 = vld [vmem:[%s6 + $0x818] sm:$0xff]
      %v7704 = vld [vmem:[%s6 + $0x820] sm:$0xff]
      %v7705 = vld [vmem:[%s6 + $0x828] sm:$0xff]
      %v7706 = vld [vmem:[%s6 + $0x830] sm:$0xff]
      %v7707 = vld [vmem:[%s6 + $0x838] sm:$0xff]
      %v7708 = vld [vmem:[%s6 + $0x840] sm:$0xff]
      %v7709 = vld [vmem:[%s6 + $0x848] sm:$0xff]
      %v7710 = vld [vmem:[%s6 + $0x850] sm:$0xff]
      %v7711 = vld [vmem:[%s6 + $0x858] sm:$0xff]
      %v7712 = vld [vmem:[%s6 + $0x860] sm:$0xff]
      %v7713 = vld [vmem:[%s6 + $0x868] sm:$0xff]
      %v7714 = vld [vmem:[%s6 + $0x870] sm:$0xff]
      %v7715 = vld [vmem:[%s6 + $0x878] sm:$0xff]
      %v7716 = vld [vmem:[%s6 + $0x880] sm:$0xff]
      %v7717 = vld [vmem:[%s6 + $0x888] sm:$0xff]
      %v7718 = vld [vmem:[%s6 + $0x890] sm:$0xff]
      %v7719 = vld [vmem:[%s6 + $0x898] sm:$0xff]
      %v7720 = vld [vmem:[%s6 + $0x8a0] sm:$0xff]
      %v7721 = vld [vmem:[%s6 + $0x8a8] sm:$0xff]
      %v7722 = vld [vmem:[%s6 + $0x8b0] sm:$0xff]
      %v7723 = vld [vmem:[%s6 + $0x8b8] sm:$0xff]
      %v7724 = vld [vmem:[%s6 + $0x8c0] sm:$0xff]
      %v7725 = vld [vmem:[%s6 + $0x8c8] sm:$0xff]
      %v7726 = vld [vmem:[%s6 + $0x8d0] sm:$0xff]
      %v7727 = vld [vmem:[%s6 + $0x8d8] sm:$0xff]
      %v7728 = vld [vmem:[%s6 + $0x8e0] sm:$0xff]
      %v7729 = vld [vmem:[%s6 + $0x8e8] sm:$0xff]
      %v7730 = vld [vmem:[%s6 + $0x8f0] sm:$0xff]
      %v7731 = vld [vmem:[%s6 + $0x8f8] sm:$0xff]
      %v7732 = vld [vmem:[%s6 + $0x900] sm:$0xff]
      %v7733 = vld [vmem:[%s6 + $0x908] sm:$0xff]
      %v7734 = vld [vmem:[%s6 + $0x910] sm:$0xff]
      %v7735 = vld [vmem:[%s6 + $0x918] sm:$0xff]
      %v7736 = vld [vmem:[%s6 + $0x920] sm:$0xff]
      %v7737 = vld [vmem:[%s6 + $0x928] sm:$0xff]
      %v7738 = vld [vmem:[%s6 + $0x930] sm:$0xff]
      %v7739 = vld [vmem:[%s6 + $0x938] sm:$0xff]
      %v7740 = vld [vmem:[%s6 + $0x940] sm:$0xff]
      %v7741 = vld [vmem:[%s6 + $0x948] sm:$0xff]
      %v7742 = vld [vmem:[%s6 + $0x950] sm:$0xff]
      %v7743 = vld [vmem:[%s6 + $0x958] sm:$0xff]
      %v7744 = vld [vmem:[%s6 + $0x960] sm:$0xff]
      %v7745 = vld [vmem:[%s6 + $0x968] sm:$0xff]
      %v7746 = vld [vmem:[%s6 + $0x970] sm:$0xff]
      %v7747 = vld [vmem:[%s6 + $0x978] sm:$0xff]
      %v7748 = vld [vmem:[%s6 + $0x980] sm:$0xff]
      %v7749 = vld [vmem:[%s6 + $0x988] sm:$0xff]
      %v7750 = vld [vmem:[%s6 + $0x990] sm:$0xff]
      %v7751 = vld [vmem:[%s6 + $0x998] sm:$0xff]
      %v7752 = vld [vmem:[%s6 + $0x9a0] sm:$0xff]
      %v7753 = vld [vmem:[%s6 + $0x9a8] sm:$0xff]
      %v7754 = vld [vmem:[%s6 + $0x9b0] sm:$0xff]
      %v7755 = vld [vmem:[%s6 + $0x9b8] sm:$0xff]
      %v7756 = vld [vmem:[%s6 + $0x9c0] sm:$0xff]
      %v7757 = vld [vmem:[%s6 + $0x9c8] sm:$0xff]
      %v7758 = vld [vmem:[%s6 + $0x9d0] sm:$0xff]
      %v7759 = vld [vmem:[%s6 + $0x9d8] sm:$0xff]
      %v7760 = vld [vmem:[%s6 + $0x9e0] sm:$0xff]
      %v7761 = vld [vmem:[%s6 + $0x9e8] sm:$0xff]
      %v7762 = vld [vmem:[%s6 + $0x9f0] sm:$0xff]
      %v7763 = vld [vmem:[%s6 + $0x9f8] sm:$0xff]
      %v7764 = vld [vmem:[%s6 + $0xa00] sm:$0xff]
      %v7765 = vld [vmem:[%s6 + $0xa08] sm:$0xff]
      %v7766 = vld [vmem:[%s6 + $0xa10] sm:$0xff]
      %v7767 = vld [vmem:[%s6 + $0xa18] sm:$0xff]
      %v7768 = vld [vmem:[%s6 + $0xa20] sm:$0xff]
      %v7769 = vld [vmem:[%s6 + $0xa28] sm:$0xff]
      %v7770 = vld [vmem:[%s6 + $0xa30] sm:$0xff]
      %v7771 = vld [vmem:[%s6 + $0xa38] sm:$0xff]
      %v7772 = vld [vmem:[%s6 + $0xa40] sm:$0xff]
      %v7773 = vld [vmem:[%s6 + $0xa48] sm:$0xff]
      %v7774 = vld [vmem:[%s6 + $0xa50] sm:$0xff]
      %v7775 = vld [vmem:[%s6 + $0xa58] sm:$0xff]
      %v7776 = vld [vmem:[%s6 + $0xa60] sm:$0xff]
      %v7777 = vld [vmem:[%s6 + $0xa68] sm:$0xff]
      %v7778 = vld [vmem:[%s6 + $0xa70] sm:$0xff]
      %v7779 = vld [vmem:[%s6 + $0xa78] sm:$0xff]
      %v7780 = vld [vmem:[%s6 + $0xa80] sm:$0xff]
      %v7781 = vld [vmem:[%s6 + $0xa88] sm:$0xff]
      %v7782 = vld [vmem:[%s6 + $0xa90] sm:$0xff]
      %v7783 = vld [vmem:[%s6 + $0xa98] sm:$0xff]
      %v7784 = vld [vmem:[%s6 + $0xaa0] sm:$0xff]
      %v7785 = vld [vmem:[%s6 + $0xaa8] sm:$0xff]
      %v7786 = vld [vmem:[%s6 + $0xab0] sm:$0xff]
      %v7787 = vld [vmem:[%s6 + $0xab8] sm:$0xff]
      %v7788 = vld [vmem:[%s6 + $0xac0] sm:$0xff]
      %v7789 = vld [vmem:[%s6 + $0xac8] sm:$0xff]
      %v7790 = vld [vmem:[%s6 + $0xad0] sm:$0xff]
      %v7791 = vld [vmem:[%s6 + $0xad8] sm:$0xff]
      %v7792 = vld [vmem:[%s6 + $0xae0] sm:$0xff]
      %v7793 = vld [vmem:[%s6 + $0xae8] sm:$0xff]
      %v7794 = vld [vmem:[%s6 + $0xaf0] sm:$0xff]
      %v7795 = vld [vmem:[%s6 + $0xaf8] sm:$0xff]
      %v7796 = vld [vmem:[%s6 + $0xb00] sm:$0xff]
      %v7797 = vld [vmem:[%s6 + $0xb08] sm:$0xff]
      %v7798 = vld [vmem:[%s6 + $0xb10] sm:$0xff]
      %v7799 = vld [vmem:[%s6 + $0xb18] sm:$0xff]
      %v7800 = vld [vmem:[%s6 + $0xb20] sm:$0xff]
      %v7801 = vld [vmem:[%s6 + $0xb28] sm:$0xff]
      %v7802 = vld [vmem:[%s6 + $0xb30] sm:$0xff]
      %v7803 = vld [vmem:[%s6 + $0xb38] sm:$0xff]
      %v7804 = vld [vmem:[%s6 + $0xb40] sm:$0xff]
      %v7805 = vld [vmem:[%s6 + $0xb48] sm:$0xff]
      %v7806 = vld [vmem:[%s6 + $0xb50] sm:$0xff]
      %v7807 = vld [vmem:[%s6 + $0xb58] sm:$0xff]
      %v7808 = vld [vmem:[%s6 + $0xb60] sm:$0xff]
      %v7809 = vld [vmem:[%s6 + $0xb68] sm:$0xff]
      %v7810 = vld [vmem:[%s6 + $0xb70] sm:$0xff]
      %v7811 = vld [vmem:[%s6 + $0xb78] sm:$0xff]
      %v7812 = vld [vmem:[%s6 + $0xb80] sm:$0xff]
      %v7813 = vld [vmem:[%s6 + $0xb88] sm:$0xff]
      %v7814 = vld [vmem:[%s6 + $0xb90] sm:$0xff]
      %v7815 = vld [vmem:[%s6 + $0xb98] sm:$0xff]
      %v7816 = vld [vmem:[%s6 + $0xba0] sm:$0xff]
      %v7817 = vld [vmem:[%s6 + $0xba8] sm:$0xff]
      %v7818 = vld [vmem:[%s6 + $0xbb0] sm:$0xff]
      %v7819 = vld [vmem:[%s6 + $0xbb8] sm:$0xff]
      %v7820 = vld [vmem:[%s6 + $0xbc0] sm:$0xff]
      %v7821 = vld [vmem:[%s6 + $0xbc8] sm:$0xff]
      %v7822 = vld [vmem:[%s6 + $0xbd0] sm:$0xff]
      %v7823 = vld [vmem:[%s6 + $0xbd8] sm:$0xff]
      %v7824 = vld [vmem:[%s6 + $0xbe0] sm:$0xff]
      %v7825 = vld [vmem:[%s6 + $0xbe8] sm:$0xff]
      %v7826 = vld [vmem:[%s6 + $0xbf0] sm:$0xff]
      %v7827 = vld [vmem:[%s6 + $0xbf8] sm:$0xff]
      %v7828 = vld [vmem:[%s6 + $0xc00] sm:$0xff]
      %v7829 = vld [vmem:[%s6 + $0xc08] sm:$0xff]
      %v7830 = vld [vmem:[%s6 + $0xc10] sm:$0xff]
      %v7831 = vld [vmem:[%s6 + $0xc18] sm:$0xff]
      %v7832 = vld [vmem:[%s6 + $0xc20] sm:$0xff]
      %v7833 = vld [vmem:[%s6 + $0xc28] sm:$0xff]
      %v7834 = vld [vmem:[%s6 + $0xc30] sm:$0xff]
      %v7835 = vld [vmem:[%s6 + $0xc38] sm:$0xff]
      %v7836 = vld [vmem:[%s6 + $0xc40] sm:$0xff]
      %v7837 = vld [vmem:[%s6 + $0xc48] sm:$0xff]
      %v7838 = vld [vmem:[%s6 + $0xc50] sm:$0xff]
      %v7839 = vld [vmem:[%s6 + $0xc58] sm:$0xff]
      %v7840 = vld [vmem:[%s6 + $0xc60] sm:$0xff]
      %v7841 = vld [vmem:[%s6 + $0xc68] sm:$0xff]
      %v7842 = vld [vmem:[%s6 + $0xc70] sm:$0xff]
      %v7843 = vld [vmem:[%s6 + $0xc78] sm:$0xff]
      %v7844 = vld [vmem:[%s6 + $0xc80] sm:$0xff]
      %v7845 = vld [vmem:[%s6 + $0xc88] sm:$0xff]
      %v7846 = vld [vmem:[%s6 + $0xc90] sm:$0xff]
      %v7847 = vld [vmem:[%s6 + $0xc98] sm:$0xff]
      %v7848 = vld [vmem:[%s6 + $0xca0] sm:$0xff]
      %v7849 = vld [vmem:[%s6 + $0xca8] sm:$0xff]
      %v7850 = vld [vmem:[%s6 + $0xcb0] sm:$0xff]
      %v7851 = vld [vmem:[%s6 + $0xcb8] sm:$0xff]
      %v7852 = vld [vmem:[%s6 + $0xcc0] sm:$0xff]
      %v7853 = vld [vmem:[%s6 + $0xcc8] sm:$0xff]
      %v7854 = vld [vmem:[%s6 + $0xcd0] sm:$0xff]
      %v7855 = vld [vmem:[%s6 + $0xcd8] sm:$0xff]
      %v7856 = vld [vmem:[%s6 + $0xce0] sm:$0xff]
      %v7857 = vld [vmem:[%s6 + $0xce8] sm:$0xff]
      %v7858 = vld [vmem:[%s6 + $0xcf0] sm:$0xff]
      %v7859 = vld [vmem:[%s6 + $0xcf8] sm:$0xff]
      %v7860 = vld [vmem:[%s6 + $0xd00] sm:$0xff]
      %v7861 = vld [vmem:[%s6 + $0xd08] sm:$0xff]
      %v7862 = vld [vmem:[%s6 + $0xd10] sm:$0xff]
      %v7863 = vld [vmem:[%s6 + $0xd18] sm:$0xff]
      %v7864 = vld [vmem:[%s6 + $0xd20] sm:$0xff]
      %v7865 = vld [vmem:[%s6 + $0xd28] sm:$0xff]
      %v7866 = vld [vmem:[%s6 + $0xd30] sm:$0xff]
      %v7867 = vld [vmem:[%s6 + $0xd38] sm:$0xff]
      %v7868 = vld [vmem:[%s6 + $0xd40] sm:$0xff]
      %v7869 = vld [vmem:[%s6 + $0xd48] sm:$0xff]
      %v7870 = vld [vmem:[%s6 + $0xd50] sm:$0xff]
      %v7871 = vld [vmem:[%s6 + $0xd58] sm:$0xff]
      %v7872 = vld [vmem:[%s6 + $0xd60] sm:$0xff]
      %v7873 = vld [vmem:[%s6 + $0xd68] sm:$0xff]
      %v7874 = vld [vmem:[%s6 + $0xd70] sm:$0xff]
      %v7875 = vld [vmem:[%s6 + $0xd78] sm:$0xff]
      %v7876 = vld [vmem:[%s6 + $0xd80] sm:$0xff]
      %v7877 = vld [vmem:[%s6 + $0xd88] sm:$0xff]
      %v7878 = vld [vmem:[%s6 + $0xd90] sm:$0xff]
      %v7879 = vld [vmem:[%s6 + $0xd98] sm:$0xff]
      %v7880 = vld [vmem:[%s6 + $0xda0] sm:$0xff]
      %v7881 = vld [vmem:[%s6 + $0xda8] sm:$0xff]
      %v7882 = vld [vmem:[%s6 + $0xdb0] sm:$0xff]
      %v7883 = vld [vmem:[%s6 + $0xdb8] sm:$0xff]
      %v7884 = vld [vmem:[%s6 + $0xdc0] sm:$0xff]
      %v7885 = vld [vmem:[%s6 + $0xdc8] sm:$0xff]
      %v7886 = vld [vmem:[%s6 + $0xdd0] sm:$0xff]
      %v7887 = vld [vmem:[%s6 + $0xdd8] sm:$0xff]
      %v7888 = vld [vmem:[%s6 + $0xde0] sm:$0xff]
      %v7889 = vld [vmem:[%s6 + $0xde8] sm:$0xff]
      %v7890 = vld [vmem:[%s6 + $0xdf0] sm:$0xff]
      %v7891 = vld [vmem:[%s6 + $0xdf8] sm:$0xff]
      %v7892 = vld [vmem:[%s6 + $0xe00] sm:$0xff]
      %v7893 = vld [vmem:[%s6 + $0xe08] sm:$0xff]
      %v7894 = vld [vmem:[%s6 + $0xe10] sm:$0xff]
      %v7895 = vld [vmem:[%s6 + $0xe18] sm:$0xff]
      %v7896 = vld [vmem:[%s6 + $0xe20] sm:$0xff]
      %v7897 = vld [vmem:[%s6 + $0xe28] sm:$0xff]
      %v7898 = vld [vmem:[%s6 + $0xe30] sm:$0xff]
      %v7899 = vld [vmem:[%s6 + $0xe38] sm:$0xff]
      %v7900 = vld [vmem:[%s6 + $0xe40] sm:$0xff]
      %v7901 = vld [vmem:[%s6 + $0xe48] sm:$0xff]
      %v7902 = vld [vmem:[%s6 + $0xe50] sm:$0xff]
      %v7903 = vld [vmem:[%s6 + $0xe58] sm:$0xff]
      %v7904 = vld [vmem:[%s6 + $0xe60] sm:$0xff]
      %v7905 = vld [vmem:[%s6 + $0xe68] sm:$0xff]
      %v7906 = vld [vmem:[%s6 + $0xe70] sm:$0xff]
      %v7907 = vld [vmem:[%s6 + $0xe78] sm:$0xff]
      %v7908 = vld [vmem:[%s6 + $0xe80] sm:$0xff]
      %v7909 = vld [vmem:[%s6 + $0xe88] sm:$0xff]
      %v7910 = vld [vmem:[%s6 + $0xe90] sm:$0xff]
      %v7911 = vld [vmem:[%s6 + $0xe98] sm:$0xff]
      %v7912 = vld [vmem:[%s6 + $0xea0] sm:$0xff]
      %v7913 = vld [vmem:[%s6 + $0xea8] sm:$0xff]
      %v7914 = vld [vmem:[%s6 + $0xeb0] sm:$0xff]
      %v7915 = vld [vmem:[%s6 + $0xeb8] sm:$0xff]
      %v7916 = vld [vmem:[%s6 + $0xec0] sm:$0xff]
      %v7917 = vld [vmem:[%s6 + $0xec8] sm:$0xff]
      %v7918 = vld [vmem:[%s6 + $0xed0] sm:$0xff]
      %v7919 = vld [vmem:[%s6 + $0xed8] sm:$0xff]
      %v7920 = vld [vmem:[%s6 + $0xee0] sm:$0xff]
      %v7921 = vld [vmem:[%s6 + $0xee8] sm:$0xff]
      %v7922 = vld [vmem:[%s6 + $0xef0] sm:$0xff]
      %v7923 = vld [vmem:[%s6 + $0xef8] sm:$0xff]
      %v7924 = vld [vmem:[%s6 + $0xf00] sm:$0xff]
      %v7925 = vld [vmem:[%s6 + $0xf08] sm:$0xff]
      %v7926 = vld [vmem:[%s6 + $0xf10] sm:$0xff]
      %v7927 = vld [vmem:[%s6 + $0xf18] sm:$0xff]
      %v7928 = vld [vmem:[%s6 + $0xf20] sm:$0xff]
      %v7929 = vld [vmem:[%s6 + $0xf28] sm:$0xff]
      %v7930 = vld [vmem:[%s6 + $0xf30] sm:$0xff]
      %v7931 = vld [vmem:[%s6 + $0xf38] sm:$0xff]
      %v7932 = vld [vmem:[%s6 + $0xf40] sm:$0xff]
      %v7933 = vld [vmem:[%s6 + $0xf48] sm:$0xff]
      %v7934 = vld [vmem:[%s6 + $0xf50] sm:$0xff]
      %v7935 = vld [vmem:[%s6 + $0xf58] sm:$0xff]
      %v7936 = vld [vmem:[%s6 + $0xf60] sm:$0xff]
      %v7937 = vld [vmem:[%s6 + $0xf68] sm:$0xff]
      %v7938 = vld [vmem:[%s6 + $0xf70] sm:$0xff]
      %v7939 = vld [vmem:[%s6 + $0xf78] sm:$0xff]
      %v7940 = vld [vmem:[%s6 + $0xf80] sm:$0xff]
      %v7941 = vld [vmem:[%s6 + $0xf88] sm:$0xff]
      %v7942 = vld [vmem:[%s6 + $0xf90] sm:$0xff]
      %v7943 = vld [vmem:[%s6 + $0xf98] sm:$0xff]
      %v7944 = vld [vmem:[%s6 + $0xfa0] sm:$0xff]
      %v7945 = vld [vmem:[%s6 + $0xfa8] sm:$0xff]
      %v7946 = vld [vmem:[%s6 + $0xfb0] sm:$0xff]
      %v7947 = vld [vmem:[%s6 + $0xfb8] sm:$0xff]
      %v7948 = vld [vmem:[%s6 + $0xfc0] sm:$0xff]
      %v7949 = vld [vmem:[%s6 + $0xfc8] sm:$0xff]
      %v7950 = vld [vmem:[%s6 + $0xfd0] sm:$0xff]
      %v7951 = vld [vmem:[%s6 + $0xfd8] sm:$0xff]
      %v7952 = vld [vmem:[%s6 + $0xfe0] sm:$0xff]
      %v7953 = vld [vmem:[%s6 + $0xfe8] sm:$0xff]
      %v7954 = vld [vmem:[%s6 + $0xff0] sm:$0xff]
      %v7955 = vld [vmem:[%s6 + $0xff8] sm:$0xff]
      %v7956 = vld [vmem:[%s6 + $0x1000] sm:$0xff]
      %v7957 = vld [vmem:[%s6 + $0x1008] sm:$0xff]
      %v7958 = vld [vmem:[%s6 + $0x1010] sm:$0xff]
      %v7959 = vld [vmem:[%s6 + $0x1018] sm:$0xff]
      %v7960 = vld [vmem:[%s6 + $0x1020] sm:$0xff]
      %v7961 = vld [vmem:[%s6 + $0x1028] sm:$0xff]
      %v7962 = vld [vmem:[%s6 + $0x1030] sm:$0xff]
      %v7963 = vld [vmem:[%s6 + $0x1038] sm:$0xff]
      %v7964 = vld [vmem:[%s6 + $0x1040] sm:$0xff]
      %v7965 = vld [vmem:[%s6 + $0x1048] sm:$0xff]
      %v7966 = vld [vmem:[%s6 + $0x1050] sm:$0xff]
      %v7967 = vld [vmem:[%s6 + $0x1058] sm:$0xff]
      %v7968 = vld [vmem:[%s6 + $0x1060] sm:$0xff]
      %v7969 = vld [vmem:[%s6 + $0x1068] sm:$0xff]
      %v7970 = vld [vmem:[%s6 + $0x1070] sm:$0xff]
      %v7971 = vld [vmem:[%s6 + $0x1078] sm:$0xff]
      %v7972 = vld [vmem:[%s6 + $0x1080] sm:$0xff]
      %v7973 = vld [vmem:[%s6 + $0x1088] sm:$0xff]
      %v7974 = vld [vmem:[%s6 + $0x1090] sm:$0xff]
      %v7975 = vld [vmem:[%s6 + $0x1098] sm:$0xff]
      %v7976 = vld [vmem:[%s6 + $0x10a0] sm:$0xff]
      %v7977 = vld [vmem:[%s6 + $0x10a8] sm:$0xff]
      %v7978 = vld [vmem:[%s6 + $0x10b0] sm:$0xff]
      %v7979 = vld [vmem:[%s6 + $0x10b8] sm:$0xff]
      %v7980 = vld [vmem:[%s6 + $0x10c0] sm:$0xff]
      %v7981 = vld [vmem:[%s6 + $0x10c8] sm:$0xff]
      %v7982 = vld [vmem:[%s6 + $0x10d0] sm:$0xff]
      %v7983 = vld [vmem:[%s6 + $0x10d8] sm:$0xff]
      %v7984 = vld [vmem:[%s6 + $0x10e0] sm:$0xff]
      %v7985 = vld [vmem:[%s6 + $0x10e8] sm:$0xff]
      %v7986 = vld [vmem:[%s6 + $0x10f0] sm:$0xff]
      %v7987 = vld [vmem:[%s6 + $0x10f8] sm:$0xff]
      %v7988 = vld [vmem:[%s6 + $0x1100] sm:$0xff]
      %v7989 = vld [vmem:[%s6 + $0x1108] sm:$0xff]
      %v7990 = vld [vmem:[%s6 + $0x1110] sm:$0xff]
      %v7991 = vld [vmem:[%s6 + $0x1118] sm:$0xff]
      %v7992 = vld [vmem:[%s6 + $0x1120] sm:$0xff]
      %v7993 = vld [vmem:[%s6 + $0x1128] sm:$0xff]
      %v7994 = vld [vmem:[%s6 + $0x1130] sm:$0xff]
      %v7995 = vld [vmem:[%s6 + $0x1138] sm:$0xff]
      %v7996 = vld [vmem:[%s6 + $0x1140] sm:$0xff]
      %v7997 = vld [vmem:[%s6 + $0x1148] sm:$0xff]
      %v7998 = vld [vmem:[%s6 + $0x1150] sm:$0xff]
      %v7999 = vld [vmem:[%s6 + $0x1158] sm:$0xff]
      %v8000 = vld [vmem:[%s6 + $0x1160] sm:$0xff]
      %v8001 = vld [vmem:[%s6 + $0x1168] sm:$0xff]
      %v8002 = vld [vmem:[%s6 + $0x1170] sm:$0xff]
      %v8003 = vld [vmem:[%s6 + $0x1178] sm:$0xff]
      %v8004 = vld [vmem:[%s6 + $0x1180] sm:$0xff]
      %v8005 = vld [vmem:[%s6 + $0x1188] sm:$0xff]
      %v8006 = vld [vmem:[%s6 + $0x1190] sm:$0xff]
      %v8007 = vld [vmem:[%s6 + $0x1198] sm:$0xff]
      %v8008 = vld [vmem:[%s6 + $0x11a0] sm:$0xff]
      %v8009 = vld [vmem:[%s6 + $0x11a8] sm:$0xff]
      %v8010 = vld [vmem:[%s6 + $0x11b0] sm:$0xff]
      %v8011 = vld [vmem:[%s6 + $0x11b8] sm:$0xff]
      %v8012 = vld [vmem:[%s6 + $0x11c0] sm:$0xff]
      %v8013 = vld [vmem:[%s6 + $0x11c8] sm:$0xff]
      %v8014 = vld [vmem:[%s6 + $0x11d0] sm:$0xff]
      %v8015 = vld [vmem:[%s6 + $0x11d8] sm:$0xff]
      %v8016 = vld [vmem:[%s6 + $0x11e0] sm:$0xff]
      %v8017 = vld [vmem:[%s6 + $0x11e8] sm:$0xff]
      %v8018 = vld [vmem:[%s6 + $0x11f0] sm:$0xff]
      %v8019 = vld [vmem:[%s6 + $0x11f8] sm:$0xff]
      %v8020 = vld [vmem:[%s12] sm:$0xf]
      %v8597 = vunpack.c.l.b16 %v7444
      %v8598 = vunpack.c.h.b16 %v7444
      %v8599 = vunpack.c.l.b16 %v7445
      %v8600 = vunpack.c.h.b16 %v7445
      %v8601 = vunpack.c.l.b16 %v7446
      %v8602 = vunpack.c.h.b16 %v7446
      %v8603 = vunpack.c.l.b16 %v7447
      %v8604 = vunpack.c.h.b16 %v7447
      %v8605 = vunpack.c.l.b16 %v7448
      %v8606 = vunpack.c.h.b16 %v7448
      %v8607 = vunpack.c.l.b16 %v7449
      %v8608 = vunpack.c.h.b16 %v7449
      %v8609 = vunpack.c.l.b16 %v7450
      %v8610 = vunpack.c.h.b16 %v7450
      %v8611 = vunpack.c.l.b16 %v7451
      %v8612 = vunpack.c.h.b16 %v7451
      %v8613 = vunpack.c.l.b16 %v7452
      %v8614 = vunpack.c.h.b16 %v7452
      %v8615 = vunpack.c.l.b16 %v7453
      %v8616 = vunpack.c.h.b16 %v7453
      %v8617 = vunpack.c.l.b16 %v7454
      %v8618 = vunpack.c.h.b16 %v7454
      %v8619 = vunpack.c.l.b16 %v7455
      %v8620 = vunpack.c.h.b16 %v7455
      %v8621 = vunpack.c.l.b16 %v7456
      %v8622 = vunpack.c.h.b16 %v7456
      %v8623 = vunpack.c.l.b16 %v7457
      %v8624 = vunpack.c.h.b16 %v7457
      %v8625 = vunpack.c.l.b16 %v7458
      %v8626 = vunpack.c.h.b16 %v7458
      %v8627 = vunpack.c.l.b16 %v7459
      %v8628 = vunpack.c.h.b16 %v7459
      %v8629 = vunpack.c.l.b16 %v7460
      %v8630 = vunpack.c.h.b16 %v7460
      %v8631 = vunpack.c.l.b16 %v7461
      %v8632 = vunpack.c.h.b16 %v7461
      %v8633 = vunpack.c.l.b16 %v7462
      %v8634 = vunpack.c.h.b16 %v7462
      %v8635 = vunpack.c.l.b16 %v7463
      %v8636 = vunpack.c.h.b16 %v7463
      %v8637 = vunpack.c.l.b16 %v7464
      %v8638 = vunpack.c.h.b16 %v7464
      %v8639 = vunpack.c.l.b16 %v7465
      %v8640 = vunpack.c.h.b16 %v7465
      %v8641 = vunpack.c.l.b16 %v7466
      %v8642 = vunpack.c.h.b16 %v7466
      %v8643 = vunpack.c.l.b16 %v7467
      %v8644 = vunpack.c.h.b16 %v7467
      %v8645 = vunpack.c.l.b16 %v7468
      %v8646 = vunpack.c.h.b16 %v7468
      %v8647 = vunpack.c.l.b16 %v7469
      %v8648 = vunpack.c.h.b16 %v7469
      %v8649 = vunpack.c.l.b16 %v7470
      %v8650 = vunpack.c.h.b16 %v7470
      %v8651 = vunpack.c.l.b16 %v7471
      %v8652 = vunpack.c.h.b16 %v7471
      %v8653 = vunpack.c.l.b16 %v7472
      %v8654 = vunpack.c.h.b16 %v7472
      %v8655 = vunpack.c.l.b16 %v7473
      %v8656 = vunpack.c.h.b16 %v7473
      %v8657 = vunpack.c.l.b16 %v7474
      %v8658 = vunpack.c.h.b16 %v7474
      %v8659 = vunpack.c.l.b16 %v7475
      %v8660 = vunpack.c.h.b16 %v7475
      %v8661 = vunpack.c.l.b16 %v7476
      %v8662 = vunpack.c.h.b16 %v7476
      %v8663 = vunpack.c.l.b16 %v7477
      %v8664 = vunpack.c.h.b16 %v7477
      %v8665 = vunpack.c.l.b16 %v7478
      %v8666 = vunpack.c.h.b16 %v7478
      %v8667 = vunpack.c.l.b16 %v7479
      %v8668 = vunpack.c.h.b16 %v7479
      %v8669 = vunpack.c.l.b16 %v7480
      %v8670 = vunpack.c.h.b16 %v7480
      %v8671 = vunpack.c.l.b16 %v7481
      %v8672 = vunpack.c.h.b16 %v7481
      %v8673 = vunpack.c.l.b16 %v7482
      %v8674 = vunpack.c.h.b16 %v7482
      %v8675 = vunpack.c.l.b16 %v7483
      %v8676 = vunpack.c.h.b16 %v7483
      %v8677 = vunpack.c.l.b16 %v7484
      %v8678 = vunpack.c.h.b16 %v7484
      %v8679 = vunpack.c.l.b16 %v7485
      %v8680 = vunpack.c.h.b16 %v7485
      %v8681 = vunpack.c.l.b16 %v7486
      %v8682 = vunpack.c.h.b16 %v7486
      %v8683 = vunpack.c.l.b16 %v7487
      %v8684 = vunpack.c.h.b16 %v7487
      %v8685 = vunpack.c.l.b16 %v7488
      %v8686 = vunpack.c.h.b16 %v7488
      %v8687 = vunpack.c.l.b16 %v7489
      %v8688 = vunpack.c.h.b16 %v7489
      %v8689 = vunpack.c.l.b16 %v7490
      %v8690 = vunpack.c.h.b16 %v7490
      %v8691 = vunpack.c.l.b16 %v7491
      %v8692 = vunpack.c.h.b16 %v7491
      %v8693 = vunpack.c.l.b16 %v7492
      %v8694 = vunpack.c.h.b16 %v7492
      %v8695 = vunpack.c.l.b16 %v7493
      %v8696 = vunpack.c.h.b16 %v7493
      %v8697 = vunpack.c.l.b16 %v7494
      %v8698 = vunpack.c.h.b16 %v7494
      %v8699 = vunpack.c.l.b16 %v7495
      %v8700 = vunpack.c.h.b16 %v7495
      %v8701 = vunpack.c.l.b16 %v7496
      %v8702 = vunpack.c.h.b16 %v7496
      %v8703 = vunpack.c.l.b16 %v7497
      %v8704 = vunpack.c.h.b16 %v7497
      %v8705 = vunpack.c.l.b16 %v7498
      %v8706 = vunpack.c.h.b16 %v7498
      %v8707 = vunpack.c.l.b16 %v7499
      %v8708 = vunpack.c.h.b16 %v7499
      %v8709 = vunpack.c.l.b16 %v7500
      %v8710 = vunpack.c.h.b16 %v7500
      %v8711 = vunpack.c.l.b16 %v7501
      %v8712 = vunpack.c.h.b16 %v7501
      %v8713 = vunpack.c.l.b16 %v7502
      %v8714 = vunpack.c.h.b16 %v7502
      %v8715 = vunpack.c.l.b16 %v7503
      %v8716 = vunpack.c.h.b16 %v7503
      %v8717 = vunpack.c.l.b16 %v7504
      %v8718 = vunpack.c.h.b16 %v7504
      %v8719 = vunpack.c.l.b16 %v7505
      %v8720 = vunpack.c.h.b16 %v7505
      %v8721 = vunpack.c.l.b16 %v7506
      %v8722 = vunpack.c.h.b16 %v7506
      %v8723 = vunpack.c.l.b16 %v7507
      %v8724 = vunpack.c.h.b16 %v7507
      %v8725 = vunpack.c.l.b16 %v7508
      %v8726 = vunpack.c.h.b16 %v7508
      %v8727 = vunpack.c.l.b16 %v7509
      %v8728 = vunpack.c.h.b16 %v7509
      %v8729 = vunpack.c.l.b16 %v7510
      %v8730 = vunpack.c.h.b16 %v7510
      %v8731 = vunpack.c.l.b16 %v7511
      %v8732 = vunpack.c.h.b16 %v7511
      %v8733 = vunpack.c.l.b16 %v7512
      %v8734 = vunpack.c.h.b16 %v7512
      %v8735 = vunpack.c.l.b16 %v7513
      %v8736 = vunpack.c.h.b16 %v7513
      %v8737 = vunpack.c.l.b16 %v7514
      %v8738 = vunpack.c.h.b16 %v7514
      %v8739 = vunpack.c.l.b16 %v7515
      %v8740 = vunpack.c.h.b16 %v7515
      %v8741 = vunpack.c.l.b16 %v7516
      %v8742 = vunpack.c.h.b16 %v7516
      %v8743 = vunpack.c.l.b16 %v7517
      %v8744 = vunpack.c.h.b16 %v7517
      %v8745 = vunpack.c.l.b16 %v7518
      %v8746 = vunpack.c.h.b16 %v7518
      %v8747 = vunpack.c.l.b16 %v7519
      %v8748 = vunpack.c.h.b16 %v7519
      %v8749 = vunpack.c.l.b16 %v7520
      %v8750 = vunpack.c.h.b16 %v7520
      %v8751 = vunpack.c.l.b16 %v7521
      %v8752 = vunpack.c.h.b16 %v7521
      %v8753 = vunpack.c.l.b16 %v7522
      %v8754 = vunpack.c.h.b16 %v7522
      %v8755 = vunpack.c.l.b16 %v7523
      %v8756 = vunpack.c.h.b16 %v7523
      %v8757 = vunpack.c.l.b16 %v7524
      %v8758 = vunpack.c.h.b16 %v7524
      %v8759 = vunpack.c.l.b16 %v7525
      %v8760 = vunpack.c.h.b16 %v7525
      %v8761 = vunpack.c.l.b16 %v7526
      %v8762 = vunpack.c.h.b16 %v7526
      %v8763 = vunpack.c.l.b16 %v7527
      %v8764 = vunpack.c.h.b16 %v7527
      %v8765 = vunpack.c.l.b16 %v7528
      %v8766 = vunpack.c.h.b16 %v7528
      %v8767 = vunpack.c.l.b16 %v7529
      %v8768 = vunpack.c.h.b16 %v7529
      %v8769 = vunpack.c.l.b16 %v7530
      %v8770 = vunpack.c.h.b16 %v7530
      %v8771 = vunpack.c.l.b16 %v7531
      %v8772 = vunpack.c.h.b16 %v7531
      %v8773 = vunpack.c.l.b16 %v7532
      %v8774 = vunpack.c.h.b16 %v7532
      %v8775 = vunpack.c.l.b16 %v7533
      %v8776 = vunpack.c.h.b16 %v7533
      %v8777 = vunpack.c.l.b16 %v7534
      %v8778 = vunpack.c.h.b16 %v7534
      %v8779 = vunpack.c.l.b16 %v7535
      %v8780 = vunpack.c.h.b16 %v7535
      %v8781 = vunpack.c.l.b16 %v7536
      %v8782 = vunpack.c.h.b16 %v7536
      %v8783 = vunpack.c.l.b16 %v7537
      %v8784 = vunpack.c.h.b16 %v7537
      %v8785 = vunpack.c.l.b16 %v7538
      %v8786 = vunpack.c.h.b16 %v7538
      %v8787 = vunpack.c.l.b16 %v7539
      %v8788 = vunpack.c.h.b16 %v7539
      %v8789 = vunpack.c.l.b16 %v7540
      %v8790 = vunpack.c.h.b16 %v7540
      %v8791 = vunpack.c.l.b16 %v7541
      %v8792 = vunpack.c.h.b16 %v7541
      %v8793 = vunpack.c.l.b16 %v7542
      %v8794 = vunpack.c.h.b16 %v7542
      %v8795 = vunpack.c.l.b16 %v7543
      %v8796 = vunpack.c.h.b16 %v7543
      %v8797 = vunpack.c.l.b16 %v7544
      %v8798 = vunpack.c.h.b16 %v7544
      %v8799 = vunpack.c.l.b16 %v7545
      %v8800 = vunpack.c.h.b16 %v7545
      %v8801 = vunpack.c.l.b16 %v7546
      %v8802 = vunpack.c.h.b16 %v7546
      %v8803 = vunpack.c.l.b16 %v7547
      %v8804 = vunpack.c.h.b16 %v7547
      %v8805 = vunpack.c.l.b16 %v7548
      %v8806 = vunpack.c.h.b16 %v7548
      %v8807 = vunpack.c.l.b16 %v7549
      %v8808 = vunpack.c.h.b16 %v7549
      %v8809 = vunpack.c.l.b16 %v7550
      %v8810 = vunpack.c.h.b16 %v7550
      %v8811 = vunpack.c.l.b16 %v7551
      %v8812 = vunpack.c.h.b16 %v7551
      %v8813 = vunpack.c.l.b16 %v7552
      %v8814 = vunpack.c.h.b16 %v7552
      %v8815 = vunpack.c.l.b16 %v7553
      %v8816 = vunpack.c.h.b16 %v7553
      %v8817 = vunpack.c.l.b16 %v7554
      %v8818 = vunpack.c.h.b16 %v7554
      %v8819 = vunpack.c.l.b16 %v7555
      %v8820 = vunpack.c.h.b16 %v7555
      %v8821 = vunpack.c.l.b16 %v7556
      %v8822 = vunpack.c.h.b16 %v7556
      %v8823 = vunpack.c.l.b16 %v7557
      %v8824 = vunpack.c.h.b16 %v7557
      %v8825 = vunpack.c.l.b16 %v7558
      %v8826 = vunpack.c.h.b16 %v7558
      %v8827 = vunpack.c.l.b16 %v7559
      %v8828 = vunpack.c.h.b16 %v7559
      %v8829 = vunpack.c.l.b16 %v7560
      %v8830 = vunpack.c.h.b16 %v7560
      %v8831 = vunpack.c.l.b16 %v7561
      %v8832 = vunpack.c.h.b16 %v7561
      %v8833 = vunpack.c.l.b16 %v7562
      %v8834 = vunpack.c.h.b16 %v7562
      %v8835 = vunpack.c.l.b16 %v7563
      %v8836 = vunpack.c.h.b16 %v7563
      %v8837 = vunpack.c.l.b16 %v7564
      %v8838 = vunpack.c.h.b16 %v7564
      %v8839 = vunpack.c.l.b16 %v7565
      %v8840 = vunpack.c.h.b16 %v7565
      %v8841 = vunpack.c.l.b16 %v7566
      %v8842 = vunpack.c.h.b16 %v7566
      %v8843 = vunpack.c.l.b16 %v7567
      %v8844 = vunpack.c.h.b16 %v7567
      %v8845 = vunpack.c.l.b16 %v7568
      %v8846 = vunpack.c.h.b16 %v7568
      %v8847 = vunpack.c.l.b16 %v7569
      %v8848 = vunpack.c.h.b16 %v7569
      %v8849 = vunpack.c.l.b16 %v7570
      %v8850 = vunpack.c.h.b16 %v7570
      %v8851 = vunpack.c.l.b16 %v7571
      %v8852 = vunpack.c.h.b16 %v7571
      %v8853 = vunpack.c.l.b16 %v7572
      %v8854 = vunpack.c.h.b16 %v7572
      %v8855 = vunpack.c.l.b16 %v7573
      %v8856 = vunpack.c.h.b16 %v7573
      %v8857 = vunpack.c.l.b16 %v7574
      %v8858 = vunpack.c.h.b16 %v7574
      %v8859 = vunpack.c.l.b16 %v7575
      %v8860 = vunpack.c.h.b16 %v7575
      %v8861 = vunpack.c.l.b16 %v7576
      %v8862 = vunpack.c.h.b16 %v7576
      %v8863 = vunpack.c.l.b16 %v7577
      %v8864 = vunpack.c.h.b16 %v7577
      %v8865 = vunpack.c.l.b16 %v7578
      %v8866 = vunpack.c.h.b16 %v7578
      %v8867 = vunpack.c.l.b16 %v7579
      %v8868 = vunpack.c.h.b16 %v7579
      %v8869 = vunpack.c.l.b16 %v7580
      %v8870 = vunpack.c.h.b16 %v7580
      %v8871 = vunpack.c.l.b16 %v7581
      %v8872 = vunpack.c.h.b16 %v7581
      %v8873 = vunpack.c.l.b16 %v7582
      %v8874 = vunpack.c.h.b16 %v7582
      %v8875 = vunpack.c.l.b16 %v7583
      %v8876 = vunpack.c.h.b16 %v7583
      %v8877 = vunpack.c.l.b16 %v7584
      %v8878 = vunpack.c.h.b16 %v7584
      %v8879 = vunpack.c.l.b16 %v7585
      %v8880 = vunpack.c.h.b16 %v7585
      %v8881 = vunpack.c.l.b16 %v7586
      %v8882 = vunpack.c.h.b16 %v7586
      %v8883 = vunpack.c.l.b16 %v7587
      %v8884 = vunpack.c.h.b16 %v7587
      %v8885 = vunpack.c.l.b16 %v7588
      %v8886 = vunpack.c.h.b16 %v7588
      %v8887 = vunpack.c.l.b16 %v7589
      %v8888 = vunpack.c.h.b16 %v7589
      %v8889 = vunpack.c.l.b16 %v7590
      %v8890 = vunpack.c.h.b16 %v7590
      %v8891 = vunpack.c.l.b16 %v7591
      %v8892 = vunpack.c.h.b16 %v7591
      %v8893 = vunpack.c.l.b16 %v7592
      %v8894 = vunpack.c.h.b16 %v7592
      %v8895 = vunpack.c.l.b16 %v7593
      %v8896 = vunpack.c.h.b16 %v7593
      %v8897 = vunpack.c.l.b16 %v7594
      %v8898 = vunpack.c.h.b16 %v7594
      %v8899 = vunpack.c.l.b16 %v7595
      %v8900 = vunpack.c.h.b16 %v7595
      %v8901 = vunpack.c.l.b16 %v7596
      %v8902 = vunpack.c.h.b16 %v7596
      %v8903 = vunpack.c.l.b16 %v7597
      %v8904 = vunpack.c.h.b16 %v7597
      %v8905 = vunpack.c.l.b16 %v7598
      %v8906 = vunpack.c.h.b16 %v7598
      %v8907 = vunpack.c.l.b16 %v7599
      %v8908 = vunpack.c.h.b16 %v7599
      %v8909 = vunpack.c.l.b16 %v7600
      %v8910 = vunpack.c.h.b16 %v7600
      %v8911 = vunpack.c.l.b16 %v7601
      %v8912 = vunpack.c.h.b16 %v7601
      %v8913 = vunpack.c.l.b16 %v7602
      %v8914 = vunpack.c.h.b16 %v7602
      %v8915 = vunpack.c.l.b16 %v7603
      %v8916 = vunpack.c.h.b16 %v7603
      %v8917 = vunpack.c.l.b16 %v7604
      %v8918 = vunpack.c.h.b16 %v7604
      %v8919 = vunpack.c.l.b16 %v7605
      %v8920 = vunpack.c.h.b16 %v7605
      %v8921 = vunpack.c.l.b16 %v7606
      %v8922 = vunpack.c.h.b16 %v7606
      %v8923 = vunpack.c.l.b16 %v7607
      %v8924 = vunpack.c.h.b16 %v7607
      %v8925 = vunpack.c.l.b16 %v7608
      %v8926 = vunpack.c.h.b16 %v7608
      %v8927 = vunpack.c.l.b16 %v7609
      %v8928 = vunpack.c.h.b16 %v7609
      %v8929 = vunpack.c.l.b16 %v7610
      %v8930 = vunpack.c.h.b16 %v7610
      %v8931 = vunpack.c.l.b16 %v7611
      %v8932 = vunpack.c.h.b16 %v7611
      %v8933 = vunpack.c.l.b16 %v7612
      %v8934 = vunpack.c.h.b16 %v7612
      %v8935 = vunpack.c.l.b16 %v7613
      %v8936 = vunpack.c.h.b16 %v7613
      %v8937 = vunpack.c.l.b16 %v7614
      %v8938 = vunpack.c.h.b16 %v7614
      %v8939 = vunpack.c.l.b16 %v7615
      %v8940 = vunpack.c.h.b16 %v7615
      %v8941 = vunpack.c.l.b16 %v7616
      %v8942 = vunpack.c.h.b16 %v7616
      %v8943 = vunpack.c.l.b16 %v7617
      %v8944 = vunpack.c.h.b16 %v7617
      %v8945 = vunpack.c.l.b16 %v7618
      %v8946 = vunpack.c.h.b16 %v7618
      %v8947 = vunpack.c.l.b16 %v7619
      %v8948 = vunpack.c.h.b16 %v7619
      %v8949 = vunpack.c.l.b16 %v7620
      %v8950 = vunpack.c.h.b16 %v7620
      %v8951 = vunpack.c.l.b16 %v7621
      %v8952 = vunpack.c.h.b16 %v7621
      %v8953 = vunpack.c.l.b16 %v7622
      %v8954 = vunpack.c.h.b16 %v7622
      %v8955 = vunpack.c.l.b16 %v7623
      %v8956 = vunpack.c.h.b16 %v7623
      %v8957 = vunpack.c.l.b16 %v7624
      %v8958 = vunpack.c.h.b16 %v7624
      %v8959 = vunpack.c.l.b16 %v7625
      %v8960 = vunpack.c.h.b16 %v7625
      %v8961 = vunpack.c.l.b16 %v7626
      %v8962 = vunpack.c.h.b16 %v7626
      %v8963 = vunpack.c.l.b16 %v7627
      %v8964 = vunpack.c.h.b16 %v7627
      %v8965 = vunpack.c.l.b16 %v7628
      %v8966 = vunpack.c.h.b16 %v7628
      %v8967 = vunpack.c.l.b16 %v7629
      %v8968 = vunpack.c.h.b16 %v7629
      %v8969 = vunpack.c.l.b16 %v7630
      %v8970 = vunpack.c.h.b16 %v7630
      %v8971 = vunpack.c.l.b16 %v7631
      %v8972 = vunpack.c.h.b16 %v7631
      %v8973 = vunpack.c.l.b16 %v7632
      %v8974 = vunpack.c.h.b16 %v7632
      %v8975 = vunpack.c.l.b16 %v7633
      %v8976 = vunpack.c.h.b16 %v7633
      %v8977 = vunpack.c.l.b16 %v7634
      %v8978 = vunpack.c.h.b16 %v7634
      %v8979 = vunpack.c.l.b16 %v7635
      %v8980 = vunpack.c.h.b16 %v7635
      %v8981 = vunpack.c.l.b16 %v7636
      %v8982 = vunpack.c.h.b16 %v7636
      %v8983 = vunpack.c.l.b16 %v7637
      %v8984 = vunpack.c.h.b16 %v7637
      %v8985 = vunpack.c.l.b16 %v7638
      %v8986 = vunpack.c.h.b16 %v7638
      %v8987 = vunpack.c.l.b16 %v7639
      %v8988 = vunpack.c.h.b16 %v7639
      %v8989 = vunpack.c.l.b16 %v7640
      %v8990 = vunpack.c.h.b16 %v7640
      %v8991 = vunpack.c.l.b16 %v7641
      %v8992 = vunpack.c.h.b16 %v7641
      %v8993 = vunpack.c.l.b16 %v7642
      %v8994 = vunpack.c.h.b16 %v7642
      %v8995 = vunpack.c.l.b16 %v7643
      %v8996 = vunpack.c.h.b16 %v7643
      %v8997 = vunpack.c.l.b16 %v7644
      %v8998 = vunpack.c.h.b16 %v7644
      %v8999 = vunpack.c.l.b16 %v7645
      %v9000 = vunpack.c.h.b16 %v7645
      %v9001 = vunpack.c.l.b16 %v7646
      %v9002 = vunpack.c.h.b16 %v7646
      %v9003 = vunpack.c.l.b16 %v7647
      %v9004 = vunpack.c.h.b16 %v7647
      %v9005 = vunpack.c.l.b16 %v7648
      %v9006 = vunpack.c.h.b16 %v7648
      %v9007 = vunpack.c.l.b16 %v7649
      %v9008 = vunpack.c.h.b16 %v7649
      %v9009 = vunpack.c.l.b16 %v7650
      %v9010 = vunpack.c.h.b16 %v7650
      %v9011 = vunpack.c.l.b16 %v7651
      %v9012 = vunpack.c.h.b16 %v7651
      %v9013 = vunpack.c.l.b16 %v7652
      %v9014 = vunpack.c.h.b16 %v7652
      %v9015 = vunpack.c.l.b16 %v7653
      %v9016 = vunpack.c.h.b16 %v7653
      %v9017 = vunpack.c.l.b16 %v7654
      %v9018 = vunpack.c.h.b16 %v7654
      %v9019 = vunpack.c.l.b16 %v7655
      %v9020 = vunpack.c.h.b16 %v7655
      %v9021 = vunpack.c.l.b16 %v7656
      %v9022 = vunpack.c.h.b16 %v7656
      %v9023 = vunpack.c.l.b16 %v7657
      %v9024 = vunpack.c.h.b16 %v7657
      %v9025 = vunpack.c.l.b16 %v7658
      %v9026 = vunpack.c.h.b16 %v7658
      %v9027 = vunpack.c.l.b16 %v7659
      %v9028 = vunpack.c.h.b16 %v7659
      %v9029 = vunpack.c.l.b16 %v7660
      %v9030 = vunpack.c.h.b16 %v7660
      %v9031 = vunpack.c.l.b16 %v7661
      %v9032 = vunpack.c.h.b16 %v7661
      %v9033 = vunpack.c.l.b16 %v7662
      %v9034 = vunpack.c.h.b16 %v7662
      %v9035 = vunpack.c.l.b16 %v7663
      %v9036 = vunpack.c.h.b16 %v7663
      %v9037 = vunpack.c.l.b16 %v7664
      %v9038 = vunpack.c.h.b16 %v7664
      %v9039 = vunpack.c.l.b16 %v7665
      %v9040 = vunpack.c.h.b16 %v7665
      %v9041 = vunpack.c.l.b16 %v7666
      %v9042 = vunpack.c.h.b16 %v7666
      %v9043 = vunpack.c.l.b16 %v7667
      %v9044 = vunpack.c.h.b16 %v7667
      %v9045 = vunpack.c.l.b16 %v7668
      %v9046 = vunpack.c.h.b16 %v7668
      %v9047 = vunpack.c.l.b16 %v7669
      %v9048 = vunpack.c.h.b16 %v7669
      %v9049 = vunpack.c.l.b16 %v7670
      %v9050 = vunpack.c.h.b16 %v7670
      %v9051 = vunpack.c.l.b16 %v7671
      %v9052 = vunpack.c.h.b16 %v7671
      %v9053 = vunpack.c.l.b16 %v7672
      %v9054 = vunpack.c.h.b16 %v7672
      %v9055 = vunpack.c.l.b16 %v7673
      %v9056 = vunpack.c.h.b16 %v7673
      %v9057 = vunpack.c.l.b16 %v7674
      %v9058 = vunpack.c.h.b16 %v7674
      %v9059 = vunpack.c.l.b16 %v7675
      %v9060 = vunpack.c.h.b16 %v7675
      %v9061 = vunpack.c.l.b16 %v7676
      %v9062 = vunpack.c.h.b16 %v7676
      %v9063 = vunpack.c.l.b16 %v7677
      %v9064 = vunpack.c.h.b16 %v7677
      %v9065 = vunpack.c.l.b16 %v7678
      %v9066 = vunpack.c.h.b16 %v7678
      %v9067 = vunpack.c.l.b16 %v7679
      %v9068 = vunpack.c.h.b16 %v7679
      %v9069 = vunpack.c.l.b16 %v7680
      %v9070 = vunpack.c.h.b16 %v7680
      %v9071 = vunpack.c.l.b16 %v7681
      %v9072 = vunpack.c.h.b16 %v7681
      %v9073 = vunpack.c.l.b16 %v7682
      %v9074 = vunpack.c.h.b16 %v7682
      %v9075 = vunpack.c.l.b16 %v7683
      %v9076 = vunpack.c.h.b16 %v7683
      %v9077 = vunpack.c.l.b16 %v7684
      %v9078 = vunpack.c.h.b16 %v7684
      %v9079 = vunpack.c.l.b16 %v7685
      %v9080 = vunpack.c.h.b16 %v7685
      %v9081 = vunpack.c.l.b16 %v7686
      %v9082 = vunpack.c.h.b16 %v7686
      %v9083 = vunpack.c.l.b16 %v7687
      %v9084 = vunpack.c.h.b16 %v7687
      %v9085 = vunpack.c.l.b16 %v7688
      %v9086 = vunpack.c.h.b16 %v7688
      %v9087 = vunpack.c.l.b16 %v7689
      %v9088 = vunpack.c.h.b16 %v7689
      %v9089 = vunpack.c.l.b16 %v7690
      %v9090 = vunpack.c.h.b16 %v7690
      %v9091 = vunpack.c.l.b16 %v7691
      %v9092 = vunpack.c.h.b16 %v7691
      %v9093 = vunpack.c.l.b16 %v7692
      %v9094 = vunpack.c.h.b16 %v7692
      %v9095 = vunpack.c.l.b16 %v7693
      %v9096 = vunpack.c.h.b16 %v7693
      %v9097 = vunpack.c.l.b16 %v7694
      %v9098 = vunpack.c.h.b16 %v7694
      %v9099 = vunpack.c.l.b16 %v7695
      %v9100 = vunpack.c.h.b16 %v7695
      %v9101 = vunpack.c.l.b16 %v7696
      %v9102 = vunpack.c.h.b16 %v7696
      %v9103 = vunpack.c.l.b16 %v7697
      %v9104 = vunpack.c.h.b16 %v7697
      %v9105 = vunpack.c.l.b16 %v7698
      %v9106 = vunpack.c.h.b16 %v7698
      %v9107 = vunpack.c.l.b16 %v7699
      %v9108 = vunpack.c.h.b16 %v7699
      %v9109 = vunpack.c.l.b16 %v7700
      %v9110 = vunpack.c.h.b16 %v7700
      %v9111 = vunpack.c.l.b16 %v7701
      %v9112 = vunpack.c.h.b16 %v7701
      %v9113 = vunpack.c.l.b16 %v7702
      %v9114 = vunpack.c.h.b16 %v7702
      %v9115 = vunpack.c.l.b16 %v7703
      %v9116 = vunpack.c.h.b16 %v7703
      %v9117 = vunpack.c.l.b16 %v7704
      %v9118 = vunpack.c.h.b16 %v7704
      %v9119 = vunpack.c.l.b16 %v7705
      %v9120 = vunpack.c.h.b16 %v7705
      %v9121 = vunpack.c.l.b16 %v7706
      %v9122 = vunpack.c.h.b16 %v7706
      %v9123 = vunpack.c.l.b16 %v7707
      %v9124 = vunpack.c.h.b16 %v7707
      %v9125 = vunpack.c.l.b16 %v7708
      %v9126 = vunpack.c.h.b16 %v7708
      %v9127 = vunpack.c.l.b16 %v7709
      %v9128 = vunpack.c.h.b16 %v7709
      %v9129 = vunpack.c.l.b16 %v7710
      %v9130 = vunpack.c.h.b16 %v7710
      %v9131 = vunpack.c.l.b16 %v7711
      %v9132 = vunpack.c.h.b16 %v7711
      %v9133 = vunpack.c.l.b16 %v7712
      %v9134 = vunpack.c.h.b16 %v7712
      %v9135 = vunpack.c.l.b16 %v7713
      %v9136 = vunpack.c.h.b16 %v7713
      %v9137 = vunpack.c.l.b16 %v7714
      %v9138 = vunpack.c.h.b16 %v7714
      %v9139 = vunpack.c.l.b16 %v7715
      %v9140 = vunpack.c.h.b16 %v7715
      %v9141 = vunpack.c.l.b16 %v7716
      %v9142 = vunpack.c.h.b16 %v7716
      %v9143 = vunpack.c.l.b16 %v7717
      %v9144 = vunpack.c.h.b16 %v7717
      %v9145 = vunpack.c.l.b16 %v7718
      %v9146 = vunpack.c.h.b16 %v7718
      %v9147 = vunpack.c.l.b16 %v7719
      %v9148 = vunpack.c.h.b16 %v7719
      %v9149 = vunpack.c.l.b16 %v7720
      %v9150 = vunpack.c.h.b16 %v7720
      %v9151 = vunpack.c.l.b16 %v7721
      %v9152 = vunpack.c.h.b16 %v7721
      %v9153 = vunpack.c.l.b16 %v7722
      %v9154 = vunpack.c.h.b16 %v7722
      %v9155 = vunpack.c.l.b16 %v7723
      %v9156 = vunpack.c.h.b16 %v7723
      %v9157 = vunpack.c.l.b16 %v7724
      %v9158 = vunpack.c.h.b16 %v7724
      %v9159 = vunpack.c.l.b16 %v7725
      %v9160 = vunpack.c.h.b16 %v7725
      %v9161 = vunpack.c.l.b16 %v7726
      %v9162 = vunpack.c.h.b16 %v7726
      %v9163 = vunpack.c.l.b16 %v7727
      %v9164 = vunpack.c.h.b16 %v7727
      %v9165 = vunpack.c.l.b16 %v7728
      %v9166 = vunpack.c.h.b16 %v7728
      %v9167 = vunpack.c.l.b16 %v7729
      %v9168 = vunpack.c.h.b16 %v7729
      %v9169 = vunpack.c.l.b16 %v7730
      %v9170 = vunpack.c.h.b16 %v7730
      %v9171 = vunpack.c.l.b16 %v7731
      %v9172 = vunpack.c.h.b16 %v7731
      %v9173 = vunpack.c.l.b16 %v7732
      %v9174 = vunpack.c.h.b16 %v7732
      %v9175 = vunpack.c.l.b16 %v7733
      %v9176 = vunpack.c.h.b16 %v7733
      %v9177 = vunpack.c.l.b16 %v7734
      %v9178 = vunpack.c.h.b16 %v7734
      %v9179 = vunpack.c.l.b16 %v7735
      %v9180 = vunpack.c.h.b16 %v7735
      %v9181 = vunpack.c.l.b16 %v7736
      %v9182 = vunpack.c.h.b16 %v7736
      %v9183 = vunpack.c.l.b16 %v7737
      %v9184 = vunpack.c.h.b16 %v7737
      %v9185 = vunpack.c.l.b16 %v7738
      %v9186 = vunpack.c.h.b16 %v7738
      %v9187 = vunpack.c.l.b16 %v7739
      %v9188 = vunpack.c.h.b16 %v7739
      %v9189 = vunpack.c.l.b16 %v7740
      %v9190 = vunpack.c.h.b16 %v7740
      %v9191 = vunpack.c.l.b16 %v7741
      %v9192 = vunpack.c.h.b16 %v7741
      %v9193 = vunpack.c.l.b16 %v7742
      %v9194 = vunpack.c.h.b16 %v7742
      %v9195 = vunpack.c.l.b16 %v7743
      %v9196 = vunpack.c.h.b16 %v7743
      %v9197 = vunpack.c.l.b16 %v7744
      %v9198 = vunpack.c.h.b16 %v7744
      %v9199 = vunpack.c.l.b16 %v7745
      %v9200 = vunpack.c.h.b16 %v7745
      %v9201 = vunpack.c.l.b16 %v7746
      %v9202 = vunpack.c.h.b16 %v7746
      %v9203 = vunpack.c.l.b16 %v7747
      %v9204 = vunpack.c.h.b16 %v7747
      %v9205 = vunpack.c.l.b16 %v7748
      %v9206 = vunpack.c.h.b16 %v7748
      %v9207 = vunpack.c.l.b16 %v7749
      %v9208 = vunpack.c.h.b16 %v7749
      %v9209 = vunpack.c.l.b16 %v7750
      %v9210 = vunpack.c.h.b16 %v7750
      %v9211 = vunpack.c.l.b16 %v7751
      %v9212 = vunpack.c.h.b16 %v7751
      %v9213 = vunpack.c.l.b16 %v7752
      %v9214 = vunpack.c.h.b16 %v7752
      %v9215 = vunpack.c.l.b16 %v7753
      %v9216 = vunpack.c.h.b16 %v7753
      %v9217 = vunpack.c.l.b16 %v7754
      %v9218 = vunpack.c.h.b16 %v7754
      %v9219 = vunpack.c.l.b16 %v7755
      %v9220 = vunpack.c.h.b16 %v7755
      %v9221 = vunpack.c.l.b16 %v7756
      %v9222 = vunpack.c.h.b16 %v7756
      %v9223 = vunpack.c.l.b16 %v7757
      %v9224 = vunpack.c.h.b16 %v7757
      %v9225 = vunpack.c.l.b16 %v7758
      %v9226 = vunpack.c.h.b16 %v7758
      %v9227 = vunpack.c.l.b16 %v7759
      %v9228 = vunpack.c.h.b16 %v7759
      %v9229 = vunpack.c.l.b16 %v7760
      %v9230 = vunpack.c.h.b16 %v7760
      %v9231 = vunpack.c.l.b16 %v7761
      %v9232 = vunpack.c.h.b16 %v7761
      %v9233 = vunpack.c.l.b16 %v7762
      %v9234 = vunpack.c.h.b16 %v7762
      %v9235 = vunpack.c.l.b16 %v7763
      %v9236 = vunpack.c.h.b16 %v7763
      %v9237 = vunpack.c.l.b16 %v7764
      %v9238 = vunpack.c.h.b16 %v7764
      %v9239 = vunpack.c.l.b16 %v7765
      %v9240 = vunpack.c.h.b16 %v7765
      %v9241 = vunpack.c.l.b16 %v7766
      %v9242 = vunpack.c.h.b16 %v7766
      %v9243 = vunpack.c.l.b16 %v7767
      %v9244 = vunpack.c.h.b16 %v7767
      %v9245 = vunpack.c.l.b16 %v7768
      %v9246 = vunpack.c.h.b16 %v7768
      %v9247 = vunpack.c.l.b16 %v7769
      %v9248 = vunpack.c.h.b16 %v7769
      %v9249 = vunpack.c.l.b16 %v7770
      %v9250 = vunpack.c.h.b16 %v7770
      %v9251 = vunpack.c.l.b16 %v7771
      %v9252 = vunpack.c.h.b16 %v7771
      %v9253 = vunpack.c.l.b16 %v7772
      %v9254 = vunpack.c.h.b16 %v7772
      %v9255 = vunpack.c.l.b16 %v7773
      %v9256 = vunpack.c.h.b16 %v7773
      %v9257 = vunpack.c.l.b16 %v7774
      %v9258 = vunpack.c.h.b16 %v7774
      %v9259 = vunpack.c.l.b16 %v7775
      %v9260 = vunpack.c.h.b16 %v7775
      %v9261 = vunpack.c.l.b16 %v7776
      %v9262 = vunpack.c.h.b16 %v7776
      %v9263 = vunpack.c.l.b16 %v7777
      %v9264 = vunpack.c.h.b16 %v7777
      %v9265 = vunpack.c.l.b16 %v7778
      %v9266 = vunpack.c.h.b16 %v7778
      %v9267 = vunpack.c.l.b16 %v7779
      %v9268 = vunpack.c.h.b16 %v7779
      %v9269 = vunpack.c.l.b16 %v7780
      %v9270 = vunpack.c.h.b16 %v7780
      %v9271 = vunpack.c.l.b16 %v7781
      %v9272 = vunpack.c.h.b16 %v7781
      %v9273 = vunpack.c.l.b16 %v7782
      %v9274 = vunpack.c.h.b16 %v7782
      %v9275 = vunpack.c.l.b16 %v7783
      %v9276 = vunpack.c.h.b16 %v7783
      %v9277 = vunpack.c.l.b16 %v7784
      %v9278 = vunpack.c.h.b16 %v7784
      %v9279 = vunpack.c.l.b16 %v7785
      %v9280 = vunpack.c.h.b16 %v7785
      %v9281 = vunpack.c.l.b16 %v7786
      %v9282 = vunpack.c.h.b16 %v7786
      %v9283 = vunpack.c.l.b16 %v7787
      %v9284 = vunpack.c.h.b16 %v7787
      %v9285 = vunpack.c.l.b16 %v7788
      %v9286 = vunpack.c.h.b16 %v7788
      %v9287 = vunpack.c.l.b16 %v7789
      %v9288 = vunpack.c.h.b16 %v7789
      %v9289 = vunpack.c.l.b16 %v7790
      %v9290 = vunpack.c.h.b16 %v7790
      %v9291 = vunpack.c.l.b16 %v7791
      %v9292 = vunpack.c.h.b16 %v7791
      %v9293 = vunpack.c.l.b16 %v7792
      %v9294 = vunpack.c.h.b16 %v7792
      %v9295 = vunpack.c.l.b16 %v7793
      %v9296 = vunpack.c.h.b16 %v7793
      %v9297 = vunpack.c.l.b16 %v7794
      %v9298 = vunpack.c.h.b16 %v7794
      %v9299 = vunpack.c.l.b16 %v7795
      %v9300 = vunpack.c.h.b16 %v7795
      %v9301 = vunpack.c.l.b16 %v7796
      %v9302 = vunpack.c.h.b16 %v7796
      %v9303 = vunpack.c.l.b16 %v7797
      %v9304 = vunpack.c.h.b16 %v7797
      %v9305 = vunpack.c.l.b16 %v7798
      %v9306 = vunpack.c.h.b16 %v7798
      %v9307 = vunpack.c.l.b16 %v7799
      %v9308 = vunpack.c.h.b16 %v7799
      %v9309 = vunpack.c.l.b16 %v7800
      %v9310 = vunpack.c.h.b16 %v7800
      %v9311 = vunpack.c.l.b16 %v7801
      %v9312 = vunpack.c.h.b16 %v7801
      %v9313 = vunpack.c.l.b16 %v7802
      %v9314 = vunpack.c.h.b16 %v7802
      %v9315 = vunpack.c.l.b16 %v7803
      %v9316 = vunpack.c.h.b16 %v7803
      %v9317 = vunpack.c.l.b16 %v7804
      %v9318 = vunpack.c.h.b16 %v7804
      %v9319 = vunpack.c.l.b16 %v7805
      %v9320 = vunpack.c.h.b16 %v7805
      %v9321 = vunpack.c.l.b16 %v7806
      %v9322 = vunpack.c.h.b16 %v7806
      %v9323 = vunpack.c.l.b16 %v7807
      %v9324 = vunpack.c.h.b16 %v7807
      %v9325 = vunpack.c.l.b16 %v7808
      %v9326 = vunpack.c.h.b16 %v7808
      %v9327 = vunpack.c.l.b16 %v7809
      %v9328 = vunpack.c.h.b16 %v7809
      %v9329 = vunpack.c.l.b16 %v7810
      %v9330 = vunpack.c.h.b16 %v7810
      %v9331 = vunpack.c.l.b16 %v7811
      %v9332 = vunpack.c.h.b16 %v7811
      %v9333 = vunpack.c.l.b16 %v7812
      %v9334 = vunpack.c.h.b16 %v7812
      %v9335 = vunpack.c.l.b16 %v7813
      %v9336 = vunpack.c.h.b16 %v7813
      %v9337 = vunpack.c.l.b16 %v7814
      %v9338 = vunpack.c.h.b16 %v7814
      %v9339 = vunpack.c.l.b16 %v7815
      %v9340 = vunpack.c.h.b16 %v7815
      %v9341 = vunpack.c.l.b16 %v7816
      %v9342 = vunpack.c.h.b16 %v7816
      %v9343 = vunpack.c.l.b16 %v7817
      %v9344 = vunpack.c.h.b16 %v7817
      %v9345 = vunpack.c.l.b16 %v7818
      %v9346 = vunpack.c.h.b16 %v7818
      %v9347 = vunpack.c.l.b16 %v7819
      %v9348 = vunpack.c.h.b16 %v7819
      %v9349 = vunpack.c.l.b16 %v7820
      %v9350 = vunpack.c.h.b16 %v7820
      %v9351 = vunpack.c.l.b16 %v7821
      %v9352 = vunpack.c.h.b16 %v7821
      %v9353 = vunpack.c.l.b16 %v7822
      %v9354 = vunpack.c.h.b16 %v7822
      %v9355 = vunpack.c.l.b16 %v7823
      %v9356 = vunpack.c.h.b16 %v7823
      %v9357 = vunpack.c.l.b16 %v7824
      %v9358 = vunpack.c.h.b16 %v7824
      %v9359 = vunpack.c.l.b16 %v7825
      %v9360 = vunpack.c.h.b16 %v7825
      %v9361 = vunpack.c.l.b16 %v7826
      %v9362 = vunpack.c.h.b16 %v7826
      %v9363 = vunpack.c.l.b16 %v7827
      %v9364 = vunpack.c.h.b16 %v7827
      %v9365 = vunpack.c.l.b16 %v7828
      %v9366 = vunpack.c.h.b16 %v7828
      %v9367 = vunpack.c.l.b16 %v7829
      %v9368 = vunpack.c.h.b16 %v7829
      %v9369 = vunpack.c.l.b16 %v7830
      %v9370 = vunpack.c.h.b16 %v7830
      %v9371 = vunpack.c.l.b16 %v7831
      %v9372 = vunpack.c.h.b16 %v7831
      %v9373 = vunpack.c.l.b16 %v7832
      %v9374 = vunpack.c.h.b16 %v7832
      %v9375 = vunpack.c.l.b16 %v7833
      %v9376 = vunpack.c.h.b16 %v7833
      %v9377 = vunpack.c.l.b16 %v7834
      %v9378 = vunpack.c.h.b16 %v7834
      %v9379 = vunpack.c.l.b16 %v7835
      %v9380 = vunpack.c.h.b16 %v7835
      %v9381 = vunpack.c.l.b16 %v7836
      %v9382 = vunpack.c.h.b16 %v7836
      %v9383 = vunpack.c.l.b16 %v7837
      %v9384 = vunpack.c.h.b16 %v7837
      %v9385 = vunpack.c.l.b16 %v7838
      %v9386 = vunpack.c.h.b16 %v7838
      %v9387 = vunpack.c.l.b16 %v7839
      %v9388 = vunpack.c.h.b16 %v7839
      %v9389 = vunpack.c.l.b16 %v7840
      %v9390 = vunpack.c.h.b16 %v7840
      %v9391 = vunpack.c.l.b16 %v7841
      %v9392 = vunpack.c.h.b16 %v7841
      %v9393 = vunpack.c.l.b16 %v7842
      %v9394 = vunpack.c.h.b16 %v7842
      %v9395 = vunpack.c.l.b16 %v7843
      %v9396 = vunpack.c.h.b16 %v7843
      %v9397 = vunpack.c.l.b16 %v7844
      %v9398 = vunpack.c.h.b16 %v7844
      %v9399 = vunpack.c.l.b16 %v7845
      %v9400 = vunpack.c.h.b16 %v7845
      %v9401 = vunpack.c.l.b16 %v7846
      %v9402 = vunpack.c.h.b16 %v7846
      %v9403 = vunpack.c.l.b16 %v7847
      %v9404 = vunpack.c.h.b16 %v7847
      %v9405 = vunpack.c.l.b16 %v7848
      %v9406 = vunpack.c.h.b16 %v7848
      %v9407 = vunpack.c.l.b16 %v7849
      %v9408 = vunpack.c.h.b16 %v7849
      %v9409 = vunpack.c.l.b16 %v7850
      %v9410 = vunpack.c.h.b16 %v7850
      %v9411 = vunpack.c.l.b16 %v7851
      %v9412 = vunpack.c.h.b16 %v7851
      %v9413 = vunpack.c.l.b16 %v7852
      %v9414 = vunpack.c.h.b16 %v7852
      %v9415 = vunpack.c.l.b16 %v7853
      %v9416 = vunpack.c.h.b16 %v7853
      %v9417 = vunpack.c.l.b16 %v7854
      %v9418 = vunpack.c.h.b16 %v7854
      %v9419 = vunpack.c.l.b16 %v7855
      %v9420 = vunpack.c.h.b16 %v7855
      %v9421 = vunpack.c.l.b16 %v7856
      %v9422 = vunpack.c.h.b16 %v7856
      %v9423 = vunpack.c.l.b16 %v7857
      %v9424 = vunpack.c.h.b16 %v7857
      %v9425 = vunpack.c.l.b16 %v7858
      %v9426 = vunpack.c.h.b16 %v7858
      %v9427 = vunpack.c.l.b16 %v7859
      %v9428 = vunpack.c.h.b16 %v7859
      %v9429 = vunpack.c.l.b16 %v7860
      %v9430 = vunpack.c.h.b16 %v7860
      %v9431 = vunpack.c.l.b16 %v7861
      %v9432 = vunpack.c.h.b16 %v7861
      %v9433 = vunpack.c.l.b16 %v7862
      %v9434 = vunpack.c.h.b16 %v7862
      %v9435 = vunpack.c.l.b16 %v7863
      %v9436 = vunpack.c.h.b16 %v7863
      %v9437 = vunpack.c.l.b16 %v7864
      %v9438 = vunpack.c.h.b16 %v7864
      %v9439 = vunpack.c.l.b16 %v7865
      %v9440 = vunpack.c.h.b16 %v7865
      %v9441 = vunpack.c.l.b16 %v7866
      %v9442 = vunpack.c.h.b16 %v7866
      %v9443 = vunpack.c.l.b16 %v7867
      %v9444 = vunpack.c.h.b16 %v7867
      %v9445 = vunpack.c.l.b16 %v7868
      %v9446 = vunpack.c.h.b16 %v7868
      %v9447 = vunpack.c.l.b16 %v7869
      %v9448 = vunpack.c.h.b16 %v7869
      %v9449 = vunpack.c.l.b16 %v7870
      %v9450 = vunpack.c.h.b16 %v7870
      %v9451 = vunpack.c.l.b16 %v7871
      %v9452 = vunpack.c.h.b16 %v7871
      %v9453 = vunpack.c.l.b16 %v7872
      %v9454 = vunpack.c.h.b16 %v7872
      %v9455 = vunpack.c.l.b16 %v7873
      %v9456 = vunpack.c.h.b16 %v7873
      %v9457 = vunpack.c.l.b16 %v7874
      %v9458 = vunpack.c.h.b16 %v7874
      %v9459 = vunpack.c.l.b16 %v7875
      %v9460 = vunpack.c.h.b16 %v7875
      %v9461 = vunpack.c.l.b16 %v7876
      %v9462 = vunpack.c.h.b16 %v7876
      %v9463 = vunpack.c.l.b16 %v7877
      %v9464 = vunpack.c.h.b16 %v7877
      %v9465 = vunpack.c.l.b16 %v7878
      %v9466 = vunpack.c.h.b16 %v7878
      %v9467 = vunpack.c.l.b16 %v7879
      %v9468 = vunpack.c.h.b16 %v7879
      %v9469 = vunpack.c.l.b16 %v7880
      %v9470 = vunpack.c.h.b16 %v7880
      %v9471 = vunpack.c.l.b16 %v7881
      %v9472 = vunpack.c.h.b16 %v7881
      %v9473 = vunpack.c.l.b16 %v7882
      %v9474 = vunpack.c.h.b16 %v7882
      %v9475 = vunpack.c.l.b16 %v7883
      %v9476 = vunpack.c.h.b16 %v7883
      %v9477 = vunpack.c.l.b16 %v7884
      %v9478 = vunpack.c.h.b16 %v7884
      %v9479 = vunpack.c.l.b16 %v7885
      %v9480 = vunpack.c.h.b16 %v7885
      %v9481 = vunpack.c.l.b16 %v7886
      %v9482 = vunpack.c.h.b16 %v7886
      %v9483 = vunpack.c.l.b16 %v7887
      %v9484 = vunpack.c.h.b16 %v7887
      %v9485 = vunpack.c.l.b16 %v7888
      %v9486 = vunpack.c.h.b16 %v7888
      %v9487 = vunpack.c.l.b16 %v7889
      %v9488 = vunpack.c.h.b16 %v7889
      %v9489 = vunpack.c.l.b16 %v7890
      %v9490 = vunpack.c.h.b16 %v7890
      %v9491 = vunpack.c.l.b16 %v7891
      %v9492 = vunpack.c.h.b16 %v7891
      %v9493 = vunpack.c.l.b16 %v7892
      %v9494 = vunpack.c.h.b16 %v7892
      %v9495 = vunpack.c.l.b16 %v7893
      %v9496 = vunpack.c.h.b16 %v7893
      %v9497 = vunpack.c.l.b16 %v7894
      %v9498 = vunpack.c.h.b16 %v7894
      %v9499 = vunpack.c.l.b16 %v7895
      %v9500 = vunpack.c.h.b16 %v7895
      %v9501 = vunpack.c.l.b16 %v7896
      %v9502 = vunpack.c.h.b16 %v7896
      %v9503 = vunpack.c.l.b16 %v7897
      %v9504 = vunpack.c.h.b16 %v7897
      %v9505 = vunpack.c.l.b16 %v7898
      %v9506 = vunpack.c.h.b16 %v7898
      %v9507 = vunpack.c.l.b16 %v7899
      %v9508 = vunpack.c.h.b16 %v7899
      %v9509 = vunpack.c.l.b16 %v7900
      %v9510 = vunpack.c.h.b16 %v7900
      %v9511 = vunpack.c.l.b16 %v7901
      %v9512 = vunpack.c.h.b16 %v7901
      %v9513 = vunpack.c.l.b16 %v7902
      %v9514 = vunpack.c.h.b16 %v7902
      %v9515 = vunpack.c.l.b16 %v7903
      %v9516 = vunpack.c.h.b16 %v7903
      %v9517 = vunpack.c.l.b16 %v7904
      %v9518 = vunpack.c.h.b16 %v7904
      %v9519 = vunpack.c.l.b16 %v7905
      %v9520 = vunpack.c.h.b16 %v7905
      %v9521 = vunpack.c.l.b16 %v7906
      %v9522 = vunpack.c.h.b16 %v7906
      %v9523 = vunpack.c.l.b16 %v7907
      %v9524 = vunpack.c.h.b16 %v7907
      %v9525 = vunpack.c.l.b16 %v7908
      %v9526 = vunpack.c.h.b16 %v7908
      %v9527 = vunpack.c.l.b16 %v7909
      %v9528 = vunpack.c.h.b16 %v7909
      %v9529 = vunpack.c.l.b16 %v7910
      %v9530 = vunpack.c.h.b16 %v7910
      %v9531 = vunpack.c.l.b16 %v7911
      %v9532 = vunpack.c.h.b16 %v7911
      %v9533 = vunpack.c.l.b16 %v7912
      %v9534 = vunpack.c.h.b16 %v7912
      %v9535 = vunpack.c.l.b16 %v7913
      %v9536 = vunpack.c.h.b16 %v7913
      %v9537 = vunpack.c.l.b16 %v7914
      %v9538 = vunpack.c.h.b16 %v7914
      %v9539 = vunpack.c.l.b16 %v7915
      %v9540 = vunpack.c.h.b16 %v7915
      %v9541 = vunpack.c.l.b16 %v7916
      %v9542 = vunpack.c.h.b16 %v7916
      %v9543 = vunpack.c.l.b16 %v7917
      %v9544 = vunpack.c.h.b16 %v7917
      %v9545 = vunpack.c.l.b16 %v7918
      %v9546 = vunpack.c.h.b16 %v7918
      %v9547 = vunpack.c.l.b16 %v7919
      %v9548 = vunpack.c.h.b16 %v7919
      %v9549 = vunpack.c.l.b16 %v7920
      %v9550 = vunpack.c.h.b16 %v7920
      %v9551 = vunpack.c.l.b16 %v7921
      %v9552 = vunpack.c.h.b16 %v7921
      %v9553 = vunpack.c.l.b16 %v7922
      %v9554 = vunpack.c.h.b16 %v7922
      %v9555 = vunpack.c.l.b16 %v7923
      %v9556 = vunpack.c.h.b16 %v7923
      %v9557 = vunpack.c.l.b16 %v7924
      %v9558 = vunpack.c.h.b16 %v7924
      %v9559 = vunpack.c.l.b16 %v7925
      %v9560 = vunpack.c.h.b16 %v7925
      %v9561 = vunpack.c.l.b16 %v7926
      %v9562 = vunpack.c.h.b16 %v7926
      %v9563 = vunpack.c.l.b16 %v7927
      %v9564 = vunpack.c.h.b16 %v7927
      %v9565 = vunpack.c.l.b16 %v7928
      %v9566 = vunpack.c.h.b16 %v7928
      %v9567 = vunpack.c.l.b16 %v7929
      %v9568 = vunpack.c.h.b16 %v7929
      %v9569 = vunpack.c.l.b16 %v7930
      %v9570 = vunpack.c.h.b16 %v7930
      %v9571 = vunpack.c.l.b16 %v7931
      %v9572 = vunpack.c.h.b16 %v7931
      %v9573 = vunpack.c.l.b16 %v7932
      %v9574 = vunpack.c.h.b16 %v7932
      %v9575 = vunpack.c.l.b16 %v7933
      %v9576 = vunpack.c.h.b16 %v7933
      %v9577 = vunpack.c.l.b16 %v7934
      %v9578 = vunpack.c.h.b16 %v7934
      %v9579 = vunpack.c.l.b16 %v7935
      %v9580 = vunpack.c.h.b16 %v7935
      %v9581 = vunpack.c.l.b16 %v7936
      %v9582 = vunpack.c.h.b16 %v7936
      %v9583 = vunpack.c.l.b16 %v7937
      %v9584 = vunpack.c.h.b16 %v7937
      %v9585 = vunpack.c.l.b16 %v7938
      %v9586 = vunpack.c.h.b16 %v7938
      %v9587 = vunpack.c.l.b16 %v7939
      %v9588 = vunpack.c.h.b16 %v7939
      %v9589 = vunpack.c.l.b16 %v7940
      %v9590 = vunpack.c.h.b16 %v7940
      %v9591 = vunpack.c.l.b16 %v7941
      %v9592 = vunpack.c.h.b16 %v7941
      %v9593 = vunpack.c.l.b16 %v7942
      %v9594 = vunpack.c.h.b16 %v7942
      %v9595 = vunpack.c.l.b16 %v7943
      %v9596 = vunpack.c.h.b16 %v7943
      %v9597 = vunpack.c.l.b16 %v7944
      %v9598 = vunpack.c.h.b16 %v7944
      %v9599 = vunpack.c.l.b16 %v7945
      %v9600 = vunpack.c.h.b16 %v7945
      %v9601 = vunpack.c.l.b16 %v7946
      %v9602 = vunpack.c.h.b16 %v7946
      %v9603 = vunpack.c.l.b16 %v7947
      %v9604 = vunpack.c.h.b16 %v7947
      %v9605 = vunpack.c.l.b16 %v7948
      %v9606 = vunpack.c.h.b16 %v7948
      %v9607 = vunpack.c.l.b16 %v7949
      %v9608 = vunpack.c.h.b16 %v7949
      %v9609 = vunpack.c.l.b16 %v7950
      %v9610 = vunpack.c.h.b16 %v7950
      %v9611 = vunpack.c.l.b16 %v7951
      %v9612 = vunpack.c.h.b16 %v7951
      %v9613 = vunpack.c.l.b16 %v7952
      %v9614 = vunpack.c.h.b16 %v7952
      %v9615 = vunpack.c.l.b16 %v7953
      %v9616 = vunpack.c.h.b16 %v7953
      %v9617 = vunpack.c.l.b16 %v7954
      %v9618 = vunpack.c.h.b16 %v7954
      %v9619 = vunpack.c.l.b16 %v7955
      %v9620 = vunpack.c.h.b16 %v7955
      %v9621 = vunpack.c.l.b16 %v7956
      %v9622 = vunpack.c.h.b16 %v7956
      %v9623 = vunpack.c.l.b16 %v7957
      %v9624 = vunpack.c.h.b16 %v7957
      %v9625 = vunpack.c.l.b16 %v7958
      %v9626 = vunpack.c.h.b16 %v7958
      %v9627 = vunpack.c.l.b16 %v7959
      %v9628 = vunpack.c.h.b16 %v7959
      %v9629 = vunpack.c.l.b16 %v7960
      %v9630 = vunpack.c.h.b16 %v7960
      %v9631 = vunpack.c.l.b16 %v7961
      %v9632 = vunpack.c.h.b16 %v7961
      %v9633 = vunpack.c.l.b16 %v7962
      %v9634 = vunpack.c.h.b16 %v7962
      %v9635 = vunpack.c.l.b16 %v7963
      %v9636 = vunpack.c.h.b16 %v7963
      %v9637 = vunpack.c.l.b16 %v7964
      %v9638 = vunpack.c.h.b16 %v7964
      %v9639 = vunpack.c.l.b16 %v7965
      %v9640 = vunpack.c.h.b16 %v7965
      %v9641 = vunpack.c.l.b16 %v7966
      %v9642 = vunpack.c.h.b16 %v7966
      %v9643 = vunpack.c.l.b16 %v7967
      %v9644 = vunpack.c.h.b16 %v7967
      %v9645 = vunpack.c.l.b16 %v7968
      %v9646 = vunpack.c.h.b16 %v7968
      %v9647 = vunpack.c.l.b16 %v7969
      %v9648 = vunpack.c.h.b16 %v7969
      %v9649 = vunpack.c.l.b16 %v7970
      %v9650 = vunpack.c.h.b16 %v7970
      %v9651 = vunpack.c.l.b16 %v7971
      %v9652 = vunpack.c.h.b16 %v7971
      %v9653 = vunpack.c.l.b16 %v7972
      %v9654 = vunpack.c.h.b16 %v7972
      %v9655 = vunpack.c.l.b16 %v7973
      %v9656 = vunpack.c.h.b16 %v7973
      %v9657 = vunpack.c.l.b16 %v7974
      %v9658 = vunpack.c.h.b16 %v7974
      %v9659 = vunpack.c.l.b16 %v7975
      %v9660 = vunpack.c.h.b16 %v7975
      %v9661 = vunpack.c.l.b16 %v7976
      %v9662 = vunpack.c.h.b16 %v7976
      %v9663 = vunpack.c.l.b16 %v7977
      %v9664 = vunpack.c.h.b16 %v7977
      %v9665 = vunpack.c.l.b16 %v7978
      %v9666 = vunpack.c.h.b16 %v7978
      %v9667 = vunpack.c.l.b16 %v7979
      %v9668 = vunpack.c.h.b16 %v7979
      %v9669 = vunpack.c.l.b16 %v7980
      %v9670 = vunpack.c.h.b16 %v7980
      %v9671 = vunpack.c.l.b16 %v7981
      %v9672 = vunpack.c.h.b16 %v7981
      %v9673 = vunpack.c.l.b16 %v7982
      %v9674 = vunpack.c.h.b16 %v7982
      %v9675 = vunpack.c.l.b16 %v7983
      %v9676 = vunpack.c.h.b16 %v7983
      %v9677 = vunpack.c.l.b16 %v7984
      %v9678 = vunpack.c.h.b16 %v7984
      %v9679 = vunpack.c.l.b16 %v7985
      %v9680 = vunpack.c.h.b16 %v7985
      %v9681 = vunpack.c.l.b16 %v7986
      %v9682 = vunpack.c.h.b16 %v7986
      %v9683 = vunpack.c.l.b16 %v7987
      %v9684 = vunpack.c.h.b16 %v7987
      %v9685 = vunpack.c.l.b16 %v7988
      %v9686 = vunpack.c.h.b16 %v7988
      %v9687 = vunpack.c.l.b16 %v7989
      %v9688 = vunpack.c.h.b16 %v7989
      %v9689 = vunpack.c.l.b16 %v7990
      %v9690 = vunpack.c.h.b16 %v7990
      %v9691 = vunpack.c.l.b16 %v7991
      %v9692 = vunpack.c.h.b16 %v7991
      %v9693 = vunpack.c.l.b16 %v7992
      %v9694 = vunpack.c.h.b16 %v7992
      %v9695 = vunpack.c.l.b16 %v7993
      %v9696 = vunpack.c.h.b16 %v7993
      %v9697 = vunpack.c.l.b16 %v7994
      %v9698 = vunpack.c.h.b16 %v7994
      %v9699 = vunpack.c.l.b16 %v7995
      %v9700 = vunpack.c.h.b16 %v7995
      %v9701 = vunpack.c.l.b16 %v7996
      %v9702 = vunpack.c.h.b16 %v7996
      %v9703 = vunpack.c.l.b16 %v7997
      %v9704 = vunpack.c.h.b16 %v7997
      %v9705 = vunpack.c.l.b16 %v7998
      %v9706 = vunpack.c.h.b16 %v7998
      %v9707 = vunpack.c.l.b16 %v7999
      %v9708 = vunpack.c.h.b16 %v7999
      %v9709 = vunpack.c.l.b16 %v8000
      %v9710 = vunpack.c.h.b16 %v8000
      %v9711 = vunpack.c.l.b16 %v8001
      %v9712 = vunpack.c.h.b16 %v8001
      %v9713 = vunpack.c.l.b16 %v8002
      %v9714 = vunpack.c.h.b16 %v8002
      %v9715 = vunpack.c.l.b16 %v8003
      %v9716 = vunpack.c.h.b16 %v8003
      %v9717 = vunpack.c.l.b16 %v8004
      %v9718 = vunpack.c.h.b16 %v8004
      %v9719 = vunpack.c.l.b16 %v8005
      %v9720 = vunpack.c.h.b16 %v8005
      %v9721 = vunpack.c.l.b16 %v8006
      %v9722 = vunpack.c.h.b16 %v8006
      %v9723 = vunpack.c.l.b16 %v8007
      %v9724 = vunpack.c.h.b16 %v8007
      %v9725 = vunpack.c.l.b16 %v8008
      %v9726 = vunpack.c.h.b16 %v8008
      %v9727 = vunpack.c.l.b16 %v8009
      %v9728 = vunpack.c.h.b16 %v8009
      %v9729 = vunpack.c.l.b16 %v8010
      %v9730 = vunpack.c.h.b16 %v8010
      %v9731 = vunpack.c.l.b16 %v8011
      %v9732 = vunpack.c.h.b16 %v8011
      %v9733 = vunpack.c.l.b16 %v8012
      %v9734 = vunpack.c.h.b16 %v8012
      %v9735 = vunpack.c.l.b16 %v8013
      %v9736 = vunpack.c.h.b16 %v8013
      %v9737 = vunpack.c.l.b16 %v8014
      %v9738 = vunpack.c.h.b16 %v8014
      %v9739 = vunpack.c.l.b16 %v8015
      %v9740 = vunpack.c.h.b16 %v8015
      %v9741 = vunpack.c.l.b16 %v8016
      %v9742 = vunpack.c.h.b16 %v8016
      %v9743 = vunpack.c.l.b16 %v8017
      %v9744 = vunpack.c.h.b16 %v8017
      %v9745 = vunpack.c.l.b16 %v8018
      %v9746 = vunpack.c.h.b16 %v8018
      %v9747 = vunpack.c.l.b16 %v8019
      %v9748 = vunpack.c.h.b16 %v8019
      %v9749 = vpack.c.b16 %v8601, %v8597
      %v9750 = vpack.c.b16 %v8602, %v8598
      %v9751 = vpack.c.b16 %v8603, %v8599
      %v9752 = vpack.c.b16 %v8604, %v8600
      %v9753 = vpack.c.b16 %v8609, %v8605
      %v9754 = vpack.c.b16 %v8610, %v8606
      %v9755 = vpack.c.b16 %v8611, %v8607
      %v9756 = vpack.c.b16 %v8612, %v8608
      %v9757 = vpack.c.b16 %v8617, %v8613
      %v9758 = vpack.c.b16 %v8618, %v8614
      %v9759 = vpack.c.b16 %v8619, %v8615
      %v9760 = vpack.c.b16 %v8620, %v8616
      %v9761 = vpack.c.b16 %v8625, %v8621
      %v9762 = vpack.c.b16 %v8626, %v8622
      %v9763 = vpack.c.b16 %v8627, %v8623
      %v9764 = vpack.c.b16 %v8628, %v8624
      %v9765 = vpack.c.b16 %v8633, %v8629
      %v9766 = vpack.c.b16 %v8634, %v8630
      %v9767 = vpack.c.b16 %v8635, %v8631
      %v9768 = vpack.c.b16 %v8636, %v8632
      %v9769 = vpack.c.b16 %v8641, %v8637
      %v9770 = vpack.c.b16 %v8642, %v8638
      %v9771 = vpack.c.b16 %v8643, %v8639
      %v9772 = vpack.c.b16 %v8644, %v8640
      %v9773 = vpack.c.b16 %v8649, %v8645
      %v9774 = vpack.c.b16 %v8650, %v8646
      %v9775 = vpack.c.b16 %v8651, %v8647
      %v9776 = vpack.c.b16 %v8652, %v8648
      %v9777 = vpack.c.b16 %v8657, %v8653
      %v9778 = vpack.c.b16 %v8658, %v8654
      %v9779 = vpack.c.b16 %v8659, %v8655
      %v9780 = vpack.c.b16 %v8660, %v8656
      %v9781 = vpack.c.b16 %v8665, %v8661
      %v9782 = vpack.c.b16 %v8666, %v8662
      %v9783 = vpack.c.b16 %v8667, %v8663
      %v9784 = vpack.c.b16 %v8668, %v8664
      %v9785 = vpack.c.b16 %v8673, %v8669
      %v9786 = vpack.c.b16 %v8674, %v8670
      %v9787 = vpack.c.b16 %v8675, %v8671
      %v9788 = vpack.c.b16 %v8676, %v8672
      %v9789 = vpack.c.b16 %v8681, %v8677
      %v9790 = vpack.c.b16 %v8682, %v8678
      %v9791 = vpack.c.b16 %v8683, %v8679
      %v9792 = vpack.c.b16 %v8684, %v8680
      %v9793 = vpack.c.b16 %v8689, %v8685
      %v9794 = vpack.c.b16 %v8690, %v8686
      %v9795 = vpack.c.b16 %v8691, %v8687
      %v9796 = vpack.c.b16 %v8692, %v8688
      %v9797 = vpack.c.b16 %v8697, %v8693
      %v9798 = vpack.c.b16 %v8698, %v8694
      %v9799 = vpack.c.b16 %v8699, %v8695
      %v9800 = vpack.c.b16 %v8700, %v8696
      %v9801 = vpack.c.b16 %v8705, %v8701
      %v9802 = vpack.c.b16 %v8706, %v8702
      %v9803 = vpack.c.b16 %v8707, %v8703
      %v9804 = vpack.c.b16 %v8708, %v8704
      %v9805 = vpack.c.b16 %v8713, %v8709
      %v9806 = vpack.c.b16 %v8714, %v8710
      %v9807 = vpack.c.b16 %v8715, %v8711
      %v9808 = vpack.c.b16 %v8716, %v8712
      %v9809 = vpack.c.b16 %v8721, %v8717
      %v9810 = vpack.c.b16 %v8722, %v8718
      %v9811 = vpack.c.b16 %v8723, %v8719
      %v9812 = vpack.c.b16 %v8724, %v8720
      %v9813 = vpack.c.b16 %v8729, %v8725
      %v9814 = vpack.c.b16 %v8730, %v8726
      %v9815 = vpack.c.b16 %v8731, %v8727
      %v9816 = vpack.c.b16 %v8732, %v8728
      %v9817 = vpack.c.b16 %v8737, %v8733
      %v9818 = vpack.c.b16 %v8738, %v8734
      %v9819 = vpack.c.b16 %v8739, %v8735
      %v9820 = vpack.c.b16 %v8740, %v8736
      %v9821 = vpack.c.b16 %v8745, %v8741
      %v9822 = vpack.c.b16 %v8746, %v8742
      %v9823 = vpack.c.b16 %v8747, %v8743
      %v9824 = vpack.c.b16 %v8748, %v8744
      %v9825 = vpack.c.b16 %v8753, %v8749
      %v9826 = vpack.c.b16 %v8754, %v8750
      %v9827 = vpack.c.b16 %v8755, %v8751
      %v9828 = vpack.c.b16 %v8756, %v8752
      %v9829 = vpack.c.b16 %v8761, %v8757
      %v9830 = vpack.c.b16 %v8762, %v8758
      %v9831 = vpack.c.b16 %v8763, %v8759
      %v9832 = vpack.c.b16 %v8764, %v8760
      %v9833 = vpack.c.b16 %v8769, %v8765
      %v9834 = vpack.c.b16 %v8770, %v8766
      %v9835 = vpack.c.b16 %v8771, %v8767
      %v9836 = vpack.c.b16 %v8772, %v8768
      %v9837 = vpack.c.b16 %v8777, %v8773
      %v9838 = vpack.c.b16 %v8778, %v8774
      %v9839 = vpack.c.b16 %v8779, %v8775
      %v9840 = vpack.c.b16 %v8780, %v8776
      %v9841 = vpack.c.b16 %v8785, %v8781
      %v9842 = vpack.c.b16 %v8786, %v8782
      %v9843 = vpack.c.b16 %v8787, %v8783
      %v9844 = vpack.c.b16 %v8788, %v8784
      %v9845 = vpack.c.b16 %v8793, %v8789
      %v9846 = vpack.c.b16 %v8794, %v8790
      %v9847 = vpack.c.b16 %v8795, %v8791
      %v9848 = vpack.c.b16 %v8796, %v8792
      %v9849 = vpack.c.b16 %v8801, %v8797
      %v9850 = vpack.c.b16 %v8802, %v8798
      %v9851 = vpack.c.b16 %v8803, %v8799
      %v9852 = vpack.c.b16 %v8804, %v8800
      %v9853 = vpack.c.b16 %v8809, %v8805
      %v9854 = vpack.c.b16 %v8810, %v8806
      %v9855 = vpack.c.b16 %v8811, %v8807
      %v9856 = vpack.c.b16 %v8812, %v8808
      %v9857 = vpack.c.b16 %v8817, %v8813
      %v9858 = vpack.c.b16 %v8818, %v8814
      %v9859 = vpack.c.b16 %v8819, %v8815
      %v9860 = vpack.c.b16 %v8820, %v8816
      %v9861 = vpack.c.b16 %v8825, %v8821
      %v9862 = vpack.c.b16 %v8826, %v8822
      %v9863 = vpack.c.b16 %v8827, %v8823
      %v9864 = vpack.c.b16 %v8828, %v8824
      %v9865 = vpack.c.b16 %v8833, %v8829
      %v9866 = vpack.c.b16 %v8834, %v8830
      %v9867 = vpack.c.b16 %v8835, %v8831
      %v9868 = vpack.c.b16 %v8836, %v8832
      %v9869 = vpack.c.b16 %v8841, %v8837
      %v9870 = vpack.c.b16 %v8842, %v8838
      %v9871 = vpack.c.b16 %v8843, %v8839
      %v9872 = vpack.c.b16 %v8844, %v8840
      %v9873 = vpack.c.b16 %v8849, %v8845
      %v9874 = vpack.c.b16 %v8850, %v8846
      %v9875 = vpack.c.b16 %v8851, %v8847
      %v9876 = vpack.c.b16 %v8852, %v8848
      %v9877 = vpack.c.b16 %v8857, %v8853
      %v9878 = vpack.c.b16 %v8858, %v8854
      %v9879 = vpack.c.b16 %v8859, %v8855
      %v9880 = vpack.c.b16 %v8860, %v8856
      %v9881 = vpack.c.b16 %v8865, %v8861
      %v9882 = vpack.c.b16 %v8866, %v8862
      %v9883 = vpack.c.b16 %v8867, %v8863
      %v9884 = vpack.c.b16 %v8868, %v8864
      %v9885 = vpack.c.b16 %v8873, %v8869
      %v9886 = vpack.c.b16 %v8874, %v8870
      %v9887 = vpack.c.b16 %v8875, %v8871
      %v9888 = vpack.c.b16 %v8876, %v8872
      %v9889 = vpack.c.b16 %v8881, %v8877
      %v9890 = vpack.c.b16 %v8882, %v8878
      %v9891 = vpack.c.b16 %v8883, %v8879
      %v9892 = vpack.c.b16 %v8884, %v8880
      %v9893 = vpack.c.b16 %v8889, %v8885
      %v9894 = vpack.c.b16 %v8890, %v8886
      %v9895 = vpack.c.b16 %v8891, %v8887
      %v9896 = vpack.c.b16 %v8892, %v8888
      %v9897 = vpack.c.b16 %v8897, %v8893
      %v9898 = vpack.c.b16 %v8898, %v8894
      %v9899 = vpack.c.b16 %v8899, %v8895
      %v9900 = vpack.c.b16 %v8900, %v8896
      %v9901 = vpack.c.b16 %v8905, %v8901
      %v9902 = vpack.c.b16 %v8906, %v8902
      %v9903 = vpack.c.b16 %v8907, %v8903
      %v9904 = vpack.c.b16 %v8908, %v8904
      %v9905 = vpack.c.b16 %v8913, %v8909
      %v9906 = vpack.c.b16 %v8914, %v8910
      %v9907 = vpack.c.b16 %v8915, %v8911
      %v9908 = vpack.c.b16 %v8916, %v8912
      %v9909 = vpack.c.b16 %v8921, %v8917
      %v9910 = vpack.c.b16 %v8922, %v8918
      %v9911 = vpack.c.b16 %v8923, %v8919
      %v9912 = vpack.c.b16 %v8924, %v8920
      %v9913 = vpack.c.b16 %v8929, %v8925
      %v9914 = vpack.c.b16 %v8930, %v8926
      %v9915 = vpack.c.b16 %v8931, %v8927
      %v9916 = vpack.c.b16 %v8932, %v8928
      %v9917 = vpack.c.b16 %v8937, %v8933
      %v9918 = vpack.c.b16 %v8938, %v8934
      %v9919 = vpack.c.b16 %v8939, %v8935
      %v9920 = vpack.c.b16 %v8940, %v8936
      %v9921 = vpack.c.b16 %v8945, %v8941
      %v9922 = vpack.c.b16 %v8946, %v8942
      %v9923 = vpack.c.b16 %v8947, %v8943
      %v9924 = vpack.c.b16 %v8948, %v8944
      %v9925 = vpack.c.b16 %v8953, %v8949
      %v9926 = vpack.c.b16 %v8954, %v8950
      %v9927 = vpack.c.b16 %v8955, %v8951
      %v9928 = vpack.c.b16 %v8956, %v8952
      %v9929 = vpack.c.b16 %v8961, %v8957
      %v9930 = vpack.c.b16 %v8962, %v8958
      %v9931 = vpack.c.b16 %v8963, %v8959
      %v9932 = vpack.c.b16 %v8964, %v8960
      %v9933 = vpack.c.b16 %v8969, %v8965
      %v9934 = vpack.c.b16 %v8970, %v8966
      %v9935 = vpack.c.b16 %v8971, %v8967
      %v9936 = vpack.c.b16 %v8972, %v8968
      %v9937 = vpack.c.b16 %v8977, %v8973
      %v9938 = vpack.c.b16 %v8978, %v8974
      %v9939 = vpack.c.b16 %v8979, %v8975
      %v9940 = vpack.c.b16 %v8980, %v8976
      %v9941 = vpack.c.b16 %v8985, %v8981
      %v9942 = vpack.c.b16 %v8986, %v8982
      %v9943 = vpack.c.b16 %v8987, %v8983
      %v9944 = vpack.c.b16 %v8988, %v8984
      %v9945 = vpack.c.b16 %v8993, %v8989
      %v9946 = vpack.c.b16 %v8994, %v8990
      %v9947 = vpack.c.b16 %v8995, %v8991
      %v9948 = vpack.c.b16 %v8996, %v8992
      %v9949 = vpack.c.b16 %v9001, %v8997
      %v9950 = vpack.c.b16 %v9002, %v8998
      %v9951 = vpack.c.b16 %v9003, %v8999
      %v9952 = vpack.c.b16 %v9004, %v9000
      %v9953 = vpack.c.b16 %v9009, %v9005
      %v9954 = vpack.c.b16 %v9010, %v9006
      %v9955 = vpack.c.b16 %v9011, %v9007
      %v9956 = vpack.c.b16 %v9012, %v9008
      %v9957 = vpack.c.b16 %v9017, %v9013
      %v9958 = vpack.c.b16 %v9018, %v9014
      %v9959 = vpack.c.b16 %v9019, %v9015
      %v9960 = vpack.c.b16 %v9020, %v9016
      %v9961 = vpack.c.b16 %v9025, %v9021
      %v9962 = vpack.c.b16 %v9026, %v9022
      %v9963 = vpack.c.b16 %v9027, %v9023
      %v9964 = vpack.c.b16 %v9028, %v9024
      %v9965 = vpack.c.b16 %v9033, %v9029
      %v9966 = vpack.c.b16 %v9034, %v9030
      %v9967 = vpack.c.b16 %v9035, %v9031
      %v9968 = vpack.c.b16 %v9036, %v9032
      %v9969 = vpack.c.b16 %v9041, %v9037
      %v9970 = vpack.c.b16 %v9042, %v9038
      %v9971 = vpack.c.b16 %v9043, %v9039
      %v9972 = vpack.c.b16 %v9044, %v9040
      %v9973 = vpack.c.b16 %v9049, %v9045
      %v9974 = vpack.c.b16 %v9050, %v9046
      %v9975 = vpack.c.b16 %v9051, %v9047
      %v9976 = vpack.c.b16 %v9052, %v9048
      %v9977 = vpack.c.b16 %v9057, %v9053
      %v9978 = vpack.c.b16 %v9058, %v9054
      %v9979 = vpack.c.b16 %v9059, %v9055
      %v9980 = vpack.c.b16 %v9060, %v9056
      %v9981 = vpack.c.b16 %v9065, %v9061
      %v9982 = vpack.c.b16 %v9066, %v9062
      %v9983 = vpack.c.b16 %v9067, %v9063
      %v9984 = vpack.c.b16 %v9068, %v9064
      %v9985 = vpack.c.b16 %v9073, %v9069
      %v9986 = vpack.c.b16 %v9074, %v9070
      %v9987 = vpack.c.b16 %v9075, %v9071
      %v9988 = vpack.c.b16 %v9076, %v9072
      %v9989 = vpack.c.b16 %v9081, %v9077
      %v9990 = vpack.c.b16 %v9082, %v9078
      %v9991 = vpack.c.b16 %v9083, %v9079
      %v9992 = vpack.c.b16 %v9084, %v9080
      %v9993 = vpack.c.b16 %v9089, %v9085
      %v9994 = vpack.c.b16 %v9090, %v9086
      %v9995 = vpack.c.b16 %v9091, %v9087
      %v9996 = vpack.c.b16 %v9092, %v9088
      %v9997 = vpack.c.b16 %v9097, %v9093
      %v9998 = vpack.c.b16 %v9098, %v9094
      %v9999 = vpack.c.b16 %v9099, %v9095
      %v10000 = vpack.c.b16 %v9100, %v9096
      %v10001 = vpack.c.b16 %v9105, %v9101
      %v10002 = vpack.c.b16 %v9106, %v9102
      %v10003 = vpack.c.b16 %v9107, %v9103
      %v10004 = vpack.c.b16 %v9108, %v9104
      %v10005 = vpack.c.b16 %v9113, %v9109
      %v10006 = vpack.c.b16 %v9114, %v9110
      %v10007 = vpack.c.b16 %v9115, %v9111
      %v10008 = vpack.c.b16 %v9116, %v9112
      %v10009 = vpack.c.b16 %v9121, %v9117
      %v10010 = vpack.c.b16 %v9122, %v9118
      %v10011 = vpack.c.b16 %v9123, %v9119
      %v10012 = vpack.c.b16 %v9124, %v9120
      %v10013 = vpack.c.b16 %v9129, %v9125
      %v10014 = vpack.c.b16 %v9130, %v9126
      %v10015 = vpack.c.b16 %v9131, %v9127
      %v10016 = vpack.c.b16 %v9132, %v9128
      %v10017 = vpack.c.b16 %v9137, %v9133
      %v10018 = vpack.c.b16 %v9138, %v9134
      %v10019 = vpack.c.b16 %v9139, %v9135
      %v10020 = vpack.c.b16 %v9140, %v9136
      %v10021 = vpack.c.b16 %v9145, %v9141
      %v10022 = vpack.c.b16 %v9146, %v9142
      %v10023 = vpack.c.b16 %v9147, %v9143
      %v10024 = vpack.c.b16 %v9148, %v9144
      %v10025 = vpack.c.b16 %v9153, %v9149
      %v10026 = vpack.c.b16 %v9154, %v9150
      %v10027 = vpack.c.b16 %v9155, %v9151
      %v10028 = vpack.c.b16 %v9156, %v9152
      %v10029 = vpack.c.b16 %v9161, %v9157
      %v10030 = vpack.c.b16 %v9162, %v9158
      %v10031 = vpack.c.b16 %v9163, %v9159
      %v10032 = vpack.c.b16 %v9164, %v9160
      %v10033 = vpack.c.b16 %v9169, %v9165
      %v10034 = vpack.c.b16 %v9170, %v9166
      %v10035 = vpack.c.b16 %v9171, %v9167
      %v10036 = vpack.c.b16 %v9172, %v9168
      %v10037 = vpack.c.b16 %v9177, %v9173
      %v10038 = vpack.c.b16 %v9178, %v9174
      %v10039 = vpack.c.b16 %v9179, %v9175
      %v10040 = vpack.c.b16 %v9180, %v9176
      %v10041 = vpack.c.b16 %v9185, %v9181
      %v10042 = vpack.c.b16 %v9186, %v9182
      %v10043 = vpack.c.b16 %v9187, %v9183
      %v10044 = vpack.c.b16 %v9188, %v9184
      %v10045 = vpack.c.b16 %v9193, %v9189
      %v10046 = vpack.c.b16 %v9194, %v9190
      %v10047 = vpack.c.b16 %v9195, %v9191
      %v10048 = vpack.c.b16 %v9196, %v9192
      %v10049 = vpack.c.b16 %v9201, %v9197
      %v10050 = vpack.c.b16 %v9202, %v9198
      %v10051 = vpack.c.b16 %v9203, %v9199
      %v10052 = vpack.c.b16 %v9204, %v9200
      %v10053 = vpack.c.b16 %v9209, %v9205
      %v10054 = vpack.c.b16 %v9210, %v9206
      %v10055 = vpack.c.b16 %v9211, %v9207
      %v10056 = vpack.c.b16 %v9212, %v9208
      %v10057 = vpack.c.b16 %v9217, %v9213
      %v10058 = vpack.c.b16 %v9218, %v9214
      %v10059 = vpack.c.b16 %v9219, %v9215
      %v10060 = vpack.c.b16 %v9220, %v9216
      %v10061 = vpack.c.b16 %v9225, %v9221
      %v10062 = vpack.c.b16 %v9226, %v9222
      %v10063 = vpack.c.b16 %v9227, %v9223
      %v10064 = vpack.c.b16 %v9228, %v9224
      %v10065 = vpack.c.b16 %v9233, %v9229
      %v10066 = vpack.c.b16 %v9234, %v9230
      %v10067 = vpack.c.b16 %v9235, %v9231
      %v10068 = vpack.c.b16 %v9236, %v9232
      %v10069 = vpack.c.b16 %v9241, %v9237
      %v10070 = vpack.c.b16 %v9242, %v9238
      %v10071 = vpack.c.b16 %v9243, %v9239
      %v10072 = vpack.c.b16 %v9244, %v9240
      %v10073 = vpack.c.b16 %v9249, %v9245
      %v10074 = vpack.c.b16 %v9250, %v9246
      %v10075 = vpack.c.b16 %v9251, %v9247
      %v10076 = vpack.c.b16 %v9252, %v9248
      %v10077 = vpack.c.b16 %v9257, %v9253
      %v10078 = vpack.c.b16 %v9258, %v9254
      %v10079 = vpack.c.b16 %v9259, %v9255
      %v10080 = vpack.c.b16 %v9260, %v9256
      %v10081 = vpack.c.b16 %v9265, %v9261
      %v10082 = vpack.c.b16 %v9266, %v9262
      %v10083 = vpack.c.b16 %v9267, %v9263
      %v10084 = vpack.c.b16 %v9268, %v9264
      %v10085 = vpack.c.b16 %v9273, %v9269
      %v10086 = vpack.c.b16 %v9274, %v9270
      %v10087 = vpack.c.b16 %v9275, %v9271
      %v10088 = vpack.c.b16 %v9276, %v9272
      %v10089 = vpack.c.b16 %v9281, %v9277
      %v10090 = vpack.c.b16 %v9282, %v9278
      %v10091 = vpack.c.b16 %v9283, %v9279
      %v10092 = vpack.c.b16 %v9284, %v9280
      %v10093 = vpack.c.b16 %v9289, %v9285
      %v10094 = vpack.c.b16 %v9290, %v9286
      %v10095 = vpack.c.b16 %v9291, %v9287
      %v10096 = vpack.c.b16 %v9292, %v9288
      %v10097 = vpack.c.b16 %v9297, %v9293
      %v10098 = vpack.c.b16 %v9298, %v9294
      %v10099 = vpack.c.b16 %v9299, %v9295
      %v10100 = vpack.c.b16 %v9300, %v9296
      %v10101 = vpack.c.b16 %v9305, %v9301
      %v10102 = vpack.c.b16 %v9306, %v9302
      %v10103 = vpack.c.b16 %v9307, %v9303
      %v10104 = vpack.c.b16 %v9308, %v9304
      %v10105 = vpack.c.b16 %v9313, %v9309
      %v10106 = vpack.c.b16 %v9314, %v9310
      %v10107 = vpack.c.b16 %v9315, %v9311
      %v10108 = vpack.c.b16 %v9316, %v9312
      %v10109 = vpack.c.b16 %v9321, %v9317
      %v10110 = vpack.c.b16 %v9322, %v9318
      %v10111 = vpack.c.b16 %v9323, %v9319
      %v10112 = vpack.c.b16 %v9324, %v9320
      %v10113 = vpack.c.b16 %v9329, %v9325
      %v10114 = vpack.c.b16 %v9330, %v9326
      %v10115 = vpack.c.b16 %v9331, %v9327
      %v10116 = vpack.c.b16 %v9332, %v9328
      %v10117 = vpack.c.b16 %v9337, %v9333
      %v10118 = vpack.c.b16 %v9338, %v9334
      %v10119 = vpack.c.b16 %v9339, %v9335
      %v10120 = vpack.c.b16 %v9340, %v9336
      %v10121 = vpack.c.b16 %v9345, %v9341
      %v10122 = vpack.c.b16 %v9346, %v9342
      %v10123 = vpack.c.b16 %v9347, %v9343
      %v10124 = vpack.c.b16 %v9348, %v9344
      %v10125 = vpack.c.b16 %v9353, %v9349
      %v10126 = vpack.c.b16 %v9354, %v9350
      %v10127 = vpack.c.b16 %v9355, %v9351
      %v10128 = vpack.c.b16 %v9356, %v9352
      %v10129 = vpack.c.b16 %v9361, %v9357
      %v10130 = vpack.c.b16 %v9362, %v9358
      %v10131 = vpack.c.b16 %v9363, %v9359
      %v10132 = vpack.c.b16 %v9364, %v9360
      %v10133 = vpack.c.b16 %v9369, %v9365
      %v10134 = vpack.c.b16 %v9370, %v9366
      %v10135 = vpack.c.b16 %v9371, %v9367
      %v10136 = vpack.c.b16 %v9372, %v9368
      %v10137 = vpack.c.b16 %v9377, %v9373
      %v10138 = vpack.c.b16 %v9378, %v9374
      %v10139 = vpack.c.b16 %v9379, %v9375
      %v10140 = vpack.c.b16 %v9380, %v9376
      %v10141 = vpack.c.b16 %v9385, %v9381
      %v10142 = vpack.c.b16 %v9386, %v9382
      %v10143 = vpack.c.b16 %v9387, %v9383
      %v10144 = vpack.c.b16 %v9388, %v9384
      %v10145 = vpack.c.b16 %v9393, %v9389
      %v10146 = vpack.c.b16 %v9394, %v9390
      %v10147 = vpack.c.b16 %v9395, %v9391
      %v10148 = vpack.c.b16 %v9396, %v9392
      %v10149 = vpack.c.b16 %v9401, %v9397
      %v10150 = vpack.c.b16 %v9402, %v9398
      %v10151 = vpack.c.b16 %v9403, %v9399
      %v10152 = vpack.c.b16 %v9404, %v9400
      %v10153 = vpack.c.b16 %v9409, %v9405
      %v10154 = vpack.c.b16 %v9410, %v9406
      %v10155 = vpack.c.b16 %v9411, %v9407
      %v10156 = vpack.c.b16 %v9412, %v9408
      %v10157 = vpack.c.b16 %v9417, %v9413
      %v10158 = vpack.c.b16 %v9418, %v9414
      %v10159 = vpack.c.b16 %v9419, %v9415
      %v10160 = vpack.c.b16 %v9420, %v9416
      %v10161 = vpack.c.b16 %v9425, %v9421
      %v10162 = vpack.c.b16 %v9426, %v9422
      %v10163 = vpack.c.b16 %v9427, %v9423
      %v10164 = vpack.c.b16 %v9428, %v9424
      %v10165 = vpack.c.b16 %v9433, %v9429
      %v10166 = vpack.c.b16 %v9434, %v9430
      %v10167 = vpack.c.b16 %v9435, %v9431
      %v10168 = vpack.c.b16 %v9436, %v9432
      %v10169 = vpack.c.b16 %v9441, %v9437
      %v10170 = vpack.c.b16 %v9442, %v9438
      %v10171 = vpack.c.b16 %v9443, %v9439
      %v10172 = vpack.c.b16 %v9444, %v9440
      %v10173 = vpack.c.b16 %v9449, %v9445
      %v10174 = vpack.c.b16 %v9450, %v9446
      %v10175 = vpack.c.b16 %v9451, %v9447
      %v10176 = vpack.c.b16 %v9452, %v9448
      %v10177 = vpack.c.b16 %v9457, %v9453
      %v10178 = vpack.c.b16 %v9458, %v9454
      %v10179 = vpack.c.b16 %v9459, %v9455
      %v10180 = vpack.c.b16 %v9460, %v9456
      %v10181 = vpack.c.b16 %v9465, %v9461
      %v10182 = vpack.c.b16 %v9466, %v9462
      %v10183 = vpack.c.b16 %v9467, %v9463
      %v10184 = vpack.c.b16 %v9468, %v9464
      %v10185 = vpack.c.b16 %v9473, %v9469
      %v10186 = vpack.c.b16 %v9474, %v9470
      %v10187 = vpack.c.b16 %v9475, %v9471
      %v10188 = vpack.c.b16 %v9476, %v9472
      %v10189 = vpack.c.b16 %v9481, %v9477
      %v10190 = vpack.c.b16 %v9482, %v9478
      %v10191 = vpack.c.b16 %v9483, %v9479
      %v10192 = vpack.c.b16 %v9484, %v9480
      %v10193 = vpack.c.b16 %v9489, %v9485
      %v10194 = vpack.c.b16 %v9490, %v9486
      %v10195 = vpack.c.b16 %v9491, %v9487
      %v10196 = vpack.c.b16 %v9492, %v9488
      %v10197 = vpack.c.b16 %v9497, %v9493
      %v10198 = vpack.c.b16 %v9498, %v9494
      %v10199 = vpack.c.b16 %v9499, %v9495
      %v10200 = vpack.c.b16 %v9500, %v9496
      %v10201 = vpack.c.b16 %v9505, %v9501
      %v10202 = vpack.c.b16 %v9506, %v9502
      %v10203 = vpack.c.b16 %v9507, %v9503
      %v10204 = vpack.c.b16 %v9508, %v9504
      %v10205 = vpack.c.b16 %v9513, %v9509
      %v10206 = vpack.c.b16 %v9514, %v9510
      %v10207 = vpack.c.b16 %v9515, %v9511
      %v10208 = vpack.c.b16 %v9516, %v9512
      %v10209 = vpack.c.b16 %v9521, %v9517
      %v10210 = vpack.c.b16 %v9522, %v9518
      %v10211 = vpack.c.b16 %v9523, %v9519
      %v10212 = vpack.c.b16 %v9524, %v9520
      %v10213 = vpack.c.b16 %v9529, %v9525
      %v10214 = vpack.c.b16 %v9530, %v9526
      %v10215 = vpack.c.b16 %v9531, %v9527
      %v10216 = vpack.c.b16 %v9532, %v9528
      %v10217 = vpack.c.b16 %v9537, %v9533
      %v10218 = vpack.c.b16 %v9538, %v9534
      %v10219 = vpack.c.b16 %v9539, %v9535
      %v10220 = vpack.c.b16 %v9540, %v9536
      %v10221 = vpack.c.b16 %v9545, %v9541
      %v10222 = vpack.c.b16 %v9546, %v9542
      %v10223 = vpack.c.b16 %v9547, %v9543
      %v10224 = vpack.c.b16 %v9548, %v9544
      %v10225 = vpack.c.b16 %v9553, %v9549
      %v10226 = vpack.c.b16 %v9554, %v9550
      %v10227 = vpack.c.b16 %v9555, %v9551
      %v10228 = vpack.c.b16 %v9556, %v9552
      %v10229 = vpack.c.b16 %v9561, %v9557
      %v10230 = vpack.c.b16 %v9562, %v9558
      %v10231 = vpack.c.b16 %v9563, %v9559
      %v10232 = vpack.c.b16 %v9564, %v9560
      %v10233 = vpack.c.b16 %v9569, %v9565
      %v10234 = vpack.c.b16 %v9570, %v9566
      %v10235 = vpack.c.b16 %v9571, %v9567
      %v10236 = vpack.c.b16 %v9572, %v9568
      %v10237 = vpack.c.b16 %v9577, %v9573
      %v10238 = vpack.c.b16 %v9578, %v9574
      %v10239 = vpack.c.b16 %v9579, %v9575
      %v10240 = vpack.c.b16 %v9580, %v9576
      %v10241 = vpack.c.b16 %v9585, %v9581
      %v10242 = vpack.c.b16 %v9586, %v9582
      %v10243 = vpack.c.b16 %v9587, %v9583
      %v10244 = vpack.c.b16 %v9588, %v9584
      %v10245 = vpack.c.b16 %v9593, %v9589
      %v10246 = vpack.c.b16 %v9594, %v9590
      %v10247 = vpack.c.b16 %v9595, %v9591
      %v10248 = vpack.c.b16 %v9596, %v9592
      %v10249 = vpack.c.b16 %v9601, %v9597
      %v10250 = vpack.c.b16 %v9602, %v9598
      %v10251 = vpack.c.b16 %v9603, %v9599
      %v10252 = vpack.c.b16 %v9604, %v9600
      %v10253 = vpack.c.b16 %v9609, %v9605
      %v10254 = vpack.c.b16 %v9610, %v9606
      %v10255 = vpack.c.b16 %v9611, %v9607
      %v10256 = vpack.c.b16 %v9612, %v9608
      %v10257 = vpack.c.b16 %v9617, %v9613
      %v10258 = vpack.c.b16 %v9618, %v9614
      %v10259 = vpack.c.b16 %v9619, %v9615
      %v10260 = vpack.c.b16 %v9620, %v9616
      %v10261 = vpack.c.b16 %v9625, %v9621
      %v10262 = vpack.c.b16 %v9626, %v9622
      %v10263 = vpack.c.b16 %v9627, %v9623
      %v10264 = vpack.c.b16 %v9628, %v9624
      %v10265 = vpack.c.b16 %v9633, %v9629
      %v10266 = vpack.c.b16 %v9634, %v9630
      %v10267 = vpack.c.b16 %v9635, %v9631
      %v10268 = vpack.c.b16 %v9636, %v9632
      %v10269 = vpack.c.b16 %v9641, %v9637
      %v10270 = vpack.c.b16 %v9642, %v9638
      %v10271 = vpack.c.b16 %v9643, %v9639
      %v10272 = vpack.c.b16 %v9644, %v9640
      %v10273 = vpack.c.b16 %v9649, %v9645
      %v10274 = vpack.c.b16 %v9650, %v9646
      %v10275 = vpack.c.b16 %v9651, %v9647
      %v10276 = vpack.c.b16 %v9652, %v9648
      %v10277 = vpack.c.b16 %v9657, %v9653
      %v10278 = vpack.c.b16 %v9658, %v9654
      %v10279 = vpack.c.b16 %v9659, %v9655
      %v10280 = vpack.c.b16 %v9660, %v9656
      %v10281 = vpack.c.b16 %v9665, %v9661
      %v10282 = vpack.c.b16 %v9666, %v9662
      %v10283 = vpack.c.b16 %v9667, %v9663
      %v10284 = vpack.c.b16 %v9668, %v9664
      %v10285 = vpack.c.b16 %v9673, %v9669
      %v10286 = vpack.c.b16 %v9674, %v9670
      %v10287 = vpack.c.b16 %v9675, %v9671
      %v10288 = vpack.c.b16 %v9676, %v9672
      %v10289 = vpack.c.b16 %v9681, %v9677
      %v10290 = vpack.c.b16 %v9682, %v9678
      %v10291 = vpack.c.b16 %v9683, %v9679
      %v10292 = vpack.c.b16 %v9684, %v9680
      %v10293 = vpack.c.b16 %v9689, %v9685
      %v10294 = vpack.c.b16 %v9690, %v9686
      %v10295 = vpack.c.b16 %v9691, %v9687
      %v10296 = vpack.c.b16 %v9692, %v9688
      %v10297 = vpack.c.b16 %v9697, %v9693
      %v10298 = vpack.c.b16 %v9698, %v9694
      %v10299 = vpack.c.b16 %v9699, %v9695
      %v10300 = vpack.c.b16 %v9700, %v9696
      %v10301 = vpack.c.b16 %v9705, %v9701
      %v10302 = vpack.c.b16 %v9706, %v9702
      %v10303 = vpack.c.b16 %v9707, %v9703
      %v10304 = vpack.c.b16 %v9708, %v9704
      %v10305 = vpack.c.b16 %v9713, %v9709
      %v10306 = vpack.c.b16 %v9714, %v9710
      %v10307 = vpack.c.b16 %v9715, %v9711
      %v10308 = vpack.c.b16 %v9716, %v9712
      %v10309 = vpack.c.b16 %v9721, %v9717
      %v10310 = vpack.c.b16 %v9722, %v9718
      %v10311 = vpack.c.b16 %v9723, %v9719
      %v10312 = vpack.c.b16 %v9724, %v9720
      %v10313 = vpack.c.b16 %v9729, %v9725
      %v10314 = vpack.c.b16 %v9730, %v9726
      %v10315 = vpack.c.b16 %v9731, %v9727
      %v10316 = vpack.c.b16 %v9732, %v9728
      %v10317 = vpack.c.b16 %v9737, %v9733
      %v10318 = vpack.c.b16 %v9738, %v9734
      %v10319 = vpack.c.b16 %v9739, %v9735
      %v10320 = vpack.c.b16 %v9740, %v9736
      %v10321 = vpack.c.b16 %v9745, %v9741
      %v10322 = vpack.c.b16 %v9746, %v9742
      %v10323 = vpack.c.b16 %v9747, %v9743
      %v10324 = vpack.c.b16 %v9748, %v9744
      %v10902 = vlaneseq
      %v10903 = vshrl.u32 %v10902, 7
      %v10904 = vsub.s32 0, %v10903
      %v10905 = vrot.slane %v8020, %v10904
      %v10906 = vlaneseq
      %v10907 = vshrl.u32 %v10906, 7
      %v10908 = vsub.s32 1, %v10907
      %v10909 = vrot.slane %v8020, %v10908
      %v10910 = vlaneseq
      %v10911 = vshrl.u32 %v10910, 7
      %v10912 = vsub.s32 2, %v10911
      %v10913 = vrot.slane %v8020, %v10912
      %v10914 = vlaneseq
      %v10915 = vshrl.u32 %v10914, 7
      %v10916 = vsub.s32 3, %v10915
      %v10917 = vrot.slane %v8020, %v10916
      %10922 = vmatprep.subr.bf16.mxu0 %v9778
      %10923 = vmatpush1.bf16.msra.mxu0 %v9777
      %10924 = vmatprep.subr.bf16.mxu0 %v9774
      %10925 = vmatpush1.bf16.msra.mxu0 %v9773
      %10926 = vmatprep.subr.bf16.mxu0 %v9770
      %10927 = vmatpush1.bf16.msra.mxu0 %v9769
      %10928 = vmatprep.subr.bf16.mxu0 %v9766
      %10929 = vmatpush1.bf16.msra.mxu0 %v9765
      %10930 = vmatprep.subr.bf16.mxu0 %v9762
      %10931 = vmatpush1.bf16.msra.mxu0 %v9761
      %10932 = vmatprep.subr.bf16.mxu0 %v9758
      %10933 = vmatpush1.bf16.msra.mxu0 %v9757
      %10934 = vmatprep.subr.bf16.mxu0 %v9754
      %10935 = vmatpush1.bf16.msra.mxu0 %v9753
      %10936 = vmatprep.subr.bf16.mxu0 %v9750
      %10937 = vmatpush1.bf16.msra.mxu0 %v9749
      %10938 = vmatprep.subr.bf16.mxu0 %v9810
      %10939 = vmatpush2.bf16.msra.mxu0 %v9809
      %10940 = vmatprep.subr.bf16.mxu0 %v9806
      %10941 = vmatpush2.bf16.msra.mxu0 %v9805
      %10942 = vmatprep.subr.bf16.mxu0 %v9802
      %10943 = vmatpush2.bf16.msra.mxu0 %v9801
      %10944 = vmatprep.subr.bf16.mxu0 %v9798
      %10945 = vmatpush2.bf16.msra.mxu0 %v9797
      %10946 = vmatprep.subr.bf16.mxu0 %v9794
      %10947 = vmatpush2.bf16.msra.mxu0 %v9793
      %10948 = vmatprep.subr.bf16.mxu0 %v9790
      %10949 = vmatpush2.bf16.msra.mxu0 %v9789
      %10950 = vmatprep.subr.bf16.mxu0 %v9786
      %10951 = vmatpush2.bf16.msra.mxu0 %v9785
      %10952 = vmatprep.subr.bf16.mxu0 %v9782
      %10953 = vmatpush2.bf16.msra.mxu0 %v9781
      %10954 = vmatprep.mubr.bf16.mxu0 %v7427
      %10955 = vmatmul.mubr.bf16.gmra.mxu0 %v7426
      %v10956 = vpop.f32.mrf.mxu0
      %v10957 = vadd.f32 %v10905, %v10956
      %v10958 = vpop.f32.mrf.mxu0
      %v10959 = vadd.f32 %v10909, %v10958
      %v10960 = vpop.f32.mrf.mxu0
      %v10961 = vpop.f32.mrf.mxu0
      %10962 = vdwg.mxu0
      %10963 = vmatprep.subr.bf16.mxu0 %v9842
      %10964 = vmatpush1.bf16.msra.mxu0 %v9841
      %10965 = vmatprep.subr.bf16.mxu0 %v9838
      %10966 = vmatpush1.bf16.msra.mxu0 %v9837
      %10967 = vmatprep.subr.bf16.mxu0 %v9834
      %10968 = vmatpush1.bf16.msra.mxu0 %v9833
      %10969 = vmatprep.subr.bf16.mxu0 %v9830
      %10970 = vmatpush1.bf16.msra.mxu0 %v9829
      %10971 = vmatprep.subr.bf16.mxu0 %v9826
      %10972 = vmatpush1.bf16.msra.mxu0 %v9825
      %10973 = vmatprep.subr.bf16.mxu0 %v9822
      %10974 = vmatpush1.bf16.msra.mxu0 %v9821
      %10975 = vmatprep.subr.bf16.mxu0 %v9818
      %10976 = vmatpush1.bf16.msra.mxu0 %v9817
      %10977 = vmatprep.subr.bf16.mxu0 %v9814
      %10978 = vmatpush1.bf16.msra.mxu0 %v9813
      %10979 = vmatprep.subr.bf16.mxu0 %v9874
      %10980 = vmatpush2.bf16.msra.mxu0 %v9873
      %10981 = vmatprep.subr.bf16.mxu0 %v9870
      %10982 = vmatpush2.bf16.msra.mxu0 %v9869
      %10983 = vmatprep.subr.bf16.mxu0 %v9866
      %10984 = vmatpush2.bf16.msra.mxu0 %v9865
      %10985 = vmatprep.subr.bf16.mxu0 %v9862
      %10986 = vmatpush2.bf16.msra.mxu0 %v9861
      %10987 = vmatprep.subr.bf16.mxu0 %v9858
      %10988 = vmatpush2.bf16.msra.mxu0 %v9857
      %10989 = vmatprep.subr.bf16.mxu0 %v9854
      %10990 = vmatpush2.bf16.msra.mxu0 %v9853
      %10991 = vmatprep.subr.bf16.mxu0 %v9850
      %10992 = vmatpush2.bf16.msra.mxu0 %v9849
      %10993 = vmatprep.subr.bf16.mxu0 %v9846
      %10994 = vmatpush2.bf16.msra.mxu0 %v9845
      %10995 = vmatprep.mubr.bf16.mxu0 %v7429
      %10996 = vmatmul.mubr.bf16.gmra.mxu0 %v7428
      %v10997 = vpop.f32.mrf.mxu0
      %v10998 = vadd.f32 %v10957, %v10997
      %v10999 = vpop.f32.mrf.mxu0
      %v11000 = vadd.f32 %v10959, %v10999
      %v11001 = vpop.f32.mrf.mxu0
      %v11002 = vpop.f32.mrf.mxu0
      %11003 = vdwg.mxu0
      %11004 = vmatprep.subr.bf16.mxu0 %v9906
      %11005 = vmatpush1.bf16.msra.mxu0 %v9905
      %11006 = vmatprep.subr.bf16.mxu0 %v9902
      %11007 = vmatpush1.bf16.msra.mxu0 %v9901
      %11008 = vmatprep.subr.bf16.mxu0 %v9898
      %11009 = vmatpush1.bf16.msra.mxu0 %v9897
      %11010 = vmatprep.subr.bf16.mxu0 %v9894
      %11011 = vmatpush1.bf16.msra.mxu0 %v9893
      %11012 = vmatprep.subr.bf16.mxu0 %v9890
      %11013 = vmatpush1.bf16.msra.mxu0 %v9889
      %11014 = vmatprep.subr.bf16.mxu0 %v9886
      %11015 = vmatpush1.bf16.msra.mxu0 %v9885
      %11016 = vmatprep.subr.bf16.mxu0 %v9882
      %11017 = vmatpush1.bf16.msra.mxu0 %v9881
      %11018 = vmatprep.subr.bf16.mxu0 %v9878
      %11019 = vmatpush1.bf16.msra.mxu0 %v9877
      %11020 = vmatprep.subr.bf16.mxu0 %v9938
      %11021 = vmatpush2.bf16.msra.mxu0 %v9937
      %11022 = vmatprep.subr.bf16.mxu0 %v9934
      %11023 = vmatpush2.bf16.msra.mxu0 %v9933
      %11024 = vmatprep.subr.bf16.mxu0 %v9930
      %11025 = vmatpush2.bf16.msra.mxu0 %v9929
      %11026 = vmatprep.subr.bf16.mxu0 %v9926
      %11027 = vmatpush2.bf16.msra.mxu0 %v9925
      %11028 = vmatprep.subr.bf16.mxu0 %v9922
      %11029 = vmatpush2.bf16.msra.mxu0 %v9921
      %11030 = vmatprep.subr.bf16.mxu0 %v9918
      %11031 = vmatpush2.bf16.msra.mxu0 %v9917
      %11032 = vmatprep.subr.bf16.mxu0 %v9914
      %11033 = vmatpush2.bf16.msra.mxu0 %v9913
      %11034 = vmatprep.subr.bf16.mxu0 %v9910
      %11035 = vmatpush2.bf16.msra.mxu0 %v9909
      %11036 = vmatprep.mubr.bf16.mxu0 %v7431
      %11037 = vmatmul.mubr.bf16.gmra.mxu0 %v7430
      %v11038 = vpop.f32.mrf.mxu0
      %v11039 = vadd.f32 %v10998, %v11038
      %v11040 = vpop.f32.mrf.mxu0
      %v11041 = vadd.f32 %v11000, %v11040
      %v11042 = vpop.f32.mrf.mxu0
      %v11043 = vpop.f32.mrf.mxu0
      %11044 = vdwg.mxu0
      %11045 = vmatprep.subr.bf16.mxu0 %v9970
      %11046 = vmatpush1.bf16.msra.mxu0 %v9969
      %11047 = vmatprep.subr.bf16.mxu0 %v9966
      %11048 = vmatpush1.bf16.msra.mxu0 %v9965
      %11049 = vmatprep.subr.bf16.mxu0 %v9962
      %11050 = vmatpush1.bf16.msra.mxu0 %v9961
      %11051 = vmatprep.subr.bf16.mxu0 %v9958
      %11052 = vmatpush1.bf16.msra.mxu0 %v9957
      %11053 = vmatprep.subr.bf16.mxu0 %v9954
      %11054 = vmatpush1.bf16.msra.mxu0 %v9953
      %11055 = vmatprep.subr.bf16.mxu0 %v9950
      %11056 = vmatpush1.bf16.msra.mxu0 %v9949
      %11057 = vmatprep.subr.bf16.mxu0 %v9946
      %11058 = vmatpush1.bf16.msra.mxu0 %v9945
      %11059 = vmatprep.subr.bf16.mxu0 %v9942
      %11060 = vmatpush1.bf16.msra.mxu0 %v9941
      %11061 = vmatprep.subr.bf16.mxu0 %v10002
      %11062 = vmatpush2.bf16.msra.mxu0 %v10001
      %11063 = vmatprep.subr.bf16.mxu0 %v9998
      %11064 = vmatpush2.bf16.msra.mxu0 %v9997
      %11065 = vmatprep.subr.bf16.mxu0 %v9994
      %11066 = vmatpush2.bf16.msra.mxu0 %v9993
      %11067 = vmatprep.subr.bf16.mxu0 %v9990
      %11068 = vmatpush2.bf16.msra.mxu0 %v9989
      %11069 = vmatprep.subr.bf16.mxu0 %v9986
      %11070 = vmatpush2.bf16.msra.mxu0 %v9985
      %11071 = vmatprep.subr.bf16.mxu0 %v9982
      %11072 = vmatpush2.bf16.msra.mxu0 %v9981
      %11073 = vmatprep.subr.bf16.mxu0 %v9978
      %11074 = vmatpush2.bf16.msra.mxu0 %v9977
      %11075 = vmatprep.subr.bf16.mxu0 %v9974
      %11076 = vmatpush2.bf16.msra.mxu0 %v9973
      %11077 = vmatprep.mubr.bf16.mxu0 %v7433
      %11078 = vmatmul.mubr.bf16.gmra.mxu0 %v7432
      %v11079 = vpop.f32.mrf.mxu0
      %v11080 = vadd.f32 %v11039, %v11079
      %v11081 = vpop.f32.mrf.mxu0
      %v11082 = vadd.f32 %v11041, %v11081
      %v11083 = vpop.f32.mrf.mxu0
      %v11084 = vpop.f32.mrf.mxu0
      %11085 = vdwg.mxu0
      %11086 = vmatprep.subr.bf16.mxu0 %v10034
      %11087 = vmatpush1.bf16.msra.mxu0 %v10033
      %11088 = vmatprep.subr.bf16.mxu0 %v10030
      %11089 = vmatpush1.bf16.msra.mxu0 %v10029
      %11090 = vmatprep.subr.bf16.mxu0 %v10026
      %11091 = vmatpush1.bf16.msra.mxu0 %v10025
      %11092 = vmatprep.subr.bf16.mxu0 %v10022
      %11093 = vmatpush1.bf16.msra.mxu0 %v10021
      %11094 = vmatprep.subr.bf16.mxu0 %v10018
      %11095 = vmatpush1.bf16.msra.mxu0 %v10017
      %11096 = vmatprep.subr.bf16.mxu0 %v10014
      %11097 = vmatpush1.bf16.msra.mxu0 %v10013
      %11098 = vmatprep.subr.bf16.mxu0 %v10010
      %11099 = vmatpush1.bf16.msra.mxu0 %v10009
      %11100 = vmatprep.subr.bf16.mxu0 %v10006
      %11101 = vmatpush1.bf16.msra.mxu0 %v10005
      %11102 = vmatprep.subr.bf16.mxu0 %v10066
      %11103 = vmatpush2.bf16.msra.mxu0 %v10065
      %11104 = vmatprep.subr.bf16.mxu0 %v10062
      %11105 = vmatpush2.bf16.msra.mxu0 %v10061
      %11106 = vmatprep.subr.bf16.mxu0 %v10058
      %11107 = vmatpush2.bf16.msra.mxu0 %v10057
      %11108 = vmatprep.subr.bf16.mxu0 %v10054
      %11109 = vmatpush2.bf16.msra.mxu0 %v10053
      %11110 = vmatprep.subr.bf16.mxu0 %v10050
      %11111 = vmatpush2.bf16.msra.mxu0 %v10049
      %11112 = vmatprep.subr.bf16.mxu0 %v10046
      %11113 = vmatpush2.bf16.msra.mxu0 %v10045
      %11114 = vmatprep.subr.bf16.mxu0 %v10042
      %11115 = vmatpush2.bf16.msra.mxu0 %v10041
      %11116 = vmatprep.subr.bf16.mxu0 %v10038
      %11117 = vmatpush2.bf16.msra.mxu0 %v10037
      %11118 = vmatprep.mubr.bf16.mxu0 %v7435
      %11119 = vmatmul.mubr.bf16.gmra.mxu0 %v7434
      %v11120 = vpop.f32.mrf.mxu0
      %v11121 = vadd.f32 %v11080, %v11120
      %v11122 = vpop.f32.mrf.mxu0
      %v11123 = vadd.f32 %v11082, %v11122
      %v11124 = vpop.f32.mrf.mxu0
      %v11125 = vpop.f32.mrf.mxu0
      %11126 = vdwg.mxu0
      %11127 = vmatprep.subr.bf16.mxu0 %v10098
      %11128 = vmatpush1.bf16.msra.mxu0 %v10097
      %11129 = vmatprep.subr.bf16.mxu0 %v10094
      %11130 = vmatpush1.bf16.msra.mxu0 %v10093
      %11131 = vmatprep.subr.bf16.mxu0 %v10090
      %11132 = vmatpush1.bf16.msra.mxu0 %v10089
      %11133 = vmatprep.subr.bf16.mxu0 %v10086
      %11134 = vmatpush1.bf16.msra.mxu0 %v10085
      %11135 = vmatprep.subr.bf16.mxu0 %v10082
      %11136 = vmatpush1.bf16.msra.mxu0 %v10081
      %11137 = vmatprep.subr.bf16.mxu0 %v10078
      %11138 = vmatpush1.bf16.msra.mxu0 %v10077
      %11139 = vmatprep.subr.bf16.mxu0 %v10074
      %11140 = vmatpush1.bf16.msra.mxu0 %v10073
      %11141 = vmatprep.subr.bf16.mxu0 %v10070
      %11142 = vmatpush1.bf16.msra.mxu0 %v10069
      %11143 = vmatprep.subr.bf16.mxu0 %v10130
      %11144 = vmatpush2.bf16.msra.mxu0 %v10129
      %11145 = vmatprep.subr.bf16.mxu0 %v10126
      %11146 = vmatpush2.bf16.msra.mxu0 %v10125
      %11147 = vmatprep.subr.bf16.mxu0 %v10122
      %11148 = vmatpush2.bf16.msra.mxu0 %v10121
      %11149 = vmatprep.subr.bf16.mxu0 %v10118
      %11150 = vmatpush2.bf16.msra.mxu0 %v10117
      %11151 = vmatprep.subr.bf16.mxu0 %v10114
      %11152 = vmatpush2.bf16.msra.mxu0 %v10113
      %11153 = vmatprep.subr.bf16.mxu0 %v10110
      %11154 = vmatpush2.bf16.msra.mxu0 %v10109
      %11155 = vmatprep.subr.bf16.mxu0 %v10106
      %11156 = vmatpush2.bf16.msra.mxu0 %v10105
      %11157 = vmatprep.subr.bf16.mxu0 %v10102
      %11158 = vmatpush2.bf16.msra.mxu0 %v10101
      %11159 = vmatprep.mubr.bf16.mxu0 %v7437
      %11160 = vmatmul.mubr.bf16.gmra.mxu0 %v7436
      %v11161 = vpop.f32.mrf.mxu0
      %v11162 = vadd.f32 %v11121, %v11161
      %v11163 = vpop.f32.mrf.mxu0
      %v11164 = vadd.f32 %v11123, %v11163
      %v11165 = vpop.f32.mrf.mxu0
      %v11166 = vpop.f32.mrf.mxu0
      %11167 = vdwg.mxu0
      %11168 = vmatprep.subr.bf16.mxu0 %v10162
      %11169 = vmatpush1.bf16.msra.mxu0 %v10161
      %11170 = vmatprep.subr.bf16.mxu0 %v10158
      %11171 = vmatpush1.bf16.msra.mxu0 %v10157
      %11172 = vmatprep.subr.bf16.mxu0 %v10154
      %11173 = vmatpush1.bf16.msra.mxu0 %v10153
      %11174 = vmatprep.subr.bf16.mxu0 %v10150
      %11175 = vmatpush1.bf16.msra.mxu0 %v10149
      %11176 = vmatprep.subr.bf16.mxu0 %v10146
      %11177 = vmatpush1.bf16.msra.mxu0 %v10145
      %11178 = vmatprep.subr.bf16.mxu0 %v10142
      %11179 = vmatpush1.bf16.msra.mxu0 %v10141
      %11180 = vmatprep.subr.bf16.mxu0 %v10138
      %11181 = vmatpush1.bf16.msra.mxu0 %v10137
      %11182 = vmatprep.subr.bf16.mxu0 %v10134
      %11183 = vmatpush1.bf16.msra.mxu0 %v10133
      %11184 = vmatprep.subr.bf16.mxu0 %v10194
      %11185 = vmatpush2.bf16.msra.mxu0 %v10193
      %11186 = vmatprep.subr.bf16.mxu0 %v10190
      %11187 = vmatpush2.bf16.msra.mxu0 %v10189
      %11188 = vmatprep.subr.bf16.mxu0 %v10186
      %11189 = vmatpush2.bf16.msra.mxu0 %v10185
      %11190 = vmatprep.subr.bf16.mxu0 %v10182
      %11191 = vmatpush2.bf16.msra.mxu0 %v10181
      %11192 = vmatprep.subr.bf16.mxu0 %v10178
      %11193 = vmatpush2.bf16.msra.mxu0 %v10177
      %11194 = vmatprep.subr.bf16.mxu0 %v10174
      %11195 = vmatpush2.bf16.msra.mxu0 %v10173
      %11196 = vmatprep.subr.bf16.mxu0 %v10170
      %11197 = vmatpush2.bf16.msra.mxu0 %v10169
      %11198 = vmatprep.subr.bf16.mxu0 %v10166
      %11199 = vmatpush2.bf16.msra.mxu0 %v10165
      %11200 = vmatprep.mubr.bf16.mxu0 %v7439
      %11201 = vmatmul.mubr.bf16.gmra.mxu0 %v7438
      %v11202 = vpop.f32.mrf.mxu0
      %v11203 = vadd.f32 %v11162, %v11202
      %v11204 = vpop.f32.mrf.mxu0
      %v11205 = vadd.f32 %v11164, %v11204
      %v11206 = vpop.f32.mrf.mxu0
      %v11207 = vpop.f32.mrf.mxu0
      %11208 = vdwg.mxu0
      %11209 = vmatprep.subr.bf16.mxu0 %v10226
      %11210 = vmatpush1.bf16.msra.mxu0 %v10225
      %11211 = vmatprep.subr.bf16.mxu0 %v10222
      %11212 = vmatpush1.bf16.msra.mxu0 %v10221
      %11213 = vmatprep.subr.bf16.mxu0 %v10218
      %11214 = vmatpush1.bf16.msra.mxu0 %v10217
      %11215 = vmatprep.subr.bf16.mxu0 %v10214
      %11216 = vmatpush1.bf16.msra.mxu0 %v10213
      %11217 = vmatprep.subr.bf16.mxu0 %v10210
      %11218 = vmatpush1.bf16.msra.mxu0 %v10209
      %11219 = vmatprep.subr.bf16.mxu0 %v10206
      %11220 = vmatpush1.bf16.msra.mxu0 %v10205
      %11221 = vmatprep.subr.bf16.mxu0 %v10202
      %11222 = vmatpush1.bf16.msra.mxu0 %v10201
      %11223 = vmatprep.subr.bf16.mxu0 %v10198
      %11224 = vmatpush1.bf16.msra.mxu0 %v10197
      %11225 = vmatprep.subr.bf16.mxu0 %v10258
      %11226 = vmatpush2.bf16.msra.mxu0 %v10257
      %11227 = vmatprep.subr.bf16.mxu0 %v10254
      %11228 = vmatpush2.bf16.msra.mxu0 %v10253
      %11229 = vmatprep.subr.bf16.mxu0 %v10250
      %11230 = vmatpush2.bf16.msra.mxu0 %v10249
      %11231 = vmatprep.subr.bf16.mxu0 %v10246
      %11232 = vmatpush2.bf16.msra.mxu0 %v10245
      %11233 = vmatprep.subr.bf16.mxu0 %v10242
      %11234 = vmatpush2.bf16.msra.mxu0 %v10241
      %11235 = vmatprep.subr.bf16.mxu0 %v10238
      %11236 = vmatpush2.bf16.msra.mxu0 %v10237
      %11237 = vmatprep.subr.bf16.mxu0 %v10234
      %11238 = vmatpush2.bf16.msra.mxu0 %v10233
      %11239 = vmatprep.subr.bf16.mxu0 %v10230
      %11240 = vmatpush2.bf16.msra.mxu0 %v10229
      %11241 = vmatprep.mubr.bf16.mxu0 %v7441
      %11242 = vmatmul.mubr.bf16.gmra.mxu0 %v7440
      %v11243 = vpop.f32.mrf.mxu0
      %v11244 = vadd.f32 %v11203, %v11243
      %v11245 = vpop.f32.mrf.mxu0
      %v11246 = vadd.f32 %v11205, %v11245
      %v11247 = vpop.f32.mrf.mxu0
      %v11248 = vpop.f32.mrf.mxu0
      %11249 = vdwg.mxu0
      %11250 = vmatprep.subr.bf16.mxu0 %v10290
      %11251 = vmatpush1.bf16.msra.mxu0 %v10289
      %11252 = vmatprep.subr.bf16.mxu0 %v10286
      %11253 = vmatpush1.bf16.msra.mxu0 %v10285
      %11254 = vmatprep.subr.bf16.mxu0 %v10282
      %11255 = vmatpush1.bf16.msra.mxu0 %v10281
      %11256 = vmatprep.subr.bf16.mxu0 %v10278
      %11257 = vmatpush1.bf16.msra.mxu0 %v10277
      %11258 = vmatprep.subr.bf16.mxu0 %v10274
      %11259 = vmatpush1.bf16.msra.mxu0 %v10273
      %11260 = vmatprep.subr.bf16.mxu0 %v10270
      %11261 = vmatpush1.bf16.msra.mxu0 %v10269
      %11262 = vmatprep.subr.bf16.mxu0 %v10266
      %11263 = vmatpush1.bf16.msra.mxu0 %v10265
      %11264 = vmatprep.subr.bf16.mxu0 %v10262
      %11265 = vmatpush1.bf16.msra.mxu0 %v10261
      %11266 = vmatprep.subr.bf16.mxu0 %v10322
      %11267 = vmatpush2.bf16.msra.mxu0 %v10321
      %11268 = vmatprep.subr.bf16.mxu0 %v10318
      %11269 = vmatpush2.bf16.msra.mxu0 %v10317
      %11270 = vmatprep.subr.bf16.mxu0 %v10314
      %11271 = vmatpush2.bf16.msra.mxu0 %v10313
      %11272 = vmatprep.subr.bf16.mxu0 %v10310
      %11273 = vmatpush2.bf16.msra.mxu0 %v10309
      %11274 = vmatprep.subr.bf16.mxu0 %v10306
      %11275 = vmatpush2.bf16.msra.mxu0 %v10305
      %11276 = vmatprep.subr.bf16.mxu0 %v10302
      %11277 = vmatpush2.bf16.msra.mxu0 %v10301
      %11278 = vmatprep.subr.bf16.mxu0 %v10298
      %11279 = vmatpush2.bf16.msra.mxu0 %v10297
      %11280 = vmatprep.subr.bf16.mxu0 %v10294
      %11281 = vmatpush2.bf16.msra.mxu0 %v10293
      %11282 = vmatprep.mubr.bf16.mxu0 %v7443
      %11283 = vmatmul.mubr.bf16.gmra.mxu0 %v7442
      %v11284 = vpop.f32.mrf.mxu0
      %v11285 = vadd.f32 %v11244, %v11284
      %v11286 = vpop.f32.mrf.mxu0
      %v11287 = vadd.f32 %v11246, %v11286
      %v11288 = vpop.f32.mrf.mxu0
      %v11289 = vpop.f32.mrf.mxu0
      %11290 = vdwg.mxu0
      %11291 = vmatprep.subr.bf16.mxu0 %v9780
      %11292 = vmatpush1.bf16.msra.mxu0 %v9779
      %11293 = vmatprep.subr.bf16.mxu0 %v9776
      %11294 = vmatpush1.bf16.msra.mxu0 %v9775
      %11295 = vmatprep.subr.bf16.mxu0 %v9772
      %11296 = vmatpush1.bf16.msra.mxu0 %v9771
      %11297 = vmatprep.subr.bf16.mxu0 %v9768
      %11298 = vmatpush1.bf16.msra.mxu0 %v9767
      %11299 = vmatprep.subr.bf16.mxu0 %v9764
      %11300 = vmatpush1.bf16.msra.mxu0 %v9763
      %11301 = vmatprep.subr.bf16.mxu0 %v9760
      %11302 = vmatpush1.bf16.msra.mxu0 %v9759
      %11303 = vmatprep.subr.bf16.mxu0 %v9756
      %11304 = vmatpush1.bf16.msra.mxu0 %v9755
      %11305 = vmatprep.subr.bf16.mxu0 %v9752
      %11306 = vmatpush1.bf16.msra.mxu0 %v9751
      %11307 = vmatprep.subr.bf16.mxu0 %v9812
      %11308 = vmatpush2.bf16.msra.mxu0 %v9811
      %11309 = vmatprep.subr.bf16.mxu0 %v9808
      %11310 = vmatpush2.bf16.msra.mxu0 %v9807
      %11311 = vmatprep.subr.bf16.mxu0 %v9804
      %11312 = vmatpush2.bf16.msra.mxu0 %v9803
      %11313 = vmatprep.subr.bf16.mxu0 %v9800
      %11314 = vmatpush2.bf16.msra.mxu0 %v9799
      %11315 = vmatprep.subr.bf16.mxu0 %v9796
      %11316 = vmatpush2.bf16.msra.mxu0 %v9795
      %11317 = vmatprep.subr.bf16.mxu0 %v9792
      %11318 = vmatpush2.bf16.msra.mxu0 %v9791
      %11319 = vmatprep.subr.bf16.mxu0 %v9788
      %11320 = vmatpush2.bf16.msra.mxu0 %v9787
      %11321 = vmatprep.subr.bf16.mxu0 %v9784
      %11322 = vmatpush2.bf16.msra.mxu0 %v9783
      %11323 = vmatprep.mubr.bf16.mxu0 %v7427
      %11324 = vmatmul.mubr.bf16.gmra.mxu0 %v7426
      %v11325 = vpop.f32.mrf.mxu0
      %v11326 = vadd.f32 %v10913, %v11325
      %v11327 = vpop.f32.mrf.mxu0
      %v11328 = vadd.f32 %v10917, %v11327
      %v11329 = vpop.f32.mrf.mxu0
      %v11330 = vpop.f32.mrf.mxu0
      %11331 = vdwg.mxu0
      %11332 = vmatprep.subr.bf16.mxu0 %v9844
      %11333 = vmatpush1.bf16.msra.mxu0 %v9843
      %11334 = vmatprep.subr.bf16.mxu0 %v9840
      %11335 = vmatpush1.bf16.msra.mxu0 %v9839
      %11336 = vmatprep.subr.bf16.mxu0 %v9836
      %11337 = vmatpush1.bf16.msra.mxu0 %v9835
      %11338 = vmatprep.subr.bf16.mxu0 %v9832
      %11339 = vmatpush1.bf16.msra.mxu0 %v9831
      %11340 = vmatprep.subr.bf16.mxu0 %v9828
      %11341 = vmatpush1.bf16.msra.mxu0 %v9827
      %11342 = vmatprep.subr.bf16.mxu0 %v9824
      %11343 = vmatpush1.bf16.msra.mxu0 %v9823
      %11344 = vmatprep.subr.bf16.mxu0 %v9820
      %11345 = vmatpush1.bf16.msra.mxu0 %v9819
      %11346 = vmatprep.subr.bf16.mxu0 %v9816
      %11347 = vmatpush1.bf16.msra.mxu0 %v9815
      %11348 = vmatprep.subr.bf16.mxu0 %v9876
      %11349 = vmatpush2.bf16.msra.mxu0 %v9875
      %11350 = vmatprep.subr.bf16.mxu0 %v9872
      %11351 = vmatpush2.bf16.msra.mxu0 %v9871
      %11352 = vmatprep.subr.bf16.mxu0 %v9868
      %11353 = vmatpush2.bf16.msra.mxu0 %v9867
      %11354 = vmatprep.subr.bf16.mxu0 %v9864
      %11355 = vmatpush2.bf16.msra.mxu0 %v9863
      %11356 = vmatprep.subr.bf16.mxu0 %v9860
      %11357 = vmatpush2.bf16.msra.mxu0 %v9859
      %11358 = vmatprep.subr.bf16.mxu0 %v9856
      %11359 = vmatpush2.bf16.msra.mxu0 %v9855
      %11360 = vmatprep.subr.bf16.mxu0 %v9852
      %11361 = vmatpush2.bf16.msra.mxu0 %v9851
      %11362 = vmatprep.subr.bf16.mxu0 %v9848
      %11363 = vmatpush2.bf16.msra.mxu0 %v9847
      %11364 = vmatprep.mubr.bf16.mxu0 %v7429
      %11365 = vmatmul.mubr.bf16.gmra.mxu0 %v7428
      %v11366 = vpop.f32.mrf.mxu0
      %v11367 = vadd.f32 %v11326, %v11366
      %v11368 = vpop.f32.mrf.mxu0
      %v11369 = vadd.f32 %v11328, %v11368
      %v11370 = vpop.f32.mrf.mxu0
      %v11371 = vpop.f32.mrf.mxu0
      %11372 = vdwg.mxu0
      %11373 = vmatprep.subr.bf16.mxu0 %v9908
      %11374 = vmatpush1.bf16.msra.mxu0 %v9907
      %11375 = vmatprep.subr.bf16.mxu0 %v9904
      %11376 = vmatpush1.bf16.msra.mxu0 %v9903
      %11377 = vmatprep.subr.bf16.mxu0 %v9900
      %11378 = vmatpush1.bf16.msra.mxu0 %v9899
      %11379 = vmatprep.subr.bf16.mxu0 %v9896
      %11380 = vmatpush1.bf16.msra.mxu0 %v9895
      %11381 = vmatprep.subr.bf16.mxu0 %v9892
      %11382 = vmatpush1.bf16.msra.mxu0 %v9891
      %11383 = vmatprep.subr.bf16.mxu0 %v9888
      %11384 = vmatpush1.bf16.msra.mxu0 %v9887
      %11385 = vmatprep.subr.bf16.mxu0 %v9884
      %11386 = vmatpush1.bf16.msra.mxu0 %v9883
      %11387 = vmatprep.subr.bf16.mxu0 %v9880
      %11388 = vmatpush1.bf16.msra.mxu0 %v9879
      %11389 = vmatprep.subr.bf16.mxu0 %v9940
      %11390 = vmatpush2.bf16.msra.mxu0 %v9939
      %11391 = vmatprep.subr.bf16.mxu0 %v9936
      %11392 = vmatpush2.bf16.msra.mxu0 %v9935
      %11393 = vmatprep.subr.bf16.mxu0 %v9932
      %11394 = vmatpush2.bf16.msra.mxu0 %v9931
      %11395 = vmatprep.subr.bf16.mxu0 %v9928
      %11396 = vmatpush2.bf16.msra.mxu0 %v9927
      %11397 = vmatprep.subr.bf16.mxu0 %v9924
      %11398 = vmatpush2.bf16.msra.mxu0 %v9923
      %11399 = vmatprep.subr.bf16.mxu0 %v9920
      %11400 = vmatpush2.bf16.msra.mxu0 %v9919
      %11401 = vmatprep.subr.bf16.mxu0 %v9916
      %11402 = vmatpush2.bf16.msra.mxu0 %v9915
      %11403 = vmatprep.subr.bf16.mxu0 %v9912
      %11404 = vmatpush2.bf16.msra.mxu0 %v9911
      %11405 = vmatprep.mubr.bf16.mxu0 %v7431
      %11406 = vmatmul.mubr.bf16.gmra.mxu0 %v7430
      %v11407 = vpop.f32.mrf.mxu0
      %v11408 = vadd.f32 %v11367, %v11407
      %v11409 = vpop.f32.mrf.mxu0
      %v11410 = vadd.f32 %v11369, %v11409
      %v11411 = vpop.f32.mrf.mxu0
      %v11412 = vpop.f32.mrf.mxu0
      %11413 = vdwg.mxu0
      %11414 = vmatprep.subr.bf16.mxu0 %v9972
      %11415 = vmatpush1.bf16.msra.mxu0 %v9971
      %11416 = vmatprep.subr.bf16.mxu0 %v9968
      %11417 = vmatpush1.bf16.msra.mxu0 %v9967
      %11418 = vmatprep.subr.bf16.mxu0 %v9964
      %11419 = vmatpush1.bf16.msra.mxu0 %v9963
      %11420 = vmatprep.subr.bf16.mxu0 %v9960
      %11421 = vmatpush1.bf16.msra.mxu0 %v9959
      %11422 = vmatprep.subr.bf16.mxu0 %v9956
      %11423 = vmatpush1.bf16.msra.mxu0 %v9955
      %11424 = vmatprep.subr.bf16.mxu0 %v9952
      %11425 = vmatpush1.bf16.msra.mxu0 %v9951
      %11426 = vmatprep.subr.bf16.mxu0 %v9948
      %11427 = vmatpush1.bf16.msra.mxu0 %v9947
      %11428 = vmatprep.subr.bf16.mxu0 %v9944
      %11429 = vmatpush1.bf16.msra.mxu0 %v9943
      %11430 = vmatprep.subr.bf16.mxu0 %v10004
      %11431 = vmatpush2.bf16.msra.mxu0 %v10003
      %11432 = vmatprep.subr.bf16.mxu0 %v10000
      %11433 = vmatpush2.bf16.msra.mxu0 %v9999
      %11434 = vmatprep.subr.bf16.mxu0 %v9996
      %11435 = vmatpush2.bf16.msra.mxu0 %v9995
      %11436 = vmatprep.subr.bf16.mxu0 %v9992
      %11437 = vmatpush2.bf16.msra.mxu0 %v9991
      %11438 = vmatprep.subr.bf16.mxu0 %v9988
      %11439 = vmatpush2.bf16.msra.mxu0 %v9987
      %11440 = vmatprep.subr.bf16.mxu0 %v9984
      %11441 = vmatpush2.bf16.msra.mxu0 %v9983
      %11442 = vmatprep.subr.bf16.mxu0 %v9980
      %11443 = vmatpush2.bf16.msra.mxu0 %v9979
      %11444 = vmatprep.subr.bf16.mxu0 %v9976
      %11445 = vmatpush2.bf16.msra.mxu0 %v9975
      %11446 = vmatprep.mubr.bf16.mxu0 %v7433
      %11447 = vmatmul.mubr.bf16.gmra.mxu0 %v7432
      %v11448 = vpop.f32.mrf.mxu0
      %v11449 = vadd.f32 %v11408, %v11448
      %v11450 = vpop.f32.mrf.mxu0
      %v11451 = vadd.f32 %v11410, %v11450
      %v11452 = vpop.f32.mrf.mxu0
      %v11453 = vpop.f32.mrf.mxu0
      %11454 = vdwg.mxu0
      %11455 = vmatprep.subr.bf16.mxu0 %v10036
      %11456 = vmatpush1.bf16.msra.mxu0 %v10035
      %11457 = vmatprep.subr.bf16.mxu0 %v10032
      %11458 = vmatpush1.bf16.msra.mxu0 %v10031
      %11459 = vmatprep.subr.bf16.mxu0 %v10028
      %11460 = vmatpush1.bf16.msra.mxu0 %v10027
      %11461 = vmatprep.subr.bf16.mxu0 %v10024
      %11462 = vmatpush1.bf16.msra.mxu0 %v10023
      %11463 = vmatprep.subr.bf16.mxu0 %v10020
      %11464 = vmatpush1.bf16.msra.mxu0 %v10019
      %11465 = vmatprep.subr.bf16.mxu0 %v10016
      %11466 = vmatpush1.bf16.msra.mxu0 %v10015
      %11467 = vmatprep.subr.bf16.mxu0 %v10012
      %11468 = vmatpush1.bf16.msra.mxu0 %v10011
      %11469 = vmatprep.subr.bf16.mxu0 %v10008
      %11470 = vmatpush1.bf16.msra.mxu0 %v10007
      %11471 = vmatprep.subr.bf16.mxu0 %v10068
      %11472 = vmatpush2.bf16.msra.mxu0 %v10067
      %11473 = vmatprep.subr.bf16.mxu0 %v10064
      %11474 = vmatpush2.bf16.msra.mxu0 %v10063
      %11475 = vmatprep.subr.bf16.mxu0 %v10060
      %11476 = vmatpush2.bf16.msra.mxu0 %v10059
      %11477 = vmatprep.subr.bf16.mxu0 %v10056
      %11478 = vmatpush2.bf16.msra.mxu0 %v10055
      %11479 = vmatprep.subr.bf16.mxu0 %v10052
      %11480 = vmatpush2.bf16.msra.mxu0 %v10051
      %11481 = vmatprep.subr.bf16.mxu0 %v10048
      %11482 = vmatpush2.bf16.msra.mxu0 %v10047
      %11483 = vmatprep.subr.bf16.mxu0 %v10044
      %11484 = vmatpush2.bf16.msra.mxu0 %v10043
      %11485 = vmatprep.subr.bf16.mxu0 %v10040
      %11486 = vmatpush2.bf16.msra.mxu0 %v10039
      %11487 = vmatprep.mubr.bf16.mxu0 %v7435
      %11488 = vmatmul.mubr.bf16.gmra.mxu0 %v7434
      %v11489 = vpop.f32.mrf.mxu0
      %v11490 = vadd.f32 %v11449, %v11489
      %v11491 = vpop.f32.mrf.mxu0
      %v11492 = vadd.f32 %v11451, %v11491
      %v11493 = vpop.f32.mrf.mxu0
      %v11494 = vpop.f32.mrf.mxu0
      %11495 = vdwg.mxu0
      %11496 = vmatprep.subr.bf16.mxu0 %v10100
      %11497 = vmatpush1.bf16.msra.mxu0 %v10099
      %11498 = vmatprep.subr.bf16.mxu0 %v10096
      %11499 = vmatpush1.bf16.msra.mxu0 %v10095
      %11500 = vmatprep.subr.bf16.mxu0 %v10092
      %11501 = vmatpush1.bf16.msra.mxu0 %v10091
      %11502 = vmatprep.subr.bf16.mxu0 %v10088
      %11503 = vmatpush1.bf16.msra.mxu0 %v10087
      %11504 = vmatprep.subr.bf16.mxu0 %v10084
      %11505 = vmatpush1.bf16.msra.mxu0 %v10083
      %11506 = vmatprep.subr.bf16.mxu0 %v10080
      %11507 = vmatpush1.bf16.msra.mxu0 %v10079
      %11508 = vmatprep.subr.bf16.mxu0 %v10076
      %11509 = vmatpush1.bf16.msra.mxu0 %v10075
      %11510 = vmatprep.subr.bf16.mxu0 %v10072
      %11511 = vmatpush1.bf16.msra.mxu0 %v10071
      %11512 = vmatprep.subr.bf16.mxu0 %v10132
      %11513 = vmatpush2.bf16.msra.mxu0 %v10131
      %11514 = vmatprep.subr.bf16.mxu0 %v10128
      %11515 = vmatpush2.bf16.msra.mxu0 %v10127
      %11516 = vmatprep.subr.bf16.mxu0 %v10124
      %11517 = vmatpush2.bf16.msra.mxu0 %v10123
      %11518 = vmatprep.subr.bf16.mxu0 %v10120
      %11519 = vmatpush2.bf16.msra.mxu0 %v10119
      %11520 = vmatprep.subr.bf16.mxu0 %v10116
      %11521 = vmatpush2.bf16.msra.mxu0 %v10115
      %11522 = vmatprep.subr.bf16.mxu0 %v10112
      %11523 = vmatpush2.bf16.msra.mxu0 %v10111
      %11524 = vmatprep.subr.bf16.mxu0 %v10108
      %11525 = vmatpush2.bf16.msra.mxu0 %v10107
      %11526 = vmatprep.subr.bf16.mxu0 %v10104
      %11527 = vmatpush2.bf16.msra.mxu0 %v10103
      %11528 = vmatprep.mubr.bf16.mxu0 %v7437
      %11529 = vmatmul.mubr.bf16.gmra.mxu0 %v7436
      %v11530 = vpop.f32.mrf.mxu0
      %v11531 = vadd.f32 %v11490, %v11530
      %v11532 = vpop.f32.mrf.mxu0
      %v11533 = vadd.f32 %v11492, %v11532
      %v11534 = vpop.f32.mrf.mxu0
      %v11535 = vpop.f32.mrf.mxu0
      %11536 = vdwg.mxu0
      %11537 = vmatprep.subr.bf16.mxu0 %v10164
      %11538 = vmatpush1.bf16.msra.mxu0 %v10163
      %11539 = vmatprep.subr.bf16.mxu0 %v10160
      %11540 = vmatpush1.bf16.msra.mxu0 %v10159
      %11541 = vmatprep.subr.bf16.mxu0 %v10156
      %11542 = vmatpush1.bf16.msra.mxu0 %v10155
      %11543 = vmatprep.subr.bf16.mxu0 %v10152
      %11544 = vmatpush1.bf16.msra.mxu0 %v10151
      %11545 = vmatprep.subr.bf16.mxu0 %v10148
      %11546 = vmatpush1.bf16.msra.mxu0 %v10147
      %11547 = vmatprep.subr.bf16.mxu0 %v10144
      %11548 = vmatpush1.bf16.msra.mxu0 %v10143
      %11549 = vmatprep.subr.bf16.mxu0 %v10140
      %11550 = vmatpush1.bf16.msra.mxu0 %v10139
      %11551 = vmatprep.subr.bf16.mxu0 %v10136
      %11552 = vmatpush1.bf16.msra.mxu0 %v10135
      %11553 = vmatprep.subr.bf16.mxu0 %v10196
      %11554 = vmatpush2.bf16.msra.mxu0 %v10195
      %11555 = vmatprep.subr.bf16.mxu0 %v10192
      %11556 = vmatpush2.bf16.msra.mxu0 %v10191
      %11557 = vmatprep.subr.bf16.mxu0 %v10188
      %11558 = vmatpush2.bf16.msra.mxu0 %v10187
      %11559 = vmatprep.subr.bf16.mxu0 %v10184
      %11560 = vmatpush2.bf16.msra.mxu0 %v10183
      %11561 = vmatprep.subr.bf16.mxu0 %v10180
      %11562 = vmatpush2.bf16.msra.mxu0 %v10179
      %11563 = vmatprep.subr.bf16.mxu0 %v10176
      %11564 = vmatpush2.bf16.msra.mxu0 %v10175
      %11565 = vmatprep.subr.bf16.mxu0 %v10172
      %11566 = vmatpush2.bf16.msra.mxu0 %v10171
      %11567 = vmatprep.subr.bf16.mxu0 %v10168
      %11568 = vmatpush2.bf16.msra.mxu0 %v10167
      %11569 = vmatprep.mubr.bf16.mxu0 %v7439
      %11570 = vmatmul.mubr.bf16.gmra.mxu0 %v7438
      %v11571 = vpop.f32.mrf.mxu0
      %v11572 = vadd.f32 %v11531, %v11571
      %v11573 = vpop.f32.mrf.mxu0
      %v11574 = vadd.f32 %v11533, %v11573
      %v11575 = vpop.f32.mrf.mxu0
      %v11576 = vpop.f32.mrf.mxu0
      %11577 = vdwg.mxu0
      %11578 = vmatprep.subr.bf16.mxu0 %v10228
      %11579 = vmatpush1.bf16.msra.mxu0 %v10227
      %11580 = vmatprep.subr.bf16.mxu0 %v10224
      %11581 = vmatpush1.bf16.msra.mxu0 %v10223
      %11582 = vmatprep.subr.bf16.mxu0 %v10220
      %11583 = vmatpush1.bf16.msra.mxu0 %v10219
      %11584 = vmatprep.subr.bf16.mxu0 %v10216
      %11585 = vmatpush1.bf16.msra.mxu0 %v10215
      %11586 = vmatprep.subr.bf16.mxu0 %v10212
      %11587 = vmatpush1.bf16.msra.mxu0 %v10211
      %11588 = vmatprep.subr.bf16.mxu0 %v10208
      %11589 = vmatpush1.bf16.msra.mxu0 %v10207
      %11590 = vmatprep.subr.bf16.mxu0 %v10204
      %11591 = vmatpush1.bf16.msra.mxu0 %v10203
      %11592 = vmatprep.subr.bf16.mxu0 %v10200
      %11593 = vmatpush1.bf16.msra.mxu0 %v10199
      %11594 = vmatprep.subr.bf16.mxu0 %v10260
      %11595 = vmatpush2.bf16.msra.mxu0 %v10259
      %11596 = vmatprep.subr.bf16.mxu0 %v10256
      %11597 = vmatpush2.bf16.msra.mxu0 %v10255
      %11598 = vmatprep.subr.bf16.mxu0 %v10252
      %11599 = vmatpush2.bf16.msra.mxu0 %v10251
      %11600 = vmatprep.subr.bf16.mxu0 %v10248
      %11601 = vmatpush2.bf16.msra.mxu0 %v10247
      %11602 = vmatprep.subr.bf16.mxu0 %v10244
      %11603 = vmatpush2.bf16.msra.mxu0 %v10243
      %11604 = vmatprep.subr.bf16.mxu0 %v10240
      %11605 = vmatpush2.bf16.msra.mxu0 %v10239
      %11606 = vmatprep.subr.bf16.mxu0 %v10236
      %11607 = vmatpush2.bf16.msra.mxu0 %v10235
      %11608 = vmatprep.subr.bf16.mxu0 %v10232
      %11609 = vmatpush2.bf16.msra.mxu0 %v10231
      %11610 = vmatprep.mubr.bf16.mxu0 %v7441
      %11611 = vmatmul.mubr.bf16.gmra.mxu0 %v7440
      %v11612 = vpop.f32.mrf.mxu0
      %v11613 = vadd.f32 %v11572, %v11612
      %v11614 = vpop.f32.mrf.mxu0
      %v11615 = vadd.f32 %v11574, %v11614
      %v11616 = vpop.f32.mrf.mxu0
      %v11617 = vpop.f32.mrf.mxu0
      %11618 = vdwg.mxu0
      %11619 = vmatprep.subr.bf16.mxu0 %v10292
      %11620 = vmatpush1.bf16.msra.mxu0 %v10291
      %11621 = vmatprep.subr.bf16.mxu0 %v10288
      %11622 = vmatpush1.bf16.msra.mxu0 %v10287
      %11623 = vmatprep.subr.bf16.mxu0 %v10284
      %11624 = vmatpush1.bf16.msra.mxu0 %v10283
      %11625 = vmatprep.subr.bf16.mxu0 %v10280
      %11626 = vmatpush1.bf16.msra.mxu0 %v10279
      %11627 = vmatprep.subr.bf16.mxu0 %v10276
      %11628 = vmatpush1.bf16.msra.mxu0 %v10275
      %11629 = vmatprep.subr.bf16.mxu0 %v10272
      %11630 = vmatpush1.bf16.msra.mxu0 %v10271
      %11631 = vmatprep.subr.bf16.mxu0 %v10268
      %11632 = vmatpush1.bf16.msra.mxu0 %v10267
      %11633 = vmatprep.subr.bf16.mxu0 %v10264
      %11634 = vmatpush1.bf16.msra.mxu0 %v10263
      %11635 = vmatprep.subr.bf16.mxu0 %v10324
      %11636 = vmatpush2.bf16.msra.mxu0 %v10323
      %11637 = vmatprep.subr.bf16.mxu0 %v10320
      %11638 = vmatpush2.bf16.msra.mxu0 %v10319
      %11639 = vmatprep.subr.bf16.mxu0 %v10316
      %11640 = vmatpush2.bf16.msra.mxu0 %v10315
      %11641 = vmatprep.subr.bf16.mxu0 %v10312
      %11642 = vmatpush2.bf16.msra.mxu0 %v10311
      %11643 = vmatprep.subr.bf16.mxu0 %v10308
      %11644 = vmatpush2.bf16.msra.mxu0 %v10307
      %11645 = vmatprep.subr.bf16.mxu0 %v10304
      %11646 = vmatpush2.bf16.msra.mxu0 %v10303
      %11647 = vmatprep.subr.bf16.mxu0 %v10300
      %11648 = vmatpush2.bf16.msra.mxu0 %v10299
      %11649 = vmatprep.subr.bf16.mxu0 %v10296
      %11650 = vmatpush2.bf16.msra.mxu0 %v10295
      %11651 = vmatprep.mubr.bf16.mxu0 %v7443
      %11652 = vmatmul.mubr.bf16.gmra.mxu0 %v7442
      %v11653 = vpop.f32.mrf.mxu0
      %v11654 = vadd.f32 %v11613, %v11653
      %v11655 = vpop.f32.mrf.mxu0
      %v11656 = vadd.f32 %v11615, %v11655
      %v11657 = vpop.f32.mrf.mxu0
      %v11658 = vpop.f32.mrf.mxu0
      %11659 = vdwg.mxu0
      %vm11660 = vcmp.gt.f32.partialorder %v11285, 0.0
      %vm11661 = vcmp.gt.f32.partialorder %v11287, 0.0
      %vm11662 = vcmp.gt.f32.partialorder %v11654, 0.0
      %vm11663 = vcmp.gt.f32.partialorder %v11656, 0.0
      %v11664 = vmul.f32 %v11285, 0.2
      %v11665 = vmul.f32 %v11287, 0.2
      %v11666 = vmul.f32 %v11654, 0.2
      %v11667 = vmul.f32 %v11656, 0.2
      %v11668 = vsel %vm11660, %v11285, %v11664
      %v11669 = vsel %vm11661, %v11287, %v11665
      %v11670 = vsel %vm11662, %v11654, %v11666
      %v11671 = vsel %vm11663, %v11656, %v11667
      %v11676 = vcombine.low %v11668, %v11669
      %v11677 = vcombine.low %v11670, %v11671
      %v11679 = vunpack.c.l.s4 1966171168
      %v11680 = vunpack.c.0.s8 %v11679
      %v11681 = vlaneseq
      %v11682 = vshrl.u32 %v11681, 7
      %v11683 = vsub.s32 %v11680, %v11682
      %v11684 = vrot.slane %v11676, %v11683
      %v11686 = vunpack.c.l.s4 1966171168
      %v11687 = vunpack.c.0.s8 %v11686
      %v11688 = vlaneseq
      %v11689 = vshrl.u32 %v11688, 7
      %v11690 = vsub.s32 %v11687, %v11689
      %v11691 = vrot.slane %v11677, %v11690
      %v11692 = vcombine.low %v11684, %v11691
      %v11694 = vunpack.c.l.s4 1966171168
      %v11695 = vunpack.c.0.s8 %v11694
      %v11696 = vlaneseq
      %v11697 = vshrl.u32 %v11696, 7
      %v11698 = vsub.s32 %v11695, %v11697
      %v11699 = vrot.slane %v11692, %v11698
      %vm11701 = vcmp.lt.s32.totalorder %v526, 512
      %vm11702 = vmand %vm527, %vm11701
      %11703 = vst.msk [vmem:[%s438] sm:$0xf] %vm11702, %v11699
      %p11704 = scmp.lt.s32.totalorder %s24, 1
      %s11705 = scalar_select %p11704, %s24, 1
      %s11706 = smul.addr %s11705, 4
      %s11707 = scalar_lea.vmem %s13, %s11706
      // Predicated region
      $region73: #{discriminator_output.1} parent=71 // pred_check
        %p11708 = pneg %p320
      $region74: #{discriminator_output.1} parent=71 // pred_check_branch
        %11710 = sbr.rel (%p11708) target = $region76
      $region75: #{discriminator_output.1} parent=71 // pred_region
        _
      $region76: #{discriminator_output.1} parent=71 // pred_fallthru
        _
    $region72: #{discriminator_output.1} parent=5 // pred_fallthru
      _
    %p11711 = scmp.le.s32.totalorder 2, %s19
    // Predicated region
    $region77: #{discriminator_output.1} parent=5 // pred_check
      %p11712 = pneg %p11711
    $region78: #{discriminator_output.1} parent=5 // pred_check_branch
      %11714 = sbr.rel (%p11712) target = $region80
    $region79: #{discriminator_output.1} parent=5 // pred_region
      %s11715 = ssub.s32 %s19, 2
      // Predicated region
      $region81: #{discriminator_output.1} parent=79 // pred_check
        %p11716 = pneg %p326
      $region82: #{discriminator_output.1} parent=79 // pred_check_branch
        %11718 = sbr.rel (%p11716) target = $region84
      $region83: #{discriminator_output.1} parent=79 // pred_region
        %p11719 = scmp.lt.s32.totalorder %s25, 1
        %s11720 = scalar_select %p11719, %s25, 1
        %s11721 = smul.addr %s11720, 4
        %s11722 = scalar_lea.vmem %s13, %s11721
      $region84: #{discriminator_output.1} parent=79 // pred_fallthru
        _
    $region80: #{discriminator_output.1} parent=5 // pred_fallthru
      _
  $region6: #{discriminator_output.1} parent=0 // loop_footer
    %s23 = sadd.s32 1, %s19
  $region7: #{discriminator_output.1} parent=0 // loop_footer_branch
    %18 = sbr.rel target = $region3
  $region8: #{discriminator_output.1} parent=0 // loop_exit
    _

</llo_original>
